<compile_context>
chip_gen: v6e
topology: v6e:2x2x1
jax: 0.10.0
libtpu: 0.0.40
codegen_flags: <defaults>
</compile_context>

<pallas_src>
import functools

import jax
import jax.numpy as jnp
from jax import lax
from jax.experimental import pallas as pl
from jax.experimental.pallas import tpu as pltpu


def _round_up(x, m):
    return (x + m - 1) // m * m


# ------------------------------------------------------------------ fused conv-head kernel

def _fused_head_kernel(x_ref, *refs, H, W, layer_dims):
    """All conv-head layers in one kernel; activations never leave VMEM.

    x_ref:   (H, W, Cp0)          bf16  fused map, input channels lane-padded to 128
    refs:    per layer l: w_ref (9*Cin_p, Cout_p) bf16  (BN scale folded in)
                          b_ref (1, Cout_p)       f32   (folded BN bias)
             then: out_ref (H*W, Cout_p_last) bf16      lane-dense output
                   act_ref (H+2, W+2, Cmax_p)  bf16     zero-padded activation scratch
                   acc_ref (H*W, Cmax_p)       f32      matmul accumulator scratch
    """
    L = len(layer_dims)
    w_refs = [refs[2 * l] for l in range(L)]
    b_refs = [refs[2 * l + 1] for l in range(L)]
    out_ref = refs[2 * L]
    act_ref = refs[2 * L + 1]
    acc_ref = refs[2 * L + 2]

    # Zero the padded activation slab once (its 1-pixel border is the conv zero-padding
    # for every layer, handled entirely in VMEM) and drop the input into the interior.
    act_ref[...] = jnp.zeros_like(act_ref)
    cin0 = layer_dims[0][0]
    act_ref[1:H + 1, 1:W + 1, :cin0] = x_ref[...]

    for li, (cin_p, cout_p) in enumerate(layer_dims):
        w_ref = w_refs[li]
        b_ref = b_refs[li]
        # 3x3 conv = 9 shifted MXU matmuls (K = cin_p, lane-aligned), f32 accumulation.
        # Per-tap ref slices stream from VMEM (no whole-tile value held live across the
        # tap loop, no im2col slab round trip).
        for k in range(9):
            dy, dx = divmod(k, 3)
            a = act_ref[dy:dy + H, dx:dx + W, :cin_p].reshape(H * W, cin_p)
            contrib = jnp.dot(a, w_ref[k * cin_p:(k + 1) * cin_p, :],
                              preferred_element_type=jnp.float32)
            if k == 0:
                acc_ref[:, :cout_p] = contrib
            else:
                acc_ref[:, :cout_p] += contrib
        # Folded eval-mode BN (scale already inside the weights) + ReLU, f32 epilogue.
        y = jnp.maximum(acc_ref[:, :cout_p] + b_ref[...], 0.0)
        if li == L - 1:
            out_ref[...] = y.astype(out_ref.dtype)            # lane-dense store
        else:
            act_ref[1:H + 1, 1:W + 1, :cout_p] = (
                y.astype(act_ref.dtype).reshape(H, W, cout_p))


def pallas_fused_conv_head(x_hwc, packed, layer_dims, vmem_limit_bytes):
    """x_hwc: (H, W, Cp0) bf16 -> (H*W, Cout_p_last) bf16 with the whole head fused."""
    H, W, cin0 = x_hwc.shape
    assert cin0 == layer_dims[0][0]
    cmax = max(max(ci, co) for ci, co in layer_dims)
    cout_last = layer_dims[-1][1]

    kern = functools.partial(_fused_head_kernel, H=H, W=W, layer_dims=tuple(layer_dims))

    in_specs = [pl.BlockSpec((H, W, cin0), lambda i: (0, 0, 0))]
    flat_inputs = [x_hwc]
    for (w9, b_p), (ci, co) in zip(packed, layer_dims):
        in_specs.append(pl.BlockSpec((9 * ci, co), lambda i: (0, 0)))   # resident weights
        in_specs.append(pl.BlockSpec((1, co), lambda i: (0, 0)))
        flat_inputs += [w9, b_p]

    return pl.pallas_call(
        kern,
        out_shape=jax.ShapeDtypeStruct((H * W, cout_last), jnp.bfloat16),
        grid=(1,),
        in_specs=in_specs,
        out_specs=pl.BlockSpec((H * W, cout_last), lambda i: (0, 0)),
        scratch_shapes=[pltpu.VMEM((H + 2, W + 2, cmax), jnp.bfloat16),
                        pltpu.VMEM((H * W, cmax), jnp.float32)],
        compiler_params=pltpu.CompilerParams(
            dimension_semantics=("arbitrary",),
            vmem_limit_bytes=int(vmem_limit_bytes)),
    )(*flat_inputs)


# ------------------------------------------------------------------ VMEM budgeting

def _tpu_vmem_capacity_bytes():
    try:
        info = pltpu.get_tpu_info()
        cap = int(getattr(info, "vmem_capacity_bytes", 0))
        if cap > 0:
            return cap
    except Exception:
        pass
    return 64 * 1024 * 1024            # v7x-conservative default (smallest per-TC VMEM)


def _fused_head_vmem_bytes(H, W, layer_dims):
    cmax = max(max(ci, co) for ci, co in layer_dims)
    cin0 = layer_dims[0][0]
    cout_last = layer_dims[-1][1]
    est = 2 * H * W * cin0 * 2                                         # input (x2 buf)
    est += sum(2 * (9 * ci * co * 2 + co * 4) for ci, co in layer_dims)  # weights + bias
    est += 2 * H * W * cout_last * 2                                   # output (x2 buf)
    est += (H + 2) * (W + 2) * cmax * 2                                # padded act scratch
    est += H * W * cmax * 4                                            # f32 accumulator
    return est


# ------------------------------------------------------------------ fusion glue (no gather)

def _shift_zero(img_hwc, dy_i, dx_i):
    """out[h, w] = img[h+dy, w+dx], zeros outside bounds (dynamic integer shift)."""
    H, W, _ = img_hwc.shape
    rows = jnp.arange(H, dtype=jnp.int32)[:, None, None]
    cols = jnp.arange(W, dtype=jnp.int32)[None, :, None]
    valid = ((rows + dy_i >= 0) & (rows + dy_i < H) &
             (cols + dx_i >= 0) & (cols + dx_i < W))
    shifted = jnp.roll(img_hwc, shift=(-dy_i, -dx_i), axis=(0, 1))
    return jnp.where(valid, shifted, jnp.zeros_like(img_hwc))


def _translate_bilinear(img_hwc, dy_px, dx_px):
    """Bilinear sample at (h+dy_px, w+dx_px) with zero padding == the pure-translation
    grid_sample of the reference, written as 4 weighted integer shifts (no gather)."""
    ky = jnp.floor(dy_px)
    kx = jnp.floor(dx_px)
    fy = dy_px - ky
    fx = dx_px - kx
    ky = ky.astype(jnp.int32)
    kx = kx.astype(jnp.int32)
    out = jnp.zeros_like(img_hwc)
    for a, wy in ((0, 1.0 - fy), (1, fy)):
        for b, wx in ((0, 1.0 - fx), (1, fx)):
            out = out + (wy * wx) * _shift_zero(img_hwc, ky + a, kx + b)
    return out


# ------------------------------------------------------------------ parameter packing

def pack_head_params(conv_params, in_channels):
    """Fold eval-mode BN into the conv weights (in f32, then cast to bf16) and zero-pad
    every channel dim to a lane-dense multiple of 128.

    conv_params: list of (wconv HWIO (3,3,Cin,Cout) f32, bn_scale (Cout,), bn_bias (Cout,))
    returns: packed [(w9 (9*Cin_p, Cout_p) bf16, bias (1, Cout_p) f32)], layer_dims
    """
    packed, dims = [], []
    cin_p = _round_up(in_channels, 128)
    for (wconv, scale, bias) in conv_params:
        _, _, cin_true, cout = wconv.shape
        cout_p = _round_up(cout, 128)
        w_scaled = wconv * scale[None, None, None, :]       # fold BN scale in f32 first
        w_full = jnp.zeros((3, 3, cin_p, cout_p), jnp.float32)
        w_full = w_full.at[:, :, :cin_true, :cout].set(w_scaled)
        w9 = w_full.reshape(9 * cin_p, cout_p).astype(jnp.bfloat16)
        b_p = jnp.zeros((1, cout_p), jnp.float32).at[0, :cout].set(bias)
        packed.append((w9, b_p))
        dims.append((cin_p, cout_p))
        cin_p = cout_p
    return packed, dims


# ------------------------------------------------------------------ FUDET forward

@functools.partial(jax.jit, static_argnames=("fusion_res", "layer_dims", "out_channels",
                                             "use_pallas", "vmem_limit_bytes"))
def _fudet_forward_core(cpm_features, translations, packed, *, fusion_res, layer_dims,
                        out_channels, use_pallas, vmem_limit_bytes):
    n_agents, c, h, w = cpm_features.shape
    cpm_hwc = jnp.transpose(cpm_features, (0, 2, 3, 1))            # channels-last
    ego = cpm_hwc[0]
    coop = cpm_hwc[1:]

    # --- fusion(): translation branch (no 'err_T_est') ---
    shifts = (translations[1:, :2] - translations[0:1, :2]) / fusion_res
    # _affine_transform2(coop, -angles=-0, -shifts):
    #   pass 1 (rotation by 0) is an exact identity -> skipped.
    #   pass 2 samples at (h + y*H/W, w + x*W/H), x=-shift_x, y=-shift_y (faithful to the
    #   reference normalization), implemented as 4 bilinear-weighted integer shifts.
    x_t = -shifts[:, 0]
    y_t = -shifts[:, 1]
    dx_px = x_t * (w / h)
    dy_px = y_t * (h / w)

    fused = ego
    for n in range(coop.shape[0]):
        fused = fused + _translate_bilinear(coop[n], dy_px[n], dx_px[n])
    # TODO(synk): for large agent counts / feature maps, fold the shift+sum fusion into
    # the conv-head kernel to avoid the extra HBM round trip of the fused map.

    # Lane-pad the first-layer input channels to 128 (zeros folded into the weight rows)
    # and cast to bf16 (intentional precision choice; accumulation stays f32 in-kernel).
    cin0_p = layer_dims[0][0]
    fused_p = jnp.pad(fused, ((0, 0), (0, 0), (0, cin0_p - c))).astype(jnp.bfloat16)

    if use_pallas:
        x = pallas_fused_conv_head(fused_p, packed, layer_dims, vmem_limit_bytes)
    else:
        # TODO(synk): row-tiled multi-layer Pallas path (L-row halos) for feature maps
        # whose fused-head working set exceeds the VMEM budget; XLA conv fallback for now.
        xx = fused_p[None].astype(jnp.float32)
        for (w9, b_p), (ci, co) in zip(packed, layer_dims):
            wconv = w9.astype(jnp.float32).reshape(3, 3, ci, co)
            xx = lax.conv_general_dilated(xx, wconv, (1, 1), "SAME",
                                          dimension_numbers=("NHWC", "HWIO", "NHWC"))
            xx = jnp.maximum(xx + b_p[0], 0.0)
        x = xx[0].reshape(h * w, layer_dims[-1][1])

    out = x[:, :out_channels].astype(jnp.float32).reshape(h, w, out_channels)
    return jnp.transpose(out, (2, 0, 1))[None]                     # NCHW: (1, Cout, H, W)


def fudet_forward(batch_dict, conv_params, fusion_res):
    cpm = batch_dict['cpm_features']                               # (N_agents, C, H, W)
    _, c, h, w = cpm.shape
    packed, layer_dims = pack_head_params(conv_params, c)
    out_channels = int(conv_params[-1][0].shape[-1])

    est = _fused_head_vmem_bytes(h, w, layer_dims)
    cap = _tpu_vmem_capacity_bytes()                               # generation-aware
    use_pallas = est <= int(0.6 * cap)
    vmem_limit = int(max(32 << 20, min(cap - (8 << 20), est + (8 << 20))))

    fused_features = _fudet_forward_core(
        cpm, batch_dict['translations'], tuple(packed),
        fusion_res=float(fusion_res), layer_dims=tuple(layer_dims),
        out_channels=out_channels, use_pallas=bool(use_pallas),
        vmem_limit_bytes=vmem_limit)
    batch_dict['fused_features'] = fused_features
    # TODO(synk): det_head (MultiGroupHead) is not defined in the reference source; omitted.
    batch_dict['preds_final'] = None
    return batch_dict


# ------------------------------------------------------------------ pure-JAX f32 reference
# (gather-based grid_sample + lax.conv) used only as a correctness cross-check.

def _affine_grid_sample_ref(x, theta):
    n, c, h, w = x.shape
    xs = (2.0 * jnp.arange(w, dtype=jnp.float32) + 1.0) / w - 1.0
    ys = (2.0 * jnp.arange(h, dtype=jnp.float32) + 1.0) / h - 1.0
    base_x, base_y = jnp.meshgrid(xs, ys)
    coords = jnp.stack([base_x, base_y, jnp.ones_like(base_x)], axis=-1)
    grid = jnp.einsum('hwk,nik->nhwi', coords, theta)
    x_src = ((grid[..., 0] + 1.0) * w - 1.0) / 2.0
    y_src = ((grid[..., 1] + 1.0) * h - 1.0) / 2.0
    x0 = jnp.floor(x_src); y0 = jnp.floor(y_src)
    x1 = x0 + 1.0; y1 = y0 + 1.0
    wx1 = x_src - x0; wx0 = 1.0 - wx1
    wy1 = y_src - y0; wy0 = 1.0 - wy1

    def corner(yi, xi, wgt):
        valid = ((yi >= 0) & (yi < h) & (xi >= 0) & (xi < w)).astype(x.dtype)
        yc = jnp.clip(yi, 0, h - 1).astype(jnp.int32)
        xc = jnp.clip(xi, 0, w - 1).astype(jnp.int32)
        vals = jax.vmap(lambda img, yy, xx: img[:, yy, xx])(x, yc, xc)
        return vals * (valid * wgt)[:, None, :, :]

    return (corner(y0, x0, wy0 * wx0) + corner(y0, x1, wy0 * wx1) +
            corner(y1, x0, wy1 * wx0) + corner(y1, x1, wy1 * wx1))


def _affine_transform2_ref(matrices, angles, shifts):
    ss = matrices.shape
    sina = jnp.sin(angles); cosa = jnp.cos(angles)
    x = shifts[:, 0:1]; y = shifts[:, 1:]
    ones = jnp.ones_like(sina); zeros = jnp.zeros_like(sina)
    theta = jnp.stack([jnp.concatenate([cosa, -sina, zeros], axis=1),
                       jnp.concatenate([sina, cosa, zeros], axis=1)], axis=1)
    res = _affine_grid_sample_ref(matrices, theta)
    theta = jnp.stack([jnp.concatenate([ones, zeros, x / ss[2] * 2], axis=1),
                       jnp.concatenate([zeros, ones, y / ss[3] * 2], axis=1)], axis=1)
    return _affine_grid_sample_ref(res, theta)


def _fudet_forward_ref(cpm, translations, conv_params, fusion_res):
    ego = cpm[0]; coop = cpm[1:]
    shifts = (translations[1:, :2] - translations[0:1, :2]) / fusion_res
    angles = jnp.zeros_like(shifts[:, 0:1])
    coop_t = _affine_transform2_ref(coop, -angles, -shifts)
    fused = ego + coop_t.sum(0)                                    # (C, H, W)
    x = jnp.transpose(fused, (1, 2, 0))[None]                      # NHWC
    for (wconv, scale, bias) in conv_params:
        x = lax.conv_general_dilated(x, wconv, (1, 1), "SAME",
                                     dimension_numbers=("NHWC", "HWIO", "NHWC"))
        x = jnp.maximum(x * scale + bias, 0.0)
    return jnp.transpose(x, (0, 3, 1, 2))                          # NCHW


# ------------------------------------------------------------------ main

if __name__ == "__main__":
    key = jax.random.PRNGKey(0)
    N_AGENTS, C, H, W = 3, 32, 16, 16            # 1 ego + 2 coop agents
    CONV_HEAD_CHANNELS = [32, 32]                # mcfg.FUDET['conv_head_channels']
    FUSION_RES = 0.5                             # mcfg.FUDET['fusion_resolution']
    BN_EPS = 0.001

    k_feat, k_trans, k_w = jax.random.split(key, 3)
    cpm_features = jax.random.normal(k_feat, (N_AGENTS, C, H, W), dtype=jnp.float32)
    translations = jax.random.uniform(k_trans, (N_AGENTS, 3), minval=-2.0, maxval=2.0,
                                      dtype=jnp.float32)

    # Conv2d(3x3, no bias) weights in HWIO + eval-mode BatchNorm folded to scale/bias.
    conv_params = []
    cur_in = C
    wkeys = jax.random.split(k_w, len(CONV_HEAD_CHANNELS))
    for wk, cout in zip(wkeys, CONV_HEAD_CHANNELS):
        wstd = (2.0 / (9 * cur_in + 9 * cout)) ** 0.5
        wconv = jax.random.normal(wk, (3, 3, cur_in, cout), dtype=jnp.float32) * wstd
        gamma = 1.0 + 0.01 * jnp.arange(cout, dtype=jnp.float32)
        beta = 0.001 * jnp.arange(cout, dtype=jnp.float32)
        running_mean = jnp.zeros((cout,), jnp.float32)
        running_var = jnp.ones((cout,), jnp.float32)
        scale = gamma / jnp.sqrt(running_var + BN_EPS)
        bias = beta - running_mean * scale
        conv_params.append((wconv, scale, bias))
        cur_in = cout

    batch_dict = {'cpm_features': cpm_features, 'translations': translations}
    out = fudet_forward(batch_dict, conv_params, FUSION_RES)
    fused_features = jax.block_until_ready(out['fused_features'])
    assert fused_features.shape == (1, CONV_HEAD_CHANNELS[-1], H, W)

    # Cross-check against the f32 gather/conv reference (bf16 path -> loose tolerance).
    ref = jax.block_until_ready(
        _fudet_forward_ref(cpm_features, translations, conv_params, FUSION_RES))
    max_err = float(jnp.max(jnp.abs(fused_features - ref)))
    ref_scale = float(jnp.max(jnp.abs(ref)))
    assert max_err <= 0.1 * ref_scale + 0.05, (max_err, ref_scale)

    print("KERNEL_OK")
</pallas_src>

<mosaic_0001>
module attributes {stable_mosaic.version = 11 : i64} {
  func.func @_fused_head_kernel(%arg0: i32, %arg1: memref<16x16x128xbf16, #tpu.memory_space<vmem>>, %arg2: memref<1152x128xbf16, #tpu.memory_space<vmem>>, %arg3: memref<1x128xf32, #tpu.memory_space<vmem>>, %arg4: memref<1152x128xbf16, #tpu.memory_space<vmem>>, %arg5: memref<1x128xf32, #tpu.memory_space<vmem>>, %arg6: memref<256x128xbf16, #tpu.memory_space<vmem>>, %arg7: memref<18x18x128xbf16, #tpu.memory_space<vmem>>, %arg8: memref<256x128xf32, #tpu.memory_space<vmem>>) attributes {dimension_semantics = [#tpu.dimension_semantics<arbitrary>], iteration_bounds = array<i64: 1>, scalar_prefetch = 0 : i64, scratch_operands = 2 : i64, tpu.core_type = #tpu.core_type<tc>, window_params = [{pipeline_mode = #tpu.pipeline_mode<synchronous>, transform_indices = @transform_0, window_bounds = array<i64: 16, 16, 128>}, {pipeline_mode = #tpu.pipeline_mode<synchronous>, transform_indices = @transform_1, window_bounds = array<i64: 1152, 128>}, {pipeline_mode = #tpu.pipeline_mode<synchronous>, transform_indices = @transform_2, window_bounds = array<i64: 1, 128>}, {pipeline_mode = #tpu.pipeline_mode<synchronous>, transform_indices = @transform_3, window_bounds = array<i64: 1152, 128>}, {pipeline_mode = #tpu.pipeline_mode<synchronous>, transform_indices = @transform_4, window_bounds = array<i64: 1, 128>}, {pipeline_mode = #tpu.pipeline_mode<synchronous>, transform_indices = @transform_5, window_bounds = array<i64: 256, 128>}]} {
    %cst = arith.constant 0.000000e+00 : bf16
    %0 = vector.broadcast %cst : bf16 to vector<18x18x128xbf16>
    %c0 = arith.constant 0 : index
    %c0_0 = arith.constant 0 : index
    %c0_1 = arith.constant 0 : index
    %1 = vector.load %arg7[%c0, %c0_0, %c0_1] : memref<18x18x128xbf16, #tpu.memory_space<vmem>>, vector<18x18x128xbf16>
    tpu.vector_store %arg7[%c0, %c0_0, %c0_1], %0 {strides = array<i32>} : memref<18x18x128xbf16, #tpu.memory_space<vmem>>, vector<18x18x128xbf16>,
    %c0_2 = arith.constant 0 : index
    %c0_3 = arith.constant 0 : index
    %c0_4 = arith.constant 0 : index
    %2 = vector.load %arg1[%c0_2, %c0_3, %c0_4] : memref<16x16x128xbf16, #tpu.memory_space<vmem>>, vector<16x16x128xbf16>
    %c1 = arith.constant 1 : index
    %c1_5 = arith.constant 1 : index
    %c0_6 = arith.constant 0 : index
    %3 = vector.load %arg7[%c1, %c1_5, %c0_6] : memref<18x18x128xbf16, #tpu.memory_space<vmem>>, vector<16x16x128xbf16>
    tpu.vector_store %arg7[%c1, %c1_5, %c0_6], %2 {strides = array<i32>} : memref<18x18x128xbf16, #tpu.memory_space<vmem>>, vector<16x16x128xbf16>,
    %c0_7 = arith.constant 0 : index
    %c0_8 = arith.constant 0 : index
    %c0_9 = arith.constant 0 : index
    %4 = vector.load %arg7[%c0_7, %c0_8, %c0_9] : memref<18x18x128xbf16, #tpu.memory_space<vmem>>, vector<16x16x128xbf16>
    %5 = vector.shape_cast %4 : vector<16x16x128xbf16> to vector<256x128xbf16>
    %c0_10 = arith.constant 0 : index
    %c0_11 = arith.constant 0 : index
    %6 = vector.load %arg2[%c0_10, %c0_11] : memref<1152x128xbf16, #tpu.memory_space<vmem>>, vector<128x128xbf16>
    %cst_12 = arith.constant dense<0.000000e+00> : vector<256x128xf32>
    %7 = tpu.matmul %5, %6, %cst_12 {dimension_numbers = #tpu.dot_dimension_numbers<[1], [0], [0], [1], [0, 0, 1, 1], [], []>} : vector<256x128xbf16>, vector<128x128xbf16>, vector<256x128xf32> -> vector<256x128xf32>
    %c0_13 = arith.constant 0 : index
    %c0_14 = arith.constant 0 : index
    %8 = vector.load %arg8[%c0_13, %c0_14] : memref<256x128xf32, #tpu.memory_space<vmem>>, vector<256x128xf32>
    tpu.vector_store %arg8[%c0_13, %c0_14], %7 {strides = array<i32>} : memref<256x128xf32, #tpu.memory_space<vmem>>, vector<256x128xf32>,
    %c0_15 = arith.constant 0 : index
    %c1_16 = arith.constant 1 : index
    %c0_17 = arith.constant 0 : index
    %9 = vector.load %arg7[%c0_15, %c1_16, %c0_17] : memref<18x18x128xbf16, #tpu.memory_space<vmem>>, vector<16x16x128xbf16>
    %10 = vector.shape_cast %9 : vector<16x16x128xbf16> to vector<256x128xbf16>
    %c128 = arith.constant 128 : index
    %c0_18 = arith.constant 0 : index
    %11 = vector.load %arg2[%c128, %c0_18] : memref<1152x128xbf16, #tpu.memory_space<vmem>>, vector<128x128xbf16>
    %cst_19 = arith.constant dense<0.000000e+00> : vector<256x128xf32>
    %12 = tpu.matmul %10, %11, %cst_19 {dimension_numbers = #tpu.dot_dimension_numbers<[1], [0], [0], [1], [0, 0, 1, 1], [], []>} : vector<256x128xbf16>, vector<128x128xbf16>, vector<256x128xf32> -> vector<256x128xf32>
    %c0_20 = arith.constant 0 : index
    %c0_21 = arith.constant 0 : index
    %13 = vector.load %arg8[%c0_20, %c0_21] : memref<256x128xf32, #tpu.memory_space<vmem>>, vector<256x128xf32>
    %14 = arith.addf %13, %12 : vector<256x128xf32>
    %c0_22 = arith.constant 0 : index
    %c0_23 = arith.constant 0 : index
    %15 = vector.load %arg8[%c0_22, %c0_23] : memref<256x128xf32, #tpu.memory_space<vmem>>, vector<256x128xf32>
    tpu.vector_store %arg8[%c0_22, %c0_23], %14 {strides = array<i32>} : memref<256x128xf32, #tpu.memory_space<vmem>>, vector<256x128xf32>,
    %c0_24 = arith.constant 0 : index
    %c2 = arith.constant 2 : index
    %c0_25 = arith.constant 0 : index
    %16 = vector.load %arg7[%c0_24, %c2, %c0_25] : memref<18x18x128xbf16, #tpu.memory_space<vmem>>, vector<16x16x128xbf16>
    %17 = vector.shape_cast %16 : vector<16x16x128xbf16> to vector<256x128xbf16>
    %c256 = arith.constant 256 : index
    %c0_26 = arith.constant 0 : index
    %18 = vector.load %arg2[%c256, %c0_26] : memref<1152x128xbf16, #tpu.memory_space<vmem>>, vector<128x128xbf16>
    %cst_27 = arith.constant dense<0.000000e+00> : vector<256x128xf32>
    %19 = tpu.matmul %17, %18, %cst_27 {dimension_numbers = #tpu.dot_dimension_numbers<[1], [0], [0], [1], [0, 0, 1, 1], [], []>} : vector<256x128xbf16>, vector<128x128xbf16>, vector<256x128xf32> -> vector<256x128xf32>
    %c0_28 = arith.constant 0 : index
    %c0_29 = arith.constant 0 : index
    %20 = vector.load %arg8[%c0_28, %c0_29] : memref<256x128xf32, #tpu.memory_space<vmem>>, vector<256x128xf32>
    %21 = arith.addf %20, %19 : vector<256x128xf32>
    %c0_30 = arith.constant 0 : index
    %c0_31 = arith.constant 0 : index
    %22 = vector.load %arg8[%c0_30, %c0_31] : memref<256x128xf32, #tpu.memory_space<vmem>>, vector<256x128xf32>
    tpu.vector_store %arg8[%c0_30, %c0_31], %21 {strides = array<i32>} : memref<256x128xf32, #tpu.memory_space<vmem>>, vector<256x128xf32>,
    %c1_32 = arith.constant 1 : index
    %c0_33 = arith.constant 0 : index
    %c0_34 = arith.constant 0 : index
    %23 = vector.load %arg7[%c1_32, %c0_33, %c0_34] : memref<18x18x128xbf16, #tpu.memory_space<vmem>>, vector<16x16x128xbf16>
    %24 = vector.shape_cast %23 : vector<16x16x128xbf16> to vector<256x128xbf16>
    %c384 = arith.constant 384 : index
    %c0_35 = arith.constant 0 : index
    %25 = vector.load %arg2[%c384, %c0_35] : memref<1152x128xbf16, #tpu.memory_space<vmem>>, vector<128x128xbf16>
    %cst_36 = arith.constant dense<0.000000e+00> : vector<256x128xf32>
    %26 = tpu.matmul %24, %25, %cst_36 {dimension_numbers = #tpu.dot_dimension_numbers<[1], [0], [0], [1], [0, 0, 1, 1], [], []>} : vector<256x128xbf16>, vector<128x128xbf16>, vector<256x128xf32> -> vector<256x128xf32>
    %c0_37 = arith.constant 0 : index
    %c0_38 = arith.constant 0 : index
    %27 = vector.load %arg8[%c0_37, %c0_38] : memref<256x128xf32, #tpu.memory_space<vmem>>, vector<256x128xf32>
    %28 = arith.addf %27, %26 : vector<256x128xf32>
    %c0_39 = arith.constant 0 : index
    %c0_40 = arith.constant 0 : index
    %29 = vector.load %arg8[%c0_39, %c0_40] : memref<256x128xf32, #tpu.memory_space<vmem>>, vector<256x128xf32>
    tpu.vector_store %arg8[%c0_39, %c0_40], %28 {strides = array<i32>} : memref<256x128xf32, #tpu.memory_space<vmem>>, vector<256x128xf32>,
    %c1_41 = arith.constant 1 : index
    %c1_42 = arith.constant 1 : index
    %c0_43 = arith.constant 0 : index
    %30 = vector.load %arg7[%c1_41, %c1_42, %c0_43] : memref<18x18x128xbf16, #tpu.memory_space<vmem>>, vector<16x16x128xbf16>
    %31 = vector.shape_cast %30 : vector<16x16x128xbf16> to vector<256x128xbf16>
    %c512 = arith.constant 512 : index
    %c0_44 = arith.constant 0 : index
    %32 = vector.load %arg2[%c512, %c0_44] : memref<1152x128xbf16, #tpu.memory_space<vmem>>, vector<128x128xbf16>
    %cst_45 = arith.constant dense<0.000000e+00> : vector<256x128xf32>
    %33 = tpu.matmul %31, %32, %cst_45 {dimension_numbers = #tpu.dot_dimension_numbers<[1], [0], [0], [1], [0, 0, 1, 1], [], []>} : vector<256x128xbf16>, vector<128x128xbf16>, vector<256x128xf32> -> vector<256x128xf32>
    %c0_46 = arith.constant 0 : index
    %c0_47 = arith.constant 0 : index
    %34 = vector.load %arg8[%c0_46, %c0_47] : memref<256x128xf32, #tpu.memory_space<vmem>>, vector<256x128xf32>
    %35 = arith.addf %34, %33 : vector<256x128xf32>
    %c0_48 = arith.constant 0 : index
    %c0_49 = arith.constant 0 : index
    %36 = vector.load %arg8[%c0_48, %c0_49] : memref<256x128xf32, #tpu.memory_space<vmem>>, vector<256x128xf32>
    tpu.vector_store %arg8[%c0_48, %c0_49], %35 {strides = array<i32>} : memref<256x128xf32, #tpu.memory_space<vmem>>, vector<256x128xf32>,
    %c1_50 = arith.constant 1 : index
    %c2_51 = arith.constant 2 : index
    %c0_52 = arith.constant 0 : index
    %37 = vector.load %arg7[%c1_50, %c2_51, %c0_52] : memref<18x18x128xbf16, #tpu.memory_space<vmem>>, vector<16x16x128xbf16>
    %38 = vector.shape_cast %37 : vector<16x16x128xbf16> to vector<256x128xbf16>
    %c640 = arith.constant 640 : index
    %c0_53 = arith.constant 0 : index
    %39 = vector.load %arg2[%c640, %c0_53] : memref<1152x128xbf16, #tpu.memory_space<vmem>>, vector<128x128xbf16>
    %cst_54 = arith.constant dense<0.000000e+00> : vector<256x128xf32>
    %40 = tpu.matmul %38, %39, %cst_54 {dimension_numbers = #tpu.dot_dimension_numbers<[1], [0], [0], [1], [0, 0, 1, 1], [], []>} : vector<256x128xbf16>, vector<128x128xbf16>, vector<256x128xf32> -> vector<256x128xf32>
    %c0_55 = arith.constant 0 : index
    %c0_56 = arith.constant 0 : index
    %41 = vector.load %arg8[%c0_55, %c0_56] : memref<256x128xf32, #tpu.memory_space<vmem>>, vector<256x128xf32>
    %42 = arith.addf %41, %40 : vector<256x128xf32>
    %c0_57 = arith.constant 0 : index
    %c0_58 = arith.constant 0 : index
    %43 = vector.load %arg8[%c0_57, %c0_58] : memref<256x128xf32, #tpu.memory_space<vmem>>, vector<256x128xf32>
    tpu.vector_store %arg8[%c0_57, %c0_58], %42 {strides = array<i32>} : memref<256x128xf32, #tpu.memory_space<vmem>>, vector<256x128xf32>,
    %c2_59 = arith.constant 2 : index
    %c0_60 = arith.constant 0 : index
    %c0_61 = arith.constant 0 : index
    %44 = vector.load %arg7[%c2_59, %c0_60, %c0_61] : memref<18x18x128xbf16, #tpu.memory_space<vmem>>, vector<16x16x128xbf16>
    %45 = vector.shape_cast %44 : vector<16x16x128xbf16> to vector<256x128xbf16>
    %c768 = arith.constant 768 : index
    %c0_62 = arith.constant 0 : index
    %46 = vector.load %arg2[%c768, %c0_62] : memref<1152x128xbf16, #tpu.memory_space<vmem>>, vector<128x128xbf16>
    %cst_63 = arith.constant dense<0.000000e+00> : vector<256x128xf32>
    %47 = tpu.matmul %45, %46, %cst_63 {dimension_numbers = #tpu.dot_dimension_numbers<[1], [0], [0], [1], [0, 0, 1, 1], [], []>} : vector<256x128xbf16>, vector<128x128xbf16>, vector<256x128xf32> -> vector<256x128xf32>
    %c0_64 = arith.constant 0 : index
    %c0_65 = arith.constant 0 : index
    %48 = vector.load %arg8[%c0_64, %c0_65] : memref<256x128xf32, #tpu.memory_space<vmem>>, vector<256x128xf32>
    %49 = arith.addf %48, %47 : vector<256x128xf32>
    %c0_66 = arith.constant 0 : index
    %c0_67 = arith.constant 0 : index
    %50 = vector.load %arg8[%c0_66, %c0_67] : memref<256x128xf32, #tpu.memory_space<vmem>>, vector<256x128xf32>
    tpu.vector_store %arg8[%c0_66, %c0_67], %49 {strides = array<i32>} : memref<256x128xf32, #tpu.memory_space<vmem>>, vector<256x128xf32>,
    %c2_68 = arith.constant 2 : index
    %c1_69 = arith.constant 1 : index
    %c0_70 = arith.constant 0 : index
    %51 = vector.load %arg7[%c2_68, %c1_69, %c0_70] : memref<18x18x128xbf16, #tpu.memory_space<vmem>>, vector<16x16x128xbf16>
    %52 = vector.shape_cast %51 : vector<16x16x128xbf16> to vector<256x128xbf16>
    %c896 = arith.constant 896 : index
    %c0_71 = arith.constant 0 : index
    %53 = vector.load %arg2[%c896, %c0_71] : memref<1152x128xbf16, #tpu.memory_space<vmem>>, vector<128x128xbf16>
    %cst_72 = arith.constant dense<0.000000e+00> : vector<256x128xf32>
    %54 = tpu.matmul %52, %53, %cst_72 {dimension_numbers = #tpu.dot_dimension_numbers<[1], [0], [0], [1], [0, 0, 1, 1], [], []>} : vector<256x128xbf16>, vector<128x128xbf16>, vector<256x128xf32> -> vector<256x128xf32>
    %c0_73 = arith.constant 0 : index
    %c0_74 = arith.constant 0 : index
    %55 = vector.load %arg8[%c0_73, %c0_74] : memref<256x128xf32, #tpu.memory_space<vmem>>, vector<256x128xf32>
    %56 = arith.addf %55, %54 : vector<256x128xf32>
    %c0_75 = arith.constant 0 : index
    %c0_76 = arith.constant 0 : index
    %57 = vector.load %arg8[%c0_75, %c0_76] : memref<256x128xf32, #tpu.memory_space<vmem>>, vector<256x128xf32>
    tpu.vector_store %arg8[%c0_75, %c0_76], %56 {strides = array<i32>} : memref<256x128xf32, #tpu.memory_space<vmem>>, vector<256x128xf32>,
    %c2_77 = arith.constant 2 : index
    %c2_78 = arith.constant 2 : index
    %c0_79 = arith.constant 0 : index
    %58 = vector.load %arg7[%c2_77, %c2_78, %c0_79] : memref<18x18x128xbf16, #tpu.memory_space<vmem>>, vector<16x16x128xbf16>
    %59 = vector.shape_cast %58 : vector<16x16x128xbf16> to vector<256x128xbf16>
    %c1024 = arith.constant 1024 : index
    %c0_80 = arith.constant 0 : index
    %60 = vector.load %arg2[%c1024, %c0_80] : memref<1152x128xbf16, #tpu.memory_space<vmem>>, vector<128x128xbf16>
    %cst_81 = arith.constant dense<0.000000e+00> : vector<256x128xf32>
    %61 = tpu.matmul %59, %60, %cst_81 {dimension_numbers = #tpu.dot_dimension_numbers<[1], [0], [0], [1], [0, 0, 1, 1], [], []>} : vector<256x128xbf16>, vector<128x128xbf16>, vector<256x128xf32> -> vector<256x128xf32>
    %c0_82 = arith.constant 0 : index
    %c0_83 = arith.constant 0 : index
    %62 = vector.load %arg8[%c0_82, %c0_83] : memref<256x128xf32, #tpu.memory_space<vmem>>, vector<256x128xf32>
    %63 = arith.addf %62, %61 : vector<256x128xf32>
    %c0_84 = arith.constant 0 : index
    %c0_85 = arith.constant 0 : index
    %64 = vector.load %arg8[%c0_84, %c0_85] : memref<256x128xf32, #tpu.memory_space<vmem>>, vector<256x128xf32>
    tpu.vector_store %arg8[%c0_84, %c0_85], %63 {strides = array<i32>} : memref<256x128xf32, #tpu.memory_space<vmem>>, vector<256x128xf32>,
    %c0_86 = arith.constant 0 : index
    %c0_87 = arith.constant 0 : index
    %65 = vector.load %arg8[%c0_86, %c0_87] : memref<256x128xf32, #tpu.memory_space<vmem>>, vector<256x128xf32>
    %c0_88 = arith.constant 0 : index
    %c0_89 = arith.constant 0 : index
    %66 = vector.load %arg3[%c0_88, %c0_89] : memref<1x128xf32, #tpu.memory_space<vmem>>, vector<1x128xf32>
    %67 = vector.broadcast %66 : vector<1x128xf32> to vector<256x128xf32>
    %68 = arith.addf %65, %67 : vector<256x128xf32>
    %cst_90 = arith.constant 0.000000e+00 : f32
    %69 = vector.broadcast %cst_90 : f32 to vector<256x128xf32>
    %70 = arith.maximumf %68, %69 : vector<256x128xf32>
    %71 = arith.truncf %70 : vector<256x128xf32> to vector<256x128xbf16>
    %72 = vector.shape_cast %71 : vector<256x128xbf16> to vector<16x16x128xbf16>
    %c1_91 = arith.constant 1 : index
    %c1_92 = arith.constant 1 : index
    %c0_93 = arith.constant 0 : index
    %73 = vector.load %arg7[%c1_91, %c1_92, %c0_93] : memref<18x18x128xbf16, #tpu.memory_space<vmem>>, vector<16x16x128xbf16>
    tpu.vector_store %arg7[%c1_91, %c1_92, %c0_93], %72 {strides = array<i32>} : memref<18x18x128xbf16, #tpu.memory_space<vmem>>, vector<16x16x128xbf16>,
    %c0_94 = arith.constant 0 : index
    %c0_95 = arith.constant 0 : index
    %c0_96 = arith.constant 0 : index
    %74 = vector.load %arg7[%c0_94, %c0_95, %c0_96] : memref<18x18x128xbf16, #tpu.memory_space<vmem>>, vector<16x16x128xbf16>
    %75 = vector.shape_cast %74 : vector<16x16x128xbf16> to vector<256x128xbf16>
    %c0_97 = arith.constant 0 : index
    %c0_98 = arith.constant 0 : index
    %76 = vector.load %arg4[%c0_97, %c0_98] : memref<1152x128xbf16, #tpu.memory_space<vmem>>, vector<128x128xbf16>
    %cst_99 = arith.constant dense<0.000000e+00> : vector<256x128xf32>
    %77 = tpu.matmul %75, %76, %cst_99 {dimension_numbers = #tpu.dot_dimension_numbers<[1], [0], [0], [1], [0, 0, 1, 1], [], []>} : vector<256x128xbf16>, vector<128x128xbf16>, vector<256x128xf32> -> vector<256x128xf32>
    %c0_100 = arith.constant 0 : index
    %c0_101 = arith.constant 0 : index
    %78 = vector.load %arg8[%c0_100, %c0_101] : memref<256x128xf32, #tpu.memory_space<vmem>>, vector<256x128xf32>
    tpu.vector_store %arg8[%c0_100, %c0_101], %77 {strides = array<i32>} : memref<256x128xf32, #tpu.memory_space<vmem>>, vector<256x128xf32>,
    %c0_102 = arith.constant 0 : index
    %c1_103 = arith.constant 1 : index
    %c0_104 = arith.constant 0 : index
    %79 = vector.load %arg7[%c0_102, %c1_103, %c0_104] : memref<18x18x128xbf16, #tpu.memory_space<vmem>>, vector<16x16x128xbf16>
    %80 = vector.shape_cast %79 : vector<16x16x128xbf16> to vector<256x128xbf16>
    %c128_105 = arith.constant 128 : index
    %c0_106 = arith.constant 0 : index
    %81 = vector.load %arg4[%c128_105, %c0_106] : memref<1152x128xbf16, #tpu.memory_space<vmem>>, vector<128x128xbf16>
    %cst_107 = arith.constant dense<0.000000e+00> : vector<256x128xf32>
    %82 = tpu.matmul %80, %81, %cst_107 {dimension_numbers = #tpu.dot_dimension_numbers<[1], [0], [0], [1], [0, 0, 1, 1], [], []>} : vector<256x128xbf16>, vector<128x128xbf16>, vector<256x128xf32> -> vector<256x128xf32>
    %c0_108 = arith.constant 0 : index
    %c0_109 = arith.constant 0 : index
    %83 = vector.load %arg8[%c0_108, %c0_109] : memref<256x128xf32, #tpu.memory_space<vmem>>, vector<256x128xf32>
    %84 = arith.addf %83, %82 : vector<256x128xf32>
    %c0_110 = arith.constant 0 : index
    %c0_111 = arith.constant 0 : index
    %85 = vector.load %arg8[%c0_110, %c0_111] : memref<256x128xf32, #tpu.memory_space<vmem>>, vector<256x128xf32>
    tpu.vector_store %arg8[%c0_110, %c0_111], %84 {strides = array<i32>} : memref<256x128xf32, #tpu.memory_space<vmem>>, vector<256x128xf32>,
    %c0_112 = arith.constant 0 : index
    %c2_113 = arith.constant 2 : index
    %c0_114 = arith.constant 0 : index
    %86 = vector.load %arg7[%c0_112, %c2_113, %c0_114] : memref<18x18x128xbf16, #tpu.memory_space<vmem>>, vector<16x16x128xbf16>
    %87 = vector.shape_cast %86 : vector<16x16x128xbf16> to vector<256x128xbf16>
    %c256_115 = arith.constant 256 : index
    %c0_116 = arith.constant 0 : index
    %88 = vector.load %arg4[%c256_115, %c0_116] : memref<1152x128xbf16, #tpu.memory_space<vmem>>, vector<128x128xbf16>
    %cst_117 = arith.constant dense<0.000000e+00> : vector<256x128xf32>
    %89 = tpu.matmul %87, %88, %cst_117 {dimension_numbers = #tpu.dot_dimension_numbers<[1], [0], [0], [1], [0, 0, 1, 1], [], []>} : vector<256x128xbf16>, vector<128x128xbf16>, vector<256x128xf32> -> vector<256x128xf32>
    %c0_118 = arith.constant 0 : index
    %c0_119 = arith.constant 0 : index
    %90 = vector.load %arg8[%c0_118, %c0_119] : memref<256x128xf32, #tpu.memory_space<vmem>>, vector<256x128xf32>
    %91 = arith.addf %90, %89 : vector<256x128xf32>
    %c0_120 = arith.constant 0 : index
    %c0_121 = arith.constant 0 : index
    %92 = vector.load %arg8[%c0_120, %c0_121] : memref<256x128xf32, #tpu.memory_space<vmem>>, vector<256x128xf32>
    tpu.vector_store %arg8[%c0_120, %c0_121], %91 {strides = array<i32>} : memref<256x128xf32, #tpu.memory_space<vmem>>, vector<256x128xf32>,
    %c1_122 = arith.constant 1 : index
    %c0_123 = arith.constant 0 : index
    %c0_124 = arith.constant 0 : index
    %93 = vector.load %arg7[%c1_122, %c0_123, %c0_124] : memref<18x18x128xbf16, #tpu.memory_space<vmem>>, vector<16x16x128xbf16>
    %94 = vector.shape_cast %93 : vector<16x16x128xbf16> to vector<256x128xbf16>
    %c384_125 = arith.constant 384 : index
    %c0_126 = arith.constant 0 : index
    %95 = vector.load %arg4[%c384_125, %c0_126] : memref<1152x128xbf16, #tpu.memory_space<vmem>>, vector<128x128xbf16>
    %cst_127 = arith.constant dense<0.000000e+00> : vector<256x128xf32>
    %96 = tpu.matmul %94, %95, %cst_127 {dimension_numbers = #tpu.dot_dimension_numbers<[1], [0], [0], [1], [0, 0, 1, 1], [], []>} : vector<256x128xbf16>, vector<128x128xbf16>, vector<256x128xf32> -> vector<256x128xf32>
    %c0_128 = arith.constant 0 : index
    %c0_129 = arith.constant 0 : index
    %97 = vector.load %arg8[%c0_128, %c0_129] : memref<256x128xf32, #tpu.memory_space<vmem>>, vector<256x128xf32>
    %98 = arith.addf %97, %96 : vector<256x128xf32>
    %c0_130 = arith.constant 0 : index
    %c0_131 = arith.constant 0 : index
    %99 = vector.load %arg8[%c0_130, %c0_131] : memref<256x128xf32, #tpu.memory_space<vmem>>, vector<256x128xf32>
    tpu.vector_store %arg8[%c0_130, %c0_131], %98 {strides = array<i32>} : memref<256x128xf32, #tpu.memory_space<vmem>>, vector<256x128xf32>,
    %c1_132 = arith.constant 1 : index
    %c1_133 = arith.constant 1 : index
    %c0_134 = arith.constant 0 : index
    %100 = vector.load %arg7[%c1_132, %c1_133, %c0_134] : memref<18x18x128xbf16, #tpu.memory_space<vmem>>, vector<16x16x128xbf16>
    %101 = vector.shape_cast %100 : vector<16x16x128xbf16> to vector<256x128xbf16>
    %c512_135 = arith.constant 512 : index
    %c0_136 = arith.constant 0 : index
    %102 = vector.load %arg4[%c512_135, %c0_136] : memref<1152x128xbf16, #tpu.memory_space<vmem>>, vector<128x128xbf16>
    %cst_137 = arith.constant dense<0.000000e+00> : vector<256x128xf32>
    %103 = tpu.matmul %101, %102, %cst_137 {dimension_numbers = #tpu.dot_dimension_numbers<[1], [0], [0], [1], [0, 0, 1, 1], [], []>} : vector<256x128xbf16>, vector<128x128xbf16>, vector<256x128xf32> -> vector<256x128xf32>
    %c0_138 = arith.constant 0 : index
    %c0_139 = arith.constant 0 : index
    %104 = vector.load %arg8[%c0_138, %c0_139] : memref<256x128xf32, #tpu.memory_space<vmem>>, vector<256x128xf32>
    %105 = arith.addf %104, %103 : vector<256x128xf32>
    %c0_140 = arith.constant 0 : index
    %c0_141 = arith.constant 0 : index
    %106 = vector.load %arg8[%c0_140, %c0_141] : memref<256x128xf32, #tpu.memory_space<vmem>>, vector<256x128xf32>
    tpu.vector_store %arg8[%c0_140, %c0_141], %105 {strides = array<i32>} : memref<256x128xf32, #tpu.memory_space<vmem>>, vector<256x128xf32>,
    %c1_142 = arith.constant 1 : index
    %c2_143 = arith.constant 2 : index
    %c0_144 = arith.constant 0 : index
    %107 = vector.load %arg7[%c1_142, %c2_143, %c0_144] : memref<18x18x128xbf16, #tpu.memory_space<vmem>>, vector<16x16x128xbf16>
    %108 = vector.shape_cast %107 : vector<16x16x128xbf16> to vector<256x128xbf16>
    %c640_145 = arith.constant 640 : index
    %c0_146 = arith.constant 0 : index
    %109 = vector.load %arg4[%c640_145, %c0_146] : memref<1152x128xbf16, #tpu.memory_space<vmem>>, vector<128x128xbf16>
    %cst_147 = arith.constant dense<0.000000e+00> : vector<256x128xf32>
    %110 = tpu.matmul %108, %109, %cst_147 {dimension_numbers = #tpu.dot_dimension_numbers<[1], [0], [0], [1], [0, 0, 1, 1], [], []>} : vector<256x128xbf16>, vector<128x128xbf16>, vector<256x128xf32> -> vector<256x128xf32>
    %c0_148 = arith.constant 0 : index
    %c0_149 = arith.constant 0 : index
    %111 = vector.load %arg8[%c0_148, %c0_149] : memref<256x128xf32, #tpu.memory_space<vmem>>, vector<256x128xf32>
    %112 = arith.addf %111, %110 : vector<256x128xf32>
    %c0_150 = arith.constant 0 : index
    %c0_151 = arith.constant 0 : index
    %113 = vector.load %arg8[%c0_150, %c0_151] : memref<256x128xf32, #tpu.memory_space<vmem>>, vector<256x128xf32>
    tpu.vector_store %arg8[%c0_150, %c0_151], %112 {strides = array<i32>} : memref<256x128xf32, #tpu.memory_space<vmem>>, vector<256x128xf32>,
    %c2_152 = arith.constant 2 : index
    %c0_153 = arith.constant 0 : index
    %c0_154 = arith.constant 0 : index
    %114 = vector.load %arg7[%c2_152, %c0_153, %c0_154] : memref<18x18x128xbf16, #tpu.memory_space<vmem>>, vector<16x16x128xbf16>
    %115 = vector.shape_cast %114 : vector<16x16x128xbf16> to vector<256x128xbf16>
    %c768_155 = arith.constant 768 : index
    %c0_156 = arith.constant 0 : index
    %116 = vector.load %arg4[%c768_155, %c0_156] : memref<1152x128xbf16, #tpu.memory_space<vmem>>, vector<128x128xbf16>
    %cst_157 = arith.constant dense<0.000000e+00> : vector<256x128xf32>
    %117 = tpu.matmul %115, %116, %cst_157 {dimension_numbers = #tpu.dot_dimension_numbers<[1], [0], [0], [1], [0, 0, 1, 1], [], []>} : vector<256x128xbf16>, vector<128x128xbf16>, vector<256x128xf32> -> vector<256x128xf32>
    %c0_158 = arith.constant 0 : index
    %c0_159 = arith.constant 0 : index
    %118 = vector.load %arg8[%c0_158, %c0_159] : memref<256x128xf32, #tpu.memory_space<vmem>>, vector<256x128xf32>
    %119 = arith.addf %118, %117 : vector<256x128xf32>
    %c0_160 = arith.constant 0 : index
    %c0_161 = arith.constant 0 : index
    %120 = vector.load %arg8[%c0_160, %c0_161] : memref<256x128xf32, #tpu.memory_space<vmem>>, vector<256x128xf32>
    tpu.vector_store %arg8[%c0_160, %c0_161], %119 {strides = array<i32>} : memref<256x128xf32, #tpu.memory_space<vmem>>, vector<256x128xf32>,
    %c2_162 = arith.constant 2 : index
    %c1_163 = arith.constant 1 : index
    %c0_164 = arith.constant 0 : index
    %121 = vector.load %arg7[%c2_162, %c1_163, %c0_164] : memref<18x18x128xbf16, #tpu.memory_space<vmem>>, vector<16x16x128xbf16>
    %122 = vector.shape_cast %121 : vector<16x16x128xbf16> to vector<256x128xbf16>
    %c896_165 = arith.constant 896 : index
    %c0_166 = arith.constant 0 : index
    %123 = vector.load %arg4[%c896_165, %c0_166] : memref<1152x128xbf16, #tpu.memory_space<vmem>>, vector<128x128xbf16>
    %cst_167 = arith.constant dense<0.000000e+00> : vector<256x128xf32>
    %124 = tpu.matmul %122, %123, %cst_167 {dimension_numbers = #tpu.dot_dimension_numbers<[1], [0], [0], [1], [0, 0, 1, 1], [], []>} : vector<256x128xbf16>, vector<128x128xbf16>, vector<256x128xf32> -> vector<256x128xf32>
    %c0_168 = arith.constant 0 : index
    %c0_169 = arith.constant 0 : index
    %125 = vector.load %arg8[%c0_168, %c0_169] : memref<256x128xf32, #tpu.memory_space<vmem>>, vector<256x128xf32>
    %126 = arith.addf %125, %124 : vector<256x128xf32>
    %c0_170 = arith.constant 0 : index
    %c0_171 = arith.constant 0 : index
    %127 = vector.load %arg8[%c0_170, %c0_171] : memref<256x128xf32, #tpu.memory_space<vmem>>, vector<256x128xf32>
    tpu.vector_store %arg8[%c0_170, %c0_171], %126 {strides = array<i32>} : memref<256x128xf32, #tpu.memory_space<vmem>>, vector<256x128xf32>,
    %c2_172 = arith.constant 2 : index
    %c2_173 = arith.constant 2 : index
    %c0_174 = arith.constant 0 : index
    %128 = vector.load %arg7[%c2_172, %c2_173, %c0_174] : memref<18x18x128xbf16, #tpu.memory_space<vmem>>, vector<16x16x128xbf16>
    %129 = vector.shape_cast %128 : vector<16x16x128xbf16> to vector<256x128xbf16>
    %c1024_175 = arith.constant 1024 : index
    %c0_176 = arith.constant 0 : index
    %130 = vector.load %arg4[%c1024_175, %c0_176] : memref<1152x128xbf16, #tpu.memory_space<vmem>>, vector<128x128xbf16>
    %cst_177 = arith.constant dense<0.000000e+00> : vector<256x128xf32>
    %131 = tpu.matmul %129, %130, %cst_177 {dimension_numbers = #tpu.dot_dimension_numbers<[1], [0], [0], [1], [0, 0, 1, 1], [], []>} : vector<256x128xbf16>, vector<128x128xbf16>, vector<256x128xf32> -> vector<256x128xf32>
    %c0_178 = arith.constant 0 : index
    %c0_179 = arith.constant 0 : index
    %132 = vector.load %arg8[%c0_178, %c0_179] : memref<256x128xf32, #tpu.memory_space<vmem>>, vector<256x128xf32>
    %133 = arith.addf %132, %131 : vector<256x128xf32>
    %c0_180 = arith.constant 0 : index
    %c0_181 = arith.constant 0 : index
    %134 = vector.load %arg8[%c0_180, %c0_181] : memref<256x128xf32, #tpu.memory_space<vmem>>, vector<256x128xf32>
    tpu.vector_store %arg8[%c0_180, %c0_181], %133 {strides = array<i32>} : memref<256x128xf32, #tpu.memory_space<vmem>>, vector<256x128xf32>,
    %c0_182 = arith.constant 0 : index
    %c0_183 = arith.constant 0 : index
    %135 = vector.load %arg8[%c0_182, %c0_183] : memref<256x128xf32, #tpu.memory_space<vmem>>, vector<256x128xf32>
    %c0_184 = arith.constant 0 : index
    %c0_185 = arith.constant 0 : index
    %136 = vector.load %arg5[%c0_184, %c0_185] : memref<1x128xf32, #tpu.memory_space<vmem>>, vector<1x128xf32>
    %137 = vector.broadcast %136 : vector<1x128xf32> to vector<256x128xf32>
    %138 = arith.addf %135, %137 : vector<256x128xf32>
    %cst_186 = arith.constant 0.000000e+00 : f32
    %139 = vector.broadcast %cst_186 : f32 to vector<256x128xf32>
    %140 = arith.maximumf %138, %139 : vector<256x128xf32>
    %141 = arith.truncf %140 : vector<256x128xf32> to vector<256x128xbf16>
    %c0_187 = arith.constant 0 : index
    %c0_188 = arith.constant 0 : index
    %142 = vector.load %arg6[%c0_187, %c0_188] : memref<256x128xbf16, #tpu.memory_space<vmem>>, vector<256x128xbf16>
    tpu.vector_store %arg6[%c0_187, %c0_188], %141 {strides = array<i32>} : memref<256x128xbf16, #tpu.memory_space<vmem>>, vector<256x128xbf16>,
    return
  }
  func.func @transform_0(%arg0: i32) -> (i32, i32, i32) {
    %c0_i32 = arith.constant 0 : i32
    %c0_i32_0 = arith.constant 0 : i32
    %c0_i32_1 = arith.constant 0 : i32
    %c0_i32_2 = arith.constant 0 : i32
    return %c0_i32, %c0_i32_0, %c0_i32_1 : i32, i32, i32
  }
  func.func @transform_1(%arg0: i32) -> (i32, i32) {
    %c0_i32 = arith.constant 0 : i32
    %c0_i32_0 = arith.constant 0 : i32
    %c0_i32_1 = arith.constant 0 : i32
    return %c0_i32, %c0_i32_0 : i32, i32
  }
  func.func @transform_2(%arg0: i32) -> (i32, i32) {
    %c0_i32 = arith.constant 0 : i32
    %c0_i32_0 = arith.constant 0 : i32
    %c0_i32_1 = arith.constant 0 : i32
    return %c0_i32, %c0_i32_0 : i32, i32
  }
  func.func @transform_3(%arg0: i32) -> (i32, i32) {
    %c0_i32 = arith.constant 0 : i32
    %c0_i32_0 = arith.constant 0 : i32
    %c0_i32_1 = arith.constant 0 : i32
    return %c0_i32, %c0_i32_0 : i32, i32
  }
  func.func @transform_4(%arg0: i32) -> (i32, i32) {
    %c0_i32 = arith.constant 0 : i32
    %c0_i32_0 = arith.constant 0 : i32
    %c0_i32_1 = arith.constant 0 : i32
    return %c0_i32, %c0_i32_0 : i32, i32
  }
  func.func @transform_5(%arg0: i32) -> (i32, i32) {
    %c0_i32 = arith.constant 0 : i32
    %c0_i32_0 = arith.constant 0 : i32
    %c0_i32_1 = arith.constant 0 : i32
    return %c0_i32, %c0_i32_0 : i32, i32
  }
}

</mosaic_0001>

<llo_original>
// kernel: _fudet_forward_core.1
$region0: #{_fudet_forward_core.1}
  #allocation0 [shape = 'u32[]', space=smem, size = 0x4, offset = 0x4, fixed_abs, tag = 'smem constant byte address 0x4 - core index']
  #allocation1 [shape = 'u32[144,128]{1,0:T(1,128)}', space=vmem, size = 0x12000, scoped, tag = 'internal scratch']
  #allocation2 [shape = 'bf16[18,18,128]{2,1,0:T(8,128)(2,1)}', space=vmem, size = 0x1b000, scoped, tag = 'scratch operand']
  #allocation3 [shape = 'f32[256,128]{1,0:T(8,128)}', space=vmem, size = 0x20000, scoped, tag = 'scratch operand']
  %s0 = inlined_call_operand.vmem [shape: bf16[16,16,128], index: 0, kind: input, shape index: {}]
  %s1 = inlined_call_operand.vmem [shape: bf16[1152,128], index: 1, kind: input, shape index: {}]
  %s2 = inlined_call_operand.vmem [shape: f32[1,128], index: 2, kind: input, shape index: {}]
  %s3 = inlined_call_operand.vmem [shape: bf16[1152,128], index: 3, kind: input, shape index: {}]
  %s4 = inlined_call_operand.vmem [shape: f32[1,128], index: 4, kind: input, shape index: {}]
  %s5 = inlined_call_operand.vmem [shape: bf16[256,128], index: 5, kind: output, shape index: {}]
  %s6 = sld [smem:[#allocation0]]
  $region30: #{_fudet_forward_core.1} parent=0
    _
  %s8 = ssub.s32 1, %s6
  %s9 = scalar_select 0, %s8, %s6
  // Predicated region
  $region2: #{_fudet_forward_core.1} parent=0 // pred_check
    _
  $region3: #{_fudet_forward_core.1} parent=0 // pred_check_branch
    %11 = sbr.rel (0) target = $region5
  $region4: #{_fudet_forward_core.1} parent=0 // pred_region
    _
  $region5: #{_fudet_forward_core.1} parent=0 // pred_fallthru
    _
  // Predicated region
  $region6: #{_fudet_forward_core.1} parent=0 // pred_check
    _
  $region7: #{_fudet_forward_core.1} parent=0 // pred_check_branch
    %13 = sbr.rel (0) target = $region9
  $region8: #{_fudet_forward_core.1} parent=0 // pred_region
    _
  $region9: #{_fudet_forward_core.1} parent=0 // pred_fallthru
    _
  // Predicated region
  $region10: #{_fudet_forward_core.1} parent=0 // pred_check
    _
  $region11: #{_fudet_forward_core.1} parent=0 // pred_check_branch
    %15 = sbr.rel (0) target = $region13
  $region12: #{_fudet_forward_core.1} parent=0 // pred_region
    _
  $region13: #{_fudet_forward_core.1} parent=0 // pred_fallthru
    _
  // Predicated region
  $region14: #{_fudet_forward_core.1} parent=0 // pred_check
    _
  $region15: #{_fudet_forward_core.1} parent=0 // pred_check_branch
    %17 = sbr.rel (0) target = $region17
  $region16: #{_fudet_forward_core.1} parent=0 // pred_region
    _
  $region17: #{_fudet_forward_core.1} parent=0 // pred_fallthru
    _
  // Predicated region
  $region18: #{_fudet_forward_core.1} parent=0 // pred_check
    _
  $region19: #{_fudet_forward_core.1} parent=0 // pred_check_branch
    %19 = sbr.rel (0) target = $region21
  $region20: #{_fudet_forward_core.1} parent=0 // pred_region
    _
  $region21: #{_fudet_forward_core.1} parent=0 // pred_fallthru
    _
  %21 = vst [vmem:[#allocation2] sm:$0xf] 0
  %22 = vst [vmem:[#allocation2 + $0x4] sm:$0xf] 0
  %23 = vst [vmem:[#allocation2 + $0x8] sm:$0x1] 0
  %24 = vst [vmem:[#allocation2 + $0xc] sm:$0xf] 0
  %25 = vst [vmem:[#allocation2 + $0x10] sm:$0xf] 0
  %26 = vst [vmem:[#allocation2 + $0x14] sm:$0x1] 0
  %27 = vst [vmem:[#allocation2 + $0x18] sm:$0xf] 0
  %28 = vst [vmem:[#allocation2 + $0x1c] sm:$0xf] 0
  %29 = vst [vmem:[#allocation2 + $0x20] sm:$0x1] 0
  %30 = vst [vmem:[#allocation2 + $0x24] sm:$0xf] 0
  %31 = vst [vmem:[#allocation2 + $0x28] sm:$0xf] 0
  %32 = vst [vmem:[#allocation2 + $0x2c] sm:$0x1] 0
  %33 = vst [vmem:[#allocation2 + $0x30] sm:$0xf] 0
  %34 = vst [vmem:[#allocation2 + $0x34] sm:$0xf] 0
  %35 = vst [vmem:[#allocation2 + $0x38] sm:$0x1] 0
  %36 = vst [vmem:[#allocation2 + $0x3c] sm:$0xf] 0
  %37 = vst [vmem:[#allocation2 + $0x40] sm:$0xf] 0
  %38 = vst [vmem:[#allocation2 + $0x44] sm:$0x1] 0
  %39 = vst [vmem:[#allocation2 + $0x48] sm:$0xf] 0
  %40 = vst [vmem:[#allocation2 + $0x4c] sm:$0xf] 0
  %41 = vst [vmem:[#allocation2 + $0x50] sm:$0x1] 0
  %42 = vst [vmem:[#allocation2 + $0x54] sm:$0xf] 0
  %43 = vst [vmem:[#allocation2 + $0x58] sm:$0xf] 0
  %44 = vst [vmem:[#allocation2 + $0x5c] sm:$0x1] 0
  %45 = vst [vmem:[#allocation2 + $0x60] sm:$0xf] 0
  %46 = vst [vmem:[#allocation2 + $0x64] sm:$0xf] 0
  %47 = vst [vmem:[#allocation2 + $0x68] sm:$0x1] 0
  %48 = vst [vmem:[#allocation2 + $0x6c] sm:$0xf] 0
  %49 = vst [vmem:[#allocation2 + $0x70] sm:$0xf] 0
  %50 = vst [vmem:[#allocation2 + $0x74] sm:$0x1] 0
  %51 = vst [vmem:[#allocation2 + $0x78] sm:$0xf] 0
  %52 = vst [vmem:[#allocation2 + $0x7c] sm:$0xf] 0
  %53 = vst [vmem:[#allocation2 + $0x80] sm:$0x1] 0
  %54 = vst [vmem:[#allocation2 + $0x84] sm:$0xf] 0
  %55 = vst [vmem:[#allocation2 + $0x88] sm:$0xf] 0
  %56 = vst [vmem:[#allocation2 + $0x8c] sm:$0x1] 0
  %57 = vst [vmem:[#allocation2 + $0x90] sm:$0xf] 0
  %58 = vst [vmem:[#allocation2 + $0x94] sm:$0xf] 0
  %59 = vst [vmem:[#allocation2 + $0x98] sm:$0x1] 0
  %60 = vst [vmem:[#allocation2 + $0x9c] sm:$0xf] 0
  %61 = vst [vmem:[#allocation2 + $0xa0] sm:$0xf] 0
  %62 = vst [vmem:[#allocation2 + $0xa4] sm:$0x1] 0
  %63 = vst [vmem:[#allocation2 + $0xa8] sm:$0xf] 0
  %64 = vst [vmem:[#allocation2 + $0xac] sm:$0xf] 0
  %65 = vst [vmem:[#allocation2 + $0xb0] sm:$0x1] 0
  %66 = vst [vmem:[#allocation2 + $0xb4] sm:$0xf] 0
  %67 = vst [vmem:[#allocation2 + $0xb8] sm:$0xf] 0
  %68 = vst [vmem:[#allocation2 + $0xbc] sm:$0x1] 0
  %69 = vst [vmem:[#allocation2 + $0xc0] sm:$0xf] 0
  %70 = vst [vmem:[#allocation2 + $0xc4] sm:$0xf] 0
  %71 = vst [vmem:[#allocation2 + $0xc8] sm:$0x1] 0
  %72 = vst [vmem:[#allocation2 + $0xcc] sm:$0xf] 0
  %73 = vst [vmem:[#allocation2 + $0xd0] sm:$0xf] 0
  %74 = vst [vmem:[#allocation2 + $0xd4] sm:$0x1] 0
  %v75 = vld [vmem:[%s0] sm:$0xf]
  %v76 = vld [vmem:[%s0 + $0x4] sm:$0xf]
  %v77 = vld [vmem:[%s0 + $0x8] sm:$0xf]
  %v78 = vld [vmem:[%s0 + $0xc] sm:$0xf]
  %v79 = vld [vmem:[%s0 + $0x10] sm:$0xf]
  %v80 = vld [vmem:[%s0 + $0x14] sm:$0xf]
  %v81 = vld [vmem:[%s0 + $0x18] sm:$0xf]
  %v82 = vld [vmem:[%s0 + $0x1c] sm:$0xf]
  %v83 = vld [vmem:[%s0 + $0x20] sm:$0xf]
  %v84 = vld [vmem:[%s0 + $0x24] sm:$0xf]
  %v85 = vld [vmem:[%s0 + $0x28] sm:$0xf]
  %v86 = vld [vmem:[%s0 + $0x2c] sm:$0xf]
  %v87 = vld [vmem:[%s0 + $0x30] sm:$0xf]
  %v88 = vld [vmem:[%s0 + $0x34] sm:$0xf]
  %v89 = vld [vmem:[%s0 + $0x38] sm:$0xf]
  %v90 = vld [vmem:[%s0 + $0x3c] sm:$0xf]
  %v91 = vld [vmem:[%s0 + $0x40] sm:$0xf]
  %v92 = vld [vmem:[%s0 + $0x44] sm:$0xf]
  %v93 = vld [vmem:[%s0 + $0x48] sm:$0xf]
  %v94 = vld [vmem:[%s0 + $0x4c] sm:$0xf]
  %v95 = vld [vmem:[%s0 + $0x50] sm:$0xf]
  %v96 = vld [vmem:[%s0 + $0x54] sm:$0xf]
  %v97 = vld [vmem:[%s0 + $0x58] sm:$0xf]
  %v98 = vld [vmem:[%s0 + $0x5c] sm:$0xf]
  %v99 = vld [vmem:[%s0 + $0x60] sm:$0xf]
  %v100 = vld [vmem:[%s0 + $0x64] sm:$0xf]
  %v101 = vld [vmem:[%s0 + $0x68] sm:$0xf]
  %v102 = vld [vmem:[%s0 + $0x6c] sm:$0xf]
  %v103 = vld [vmem:[%s0 + $0x70] sm:$0xf]
  %v104 = vld [vmem:[%s0 + $0x74] sm:$0xf]
  %v105 = vld [vmem:[%s0 + $0x78] sm:$0xf]
  %v106 = vld [vmem:[%s0 + $0x7c] sm:$0xf]
  %vm107 = vsmask.f32 256
  %vm108 = vsmask.f32 4368
  %vm109 = vmor %vm107, %vm108
  %v111 = vshrl.u32 %v75, 16
  %v113 = vrot.slane %v111, 7
  %v114 = vshll.u32 %v75, 16
  %v116 = vor.u32 %v113, %v114
  %v117 = vrot.slane %v113, 4
  %v119 = vshrl.u32 %v76, 16
  %v121 = vrot.slane %v119, 7
  %v122 = vshll.u32 %v76, 16
  %v124 = vor.u32 %v121, %v122
  %v125 = vsel %vm109, %v117, %v124
  %v126 = vrot.slane %v121, 4
  %v128 = vshrl.u32 %v77, 16
  %v130 = vrot.slane %v128, 7
  %v131 = vshll.u32 %v77, 16
  %v133 = vor.u32 %v130, %v131
  %v134 = vrot.slane %v130, 4
  %v136 = vshrl.u32 %v78, 16
  %v138 = vrot.slane %v136, 7
  %v139 = vshll.u32 %v78, 16
  %v141 = vor.u32 %v138, %v139
  %v142 = vsel %vm109, %v134, %v141
  %v143 = vrot.slane %v138, 4
  %v145 = vshrl.u32 %v79, 16
  %v147 = vrot.slane %v145, 7
  %v148 = vshll.u32 %v79, 16
  %v150 = vor.u32 %v147, %v148
  %v151 = vrot.slane %v147, 4
  %v153 = vshrl.u32 %v80, 16
  %v155 = vrot.slane %v153, 7
  %v156 = vshll.u32 %v80, 16
  %v158 = vor.u32 %v155, %v156
  %v159 = vsel %vm109, %v151, %v158
  %v160 = vrot.slane %v155, 4
  %v162 = vshrl.u32 %v81, 16
  %v164 = vrot.slane %v162, 7
  %v165 = vshll.u32 %v81, 16
  %v167 = vor.u32 %v164, %v165
  %v168 = vrot.slane %v164, 4
  %v170 = vshrl.u32 %v82, 16
  %v172 = vrot.slane %v170, 7
  %v173 = vshll.u32 %v82, 16
  %v175 = vor.u32 %v172, %v173
  %v176 = vsel %vm109, %v168, %v175
  %v177 = vrot.slane %v172, 4
  %v179 = vshrl.u32 %v83, 16
  %v181 = vrot.slane %v179, 7
  %v182 = vshll.u32 %v83, 16
  %v184 = vor.u32 %v181, %v182
  %v185 = vrot.slane %v181, 4
  %v187 = vshrl.u32 %v84, 16
  %v189 = vrot.slane %v187, 7
  %v190 = vshll.u32 %v84, 16
  %v192 = vor.u32 %v189, %v190
  %v193 = vsel %vm109, %v185, %v192
  %v194 = vrot.slane %v189, 4
  %v196 = vshrl.u32 %v85, 16
  %v198 = vrot.slane %v196, 7
  %v199 = vshll.u32 %v85, 16
  %v201 = vor.u32 %v198, %v199
  %v202 = vrot.slane %v198, 4
  %v204 = vshrl.u32 %v86, 16
  %v206 = vrot.slane %v204, 7
  %v207 = vshll.u32 %v86, 16
  %v209 = vor.u32 %v206, %v207
  %v210 = vsel %vm109, %v202, %v209
  %v211 = vrot.slane %v206, 4
  %v213 = vshrl.u32 %v87, 16
  %v215 = vrot.slane %v213, 7
  %v216 = vshll.u32 %v87, 16
  %v218 = vor.u32 %v215, %v216
  %v219 = vrot.slane %v215, 4
  %v221 = vshrl.u32 %v88, 16
  %v223 = vrot.slane %v221, 7
  %v224 = vshll.u32 %v88, 16
  %v226 = vor.u32 %v223, %v224
  %v227 = vsel %vm109, %v219, %v226
  %v228 = vrot.slane %v223, 4
  %v230 = vshrl.u32 %v89, 16
  %v232 = vrot.slane %v230, 7
  %v233 = vshll.u32 %v89, 16
  %v235 = vor.u32 %v232, %v233
  %v236 = vrot.slane %v232, 4
  %v238 = vshrl.u32 %v90, 16
  %v240 = vrot.slane %v238, 7
  %v241 = vshll.u32 %v90, 16
  %v243 = vor.u32 %v240, %v241
  %v244 = vsel %vm109, %v236, %v243
  %v245 = vrot.slane %v240, 4
  %v247 = vshrl.u32 %v91, 16
  %v249 = vrot.slane %v247, 7
  %v250 = vshll.u32 %v91, 16
  %v252 = vor.u32 %v249, %v250
  %v253 = vrot.slane %v249, 4
  %v255 = vshrl.u32 %v92, 16
  %v257 = vrot.slane %v255, 7
  %v258 = vshll.u32 %v92, 16
  %v260 = vor.u32 %v257, %v258
  %v261 = vsel %vm109, %v253, %v260
  %v262 = vrot.slane %v257, 4
  %v264 = vshrl.u32 %v93, 16
  %v266 = vrot.slane %v264, 7
  %v267 = vshll.u32 %v93, 16
  %v269 = vor.u32 %v266, %v267
  %v270 = vrot.slane %v266, 4
  %v272 = vshrl.u32 %v94, 16
  %v274 = vrot.slane %v272, 7
  %v275 = vshll.u32 %v94, 16
  %v277 = vor.u32 %v274, %v275
  %v278 = vsel %vm109, %v270, %v277
  %v279 = vrot.slane %v274, 4
  %v281 = vshrl.u32 %v95, 16
  %v283 = vrot.slane %v281, 7
  %v284 = vshll.u32 %v95, 16
  %v286 = vor.u32 %v283, %v284
  %v287 = vrot.slane %v283, 4
  %v289 = vshrl.u32 %v96, 16
  %v291 = vrot.slane %v289, 7
  %v292 = vshll.u32 %v96, 16
  %v294 = vor.u32 %v291, %v292
  %v295 = vsel %vm109, %v287, %v294
  %v296 = vrot.slane %v291, 4
  %v298 = vshrl.u32 %v97, 16
  %v300 = vrot.slane %v298, 7
  %v301 = vshll.u32 %v97, 16
  %v303 = vor.u32 %v300, %v301
  %v304 = vrot.slane %v300, 4
  %v306 = vshrl.u32 %v98, 16
  %v308 = vrot.slane %v306, 7
  %v309 = vshll.u32 %v98, 16
  %v311 = vor.u32 %v308, %v309
  %v312 = vsel %vm109, %v304, %v311
  %v313 = vrot.slane %v308, 4
  %v315 = vshrl.u32 %v99, 16
  %v317 = vrot.slane %v315, 7
  %v318 = vshll.u32 %v99, 16
  %v320 = vor.u32 %v317, %v318
  %v321 = vrot.slane %v317, 4
  %v323 = vshrl.u32 %v100, 16
  %v325 = vrot.slane %v323, 7
  %v326 = vshll.u32 %v100, 16
  %v328 = vor.u32 %v325, %v326
  %v329 = vsel %vm109, %v321, %v328
  %v330 = vrot.slane %v325, 4
  %v332 = vshrl.u32 %v101, 16
  %v334 = vrot.slane %v332, 7
  %v335 = vshll.u32 %v101, 16
  %v337 = vor.u32 %v334, %v335
  %v338 = vrot.slane %v334, 4
  %v340 = vshrl.u32 %v102, 16
  %v342 = vrot.slane %v340, 7
  %v343 = vshll.u32 %v102, 16
  %v345 = vor.u32 %v342, %v343
  %v346 = vsel %vm109, %v338, %v345
  %v347 = vrot.slane %v342, 4
  %v349 = vshrl.u32 %v103, 16
  %v351 = vrot.slane %v349, 7
  %v352 = vshll.u32 %v103, 16
  %v354 = vor.u32 %v351, %v352
  %v355 = vrot.slane %v351, 4
  %v357 = vshrl.u32 %v104, 16
  %v359 = vrot.slane %v357, 7
  %v360 = vshll.u32 %v104, 16
  %v362 = vor.u32 %v359, %v360
  %v363 = vsel %vm109, %v355, %v362
  %v364 = vrot.slane %v359, 4
  %v366 = vshrl.u32 %v105, 16
  %v368 = vrot.slane %v366, 7
  %v369 = vshll.u32 %v105, 16
  %v371 = vor.u32 %v368, %v369
  %v372 = vrot.slane %v368, 4
  %v374 = vshrl.u32 %v106, 16
  %v376 = vrot.slane %v374, 7
  %v377 = vshll.u32 %v106, 16
  %v379 = vor.u32 %v376, %v377
  %v380 = vsel %vm109, %v372, %v379
  %v381 = vrot.slane %v376, 4
  %s430 = scalar_lea.vmem [#allocation2], 12
  %vm431 = vcmask 1043456
  %vm432 = vsmask.f32 7938
  %vm433 = vmand %vm431, %vm432
  %v434 = vld [vmem:[%s430] sm:$0xf]
  %v435 = vsel %vm433, %v116, %v434
  %436 = vst [vmem:[%s430] sm:$0xf] %v435
  %437 = vst [vmem:[%s430 + $0x4] sm:$0xf] %v125
  %vm438 = vcmask 1040384
  %vm439 = vmand %vm438, %vm107
  %v440 = vld [vmem:[%s430 + $0x8] sm:$0x1]
  %v441 = vsel %vm439, %v126, %v440
  %442 = vst [vmem:[%s430 + $0x8] sm:$0x1] %v441
  %v443 = vld [vmem:[%s430 + $0xc] sm:$0xf]
  %v444 = vsel %vm433, %v133, %v443
  %445 = vst [vmem:[%s430 + $0xc] sm:$0xf] %v444
  %446 = vst [vmem:[%s430 + $0x10] sm:$0xf] %v142
  %v447 = vld [vmem:[%s430 + $0x14] sm:$0x1]
  %v448 = vsel %vm439, %v143, %v447
  %449 = vst [vmem:[%s430 + $0x14] sm:$0x1] %v448
  %v450 = vld [vmem:[%s430 + $0x18] sm:$0xf]
  %v451 = vsel %vm433, %v150, %v450
  %452 = vst [vmem:[%s430 + $0x18] sm:$0xf] %v451
  %453 = vst [vmem:[%s430 + $0x1c] sm:$0xf] %v159
  %v454 = vld [vmem:[%s430 + $0x20] sm:$0x1]
  %v455 = vsel %vm439, %v160, %v454
  %456 = vst [vmem:[%s430 + $0x20] sm:$0x1] %v455
  %v457 = vld [vmem:[%s430 + $0x24] sm:$0xf]
  %v458 = vsel %vm433, %v167, %v457
  %459 = vst [vmem:[%s430 + $0x24] sm:$0xf] %v458
  %460 = vst [vmem:[%s430 + $0x28] sm:$0xf] %v176
  %v461 = vld [vmem:[%s430 + $0x2c] sm:$0x1]
  %v462 = vsel %vm439, %v177, %v461
  %463 = vst [vmem:[%s430 + $0x2c] sm:$0x1] %v462
  %v464 = vld [vmem:[%s430 + $0x30] sm:$0xf]
  %v465 = vsel %vm433, %v184, %v464
  %466 = vst [vmem:[%s430 + $0x30] sm:$0xf] %v465
  %467 = vst [vmem:[%s430 + $0x34] sm:$0xf] %v193
  %v468 = vld [vmem:[%s430 + $0x38] sm:$0x1]
  %v469 = vsel %vm439, %v194, %v468
  %470 = vst [vmem:[%s430 + $0x38] sm:$0x1] %v469
  %v471 = vld [vmem:[%s430 + $0x3c] sm:$0xf]
  %v472 = vsel %vm433, %v201, %v471
  %473 = vst [vmem:[%s430 + $0x3c] sm:$0xf] %v472
  %474 = vst [vmem:[%s430 + $0x40] sm:$0xf] %v210
  %v475 = vld [vmem:[%s430 + $0x44] sm:$0x1]
  %v476 = vsel %vm439, %v211, %v475
  %477 = vst [vmem:[%s430 + $0x44] sm:$0x1] %v476
  %v478 = vld [vmem:[%s430 + $0x48] sm:$0xf]
  %v479 = vsel %vm433, %v218, %v478
  %480 = vst [vmem:[%s430 + $0x48] sm:$0xf] %v479
  %481 = vst [vmem:[%s430 + $0x4c] sm:$0xf] %v227
  %v482 = vld [vmem:[%s430 + $0x50] sm:$0x1]
  %v483 = vsel %vm439, %v228, %v482
  %484 = vst [vmem:[%s430 + $0x50] sm:$0x1] %v483
  %v485 = vld [vmem:[%s430 + $0x54] sm:$0xf]
  %v486 = vsel %vm433, %v235, %v485
  %487 = vst [vmem:[%s430 + $0x54] sm:$0xf] %v486
  %488 = vst [vmem:[%s430 + $0x58] sm:$0xf] %v244
  %v489 = vld [vmem:[%s430 + $0x5c] sm:$0x1]
  %v490 = vsel %vm439, %v245, %v489
  %491 = vst [vmem:[%s430 + $0x5c] sm:$0x1] %v490
  %v492 = vld [vmem:[%s430 + $0x60] sm:$0xf]
  %v493 = vsel %vm433, %v252, %v492
  %494 = vst [vmem:[%s430 + $0x60] sm:$0xf] %v493
  %495 = vst [vmem:[%s430 + $0x64] sm:$0xf] %v261
  %v496 = vld [vmem:[%s430 + $0x68] sm:$0x1]
  %v497 = vsel %vm439, %v262, %v496
  %498 = vst [vmem:[%s430 + $0x68] sm:$0x1] %v497
  %v499 = vld [vmem:[%s430 + $0x6c] sm:$0xf]
  %v500 = vsel %vm433, %v269, %v499
  %501 = vst [vmem:[%s430 + $0x6c] sm:$0xf] %v500
  %502 = vst [vmem:[%s430 + $0x70] sm:$0xf] %v278
  %v503 = vld [vmem:[%s430 + $0x74] sm:$0x1]
  %v504 = vsel %vm439, %v279, %v503
  %505 = vst [vmem:[%s430 + $0x74] sm:$0x1] %v504
  %v506 = vld [vmem:[%s430 + $0x78] sm:$0xf]
  %v507 = vsel %vm433, %v286, %v506
  %508 = vst [vmem:[%s430 + $0x78] sm:$0xf] %v507
  %509 = vst [vmem:[%s430 + $0x7c] sm:$0xf] %v295
  %v510 = vld [vmem:[%s430 + $0x80] sm:$0x1]
  %v511 = vsel %vm439, %v296, %v510
  %512 = vst [vmem:[%s430 + $0x80] sm:$0x1] %v511
  %v513 = vld [vmem:[%s430 + $0x84] sm:$0xf]
  %v514 = vsel %vm433, %v303, %v513
  %515 = vst [vmem:[%s430 + $0x84] sm:$0xf] %v514
  %516 = vst [vmem:[%s430 + $0x88] sm:$0xf] %v312
  %v517 = vld [vmem:[%s430 + $0x8c] sm:$0x1]
  %v518 = vsel %vm439, %v313, %v517
  %519 = vst [vmem:[%s430 + $0x8c] sm:$0x1] %v518
  %v520 = vld [vmem:[%s430 + $0x90] sm:$0xf]
  %v521 = vsel %vm433, %v320, %v520
  %522 = vst [vmem:[%s430 + $0x90] sm:$0xf] %v521
  %523 = vst [vmem:[%s430 + $0x94] sm:$0xf] %v329
  %v524 = vld [vmem:[%s430 + $0x98] sm:$0x1]
  %v525 = vsel %vm439, %v330, %v524
  %526 = vst [vmem:[%s430 + $0x98] sm:$0x1] %v525
  %v527 = vld [vmem:[%s430 + $0x9c] sm:$0xf]
  %v528 = vsel %vm433, %v337, %v527
  %529 = vst [vmem:[%s430 + $0x9c] sm:$0xf] %v528
  %530 = vst [vmem:[%s430 + $0xa0] sm:$0xf] %v346
  %v531 = vld [vmem:[%s430 + $0xa4] sm:$0x1]
  %v532 = vsel %vm439, %v347, %v531
  %533 = vst [vmem:[%s430 + $0xa4] sm:$0x1] %v532
  %v534 = vld [vmem:[%s430 + $0xa8] sm:$0xf]
  %v535 = vsel %vm433, %v354, %v534
  %536 = vst [vmem:[%s430 + $0xa8] sm:$0xf] %v535
  %537 = vst [vmem:[%s430 + $0xac] sm:$0xf] %v363
  %v538 = vld [vmem:[%s430 + $0xb0] sm:$0x1]
  %v539 = vsel %vm439, %v364, %v538
  %540 = vst [vmem:[%s430 + $0xb0] sm:$0x1] %v539
  %v541 = vld [vmem:[%s430 + $0xb4] sm:$0xf]
  %v542 = vsel %vm433, %v371, %v541
  %543 = vst [vmem:[%s430 + $0xb4] sm:$0xf] %v542
  %544 = vst [vmem:[%s430 + $0xb8] sm:$0xf] %v380
  %v545 = vld [vmem:[%s430 + $0xbc] sm:$0x1]
  %v546 = vsel %vm439, %v381, %v545
  %547 = vst [vmem:[%s430 + $0xbc] sm:$0x1] %v546
  %v548 = vld [vmem:[#allocation2] sm:$0xf]
  %v549 = vld [vmem:[#allocation2 + $0x4] sm:$0xf]
  %v550 = vld [vmem:[#allocation2 + $0xc] sm:$0xf]
  %v551 = vld [vmem:[#allocation2 + $0x10] sm:$0xf]
  %v552 = vld [vmem:[#allocation2 + $0x18] sm:$0xf]
  %v553 = vld [vmem:[#allocation2 + $0x1c] sm:$0xf]
  %v554 = vld [vmem:[#allocation2 + $0x24] sm:$0xf]
  %v555 = vld [vmem:[#allocation2 + $0x28] sm:$0xf]
  %v556 = vld [vmem:[#allocation2 + $0x30] sm:$0xf]
  %v557 = vld [vmem:[#allocation2 + $0x34] sm:$0xf]
  %v558 = vld [vmem:[#allocation2 + $0x3c] sm:$0xf]
  %v559 = vld [vmem:[#allocation2 + $0x40] sm:$0xf]
  %v560 = vld [vmem:[#allocation2 + $0x48] sm:$0xf]
  %v561 = vld [vmem:[#allocation2 + $0x4c] sm:$0xf]
  %v562 = vld [vmem:[#allocation2 + $0x54] sm:$0xf]
  %v563 = vld [vmem:[#allocation2 + $0x58] sm:$0xf]
  %v564 = vld [vmem:[#allocation2 + $0x60] sm:$0xf]
  %v565 = vld [vmem:[#allocation2 + $0x64] sm:$0xf]
  %v566 = vld [vmem:[#allocation2 + $0x6c] sm:$0xf]
  %v567 = vld [vmem:[#allocation2 + $0x70] sm:$0xf]
  %v568 = vld [vmem:[#allocation2 + $0x78] sm:$0xf]
  %v569 = vld [vmem:[#allocation2 + $0x7c] sm:$0xf]
  %v570 = vld [vmem:[#allocation2 + $0x84] sm:$0xf]
  %v571 = vld [vmem:[#allocation2 + $0x88] sm:$0xf]
  %v572 = vld [vmem:[#allocation2 + $0x90] sm:$0xf]
  %v573 = vld [vmem:[#allocation2 + $0x94] sm:$0xf]
  %v574 = vld [vmem:[#allocation2 + $0x9c] sm:$0xf]
  %v575 = vld [vmem:[#allocation2 + $0xa0] sm:$0xf]
  %v576 = vld [vmem:[#allocation2 + $0xa8] sm:$0xf]
  %v577 = vld [vmem:[#allocation2 + $0xac] sm:$0xf]
  %v578 = vld [vmem:[#allocation2 + $0xb4] sm:$0xf]
  %v579 = vld [vmem:[#allocation2 + $0xb8] sm:$0xf]
  %v580 = vld [vmem:[%s1] sm:$0xf]
  %v581 = vld [vmem:[%s1 + $0x4] sm:$0xf]
  %v582 = vld [vmem:[%s1 + $0x8] sm:$0xf]
  %v583 = vld [vmem:[%s1 + $0xc] sm:$0xf]
  %v584 = vld [vmem:[%s1 + $0x10] sm:$0xf]
  %v585 = vld [vmem:[%s1 + $0x14] sm:$0xf]
  %v586 = vld [vmem:[%s1 + $0x18] sm:$0xf]
  %v587 = vld [vmem:[%s1 + $0x1c] sm:$0xf]
  %v588 = vld [vmem:[%s1 + $0x20] sm:$0xf]
  %v589 = vld [vmem:[%s1 + $0x24] sm:$0xf]
  %v590 = vld [vmem:[%s1 + $0x28] sm:$0xf]
  %v591 = vld [vmem:[%s1 + $0x2c] sm:$0xf]
  %v592 = vld [vmem:[%s1 + $0x30] sm:$0xf]
  %v593 = vld [vmem:[%s1 + $0x34] sm:$0xf]
  %v594 = vld [vmem:[%s1 + $0x38] sm:$0xf]
  %v595 = vld [vmem:[%s1 + $0x3c] sm:$0xf]
  %v628 = vunpack.c.l.b16 %v548
  %v629 = vunpack.c.l.b16 %v549
  %v630 = vunpack.c.l.b16 %v550
  %v631 = vunpack.c.l.b16 %v551
  %v632 = vunpack.c.l.b16 %v552
  %v633 = vunpack.c.l.b16 %v553
  %v634 = vunpack.c.l.b16 %v554
  %v635 = vunpack.c.l.b16 %v555
  %v636 = vunpack.c.l.b16 %v556
  %v637 = vunpack.c.l.b16 %v557
  %v638 = vunpack.c.l.b16 %v558
  %v639 = vunpack.c.l.b16 %v559
  %v640 = vunpack.c.l.b16 %v560
  %v641 = vunpack.c.l.b16 %v561
  %v642 = vunpack.c.l.b16 %v562
  %v643 = vunpack.c.l.b16 %v563
  %v644 = vunpack.c.l.b16 %v564
  %v645 = vunpack.c.l.b16 %v565
  %v646 = vunpack.c.l.b16 %v566
  %v647 = vunpack.c.l.b16 %v567
  %v648 = vunpack.c.l.b16 %v568
  %v649 = vunpack.c.l.b16 %v569
  %v650 = vunpack.c.l.b16 %v570
  %v651 = vunpack.c.l.b16 %v571
  %v652 = vunpack.c.l.b16 %v572
  %v653 = vunpack.c.l.b16 %v573
  %v654 = vunpack.c.l.b16 %v574
  %v655 = vunpack.c.l.b16 %v575
  %v656 = vunpack.c.l.b16 %v576
  %v657 = vunpack.c.l.b16 %v577
  %v658 = vunpack.c.l.b16 %v578
  %v659 = vunpack.c.l.b16 %v579
  %v660 = vpack.c.b16 %v629, %v628
  %v661 = vpack.c.b16 %v631, %v630
  %v662 = vpack.c.b16 %v633, %v632
  %v663 = vpack.c.b16 %v635, %v634
  %v664 = vpack.c.b16 %v637, %v636
  %v665 = vpack.c.b16 %v639, %v638
  %v666 = vpack.c.b16 %v641, %v640
  %v667 = vpack.c.b16 %v643, %v642
  %v668 = vpack.c.b16 %v645, %v644
  %v669 = vpack.c.b16 %v647, %v646
  %v670 = vpack.c.b16 %v649, %v648
  %v671 = vpack.c.b16 %v651, %v650
  %v672 = vpack.c.b16 %v653, %v652
  %v673 = vpack.c.b16 %v655, %v654
  %v674 = vpack.c.b16 %v657, %v656
  %v675 = vpack.c.b16 %v659, %v658
  %v708 = vunpack.c.l.b16 %v580
  %v709 = vunpack.c.l.b16 %v581
  %v710 = vunpack.c.l.b16 %v582
  %v711 = vunpack.c.l.b16 %v583
  %v712 = vunpack.c.l.b16 %v584
  %v713 = vunpack.c.l.b16 %v585
  %v714 = vunpack.c.l.b16 %v586
  %v715 = vunpack.c.l.b16 %v587
  %v716 = vunpack.c.l.b16 %v588
  %v717 = vunpack.c.l.b16 %v589
  %v718 = vunpack.c.l.b16 %v590
  %v719 = vunpack.c.l.b16 %v591
  %v720 = vunpack.c.l.b16 %v592
  %v721 = vunpack.c.l.b16 %v593
  %v722 = vunpack.c.l.b16 %v594
  %v723 = vunpack.c.l.b16 %v595
  %v724 = vpack.c.b16 %v709, %v708
  %v725 = vpack.c.b16 %v711, %v710
  %v726 = vpack.c.b16 %v713, %v712
  %v727 = vpack.c.b16 %v715, %v714
  %v728 = vpack.c.b16 %v717, %v716
  %v729 = vpack.c.b16 %v719, %v718
  %v730 = vpack.c.b16 %v721, %v720
  %v731 = vpack.c.b16 %v723, %v722
  %740 = vmatprep.subr.bf16.mxu0 0
  %741 = vmatpush1.bf16.msra.mxu0 %v731
  %742 = vmatprep.subr.bf16.mxu0 0
  %743 = vmatpush1.bf16.msra.mxu0 %v730
  %744 = vmatprep.subr.bf16.mxu0 0
  %745 = vmatpush1.bf16.msra.mxu0 %v729
  %746 = vmatprep.subr.bf16.mxu0 0
  %747 = vmatpush1.bf16.msra.mxu0 %v728
  %748 = vmatprep.subr.bf16.mxu0 0
  %749 = vmatpush1.bf16.msra.mxu0 %v727
  %750 = vmatprep.subr.bf16.mxu0 0
  %751 = vmatpush1.bf16.msra.mxu0 %v726
  %752 = vmatprep.subr.bf16.mxu0 0
  %753 = vmatpush1.bf16.msra.mxu0 %v725
  %754 = vmatprep.subr.bf16.mxu0 0
  %755 = vmatpush1.bf16.msra.mxu0 %v724
  %756 = vmatprep.subr.bf16.mxu0 0
  %757 = vmatpush2.bf16.msra.mxu0 0
  %758 = vmatprep.subr.bf16.mxu0 0
  %759 = vmatpush2.bf16.msra.mxu0 0
  %760 = vmatprep.subr.bf16.mxu0 0
  %761 = vmatpush2.bf16.msra.mxu0 0
  %762 = vmatprep.subr.bf16.mxu0 0
  %763 = vmatpush2.bf16.msra.mxu0 0
  %764 = vmatprep.subr.bf16.mxu0 0
  %765 = vmatpush2.bf16.msra.mxu0 0
  %766 = vmatprep.subr.bf16.mxu0 0
  %767 = vmatpush2.bf16.msra.mxu0 0
  %768 = vmatprep.subr.bf16.mxu0 0
  %769 = vmatpush2.bf16.msra.mxu0 0
  %770 = vmatprep.subr.bf16.mxu0 0
  %771 = vmatpush2.bf16.msra.mxu0 0
  %772 = vmatprep.mubr.bf16.mxu0 0
  %773 = vmatmul.mubr.bf16.gmra.mxu0 %v660
  %v774 = vpop.f32.mrf.mxu0
  %v775 = vadd.f32 0.0, %v774
  %v776 = vpop.f32.mrf.mxu0
  %v777 = vpop.f32.mrf.mxu0
  %v778 = vadd.f32 0.0, %v777
  %v779 = vpop.f32.mrf.mxu0
  %780 = vmatprep.mubr.bf16.mxu0 0
  %781 = vmatmul.mubr.bf16.gmra.mxu0 %v661
  %v782 = vpop.f32.mrf.mxu0
  %v783 = vadd.f32 0.0, %v782
  %v784 = vpop.f32.mrf.mxu0
  %v785 = vpop.f32.mrf.mxu0
  %v786 = vadd.f32 0.0, %v785
  %v787 = vpop.f32.mrf.mxu0
  %788 = vmatprep.mubr.bf16.mxu0 0
  %789 = vmatmul.mubr.bf16.gmra.mxu0 %v662
  %v790 = vpop.f32.mrf.mxu0
  %v791 = vadd.f32 0.0, %v790
  %v792 = vpop.f32.mrf.mxu0
  %v793 = vpop.f32.mrf.mxu0
  %v794 = vadd.f32 0.0, %v793
  %v795 = vpop.f32.mrf.mxu0
  %796 = vmatprep.mubr.bf16.mxu0 0
  %797 = vmatmul.mubr.bf16.gmra.mxu0 %v663
  %v798 = vpop.f32.mrf.mxu0
  %v799 = vadd.f32 0.0, %v798
  %v800 = vpop.f32.mrf.mxu0
  %v801 = vpop.f32.mrf.mxu0
  %v802 = vadd.f32 0.0, %v801
  %v803 = vpop.f32.mrf.mxu0
  %804 = vmatprep.mubr.bf16.mxu0 0
  %805 = vmatmul.mubr.bf16.gmra.mxu0 %v664
  %v806 = vpop.f32.mrf.mxu0
  %v807 = vadd.f32 0.0, %v806
  %v808 = vpop.f32.mrf.mxu0
  %v809 = vpop.f32.mrf.mxu0
  %v810 = vadd.f32 0.0, %v809
  %v811 = vpop.f32.mrf.mxu0
  %812 = vmatprep.mubr.bf16.mxu0 0
  %813 = vmatmul.mubr.bf16.gmra.mxu0 %v665
  %v814 = vpop.f32.mrf.mxu0
  %v815 = vadd.f32 0.0, %v814
  %v816 = vpop.f32.mrf.mxu0
  %v817 = vpop.f32.mrf.mxu0
  %v818 = vadd.f32 0.0, %v817
  %v819 = vpop.f32.mrf.mxu0
  %820 = vmatprep.mubr.bf16.mxu0 0
  %821 = vmatmul.mubr.bf16.gmra.mxu0 %v666
  %v822 = vpop.f32.mrf.mxu0
  %v823 = vadd.f32 0.0, %v822
  %v824 = vpop.f32.mrf.mxu0
  %v825 = vpop.f32.mrf.mxu0
  %v826 = vadd.f32 0.0, %v825
  %v827 = vpop.f32.mrf.mxu0
  %828 = vmatprep.mubr.bf16.mxu0 0
  %829 = vmatmul.mubr.bf16.gmra.mxu0 %v667
  %v830 = vpop.f32.mrf.mxu0
  %v831 = vadd.f32 0.0, %v830
  %v832 = vpop.f32.mrf.mxu0
  %v833 = vpop.f32.mrf.mxu0
  %v834 = vadd.f32 0.0, %v833
  %v835 = vpop.f32.mrf.mxu0
  %836 = vmatprep.mubr.bf16.mxu0 0
  %837 = vmatmul.mubr.bf16.gmra.mxu0 %v668
  %v838 = vpop.f32.mrf.mxu0
  %v839 = vadd.f32 0.0, %v838
  %v840 = vpop.f32.mrf.mxu0
  %v841 = vpop.f32.mrf.mxu0
  %v842 = vadd.f32 0.0, %v841
  %v843 = vpop.f32.mrf.mxu0
  %844 = vmatprep.mubr.bf16.mxu0 0
  %845 = vmatmul.mubr.bf16.gmra.mxu0 %v669
  %v846 = vpop.f32.mrf.mxu0
  %v847 = vadd.f32 0.0, %v846
  %v848 = vpop.f32.mrf.mxu0
  %v849 = vpop.f32.mrf.mxu0
  %v850 = vadd.f32 0.0, %v849
  %v851 = vpop.f32.mrf.mxu0
  %852 = vmatprep.mubr.bf16.mxu0 0
  %853 = vmatmul.mubr.bf16.gmra.mxu0 %v670
  %v854 = vpop.f32.mrf.mxu0
  %v855 = vadd.f32 0.0, %v854
  %v856 = vpop.f32.mrf.mxu0
  %v857 = vpop.f32.mrf.mxu0
  %v858 = vadd.f32 0.0, %v857
  %v859 = vpop.f32.mrf.mxu0
  %860 = vmatprep.mubr.bf16.mxu0 0
  %861 = vmatmul.mubr.bf16.gmra.mxu0 %v671
  %v862 = vpop.f32.mrf.mxu0
  %v863 = vadd.f32 0.0, %v862
  %v864 = vpop.f32.mrf.mxu0
  %v865 = vpop.f32.mrf.mxu0
  %v866 = vadd.f32 0.0, %v865
  %v867 = vpop.f32.mrf.mxu0
  %868 = vmatprep.mubr.bf16.mxu0 0
  %869 = vmatmul.mubr.bf16.gmra.mxu0 %v672
  %v870 = vpop.f32.mrf.mxu0
  %v871 = vadd.f32 0.0, %v870
  %v872 = vpop.f32.mrf.mxu0
  %v873 = vpop.f32.mrf.mxu0
  %v874 = vadd.f32 0.0, %v873
  %v875 = vpop.f32.mrf.mxu0
  %876 = vmatprep.mubr.bf16.mxu0 0
  %877 = vmatmul.mubr.bf16.gmra.mxu0 %v673
  %v878 = vpop.f32.mrf.mxu0
  %v879 = vadd.f32 0.0, %v878
  %v880 = vpop.f32.mrf.mxu0
  %v881 = vpop.f32.mrf.mxu0
  %v882 = vadd.f32 0.0, %v881
  %v883 = vpop.f32.mrf.mxu0
  %884 = vmatprep.mubr.bf16.mxu0 0
  %885 = vmatmul.mubr.bf16.gmra.mxu0 %v674
  %v886 = vpop.f32.mrf.mxu0
  %v887 = vadd.f32 0.0, %v886
  %v888 = vpop.f32.mrf.mxu0
  %v889 = vpop.f32.mrf.mxu0
  %v890 = vadd.f32 0.0, %v889
  %v891 = vpop.f32.mrf.mxu0
  %892 = vmatprep.mubr.bf16.mxu0 0
  %893 = vmatmul.mubr.bf16.gmra.mxu0 %v675
  %v894 = vpop.f32.mrf.mxu0
  %v895 = vadd.f32 0.0, %v894
  %v896 = vpop.f32.mrf.mxu0
  %v897 = vpop.f32.mrf.mxu0
  %v898 = vadd.f32 0.0, %v897
  %v899 = vpop.f32.mrf.mxu0
  %900 = vdwg.mxu0
  %901 = vst [vmem:[#allocation3] sm:$0xff] %v775
  %902 = vst [vmem:[#allocation3 + $0x8] sm:$0xff] %v778
  %903 = vst [vmem:[#allocation3 + $0x10] sm:$0xff] %v783
  %904 = vst [vmem:[#allocation3 + $0x18] sm:$0xff] %v786
  %905 = vst [vmem:[#allocation3 + $0x20] sm:$0xff] %v791
  %906 = vst [vmem:[#allocation3 + $0x28] sm:$0xff] %v794
  %907 = vst [vmem:[#allocation3 + $0x30] sm:$0xff] %v799
  %908 = vst [vmem:[#allocation3 + $0x38] sm:$0xff] %v802
  %909 = vst [vmem:[#allocation3 + $0x40] sm:$0xff] %v807
  %910 = vst [vmem:[#allocation3 + $0x48] sm:$0xff] %v810
  %911 = vst [vmem:[#allocation3 + $0x50] sm:$0xff] %v815
  %912 = vst [vmem:[#allocation3 + $0x58] sm:$0xff] %v818
  %913 = vst [vmem:[#allocation3 + $0x60] sm:$0xff] %v823
  %914 = vst [vmem:[#allocation3 + $0x68] sm:$0xff] %v826
  %915 = vst [vmem:[#allocation3 + $0x70] sm:$0xff] %v831
  %916 = vst [vmem:[#allocation3 + $0x78] sm:$0xff] %v834
  %917 = vst [vmem:[#allocation3 + $0x80] sm:$0xff] %v839
  %918 = vst [vmem:[#allocation3 + $0x88] sm:$0xff] %v842
  %919 = vst [vmem:[#allocation3 + $0x90] sm:$0xff] %v847
  %920 = vst [vmem:[#allocation3 + $0x98] sm:$0xff] %v850
  %921 = vst [vmem:[#allocation3 + $0xa0] sm:$0xff] %v855
  %922 = vst [vmem:[#allocation3 + $0xa8] sm:$0xff] %v858
  %923 = vst [vmem:[#allocation3 + $0xb0] sm:$0xff] %v863
  %924 = vst [vmem:[#allocation3 + $0xb8] sm:$0xff] %v866
  %925 = vst [vmem:[#allocation3 + $0xc0] sm:$0xff] %v871
  %926 = vst [vmem:[#allocation3 + $0xc8] sm:$0xff] %v874
  %927 = vst [vmem:[#allocation3 + $0xd0] sm:$0xff] %v879
  %928 = vst [vmem:[#allocation3 + $0xd8] sm:$0xff] %v882
  %929 = vst [vmem:[#allocation3 + $0xe0] sm:$0xff] %v887
  %930 = vst [vmem:[#allocation3 + $0xe8] sm:$0xff] %v890
  %931 = vst [vmem:[#allocation3 + $0xf0] sm:$0xff] %v895
  %932 = vst [vmem:[#allocation3 + $0xf8] sm:$0xff] %v898
  %v933 = vld [vmem:[#allocation2] sm:$0xf]
  %v934 = vld [vmem:[#allocation2 + $0x4] sm:$0xf]
  %v935 = vld [vmem:[#allocation2 + $0x8] sm:$0x1]
  %v936 = vld [vmem:[#allocation2 + $0xc] sm:$0xf]
  %v937 = vld [vmem:[#allocation2 + $0x10] sm:$0xf]
  %v938 = vld [vmem:[#allocation2 + $0x14] sm:$0x1]
  %v939 = vld [vmem:[#allocation2 + $0x18] sm:$0xf]
  %v940 = vld [vmem:[#allocation2 + $0x1c] sm:$0xf]
  %v941 = vld [vmem:[#allocation2 + $0x20] sm:$0x1]
  %v942 = vld [vmem:[#allocation2 + $0x24] sm:$0xf]
  %v943 = vld [vmem:[#allocation2 + $0x28] sm:$0xf]
  %v944 = vld [vmem:[#allocation2 + $0x2c] sm:$0x1]
  %v945 = vld [vmem:[#allocation2 + $0x30] sm:$0xf]
  %v946 = vld [vmem:[#allocation2 + $0x34] sm:$0xf]
  %v947 = vld [vmem:[#allocation2 + $0x38] sm:$0x1]
  %v948 = vld [vmem:[#allocation2 + $0x3c] sm:$0xf]
  %v949 = vld [vmem:[#allocation2 + $0x40] sm:$0xf]
  %v950 = vld [vmem:[#allocation2 + $0x44] sm:$0x1]
  %v951 = vld [vmem:[#allocation2 + $0x48] sm:$0xf]
  %v952 = vld [vmem:[#allocation2 + $0x4c] sm:$0xf]
  %v953 = vld [vmem:[#allocation2 + $0x50] sm:$0x1]
  %v954 = vld [vmem:[#allocation2 + $0x54] sm:$0xf]
  %v955 = vld [vmem:[#allocation2 + $0x58] sm:$0xf]
  %v956 = vld [vmem:[#allocation2 + $0x5c] sm:$0x1]
  %v957 = vld [vmem:[#allocation2 + $0x60] sm:$0xf]
  %v958 = vld [vmem:[#allocation2 + $0x64] sm:$0xf]
  %v959 = vld [vmem:[#allocation2 + $0x68] sm:$0x1]
  %v960 = vld [vmem:[#allocation2 + $0x6c] sm:$0xf]
  %v961 = vld [vmem:[#allocation2 + $0x70] sm:$0xf]
  %v962 = vld [vmem:[#allocation2 + $0x74] sm:$0x1]
  %v963 = vld [vmem:[#allocation2 + $0x78] sm:$0xf]
  %v964 = vld [vmem:[#allocation2 + $0x7c] sm:$0xf]
  %v965 = vld [vmem:[#allocation2 + $0x80] sm:$0x1]
  %v966 = vld [vmem:[#allocation2 + $0x84] sm:$0xf]
  %v967 = vld [vmem:[#allocation2 + $0x88] sm:$0xf]
  %v968 = vld [vmem:[#allocation2 + $0x8c] sm:$0x1]
  %v969 = vld [vmem:[#allocation2 + $0x90] sm:$0xf]
  %v970 = vld [vmem:[#allocation2 + $0x94] sm:$0xf]
  %v971 = vld [vmem:[#allocation2 + $0x98] sm:$0x1]
  %v972 = vld [vmem:[#allocation2 + $0x9c] sm:$0xf]
  %v973 = vld [vmem:[#allocation2 + $0xa0] sm:$0xf]
  %v974 = vld [vmem:[#allocation2 + $0xa4] sm:$0x1]
  %v975 = vld [vmem:[#allocation2 + $0xa8] sm:$0xf]
  %v976 = vld [vmem:[#allocation2 + $0xac] sm:$0xf]
  %v977 = vld [vmem:[#allocation2 + $0xb0] sm:$0x1]
  %v978 = vld [vmem:[#allocation2 + $0xb4] sm:$0xf]
  %v979 = vld [vmem:[#allocation2 + $0xb8] sm:$0xf]
  %v980 = vld [vmem:[#allocation2 + $0xbc] sm:$0x1]
  %vm981 = vsmask.f32 3328
  %vm982 = vsmask.f32 7440
  %vm983 = vmor %vm981, %vm982
  %v985 = vshrl.u32 %v933, 16
  %v987 = vrot.slane %v985, 4
  %v988 = vshll.u32 %v933, 16
  %v990 = vrot.slane %v988, 5
  %v991 = vor.u32 %v987, %v990
  %v992 = vrot.slane %v991, 4
  %v994 = vshll.u32 %v934, 16
  %v996 = vrot.slane %v994, 5
  %v997 = vsel %vm983, %v992, %v996
  %v998 = vshrl.u32 %v934, 16
  %v1000 = vrot.slane %v998, 4
  %v1001 = vor.u32 %v1000, %v996
  %v1002 = vrot.slane %v1001, 4
  %v1004 = vshll.u32 %v935, 16
  %v1006 = vrot.slane %v1004, 5
  %v1007 = vsel %vm983, %v1002, %v1006
  %v1009 = vshrl.u32 %v936, 16
  %v1011 = vrot.slane %v1009, 4
  %v1012 = vshll.u32 %v936, 16
  %v1014 = vrot.slane %v1012, 5
  %v1015 = vor.u32 %v1011, %v1014
  %v1016 = vrot.slane %v1015, 4
  %v1018 = vshll.u32 %v937, 16
  %v1020 = vrot.slane %v1018, 5
  %v1021 = vsel %vm983, %v1016, %v1020
  %v1022 = vshrl.u32 %v937, 16
  %v1024 = vrot.slane %v1022, 4
  %v1025 = vor.u32 %v1024, %v1020
  %v1026 = vrot.slane %v1025, 4
  %v1028 = vshll.u32 %v938, 16
  %v1030 = vrot.slane %v1028, 5
  %v1031 = vsel %vm983, %v1026, %v1030
  %v1033 = vshrl.u32 %v939, 16
  %v1035 = vrot.slane %v1033, 4
  %v1036 = vshll.u32 %v939, 16
  %v1038 = vrot.slane %v1036, 5
  %v1039 = vor.u32 %v1035, %v1038
  %v1040 = vrot.slane %v1039, 4
  %v1042 = vshll.u32 %v940, 16
  %v1044 = vrot.slane %v1042, 5
  %v1045 = vsel %vm983, %v1040, %v1044
  %v1046 = vshrl.u32 %v940, 16
  %v1048 = vrot.slane %v1046, 4
  %v1049 = vor.u32 %v1048, %v1044
  %v1050 = vrot.slane %v1049, 4
  %v1052 = vshll.u32 %v941, 16
  %v1054 = vrot.slane %v1052, 5
  %v1055 = vsel %vm983, %v1050, %v1054
  %v1057 = vshrl.u32 %v942, 16
  %v1059 = vrot.slane %v1057, 4
  %v1060 = vshll.u32 %v942, 16
  %v1062 = vrot.slane %v1060, 5
  %v1063 = vor.u32 %v1059, %v1062
  %v1064 = vrot.slane %v1063, 4
  %v1066 = vshll.u32 %v943, 16
  %v1068 = vrot.slane %v1066, 5
  %v1069 = vsel %vm983, %v1064, %v1068
  %v1070 = vshrl.u32 %v943, 16
  %v1072 = vrot.slane %v1070, 4
  %v1073 = vor.u32 %v1072, %v1068
  %v1074 = vrot.slane %v1073, 4
  %v1076 = vshll.u32 %v944, 16
  %v1078 = vrot.slane %v1076, 5
  %v1079 = vsel %vm983, %v1074, %v1078
  %v1081 = vshrl.u32 %v945, 16
  %v1083 = vrot.slane %v1081, 4
  %v1084 = vshll.u32 %v945, 16
  %v1086 = vrot.slane %v1084, 5
  %v1087 = vor.u32 %v1083, %v1086
  %v1088 = vrot.slane %v1087, 4
  %v1090 = vshll.u32 %v946, 16
  %v1092 = vrot.slane %v1090, 5
  %v1093 = vsel %vm983, %v1088, %v1092
  %v1094 = vshrl.u32 %v946, 16
  %v1096 = vrot.slane %v1094, 4
  %v1097 = vor.u32 %v1096, %v1092
  %v1098 = vrot.slane %v1097, 4
  %v1100 = vshll.u32 %v947, 16
  %v1102 = vrot.slane %v1100, 5
  %v1103 = vsel %vm983, %v1098, %v1102
  %v1105 = vshrl.u32 %v948, 16
  %v1107 = vrot.slane %v1105, 4
  %v1108 = vshll.u32 %v948, 16
  %v1110 = vrot.slane %v1108, 5
  %v1111 = vor.u32 %v1107, %v1110
  %v1112 = vrot.slane %v1111, 4
  %v1114 = vshll.u32 %v949, 16
  %v1116 = vrot.slane %v1114, 5
  %v1117 = vsel %vm983, %v1112, %v1116
  %v1118 = vshrl.u32 %v949, 16
  %v1120 = vrot.slane %v1118, 4
  %v1121 = vor.u32 %v1120, %v1116
  %v1122 = vrot.slane %v1121, 4
  %v1124 = vshll.u32 %v950, 16
  %v1126 = vrot.slane %v1124, 5
  %v1127 = vsel %vm983, %v1122, %v1126
  %v1129 = vshrl.u32 %v951, 16
  %v1131 = vrot.slane %v1129, 4
  %v1132 = vshll.u32 %v951, 16
  %v1134 = vrot.slane %v1132, 5
  %v1135 = vor.u32 %v1131, %v1134
  %v1136 = vrot.slane %v1135, 4
  %v1138 = vshll.u32 %v952, 16
  %v1140 = vrot.slane %v1138, 5
  %v1141 = vsel %vm983, %v1136, %v1140
  %v1142 = vshrl.u32 %v952, 16
  %v1144 = vrot.slane %v1142, 4
  %v1145 = vor.u32 %v1144, %v1140
  %v1146 = vrot.slane %v1145, 4
  %v1148 = vshll.u32 %v953, 16
  %v1150 = vrot.slane %v1148, 5
  %v1151 = vsel %vm983, %v1146, %v1150
  %v1153 = vshrl.u32 %v954, 16
  %v1155 = vrot.slane %v1153, 4
  %v1156 = vshll.u32 %v954, 16
  %v1158 = vrot.slane %v1156, 5
  %v1159 = vor.u32 %v1155, %v1158
  %v1160 = vrot.slane %v1159, 4
  %v1162 = vshll.u32 %v955, 16
  %v1164 = vrot.slane %v1162, 5
  %v1165 = vsel %vm983, %v1160, %v1164
  %v1166 = vshrl.u32 %v955, 16
  %v1168 = vrot.slane %v1166, 4
  %v1169 = vor.u32 %v1168, %v1164
  %v1170 = vrot.slane %v1169, 4
  %v1172 = vshll.u32 %v956, 16
  %v1174 = vrot.slane %v1172, 5
  %v1175 = vsel %vm983, %v1170, %v1174
  %v1177 = vshrl.u32 %v957, 16
  %v1179 = vrot.slane %v1177, 4
  %v1180 = vshll.u32 %v957, 16
  %v1182 = vrot.slane %v1180, 5
  %v1183 = vor.u32 %v1179, %v1182
  %v1184 = vrot.slane %v1183, 4
  %v1186 = vshll.u32 %v958, 16
  %v1188 = vrot.slane %v1186, 5
  %v1189 = vsel %vm983, %v1184, %v1188
  %v1190 = vshrl.u32 %v958, 16
  %v1192 = vrot.slane %v1190, 4
  %v1193 = vor.u32 %v1192, %v1188
  %v1194 = vrot.slane %v1193, 4
  %v1196 = vshll.u32 %v959, 16
  %v1198 = vrot.slane %v1196, 5
  %v1199 = vsel %vm983, %v1194, %v1198
  %v1201 = vshrl.u32 %v960, 16
  %v1203 = vrot.slane %v1201, 4
  %v1204 = vshll.u32 %v960, 16
  %v1206 = vrot.slane %v1204, 5
  %v1207 = vor.u32 %v1203, %v1206
  %v1208 = vrot.slane %v1207, 4
  %v1210 = vshll.u32 %v961, 16
  %v1212 = vrot.slane %v1210, 5
  %v1213 = vsel %vm983, %v1208, %v1212
  %v1214 = vshrl.u32 %v961, 16
  %v1216 = vrot.slane %v1214, 4
  %v1217 = vor.u32 %v1216, %v1212
  %v1218 = vrot.slane %v1217, 4
  %v1220 = vshll.u32 %v962, 16
  %v1222 = vrot.slane %v1220, 5
  %v1223 = vsel %vm983, %v1218, %v1222
  %v1225 = vshrl.u32 %v963, 16
  %v1227 = vrot.slane %v1225, 4
  %v1228 = vshll.u32 %v963, 16
  %v1230 = vrot.slane %v1228, 5
  %v1231 = vor.u32 %v1227, %v1230
  %v1232 = vrot.slane %v1231, 4
  %v1234 = vshll.u32 %v964, 16
  %v1236 = vrot.slane %v1234, 5
  %v1237 = vsel %vm983, %v1232, %v1236
  %v1238 = vshrl.u32 %v964, 16
  %v1240 = vrot.slane %v1238, 4
  %v1241 = vor.u32 %v1240, %v1236
  %v1242 = vrot.slane %v1241, 4
  %v1244 = vshll.u32 %v965, 16
  %v1246 = vrot.slane %v1244, 5
  %v1247 = vsel %vm983, %v1242, %v1246
  %v1249 = vshrl.u32 %v966, 16
  %v1251 = vrot.slane %v1249, 4
  %v1252 = vshll.u32 %v966, 16
  %v1254 = vrot.slane %v1252, 5
  %v1255 = vor.u32 %v1251, %v1254
  %v1256 = vrot.slane %v1255, 4
  %v1258 = vshll.u32 %v967, 16
  %v1260 = vrot.slane %v1258, 5
  %v1261 = vsel %vm983, %v1256, %v1260
  %v1262 = vshrl.u32 %v967, 16
  %v1264 = vrot.slane %v1262, 4
  %v1265 = vor.u32 %v1264, %v1260
  %v1266 = vrot.slane %v1265, 4
  %v1268 = vshll.u32 %v968, 16
  %v1270 = vrot.slane %v1268, 5
  %v1271 = vsel %vm983, %v1266, %v1270
  %v1273 = vshrl.u32 %v969, 16
  %v1275 = vrot.slane %v1273, 4
  %v1276 = vshll.u32 %v969, 16
  %v1278 = vrot.slane %v1276, 5
  %v1279 = vor.u32 %v1275, %v1278
  %v1280 = vrot.slane %v1279, 4
  %v1282 = vshll.u32 %v970, 16
  %v1284 = vrot.slane %v1282, 5
  %v1285 = vsel %vm983, %v1280, %v1284
  %v1286 = vshrl.u32 %v970, 16
  %v1288 = vrot.slane %v1286, 4
  %v1289 = vor.u32 %v1288, %v1284
  %v1290 = vrot.slane %v1289, 4
  %v1292 = vshll.u32 %v971, 16
  %v1294 = vrot.slane %v1292, 5
  %v1295 = vsel %vm983, %v1290, %v1294
  %v1297 = vshrl.u32 %v972, 16
  %v1299 = vrot.slane %v1297, 4
  %v1300 = vshll.u32 %v972, 16
  %v1302 = vrot.slane %v1300, 5
  %v1303 = vor.u32 %v1299, %v1302
  %v1304 = vrot.slane %v1303, 4
  %v1306 = vshll.u32 %v973, 16
  %v1308 = vrot.slane %v1306, 5
  %v1309 = vsel %vm983, %v1304, %v1308
  %v1310 = vshrl.u32 %v973, 16
  %v1312 = vrot.slane %v1310, 4
  %v1313 = vor.u32 %v1312, %v1308
  %v1314 = vrot.slane %v1313, 4
  %v1316 = vshll.u32 %v974, 16
  %v1318 = vrot.slane %v1316, 5
  %v1319 = vsel %vm983, %v1314, %v1318
  %v1321 = vshrl.u32 %v975, 16
  %v1323 = vrot.slane %v1321, 4
  %v1324 = vshll.u32 %v975, 16
  %v1326 = vrot.slane %v1324, 5
  %v1327 = vor.u32 %v1323, %v1326
  %v1328 = vrot.slane %v1327, 4
  %v1330 = vshll.u32 %v976, 16
  %v1332 = vrot.slane %v1330, 5
  %v1333 = vsel %vm983, %v1328, %v1332
  %v1334 = vshrl.u32 %v976, 16
  %v1336 = vrot.slane %v1334, 4
  %v1337 = vor.u32 %v1336, %v1332
  %v1338 = vrot.slane %v1337, 4
  %v1340 = vshll.u32 %v977, 16
  %v1342 = vrot.slane %v1340, 5
  %v1343 = vsel %vm983, %v1338, %v1342
  %v1345 = vshrl.u32 %v978, 16
  %v1347 = vrot.slane %v1345, 4
  %v1348 = vshll.u32 %v978, 16
  %v1350 = vrot.slane %v1348, 5
  %v1351 = vor.u32 %v1347, %v1350
  %v1352 = vrot.slane %v1351, 4
  %v1354 = vshll.u32 %v979, 16
  %v1356 = vrot.slane %v1354, 5
  %v1357 = vsel %vm983, %v1352, %v1356
  %v1358 = vshrl.u32 %v979, 16
  %v1360 = vrot.slane %v1358, 4
  %v1361 = vor.u32 %v1360, %v1356
  %v1362 = vrot.slane %v1361, 4
  %v1364 = vshll.u32 %v980, 16
  %v1366 = vrot.slane %v1364, 5
  %v1367 = vsel %vm983, %v1362, %v1366
  %v1368 = vld [vmem:[%s1 + $0x40] sm:$0xf]
  %v1369 = vld [vmem:[%s1 + $0x44] sm:$0xf]
  %v1370 = vld [vmem:[%s1 + $0x48] sm:$0xf]
  %v1371 = vld [vmem:[%s1 + $0x4c] sm:$0xf]
  %v1372 = vld [vmem:[%s1 + $0x50] sm:$0xf]
  %v1373 = vld [vmem:[%s1 + $0x54] sm:$0xf]
  %v1374 = vld [vmem:[%s1 + $0x58] sm:$0xf]
  %v1375 = vld [vmem:[%s1 + $0x5c] sm:$0xf]
  %v1376 = vld [vmem:[%s1 + $0x60] sm:$0xf]
  %v1377 = vld [vmem:[%s1 + $0x64] sm:$0xf]
  %v1378 = vld [vmem:[%s1 + $0x68] sm:$0xf]
  %v1379 = vld [vmem:[%s1 + $0x6c] sm:$0xf]
  %v1380 = vld [vmem:[%s1 + $0x70] sm:$0xf]
  %v1381 = vld [vmem:[%s1 + $0x74] sm:$0xf]
  %v1382 = vld [vmem:[%s1 + $0x78] sm:$0xf]
  %v1383 = vld [vmem:[%s1 + $0x7c] sm:$0xf]
  %v1384 = vunpack.c.l.b16 %v997
  %v1385 = vunpack.c.l.b16 %v1007
  %v1386 = vunpack.c.l.b16 %v1021
  %v1387 = vunpack.c.l.b16 %v1031
  %v1388 = vunpack.c.l.b16 %v1045
  %v1389 = vunpack.c.l.b16 %v1055
  %v1390 = vunpack.c.l.b16 %v1069
  %v1391 = vunpack.c.l.b16 %v1079
  %v1392 = vunpack.c.l.b16 %v1093
  %v1393 = vunpack.c.l.b16 %v1103
  %v1394 = vunpack.c.l.b16 %v1117
  %v1395 = vunpack.c.l.b16 %v1127
  %v1396 = vunpack.c.l.b16 %v1141
  %v1397 = vunpack.c.l.b16 %v1151
  %v1398 = vunpack.c.l.b16 %v1165
  %v1399 = vunpack.c.l.b16 %v1175
  %v1400 = vunpack.c.l.b16 %v1189
  %v1401 = vunpack.c.l.b16 %v1199
  %v1402 = vunpack.c.l.b16 %v1213
  %v1403 = vunpack.c.l.b16 %v1223
  %v1404 = vunpack.c.l.b16 %v1237
  %v1405 = vunpack.c.l.b16 %v1247
  %v1406 = vunpack.c.l.b16 %v1261
  %v1407 = vunpack.c.l.b16 %v1271
  %v1408 = vunpack.c.l.b16 %v1285
  %v1409 = vunpack.c.l.b16 %v1295
  %v1410 = vunpack.c.l.b16 %v1309
  %v1411 = vunpack.c.l.b16 %v1319
  %v1412 = vunpack.c.l.b16 %v1333
  %v1413 = vunpack.c.l.b16 %v1343
  %v1414 = vunpack.c.l.b16 %v1357
  %v1415 = vunpack.c.l.b16 %v1367
  %v1416 = vpack.c.b16 %v1385, %v1384
  %v1417 = vpack.c.b16 %v1387, %v1386
  %v1418 = vpack.c.b16 %v1389, %v1388
  %v1419 = vpack.c.b16 %v1391, %v1390
  %v1420 = vpack.c.b16 %v1393, %v1392
  %v1421 = vpack.c.b16 %v1395, %v1394
  %v1422 = vpack.c.b16 %v1397, %v1396
  %v1423 = vpack.c.b16 %v1399, %v1398
  %v1424 = vpack.c.b16 %v1401, %v1400
  %v1425 = vpack.c.b16 %v1403, %v1402
  %v1426 = vpack.c.b16 %v1405, %v1404
  %v1427 = vpack.c.b16 %v1407, %v1406
  %v1428 = vpack.c.b16 %v1409, %v1408
  %v1429 = vpack.c.b16 %v1411, %v1410
  %v1430 = vpack.c.b16 %v1413, %v1412
  %v1431 = vpack.c.b16 %v1415, %v1414
  %v1464 = vunpack.c.l.b16 %v1368
  %v1465 = vunpack.c.l.b16 %v1369
  %v1466 = vunpack.c.l.b16 %v1370
  %v1467 = vunpack.c.l.b16 %v1371
  %v1468 = vunpack.c.l.b16 %v1372
  %v1469 = vunpack.c.l.b16 %v1373
  %v1470 = vunpack.c.l.b16 %v1374
  %v1471 = vunpack.c.l.b16 %v1375
  %v1472 = vunpack.c.l.b16 %v1376
  %v1473 = vunpack.c.l.b16 %v1377
  %v1474 = vunpack.c.l.b16 %v1378
  %v1475 = vunpack.c.l.b16 %v1379
  %v1476 = vunpack.c.l.b16 %v1380
  %v1477 = vunpack.c.l.b16 %v1381
  %v1478 = vunpack.c.l.b16 %v1382
  %v1479 = vunpack.c.l.b16 %v1383
  %v1480 = vpack.c.b16 %v1465, %v1464
  %v1481 = vpack.c.b16 %v1467, %v1466
  %v1482 = vpack.c.b16 %v1469, %v1468
  %v1483 = vpack.c.b16 %v1471, %v1470
  %v1484 = vpack.c.b16 %v1473, %v1472
  %v1485 = vpack.c.b16 %v1475, %v1474
  %v1486 = vpack.c.b16 %v1477, %v1476
  %v1487 = vpack.c.b16 %v1479, %v1478
  %1496 = vmatprep.subr.bf16.mxu0 0
  %1497 = vmatpush1.bf16.msra.mxu0 %v1487
  %1498 = vmatprep.subr.bf16.mxu0 0
  %1499 = vmatpush1.bf16.msra.mxu0 %v1486
  %1500 = vmatprep.subr.bf16.mxu0 0
  %1501 = vmatpush1.bf16.msra.mxu0 %v1485
  %1502 = vmatprep.subr.bf16.mxu0 0
  %1503 = vmatpush1.bf16.msra.mxu0 %v1484
  %1504 = vmatprep.subr.bf16.mxu0 0
  %1505 = vmatpush1.bf16.msra.mxu0 %v1483
  %1506 = vmatprep.subr.bf16.mxu0 0
  %1507 = vmatpush1.bf16.msra.mxu0 %v1482
  %1508 = vmatprep.subr.bf16.mxu0 0
  %1509 = vmatpush1.bf16.msra.mxu0 %v1481
  %1510 = vmatprep.subr.bf16.mxu0 0
  %1511 = vmatpush1.bf16.msra.mxu0 %v1480
  %1512 = vmatprep.subr.bf16.mxu0 0
  %1513 = vmatpush2.bf16.msra.mxu0 0
  %1514 = vmatprep.subr.bf16.mxu0 0
  %1515 = vmatpush2.bf16.msra.mxu0 0
  %1516 = vmatprep.subr.bf16.mxu0 0
  %1517 = vmatpush2.bf16.msra.mxu0 0
  %1518 = vmatprep.subr.bf16.mxu0 0
  %1519 = vmatpush2.bf16.msra.mxu0 0
  %1520 = vmatprep.subr.bf16.mxu0 0
  %1521 = vmatpush2.bf16.msra.mxu0 0
  %1522 = vmatprep.subr.bf16.mxu0 0
  %1523 = vmatpush2.bf16.msra.mxu0 0
  %1524 = vmatprep.subr.bf16.mxu0 0
  %1525 = vmatpush2.bf16.msra.mxu0 0
  %1526 = vmatprep.subr.bf16.mxu0 0
  %1527 = vmatpush2.bf16.msra.mxu0 0
  %1528 = vmatprep.mubr.bf16.mxu0 0
  %1529 = vmatmul.mubr.bf16.gmra.mxu0 %v1416
  %v1530 = vpop.f32.mrf.mxu0
  %v1531 = vadd.f32 0.0, %v1530
  %v1532 = vpop.f32.mrf.mxu0
  %v1533 = vpop.f32.mrf.mxu0
  %v1534 = vadd.f32 0.0, %v1533
  %v1535 = vpop.f32.mrf.mxu0
  %1536 = vmatprep.mubr.bf16.mxu0 0
  %1537 = vmatmul.mubr.bf16.gmra.mxu0 %v1417
  %v1538 = vpop.f32.mrf.mxu0
  %v1539 = vadd.f32 0.0, %v1538
  %v1540 = vpop.f32.mrf.mxu0
  %v1541 = vpop.f32.mrf.mxu0
  %v1542 = vadd.f32 0.0, %v1541
  %v1543 = vpop.f32.mrf.mxu0
  %1544 = vmatprep.mubr.bf16.mxu0 0
  %1545 = vmatmul.mubr.bf16.gmra.mxu0 %v1418
  %v1546 = vpop.f32.mrf.mxu0
  %v1547 = vadd.f32 0.0, %v1546
  %v1548 = vpop.f32.mrf.mxu0
  %v1549 = vpop.f32.mrf.mxu0
  %v1550 = vadd.f32 0.0, %v1549
  %v1551 = vpop.f32.mrf.mxu0
  %1552 = vmatprep.mubr.bf16.mxu0 0
  %1553 = vmatmul.mubr.bf16.gmra.mxu0 %v1419
  %v1554 = vpop.f32.mrf.mxu0
  %v1555 = vadd.f32 0.0, %v1554
  %v1556 = vpop.f32.mrf.mxu0
  %v1557 = vpop.f32.mrf.mxu0
  %v1558 = vadd.f32 0.0, %v1557
  %v1559 = vpop.f32.mrf.mxu0
  %1560 = vmatprep.mubr.bf16.mxu0 0
  %1561 = vmatmul.mubr.bf16.gmra.mxu0 %v1420
  %v1562 = vpop.f32.mrf.mxu0
  %v1563 = vadd.f32 0.0, %v1562
  %v1564 = vpop.f32.mrf.mxu0
  %v1565 = vpop.f32.mrf.mxu0
  %v1566 = vadd.f32 0.0, %v1565
  %v1567 = vpop.f32.mrf.mxu0
  %1568 = vmatprep.mubr.bf16.mxu0 0
  %1569 = vmatmul.mubr.bf16.gmra.mxu0 %v1421
  %v1570 = vpop.f32.mrf.mxu0
  %v1571 = vadd.f32 0.0, %v1570
  %v1572 = vpop.f32.mrf.mxu0
  %v1573 = vpop.f32.mrf.mxu0
  %v1574 = vadd.f32 0.0, %v1573
  %v1575 = vpop.f32.mrf.mxu0
  %1576 = vmatprep.mubr.bf16.mxu0 0
  %1577 = vmatmul.mubr.bf16.gmra.mxu0 %v1422
  %v1578 = vpop.f32.mrf.mxu0
  %v1579 = vadd.f32 0.0, %v1578
  %v1580 = vpop.f32.mrf.mxu0
  %v1581 = vpop.f32.mrf.mxu0
  %v1582 = vadd.f32 0.0, %v1581
  %v1583 = vpop.f32.mrf.mxu0
  %1584 = vmatprep.mubr.bf16.mxu0 0
  %1585 = vmatmul.mubr.bf16.gmra.mxu0 %v1423
  %v1586 = vpop.f32.mrf.mxu0
  %v1587 = vadd.f32 0.0, %v1586
  %v1588 = vpop.f32.mrf.mxu0
  %v1589 = vpop.f32.mrf.mxu0
  %v1590 = vadd.f32 0.0, %v1589
  %v1591 = vpop.f32.mrf.mxu0
  %1592 = vmatprep.mubr.bf16.mxu0 0
  %1593 = vmatmul.mubr.bf16.gmra.mxu0 %v1424
  %v1594 = vpop.f32.mrf.mxu0
  %v1595 = vadd.f32 0.0, %v1594
  %v1596 = vpop.f32.mrf.mxu0
  %v1597 = vpop.f32.mrf.mxu0
  %v1598 = vadd.f32 0.0, %v1597
  %v1599 = vpop.f32.mrf.mxu0
  %1600 = vmatprep.mubr.bf16.mxu0 0
  %1601 = vmatmul.mubr.bf16.gmra.mxu0 %v1425
  %v1602 = vpop.f32.mrf.mxu0
  %v1603 = vadd.f32 0.0, %v1602
  %v1604 = vpop.f32.mrf.mxu0
  %v1605 = vpop.f32.mrf.mxu0
  %v1606 = vadd.f32 0.0, %v1605
  %v1607 = vpop.f32.mrf.mxu0
  %1608 = vmatprep.mubr.bf16.mxu0 0
  %1609 = vmatmul.mubr.bf16.gmra.mxu0 %v1426
  %v1610 = vpop.f32.mrf.mxu0
  %v1611 = vadd.f32 0.0, %v1610
  %v1612 = vpop.f32.mrf.mxu0
  %v1613 = vpop.f32.mrf.mxu0
  %v1614 = vadd.f32 0.0, %v1613
  %v1615 = vpop.f32.mrf.mxu0
  %1616 = vmatprep.mubr.bf16.mxu0 0
  %1617 = vmatmul.mubr.bf16.gmra.mxu0 %v1427
  %v1618 = vpop.f32.mrf.mxu0
  %v1619 = vadd.f32 0.0, %v1618
  %v1620 = vpop.f32.mrf.mxu0
  %v1621 = vpop.f32.mrf.mxu0
  %v1622 = vadd.f32 0.0, %v1621
  %v1623 = vpop.f32.mrf.mxu0
  %1624 = vmatprep.mubr.bf16.mxu0 0
  %1625 = vmatmul.mubr.bf16.gmra.mxu0 %v1428
  %v1626 = vpop.f32.mrf.mxu0
  %v1627 = vadd.f32 0.0, %v1626
  %v1628 = vpop.f32.mrf.mxu0
  %v1629 = vpop.f32.mrf.mxu0
  %v1630 = vadd.f32 0.0, %v1629
  %v1631 = vpop.f32.mrf.mxu0
  %1632 = vmatprep.mubr.bf16.mxu0 0
  %1633 = vmatmul.mubr.bf16.gmra.mxu0 %v1429
  %v1634 = vpop.f32.mrf.mxu0
  %v1635 = vadd.f32 0.0, %v1634
  %v1636 = vpop.f32.mrf.mxu0
  %v1637 = vpop.f32.mrf.mxu0
  %v1638 = vadd.f32 0.0, %v1637
  %v1639 = vpop.f32.mrf.mxu0
  %1640 = vmatprep.mubr.bf16.mxu0 0
  %1641 = vmatmul.mubr.bf16.gmra.mxu0 %v1430
  %v1642 = vpop.f32.mrf.mxu0
  %v1643 = vadd.f32 0.0, %v1642
  %v1644 = vpop.f32.mrf.mxu0
  %v1645 = vpop.f32.mrf.mxu0
  %v1646 = vadd.f32 0.0, %v1645
  %v1647 = vpop.f32.mrf.mxu0
  %1648 = vmatprep.mubr.bf16.mxu0 0
  %1649 = vmatmul.mubr.bf16.gmra.mxu0 %v1431
  %v1650 = vpop.f32.mrf.mxu0
  %v1651 = vadd.f32 0.0, %v1650
  %v1652 = vpop.f32.mrf.mxu0
  %v1653 = vpop.f32.mrf.mxu0
  %v1654 = vadd.f32 0.0, %v1653
  %v1655 = vpop.f32.mrf.mxu0
  %1656 = vdwg.mxu0
  %v1657 = vld [vmem:[#allocation3] sm:$0xff]
  %v1658 = vld [vmem:[#allocation3 + $0x8] sm:$0xff]
  %v1659 = vld [vmem:[#allocation3 + $0x10] sm:$0xff]
  %v1660 = vld [vmem:[#allocation3 + $0x18] sm:$0xff]
  %v1661 = vld [vmem:[#allocation3 + $0x20] sm:$0xff]
  %v1662 = vld [vmem:[#allocation3 + $0x28] sm:$0xff]
  %v1663 = vld [vmem:[#allocation3 + $0x30] sm:$0xff]
  %v1664 = vld [vmem:[#allocation3 + $0x38] sm:$0xff]
  %v1665 = vld [vmem:[#allocation3 + $0x40] sm:$0xff]
  %v1666 = vld [vmem:[#allocation3 + $0x48] sm:$0xff]
  %v1667 = vld [vmem:[#allocation3 + $0x50] sm:$0xff]
  %v1668 = vld [vmem:[#allocation3 + $0x58] sm:$0xff]
  %v1669 = vld [vmem:[#allocation3 + $0x60] sm:$0xff]
  %v1670 = vld [vmem:[#allocation3 + $0x68] sm:$0xff]
  %v1671 = vld [vmem:[#allocation3 + $0x70] sm:$0xff]
  %v1672 = vld [vmem:[#allocation3 + $0x78] sm:$0xff]
  %v1673 = vld [vmem:[#allocation3 + $0x80] sm:$0xff]
  %v1674 = vld [vmem:[#allocation3 + $0x88] sm:$0xff]
  %v1675 = vld [vmem:[#allocation3 + $0x90] sm:$0xff]
  %v1676 = vld [vmem:[#allocation3 + $0x98] sm:$0xff]
  %v1677 = vld [vmem:[#allocation3 + $0xa0] sm:$0xff]
  %v1678 = vld [vmem:[#allocation3 + $0xa8] sm:$0xff]
  %v1679 = vld [vmem:[#allocation3 + $0xb0] sm:$0xff]
  %v1680 = vld [vmem:[#allocation3 + $0xb8] sm:$0xff]
  %v1681 = vld [vmem:[#allocation3 + $0xc0] sm:$0xff]
  %v1682 = vld [vmem:[#allocation3 + $0xc8] sm:$0xff]
  %v1683 = vld [vmem:[#allocation3 + $0xd0] sm:$0xff]
  %v1684 = vld [vmem:[#allocation3 + $0xd8] sm:$0xff]
  %v1685 = vld [vmem:[#allocation3 + $0xe0] sm:$0xff]
  %v1686 = vld [vmem:[#allocation3 + $0xe8] sm:$0xff]
  %v1687 = vld [vmem:[#allocation3 + $0xf0] sm:$0xff]
  %v1688 = vld [vmem:[#allocation3 + $0xf8] sm:$0xff]
  %v1689 = vadd.f32 %v1657, %v1531
  %v1690 = vadd.f32 %v1658, %v1534
  %v1691 = vadd.f32 %v1659, %v1539
  %v1692 = vadd.f32 %v1660, %v1542
  %v1693 = vadd.f32 %v1661, %v1547
  %v1694 = vadd.f32 %v1662, %v1550
  %v1695 = vadd.f32 %v1663, %v1555
  %v1696 = vadd.f32 %v1664, %v1558
  %v1697 = vadd.f32 %v1665, %v1563
  %v1698 = vadd.f32 %v1666, %v1566
  %v1699 = vadd.f32 %v1667, %v1571
  %v1700 = vadd.f32 %v1668, %v1574
  %v1701 = vadd.f32 %v1669, %v1579
  %v1702 = vadd.f32 %v1670, %v1582
  %v1703 = vadd.f32 %v1671, %v1587
  %v1704 = vadd.f32 %v1672, %v1590
  %v1705 = vadd.f32 %v1673, %v1595
  %v1706 = vadd.f32 %v1674, %v1598
  %v1707 = vadd.f32 %v1675, %v1603
  %v1708 = vadd.f32 %v1676, %v1606
  %v1709 = vadd.f32 %v1677, %v1611
  %v1710 = vadd.f32 %v1678, %v1614
  %v1711 = vadd.f32 %v1679, %v1619
  %v1712 = vadd.f32 %v1680, %v1622
  %v1713 = vadd.f32 %v1681, %v1627
  %v1714 = vadd.f32 %v1682, %v1630
  %v1715 = vadd.f32 %v1683, %v1635
  %v1716 = vadd.f32 %v1684, %v1638
  %v1717 = vadd.f32 %v1685, %v1643
  %v1718 = vadd.f32 %v1686, %v1646
  %v1719 = vadd.f32 %v1687, %v1651
  %v1720 = vadd.f32 %v1688, %v1654
  %1721 = vst [vmem:[#allocation3] sm:$0xff] %v1689
  %1722 = vst [vmem:[#allocation3 + $0x8] sm:$0xff] %v1690
  %1723 = vst [vmem:[#allocation3 + $0x10] sm:$0xff] %v1691
  %1724 = vst [vmem:[#allocation3 + $0x18] sm:$0xff] %v1692
  %1725 = vst [vmem:[#allocation3 + $0x20] sm:$0xff] %v1693
  %1726 = vst [vmem:[#allocation3 + $0x28] sm:$0xff] %v1694
  %1727 = vst [vmem:[#allocation3 + $0x30] sm:$0xff] %v1695
  %1728 = vst [vmem:[#allocation3 + $0x38] sm:$0xff] %v1696
  %1729 = vst [vmem:[#allocation3 + $0x40] sm:$0xff] %v1697
  %1730 = vst [vmem:[#allocation3 + $0x48] sm:$0xff] %v1698
  %1731 = vst [vmem:[#allocation3 + $0x50] sm:$0xff] %v1699
  %1732 = vst [vmem:[#allocation3 + $0x58] sm:$0xff] %v1700
  %1733 = vst [vmem:[#allocation3 + $0x60] sm:$0xff] %v1701
  %1734 = vst [vmem:[#allocation3 + $0x68] sm:$0xff] %v1702
  %1735 = vst [vmem:[#allocation3 + $0x70] sm:$0xff] %v1703
  %1736 = vst [vmem:[#allocation3 + $0x78] sm:$0xff] %v1704
  %1737 = vst [vmem:[#allocation3 + $0x80] sm:$0xff] %v1705
  %1738 = vst [vmem:[#allocation3 + $0x88] sm:$0xff] %v1706
  %1739 = vst [vmem:[#allocation3 + $0x90] sm:$0xff] %v1707
  %1740 = vst [vmem:[#allocation3 + $0x98] sm:$0xff] %v1708
  %1741 = vst [vmem:[#allocation3 + $0xa0] sm:$0xff] %v1709
  %1742 = vst [vmem:[#allocation3 + $0xa8] sm:$0xff] %v1710
  %1743 = vst [vmem:[#allocation3 + $0xb0] sm:$0xff] %v1711
  %1744 = vst [vmem:[#allocation3 + $0xb8] sm:$0xff] %v1712
  %1745 = vst [vmem:[#allocation3 + $0xc0] sm:$0xff] %v1713
  %1746 = vst [vmem:[#allocation3 + $0xc8] sm:$0xff] %v1714
  %1747 = vst [vmem:[#allocation3 + $0xd0] sm:$0xff] %v1715
  %1748 = vst [vmem:[#allocation3 + $0xd8] sm:$0xff] %v1716
  %1749 = vst [vmem:[#allocation3 + $0xe0] sm:$0xff] %v1717
  %1750 = vst [vmem:[#allocation3 + $0xe8] sm:$0xff] %v1718
  %1751 = vst [vmem:[#allocation3 + $0xf0] sm:$0xff] %v1719
  %1752 = vst [vmem:[#allocation3 + $0xf8] sm:$0xff] %v1720
  %v1753 = vld [vmem:[#allocation2] sm:$0xe]
  %v1754 = vld [vmem:[#allocation2 + $0x4] sm:$0xf]
  %v1755 = vld [vmem:[#allocation2 + $0x8] sm:$0x1]
  %v1756 = vld [vmem:[#allocation2 + $0xc] sm:$0xe]
  %v1757 = vld [vmem:[#allocation2 + $0x10] sm:$0xf]
  %v1758 = vld [vmem:[#allocation2 + $0x14] sm:$0x1]
  %v1759 = vld [vmem:[#allocation2 + $0x18] sm:$0xe]
  %v1760 = vld [vmem:[#allocation2 + $0x1c] sm:$0xf]
  %v1761 = vld [vmem:[#allocation2 + $0x20] sm:$0x1]
  %v1762 = vld [vmem:[#allocation2 + $0x24] sm:$0xe]
  %v1763 = vld [vmem:[#allocation2 + $0x28] sm:$0xf]
  %v1764 = vld [vmem:[#allocation2 + $0x2c] sm:$0x1]
  %v1765 = vld [vmem:[#allocation2 + $0x30] sm:$0xe]
  %v1766 = vld [vmem:[#allocation2 + $0x34] sm:$0xf]
  %v1767 = vld [vmem:[#allocation2 + $0x38] sm:$0x1]
  %v1768 = vld [vmem:[#allocation2 + $0x3c] sm:$0xe]
  %v1769 = vld [vmem:[#allocation2 + $0x40] sm:$0xf]
  %v1770 = vld [vmem:[#allocation2 + $0x44] sm:$0x1]
  %v1771 = vld [vmem:[#allocation2 + $0x48] sm:$0xe]
  %v1772 = vld [vmem:[#allocation2 + $0x4c] sm:$0xf]
  %v1773 = vld [vmem:[#allocation2 + $0x50] sm:$0x1]
  %v1774 = vld [vmem:[#allocation2 + $0x54] sm:$0xe]
  %v1775 = vld [vmem:[#allocation2 + $0x58] sm:$0xf]
  %v1776 = vld [vmem:[#allocation2 + $0x5c] sm:$0x1]
  %v1777 = vld [vmem:[#allocation2 + $0x60] sm:$0xe]
  %v1778 = vld [vmem:[#allocation2 + $0x64] sm:$0xf]
  %v1779 = vld [vmem:[#allocation2 + $0x68] sm:$0x1]
  %v1780 = vld [vmem:[#allocation2 + $0x6c] sm:$0xe]
  %v1781 = vld [vmem:[#allocation2 + $0x70] sm:$0xf]
  %v1782 = vld [vmem:[#allocation2 + $0x74] sm:$0x1]
  %v1783 = vld [vmem:[#allocation2 + $0x78] sm:$0xe]
  %v1784 = vld [vmem:[#allocation2 + $0x7c] sm:$0xf]
  %v1785 = vld [vmem:[#allocation2 + $0x80] sm:$0x1]
  %v1786 = vld [vmem:[#allocation2 + $0x84] sm:$0xe]
  %v1787 = vld [vmem:[#allocation2 + $0x88] sm:$0xf]
  %v1788 = vld [vmem:[#allocation2 + $0x8c] sm:$0x1]
  %v1789 = vld [vmem:[#allocation2 + $0x90] sm:$0xe]
  %v1790 = vld [vmem:[#allocation2 + $0x94] sm:$0xf]
  %v1791 = vld [vmem:[#allocation2 + $0x98] sm:$0x1]
  %v1792 = vld [vmem:[#allocation2 + $0x9c] sm:$0xe]
  %v1793 = vld [vmem:[#allocation2 + $0xa0] sm:$0xf]
  %v1794 = vld [vmem:[#allocation2 + $0xa4] sm:$0x1]
  %v1795 = vld [vmem:[#allocation2 + $0xa8] sm:$0xe]
  %v1796 = vld [vmem:[#allocation2 + $0xac] sm:$0xf]
  %v1797 = vld [vmem:[#allocation2 + $0xb0] sm:$0x1]
  %v1798 = vld [vmem:[#allocation2 + $0xb4] sm:$0xe]
  %v1799 = vld [vmem:[#allocation2 + $0xb8] sm:$0xf]
  %v1800 = vld [vmem:[#allocation2 + $0xbc] sm:$0x1]
  %vm1849 = vcmask 1042432
  %vm1850 = vcmask 1046532
  %vm1851 = vmor %vm1849, %vm1850
  %v1852 = vrot.slane %v1753, 5
  %v1853 = vrot.slane %v1852, 4
  %v1854 = vrot.slane %v1754, 5
  %v1855 = vsel %vm1851, %v1853, %v1854
  %v1856 = vrot.slane %v1854, 4
  %v1857 = vrot.slane %v1755, 5
  %v1858 = vsel %vm1851, %v1856, %v1857
  %v1859 = vrot.slane %v1756, 5
  %v1860 = vrot.slane %v1859, 4
  %v1861 = vrot.slane %v1757, 5
  %v1862 = vsel %vm1851, %v1860, %v1861
  %v1863 = vrot.slane %v1861, 4
  %v1864 = vrot.slane %v1758, 5
  %v1865 = vsel %vm1851, %v1863, %v1864
  %v1866 = vrot.slane %v1759, 5
  %v1867 = vrot.slane %v1866, 4
  %v1868 = vrot.slane %v1760, 5
  %v1869 = vsel %vm1851, %v1867, %v1868
  %v1870 = vrot.slane %v1868, 4
  %v1871 = vrot.slane %v1761, 5
  %v1872 = vsel %vm1851, %v1870, %v1871
  %v1873 = vrot.slane %v1762, 5
  %v1874 = vrot.slane %v1873, 4
  %v1875 = vrot.slane %v1763, 5
  %v1876 = vsel %vm1851, %v1874, %v1875
  %v1877 = vrot.slane %v1875, 4
  %v1878 = vrot.slane %v1764, 5
  %v1879 = vsel %vm1851, %v1877, %v1878
  %v1880 = vrot.slane %v1765, 5
  %v1881 = vrot.slane %v1880, 4
  %v1882 = vrot.slane %v1766, 5
  %v1883 = vsel %vm1851, %v1881, %v1882
  %v1884 = vrot.slane %v1882, 4
  %v1885 = vrot.slane %v1767, 5
  %v1886 = vsel %vm1851, %v1884, %v1885
  %v1887 = vrot.slane %v1768, 5
  %v1888 = vrot.slane %v1887, 4
  %v1889 = vrot.slane %v1769, 5
  %v1890 = vsel %vm1851, %v1888, %v1889
  %v1891 = vrot.slane %v1889, 4
  %v1892 = vrot.slane %v1770, 5
  %v1893 = vsel %vm1851, %v1891, %v1892
  %v1894 = vrot.slane %v1771, 5
  %v1895 = vrot.slane %v1894, 4
  %v1896 = vrot.slane %v1772, 5
  %v1897 = vsel %vm1851, %v1895, %v1896
  %v1898 = vrot.slane %v1896, 4
  %v1899 = vrot.slane %v1773, 5
  %v1900 = vsel %vm1851, %v1898, %v1899
  %v1901 = vrot.slane %v1774, 5
  %v1902 = vrot.slane %v1901, 4
  %v1903 = vrot.slane %v1775, 5
  %v1904 = vsel %vm1851, %v1902, %v1903
  %v1905 = vrot.slane %v1903, 4
  %v1906 = vrot.slane %v1776, 5
  %v1907 = vsel %vm1851, %v1905, %v1906
  %v1908 = vrot.slane %v1777, 5
  %v1909 = vrot.slane %v1908, 4
  %v1910 = vrot.slane %v1778, 5
  %v1911 = vsel %vm1851, %v1909, %v1910
  %v1912 = vrot.slane %v1910, 4
  %v1913 = vrot.slane %v1779, 5
  %v1914 = vsel %vm1851, %v1912, %v1913
  %v1915 = vrot.slane %v1780, 5
  %v1916 = vrot.slane %v1915, 4
  %v1917 = vrot.slane %v1781, 5
  %v1918 = vsel %vm1851, %v1916, %v1917
  %v1919 = vrot.slane %v1917, 4
  %v1920 = vrot.slane %v1782, 5
  %v1921 = vsel %vm1851, %v1919, %v1920
  %v1922 = vrot.slane %v1783, 5
  %v1923 = vrot.slane %v1922, 4
  %v1924 = vrot.slane %v1784, 5
  %v1925 = vsel %vm1851, %v1923, %v1924
  %v1926 = vrot.slane %v1924, 4
  %v1927 = vrot.slane %v1785, 5
  %v1928 = vsel %vm1851, %v1926, %v1927
  %v1929 = vrot.slane %v1786, 5
  %v1930 = vrot.slane %v1929, 4
  %v1931 = vrot.slane %v1787, 5
  %v1932 = vsel %vm1851, %v1930, %v1931
  %v1933 = vrot.slane %v1931, 4
  %v1934 = vrot.slane %v1788, 5
  %v1935 = vsel %vm1851, %v1933, %v1934
  %v1936 = vrot.slane %v1789, 5
  %v1937 = vrot.slane %v1936, 4
  %v1938 = vrot.slane %v1790, 5
  %v1939 = vsel %vm1851, %v1937, %v1938
  %v1940 = vrot.slane %v1938, 4
  %v1941 = vrot.slane %v1791, 5
  %v1942 = vsel %vm1851, %v1940, %v1941
  %v1943 = vrot.slane %v1792, 5
  %v1944 = vrot.slane %v1943, 4
  %v1945 = vrot.slane %v1793, 5
  %v1946 = vsel %vm1851, %v1944, %v1945
  %v1947 = vrot.slane %v1945, 4
  %v1948 = vrot.slane %v1794, 5
  %v1949 = vsel %vm1851, %v1947, %v1948
  %v1950 = vrot.slane %v1795, 5
  %v1951 = vrot.slane %v1950, 4
  %v1952 = vrot.slane %v1796, 5
  %v1953 = vsel %vm1851, %v1951, %v1952
  %v1954 = vrot.slane %v1952, 4
  %v1955 = vrot.slane %v1797, 5
  %v1956 = vsel %vm1851, %v1954, %v1955
  %v1957 = vrot.slane %v1798, 5
  %v1958 = vrot.slane %v1957, 4
  %v1959 = vrot.slane %v1799, 5
  %v1960 = vsel %vm1851, %v1958, %v1959
  %v1961 = vrot.slane %v1959, 4
  %v1962 = vrot.slane %v1800, 5
  %v1963 = vsel %vm1851, %v1961, %v1962
  %v1964 = vld [vmem:[%s1 + $0x80] sm:$0xf]
  %v1965 = vld [vmem:[%s1 + $0x84] sm:$0xf]
  %v1966 = vld [vmem:[%s1 + $0x88] sm:$0xf]
  %v1967 = vld [vmem:[%s1 + $0x8c] sm:$0xf]
  %v1968 = vld [vmem:[%s1 + $0x90] sm:$0xf]
  %v1969 = vld [vmem:[%s1 + $0x94] sm:$0xf]
  %v1970 = vld [vmem:[%s1 + $0x98] sm:$0xf]
  %v1971 = vld [vmem:[%s1 + $0x9c] sm:$0xf]
  %v1972 = vld [vmem:[%s1 + $0xa0] sm:$0xf]
  %v1973 = vld [vmem:[%s1 + $0xa4] sm:$0xf]
  %v1974 = vld [vmem:[%s1 + $0xa8] sm:$0xf]
  %v1975 = vld [vmem:[%s1 + $0xac] sm:$0xf]
  %v1976 = vld [vmem:[%s1 + $0xb0] sm:$0xf]
  %v1977 = vld [vmem:[%s1 + $0xb4] sm:$0xf]
  %v1978 = vld [vmem:[%s1 + $0xb8] sm:$0xf]
  %v1979 = vld [vmem:[%s1 + $0xbc] sm:$0xf]
  %v1980 = vunpack.c.l.b16 %v1855
  %v1981 = vunpack.c.l.b16 %v1858
  %v1982 = vunpack.c.l.b16 %v1862
  %v1983 = vunpack.c.l.b16 %v1865
  %v1984 = vunpack.c.l.b16 %v1869
  %v1985 = vunpack.c.l.b16 %v1872
  %v1986 = vunpack.c.l.b16 %v1876
  %v1987 = vunpack.c.l.b16 %v1879
  %v1988 = vunpack.c.l.b16 %v1883
  %v1989 = vunpack.c.l.b16 %v1886
  %v1990 = vunpack.c.l.b16 %v1890
  %v1991 = vunpack.c.l.b16 %v1893
  %v1992 = vunpack.c.l.b16 %v1897
  %v1993 = vunpack.c.l.b16 %v1900
  %v1994 = vunpack.c.l.b16 %v1904
  %v1995 = vunpack.c.l.b16 %v1907
  %v1996 = vunpack.c.l.b16 %v1911
  %v1997 = vunpack.c.l.b16 %v1914
  %v1998 = vunpack.c.l.b16 %v1918
  %v1999 = vunpack.c.l.b16 %v1921
  %v2000 = vunpack.c.l.b16 %v1925
  %v2001 = vunpack.c.l.b16 %v1928
  %v2002 = vunpack.c.l.b16 %v1932
  %v2003 = vunpack.c.l.b16 %v1935
  %v2004 = vunpack.c.l.b16 %v1939
  %v2005 = vunpack.c.l.b16 %v1942
  %v2006 = vunpack.c.l.b16 %v1946
  %v2007 = vunpack.c.l.b16 %v1949
  %v2008 = vunpack.c.l.b16 %v1953
  %v2009 = vunpack.c.l.b16 %v1956
  %v2010 = vunpack.c.l.b16 %v1960
  %v2011 = vunpack.c.l.b16 %v1963
  %v2012 = vpack.c.b16 %v1981, %v1980
  %v2013 = vpack.c.b16 %v1983, %v1982
  %v2014 = vpack.c.b16 %v1985, %v1984
  %v2015 = vpack.c.b16 %v1987, %v1986
  %v2016 = vpack.c.b16 %v1989, %v1988
  %v2017 = vpack.c.b16 %v1991, %v1990
  %v2018 = vpack.c.b16 %v1993, %v1992
  %v2019 = vpack.c.b16 %v1995, %v1994
  %v2020 = vpack.c.b16 %v1997, %v1996
  %v2021 = vpack.c.b16 %v1999, %v1998
  %v2022 = vpack.c.b16 %v2001, %v2000
  %v2023 = vpack.c.b16 %v2003, %v2002
  %v2024 = vpack.c.b16 %v2005, %v2004
  %v2025 = vpack.c.b16 %v2007, %v2006
  %v2026 = vpack.c.b16 %v2009, %v2008
  %v2027 = vpack.c.b16 %v2011, %v2010
  %v2060 = vunpack.c.l.b16 %v1964
  %v2061 = vunpack.c.l.b16 %v1965
  %v2062 = vunpack.c.l.b16 %v1966
  %v2063 = vunpack.c.l.b16 %v1967
  %v2064 = vunpack.c.l.b16 %v1968
  %v2065 = vunpack.c.l.b16 %v1969
  %v2066 = vunpack.c.l.b16 %v1970
  %v2067 = vunpack.c.l.b16 %v1971
  %v2068 = vunpack.c.l.b16 %v1972
  %v2069 = vunpack.c.l.b16 %v1973
  %v2070 = vunpack.c.l.b16 %v1974
  %v2071 = vunpack.c.l.b16 %v1975
  %v2072 = vunpack.c.l.b16 %v1976
  %v2073 = vunpack.c.l.b16 %v1977
  %v2074 = vunpack.c.l.b16 %v1978
  %v2075 = vunpack.c.l.b16 %v1979
  %v2076 = vpack.c.b16 %v2061, %v2060
  %v2077 = vpack.c.b16 %v2063, %v2062
  %v2078 = vpack.c.b16 %v2065, %v2064
  %v2079 = vpack.c.b16 %v2067, %v2066
  %v2080 = vpack.c.b16 %v2069, %v2068
  %v2081 = vpack.c.b16 %v2071, %v2070
  %v2082 = vpack.c.b16 %v2073, %v2072
  %v2083 = vpack.c.b16 %v2075, %v2074
  %2092 = vmatprep.subr.bf16.mxu0 0
  %2093 = vmatpush1.bf16.msra.mxu0 %v2083
  %2094 = vmatprep.subr.bf16.mxu0 0
  %2095 = vmatpush1.bf16.msra.mxu0 %v2082
  %2096 = vmatprep.subr.bf16.mxu0 0
  %2097 = vmatpush1.bf16.msra.mxu0 %v2081
  %2098 = vmatprep.subr.bf16.mxu0 0
  %2099 = vmatpush1.bf16.msra.mxu0 %v2080
  %2100 = vmatprep.subr.bf16.mxu0 0
  %2101 = vmatpush1.bf16.msra.mxu0 %v2079
  %2102 = vmatprep.subr.bf16.mxu0 0
  %2103 = vmatpush1.bf16.msra.mxu0 %v2078
  %2104 = vmatprep.subr.bf16.mxu0 0
  %2105 = vmatpush1.bf16.msra.mxu0 %v2077
  %2106 = vmatprep.subr.bf16.mxu0 0
  %2107 = vmatpush1.bf16.msra.mxu0 %v2076
  %2108 = vmatprep.subr.bf16.mxu0 0
  %2109 = vmatpush2.bf16.msra.mxu0 0
  %2110 = vmatprep.subr.bf16.mxu0 0
  %2111 = vmatpush2.bf16.msra.mxu0 0
  %2112 = vmatprep.subr.bf16.mxu0 0
  %2113 = vmatpush2.bf16.msra.mxu0 0
  %2114 = vmatprep.subr.bf16.mxu0 0
  %2115 = vmatpush2.bf16.msra.mxu0 0
  %2116 = vmatprep.subr.bf16.mxu0 0
  %2117 = vmatpush2.bf16.msra.mxu0 0
  %2118 = vmatprep.subr.bf16.mxu0 0
  %2119 = vmatpush2.bf16.msra.mxu0 0
  %2120 = vmatprep.subr.bf16.mxu0 0
  %2121 = vmatpush2.bf16.msra.mxu0 0
  %2122 = vmatprep.subr.bf16.mxu0 0
  %2123 = vmatpush2.bf16.msra.mxu0 0
  %2124 = vmatprep.mubr.bf16.mxu0 0
  %2125 = vmatmul.mubr.bf16.gmra.mxu0 %v2012
  %v2126 = vpop.f32.mrf.mxu0
  %v2127 = vadd.f32 0.0, %v2126
  %v2128 = vpop.f32.mrf.mxu0
  %v2129 = vpop.f32.mrf.mxu0
  %v2130 = vadd.f32 0.0, %v2129
  %v2131 = vpop.f32.mrf.mxu0
  %2132 = vmatprep.mubr.bf16.mxu0 0
  %2133 = vmatmul.mubr.bf16.gmra.mxu0 %v2013
  %v2134 = vpop.f32.mrf.mxu0
  %v2135 = vadd.f32 0.0, %v2134
  %v2136 = vpop.f32.mrf.mxu0
  %v2137 = vpop.f32.mrf.mxu0
  %v2138 = vadd.f32 0.0, %v2137
  %v2139 = vpop.f32.mrf.mxu0
  %2140 = vmatprep.mubr.bf16.mxu0 0
  %2141 = vmatmul.mubr.bf16.gmra.mxu0 %v2014
  %v2142 = vpop.f32.mrf.mxu0
  %v2143 = vadd.f32 0.0, %v2142
  %v2144 = vpop.f32.mrf.mxu0
  %v2145 = vpop.f32.mrf.mxu0
  %v2146 = vadd.f32 0.0, %v2145
  %v2147 = vpop.f32.mrf.mxu0
  %2148 = vmatprep.mubr.bf16.mxu0 0
  %2149 = vmatmul.mubr.bf16.gmra.mxu0 %v2015
  %v2150 = vpop.f32.mrf.mxu0
  %v2151 = vadd.f32 0.0, %v2150
  %v2152 = vpop.f32.mrf.mxu0
  %v2153 = vpop.f32.mrf.mxu0
  %v2154 = vadd.f32 0.0, %v2153
  %v2155 = vpop.f32.mrf.mxu0
  %2156 = vmatprep.mubr.bf16.mxu0 0
  %2157 = vmatmul.mubr.bf16.gmra.mxu0 %v2016
  %v2158 = vpop.f32.mrf.mxu0
  %v2159 = vadd.f32 0.0, %v2158
  %v2160 = vpop.f32.mrf.mxu0
  %v2161 = vpop.f32.mrf.mxu0
  %v2162 = vadd.f32 0.0, %v2161
  %v2163 = vpop.f32.mrf.mxu0
  %2164 = vmatprep.mubr.bf16.mxu0 0
  %2165 = vmatmul.mubr.bf16.gmra.mxu0 %v2017
  %v2166 = vpop.f32.mrf.mxu0
  %v2167 = vadd.f32 0.0, %v2166
  %v2168 = vpop.f32.mrf.mxu0
  %v2169 = vpop.f32.mrf.mxu0
  %v2170 = vadd.f32 0.0, %v2169
  %v2171 = vpop.f32.mrf.mxu0
  %2172 = vmatprep.mubr.bf16.mxu0 0
  %2173 = vmatmul.mubr.bf16.gmra.mxu0 %v2018
  %v2174 = vpop.f32.mrf.mxu0
  %v2175 = vadd.f32 0.0, %v2174
  %v2176 = vpop.f32.mrf.mxu0
  %v2177 = vpop.f32.mrf.mxu0
  %v2178 = vadd.f32 0.0, %v2177
  %v2179 = vpop.f32.mrf.mxu0
  %2180 = vmatprep.mubr.bf16.mxu0 0
  %2181 = vmatmul.mubr.bf16.gmra.mxu0 %v2019
  %v2182 = vpop.f32.mrf.mxu0
  %v2183 = vadd.f32 0.0, %v2182
  %v2184 = vpop.f32.mrf.mxu0
  %v2185 = vpop.f32.mrf.mxu0
  %v2186 = vadd.f32 0.0, %v2185
  %v2187 = vpop.f32.mrf.mxu0
  %2188 = vmatprep.mubr.bf16.mxu0 0
  %2189 = vmatmul.mubr.bf16.gmra.mxu0 %v2020
  %v2190 = vpop.f32.mrf.mxu0
  %v2191 = vadd.f32 0.0, %v2190
  %v2192 = vpop.f32.mrf.mxu0
  %v2193 = vpop.f32.mrf.mxu0
  %v2194 = vadd.f32 0.0, %v2193
  %v2195 = vpop.f32.mrf.mxu0
  %2196 = vmatprep.mubr.bf16.mxu0 0
  %2197 = vmatmul.mubr.bf16.gmra.mxu0 %v2021
  %v2198 = vpop.f32.mrf.mxu0
  %v2199 = vadd.f32 0.0, %v2198
  %v2200 = vpop.f32.mrf.mxu0
  %v2201 = vpop.f32.mrf.mxu0
  %v2202 = vadd.f32 0.0, %v2201
  %v2203 = vpop.f32.mrf.mxu0
  %2204 = vmatprep.mubr.bf16.mxu0 0
  %2205 = vmatmul.mubr.bf16.gmra.mxu0 %v2022
  %v2206 = vpop.f32.mrf.mxu0
  %v2207 = vadd.f32 0.0, %v2206
  %v2208 = vpop.f32.mrf.mxu0
  %v2209 = vpop.f32.mrf.mxu0
  %v2210 = vadd.f32 0.0, %v2209
  %v2211 = vpop.f32.mrf.mxu0
  %2212 = vmatprep.mubr.bf16.mxu0 0
  %2213 = vmatmul.mubr.bf16.gmra.mxu0 %v2023
  %v2214 = vpop.f32.mrf.mxu0
  %v2215 = vadd.f32 0.0, %v2214
  %v2216 = vpop.f32.mrf.mxu0
  %v2217 = vpop.f32.mrf.mxu0
  %v2218 = vadd.f32 0.0, %v2217
  %v2219 = vpop.f32.mrf.mxu0
  %2220 = vmatprep.mubr.bf16.mxu0 0
  %2221 = vmatmul.mubr.bf16.gmra.mxu0 %v2024
  %v2222 = vpop.f32.mrf.mxu0
  %v2223 = vadd.f32 0.0, %v2222
  %v2224 = vpop.f32.mrf.mxu0
  %v2225 = vpop.f32.mrf.mxu0
  %v2226 = vadd.f32 0.0, %v2225
  %v2227 = vpop.f32.mrf.mxu0
  %2228 = vmatprep.mubr.bf16.mxu0 0
  %2229 = vmatmul.mubr.bf16.gmra.mxu0 %v2025
  %v2230 = vpop.f32.mrf.mxu0
  %v2231 = vadd.f32 0.0, %v2230
  %v2232 = vpop.f32.mrf.mxu0
  %v2233 = vpop.f32.mrf.mxu0
  %v2234 = vadd.f32 0.0, %v2233
  %v2235 = vpop.f32.mrf.mxu0
  %2236 = vmatprep.mubr.bf16.mxu0 0
  %2237 = vmatmul.mubr.bf16.gmra.mxu0 %v2026
  %v2238 = vpop.f32.mrf.mxu0
  %v2239 = vadd.f32 0.0, %v2238
  %v2240 = vpop.f32.mrf.mxu0
  %v2241 = vpop.f32.mrf.mxu0
  %v2242 = vadd.f32 0.0, %v2241
  %v2243 = vpop.f32.mrf.mxu0
  %2244 = vmatprep.mubr.bf16.mxu0 0
  %2245 = vmatmul.mubr.bf16.gmra.mxu0 %v2027
  %v2246 = vpop.f32.mrf.mxu0
  %v2247 = vadd.f32 0.0, %v2246
  %v2248 = vpop.f32.mrf.mxu0
  %v2249 = vpop.f32.mrf.mxu0
  %v2250 = vadd.f32 0.0, %v2249
  %v2251 = vpop.f32.mrf.mxu0
  %2252 = vdwg.mxu0
  %v2253 = vld [vmem:[#allocation3] sm:$0xff]
  %v2254 = vld [vmem:[#allocation3 + $0x8] sm:$0xff]
  %v2255 = vld [vmem:[#allocation3 + $0x10] sm:$0xff]
  %v2256 = vld [vmem:[#allocation3 + $0x18] sm:$0xff]
  %v2257 = vld [vmem:[#allocation3 + $0x20] sm:$0xff]
  %v2258 = vld [vmem:[#allocation3 + $0x28] sm:$0xff]
  %v2259 = vld [vmem:[#allocation3 + $0x30] sm:$0xff]
  %v2260 = vld [vmem:[#allocation3 + $0x38] sm:$0xff]
  %v2261 = vld [vmem:[#allocation3 + $0x40] sm:$0xff]
  %v2262 = vld [vmem:[#allocation3 + $0x48] sm:$0xff]
  %v2263 = vld [vmem:[#allocation3 + $0x50] sm:$0xff]
  %v2264 = vld [vmem:[#allocation3 + $0x58] sm:$0xff]
  %v2265 = vld [vmem:[#allocation3 + $0x60] sm:$0xff]
  %v2266 = vld [vmem:[#allocation3 + $0x68] sm:$0xff]
  %v2267 = vld [vmem:[#allocation3 + $0x70] sm:$0xff]
  %v2268 = vld [vmem:[#allocation3 + $0x78] sm:$0xff]
  %v2269 = vld [vmem:[#allocation3 + $0x80] sm:$0xff]
  %v2270 = vld [vmem:[#allocation3 + $0x88] sm:$0xff]
  %v2271 = vld [vmem:[#allocation3 + $0x90] sm:$0xff]
  %v2272 = vld [vmem:[#allocation3 + $0x98] sm:$0xff]
  %v2273 = vld [vmem:[#allocation3 + $0xa0] sm:$0xff]
  %v2274 = vld [vmem:[#allocation3 + $0xa8] sm:$0xff]
  %v2275 = vld [vmem:[#allocation3 + $0xb0] sm:$0xff]
  %v2276 = vld [vmem:[#allocation3 + $0xb8] sm:$0xff]
  %v2277 = vld [vmem:[#allocation3 + $0xc0] sm:$0xff]
  %v2278 = vld [vmem:[#allocation3 + $0xc8] sm:$0xff]
  %v2279 = vld [vmem:[#allocation3 + $0xd0] sm:$0xff]
  %v2280 = vld [vmem:[#allocation3 + $0xd8] sm:$0xff]
  %v2281 = vld [vmem:[#allocation3 + $0xe0] sm:$0xff]
  %v2282 = vld [vmem:[#allocation3 + $0xe8] sm:$0xff]
  %v2283 = vld [vmem:[#allocation3 + $0xf0] sm:$0xff]
  %v2284 = vld [vmem:[#allocation3 + $0xf8] sm:$0xff]
  %v2285 = vadd.f32 %v2253, %v2127
  %v2286 = vadd.f32 %v2254, %v2130
  %v2287 = vadd.f32 %v2255, %v2135
  %v2288 = vadd.f32 %v2256, %v2138
  %v2289 = vadd.f32 %v2257, %v2143
  %v2290 = vadd.f32 %v2258, %v2146
  %v2291 = vadd.f32 %v2259, %v2151
  %v2292 = vadd.f32 %v2260, %v2154
  %v2293 = vadd.f32 %v2261, %v2159
  %v2294 = vadd.f32 %v2262, %v2162
  %v2295 = vadd.f32 %v2263, %v2167
  %v2296 = vadd.f32 %v2264, %v2170
  %v2297 = vadd.f32 %v2265, %v2175
  %v2298 = vadd.f32 %v2266, %v2178
  %v2299 = vadd.f32 %v2267, %v2183
  %v2300 = vadd.f32 %v2268, %v2186
  %v2301 = vadd.f32 %v2269, %v2191
  %v2302 = vadd.f32 %v2270, %v2194
  %v2303 = vadd.f32 %v2271, %v2199
  %v2304 = vadd.f32 %v2272, %v2202
  %v2305 = vadd.f32 %v2273, %v2207
  %v2306 = vadd.f32 %v2274, %v2210
  %v2307 = vadd.f32 %v2275, %v2215
  %v2308 = vadd.f32 %v2276, %v2218
  %v2309 = vadd.f32 %v2277, %v2223
  %v2310 = vadd.f32 %v2278, %v2226
  %v2311 = vadd.f32 %v2279, %v2231
  %v2312 = vadd.f32 %v2280, %v2234
  %v2313 = vadd.f32 %v2281, %v2239
  %v2314 = vadd.f32 %v2282, %v2242
  %v2315 = vadd.f32 %v2283, %v2247
  %v2316 = vadd.f32 %v2284, %v2250
  %2317 = vst [vmem:[#allocation3] sm:$0xff] %v2285
  %2318 = vst [vmem:[#allocation3 + $0x8] sm:$0xff] %v2286
  %2319 = vst [vmem:[#allocation3 + $0x10] sm:$0xff] %v2287
  %2320 = vst [vmem:[#allocation3 + $0x18] sm:$0xff] %v2288
  %2321 = vst [vmem:[#allocation3 + $0x20] sm:$0xff] %v2289
  %2322 = vst [vmem:[#allocation3 + $0x28] sm:$0xff] %v2290
  %2323 = vst [vmem:[#allocation3 + $0x30] sm:$0xff] %v2291
  %2324 = vst [vmem:[#allocation3 + $0x38] sm:$0xff] %v2292
  %2325 = vst [vmem:[#allocation3 + $0x40] sm:$0xff] %v2293
  %2326 = vst [vmem:[#allocation3 + $0x48] sm:$0xff] %v2294
  %2327 = vst [vmem:[#allocation3 + $0x50] sm:$0xff] %v2295
  %2328 = vst [vmem:[#allocation3 + $0x58] sm:$0xff] %v2296
  %2329 = vst [vmem:[#allocation3 + $0x60] sm:$0xff] %v2297
  %2330 = vst [vmem:[#allocation3 + $0x68] sm:$0xff] %v2298
  %2331 = vst [vmem:[#allocation3 + $0x70] sm:$0xff] %v2299
  %2332 = vst [vmem:[#allocation3 + $0x78] sm:$0xff] %v2300
  %2333 = vst [vmem:[#allocation3 + $0x80] sm:$0xff] %v2301
  %2334 = vst [vmem:[#allocation3 + $0x88] sm:$0xff] %v2302
  %2335 = vst [vmem:[#allocation3 + $0x90] sm:$0xff] %v2303
  %2336 = vst [vmem:[#allocation3 + $0x98] sm:$0xff] %v2304
  %2337 = vst [vmem:[#allocation3 + $0xa0] sm:$0xff] %v2305
  %2338 = vst [vmem:[#allocation3 + $0xa8] sm:$0xff] %v2306
  %2339 = vst [vmem:[#allocation3 + $0xb0] sm:$0xff] %v2307
  %2340 = vst [vmem:[#allocation3 + $0xb8] sm:$0xff] %v2308
  %2341 = vst [vmem:[#allocation3 + $0xc0] sm:$0xff] %v2309
  %2342 = vst [vmem:[#allocation3 + $0xc8] sm:$0xff] %v2310
  %2343 = vst [vmem:[#allocation3 + $0xd0] sm:$0xff] %v2311
  %2344 = vst [vmem:[#allocation3 + $0xd8] sm:$0xff] %v2312
  %2345 = vst [vmem:[#allocation3 + $0xe0] sm:$0xff] %v2313
  %2346 = vst [vmem:[#allocation3 + $0xe8] sm:$0xff] %v2314
  %2347 = vst [vmem:[#allocation3 + $0xf0] sm:$0xff] %v2315
  %2348 = vst [vmem:[#allocation3 + $0xf8] sm:$0xff] %v2316
  %v2349 = vld [vmem:[%s430] sm:$0xf]
  %v2350 = vld [vmem:[%s430 + $0x4] sm:$0xf]
  %v2351 = vld [vmem:[%s430 + $0xc] sm:$0xf]
  %v2352 = vld [vmem:[%s430 + $0x10] sm:$0xf]
  %v2353 = vld [vmem:[%s430 + $0x18] sm:$0xf]
  %v2354 = vld [vmem:[%s430 + $0x1c] sm:$0xf]
  %v2355 = vld [vmem:[%s430 + $0x24] sm:$0xf]
  %v2356 = vld [vmem:[%s430 + $0x28] sm:$0xf]
  %v2357 = vld [vmem:[%s430 + $0x30] sm:$0xf]
  %v2358 = vld [vmem:[%s430 + $0x34] sm:$0xf]
  %v2359 = vld [vmem:[%s430 + $0x3c] sm:$0xf]
  %v2360 = vld [vmem:[%s430 + $0x40] sm:$0xf]
  %v2361 = vld [vmem:[%s430 + $0x48] sm:$0xf]
  %v2362 = vld [vmem:[%s430 + $0x4c] sm:$0xf]
  %v2363 = vld [vmem:[%s430 + $0x54] sm:$0xf]
  %v2364 = vld [vmem:[%s430 + $0x58] sm:$0xf]
  %v2365 = vld [vmem:[%s430 + $0x60] sm:$0xf]
  %v2366 = vld [vmem:[%s430 + $0x64] sm:$0xf]
  %v2367 = vld [vmem:[%s430 + $0x6c] sm:$0xf]
  %v2368 = vld [vmem:[%s430 + $0x70] sm:$0xf]
  %v2369 = vld [vmem:[%s430 + $0x78] sm:$0xf]
  %v2370 = vld [vmem:[%s430 + $0x7c] sm:$0xf]
  %v2371 = vld [vmem:[%s430 + $0x84] sm:$0xf]
  %v2372 = vld [vmem:[%s430 + $0x88] sm:$0xf]
  %v2373 = vld [vmem:[%s430 + $0x90] sm:$0xf]
  %v2374 = vld [vmem:[%s430 + $0x94] sm:$0xf]
  %v2375 = vld [vmem:[%s430 + $0x9c] sm:$0xf]
  %v2376 = vld [vmem:[%s430 + $0xa0] sm:$0xf]
  %v2377 = vld [vmem:[%s430 + $0xa8] sm:$0xf]
  %v2378 = vld [vmem:[%s430 + $0xac] sm:$0xf]
  %v2379 = vld [vmem:[%s430 + $0xb4] sm:$0xf]
  %v2380 = vld [vmem:[%s430 + $0xb8] sm:$0xf]
  %v2381 = vld [vmem:[%s1 + $0xc0] sm:$0xf]
  %v2382 = vld [vmem:[%s1 + $0xc4] sm:$0xf]
  %v2383 = vld [vmem:[%s1 + $0xc8] sm:$0xf]
  %v2384 = vld [vmem:[%s1 + $0xcc] sm:$0xf]
  %v2385 = vld [vmem:[%s1 + $0xd0] sm:$0xf]
  %v2386 = vld [vmem:[%s1 + $0xd4] sm:$0xf]
  %v2387 = vld [vmem:[%s1 + $0xd8] sm:$0xf]
  %v2388 = vld [vmem:[%s1 + $0xdc] sm:$0xf]
  %v2389 = vld [vmem:[%s1 + $0xe0] sm:$0xf]
  %v2390 = vld [vmem:[%s1 + $0xe4] sm:$0xf]
  %v2391 = vld [vmem:[%s1 + $0xe8] sm:$0xf]
  %v2392 = vld [vmem:[%s1 + $0xec] sm:$0xf]
  %v2393 = vld [vmem:[%s1 + $0xf0] sm:$0xf]
  %v2394 = vld [vmem:[%s1 + $0xf4] sm:$0xf]
  %v2395 = vld [vmem:[%s1 + $0xf8] sm:$0xf]
  %v2396 = vld [vmem:[%s1 + $0xfc] sm:$0xf]
  %v2429 = vunpack.c.l.b16 %v2349
  %v2430 = vunpack.c.l.b16 %v2350
  %v2431 = vunpack.c.l.b16 %v2351
  %v2432 = vunpack.c.l.b16 %v2352
  %v2433 = vunpack.c.l.b16 %v2353
  %v2434 = vunpack.c.l.b16 %v2354
  %v2435 = vunpack.c.l.b16 %v2355
  %v2436 = vunpack.c.l.b16 %v2356
  %v2437 = vunpack.c.l.b16 %v2357
  %v2438 = vunpack.c.l.b16 %v2358
  %v2439 = vunpack.c.l.b16 %v2359
  %v2440 = vunpack.c.l.b16 %v2360
  %v2441 = vunpack.c.l.b16 %v2361
  %v2442 = vunpack.c.l.b16 %v2362
  %v2443 = vunpack.c.l.b16 %v2363
  %v2444 = vunpack.c.l.b16 %v2364
  %v2445 = vunpack.c.l.b16 %v2365
  %v2446 = vunpack.c.l.b16 %v2366
  %v2447 = vunpack.c.l.b16 %v2367
  %v2448 = vunpack.c.l.b16 %v2368
  %v2449 = vunpack.c.l.b16 %v2369
  %v2450 = vunpack.c.l.b16 %v2370
  %v2451 = vunpack.c.l.b16 %v2371
  %v2452 = vunpack.c.l.b16 %v2372
  %v2453 = vunpack.c.l.b16 %v2373
  %v2454 = vunpack.c.l.b16 %v2374
  %v2455 = vunpack.c.l.b16 %v2375
  %v2456 = vunpack.c.l.b16 %v2376
  %v2457 = vunpack.c.l.b16 %v2377
  %v2458 = vunpack.c.l.b16 %v2378
  %v2459 = vunpack.c.l.b16 %v2379
  %v2460 = vunpack.c.l.b16 %v2380
  %v2461 = vpack.c.b16 %v2430, %v2429
  %v2462 = vpack.c.b16 %v2432, %v2431
  %v2463 = vpack.c.b16 %v2434, %v2433
  %v2464 = vpack.c.b16 %v2436, %v2435
  %v2465 = vpack.c.b16 %v2438, %v2437
  %v2466 = vpack.c.b16 %v2440, %v2439
  %v2467 = vpack.c.b16 %v2442, %v2441
  %v2468 = vpack.c.b16 %v2444, %v2443
  %v2469 = vpack.c.b16 %v2446, %v2445
  %v2470 = vpack.c.b16 %v2448, %v2447
  %v2471 = vpack.c.b16 %v2450, %v2449
  %v2472 = vpack.c.b16 %v2452, %v2451
  %v2473 = vpack.c.b16 %v2454, %v2453
  %v2474 = vpack.c.b16 %v2456, %v2455
  %v2475 = vpack.c.b16 %v2458, %v2457
  %v2476 = vpack.c.b16 %v2460, %v2459
  %v2509 = vunpack.c.l.b16 %v2381
  %v2510 = vunpack.c.l.b16 %v2382
  %v2511 = vunpack.c.l.b16 %v2383
  %v2512 = vunpack.c.l.b16 %v2384
  %v2513 = vunpack.c.l.b16 %v2385
  %v2514 = vunpack.c.l.b16 %v2386
  %v2515 = vunpack.c.l.b16 %v2387
  %v2516 = vunpack.c.l.b16 %v2388
  %v2517 = vunpack.c.l.b16 %v2389
  %v2518 = vunpack.c.l.b16 %v2390
  %v2519 = vunpack.c.l.b16 %v2391
  %v2520 = vunpack.c.l.b16 %v2392
  %v2521 = vunpack.c.l.b16 %v2393
  %v2522 = vunpack.c.l.b16 %v2394
  %v2523 = vunpack.c.l.b16 %v2395
  %v2524 = vunpack.c.l.b16 %v2396
  %v2525 = vpack.c.b16 %v2510, %v2509
  %v2526 = vpack.c.b16 %v2512, %v2511
  %v2527 = vpack.c.b16 %v2514, %v2513
  %v2528 = vpack.c.b16 %v2516, %v2515
  %v2529 = vpack.c.b16 %v2518, %v2517
  %v2530 = vpack.c.b16 %v2520, %v2519
  %v2531 = vpack.c.b16 %v2522, %v2521
  %v2532 = vpack.c.b16 %v2524, %v2523
  %2541 = vmatprep.subr.bf16.mxu0 0
  %2542 = vmatpush1.bf16.msra.mxu0 %v2532
  %2543 = vmatprep.subr.bf16.mxu0 0
  %2544 = vmatpush1.bf16.msra.mxu0 %v2531
  %2545 = vmatprep.subr.bf16.mxu0 0
  %2546 = vmatpush1.bf16.msra.mxu0 %v2530
  %2547 = vmatprep.subr.bf16.mxu0 0
  %2548 = vmatpush1.bf16.msra.mxu0 %v2529
  %2549 = vmatprep.subr.bf16.mxu0 0
  %2550 = vmatpush1.bf16.msra.mxu0 %v2528
  %2551 = vmatprep.subr.bf16.mxu0 0
  %2552 = vmatpush1.bf16.msra.mxu0 %v2527
  %2553 = vmatprep.subr.bf16.mxu0 0
  %2554 = vmatpush1.bf16.msra.mxu0 %v2526
  %2555 = vmatprep.subr.bf16.mxu0 0
  %2556 = vmatpush1.bf16.msra.mxu0 %v2525
  %2557 = vmatprep.subr.bf16.mxu0 0
  %2558 = vmatpush2.bf16.msra.mxu0 0
  %2559 = vmatprep.subr.bf16.mxu0 0
  %2560 = vmatpush2.bf16.msra.mxu0 0
  %2561 = vmatprep.subr.bf16.mxu0 0
  %2562 = vmatpush2.bf16.msra.mxu0 0
  %2563 = vmatprep.subr.bf16.mxu0 0
  %2564 = vmatpush2.bf16.msra.mxu0 0
  %2565 = vmatprep.subr.bf16.mxu0 0
  %2566 = vmatpush2.bf16.msra.mxu0 0
  %2567 = vmatprep.subr.bf16.mxu0 0
  %2568 = vmatpush2.bf16.msra.mxu0 0
  %2569 = vmatprep.subr.bf16.mxu0 0
  %2570 = vmatpush2.bf16.msra.mxu0 0
  %2571 = vmatprep.subr.bf16.mxu0 0
  %2572 = vmatpush2.bf16.msra.mxu0 0
  %2573 = vmatprep.mubr.bf16.mxu0 0
  %2574 = vmatmul.mubr.bf16.gmra.mxu0 %v2461
  %v2575 = vpop.f32.mrf.mxu0
  %v2576 = vadd.f32 0.0, %v2575
  %v2577 = vpop.f32.mrf.mxu0
  %v2578 = vpop.f32.mrf.mxu0
  %v2579 = vadd.f32 0.0, %v2578
  %v2580 = vpop.f32.mrf.mxu0
  %2581 = vmatprep.mubr.bf16.mxu0 0
  %2582 = vmatmul.mubr.bf16.gmra.mxu0 %v2462
  %v2583 = vpop.f32.mrf.mxu0
  %v2584 = vadd.f32 0.0, %v2583
  %v2585 = vpop.f32.mrf.mxu0
  %v2586 = vpop.f32.mrf.mxu0
  %v2587 = vadd.f32 0.0, %v2586
  %v2588 = vpop.f32.mrf.mxu0
  %2589 = vmatprep.mubr.bf16.mxu0 0
  %2590 = vmatmul.mubr.bf16.gmra.mxu0 %v2463
  %v2591 = vpop.f32.mrf.mxu0
  %v2592 = vadd.f32 0.0, %v2591
  %v2593 = vpop.f32.mrf.mxu0
  %v2594 = vpop.f32.mrf.mxu0
  %v2595 = vadd.f32 0.0, %v2594
  %v2596 = vpop.f32.mrf.mxu0
  %2597 = vmatprep.mubr.bf16.mxu0 0
  %2598 = vmatmul.mubr.bf16.gmra.mxu0 %v2464
  %v2599 = vpop.f32.mrf.mxu0
  %v2600 = vadd.f32 0.0, %v2599
  %v2601 = vpop.f32.mrf.mxu0
  %v2602 = vpop.f32.mrf.mxu0
  %v2603 = vadd.f32 0.0, %v2602
  %v2604 = vpop.f32.mrf.mxu0
  %2605 = vmatprep.mubr.bf16.mxu0 0
  %2606 = vmatmul.mubr.bf16.gmra.mxu0 %v2465
  %v2607 = vpop.f32.mrf.mxu0
  %v2608 = vadd.f32 0.0, %v2607
  %v2609 = vpop.f32.mrf.mxu0
  %v2610 = vpop.f32.mrf.mxu0
  %v2611 = vadd.f32 0.0, %v2610
  %v2612 = vpop.f32.mrf.mxu0
  %2613 = vmatprep.mubr.bf16.mxu0 0
  %2614 = vmatmul.mubr.bf16.gmra.mxu0 %v2466
  %v2615 = vpop.f32.mrf.mxu0
  %v2616 = vadd.f32 0.0, %v2615
  %v2617 = vpop.f32.mrf.mxu0
  %v2618 = vpop.f32.mrf.mxu0
  %v2619 = vadd.f32 0.0, %v2618
  %v2620 = vpop.f32.mrf.mxu0
  %2621 = vmatprep.mubr.bf16.mxu0 0
  %2622 = vmatmul.mubr.bf16.gmra.mxu0 %v2467
  %v2623 = vpop.f32.mrf.mxu0
  %v2624 = vadd.f32 0.0, %v2623
  %v2625 = vpop.f32.mrf.mxu0
  %v2626 = vpop.f32.mrf.mxu0
  %v2627 = vadd.f32 0.0, %v2626
  %v2628 = vpop.f32.mrf.mxu0
  %2629 = vmatprep.mubr.bf16.mxu0 0
  %2630 = vmatmul.mubr.bf16.gmra.mxu0 %v2468
  %v2631 = vpop.f32.mrf.mxu0
  %v2632 = vadd.f32 0.0, %v2631
  %v2633 = vpop.f32.mrf.mxu0
  %v2634 = vpop.f32.mrf.mxu0
  %v2635 = vadd.f32 0.0, %v2634
  %v2636 = vpop.f32.mrf.mxu0
  %2637 = vmatprep.mubr.bf16.mxu0 0
  %2638 = vmatmul.mubr.bf16.gmra.mxu0 %v2469
  %v2639 = vpop.f32.mrf.mxu0
  %v2640 = vadd.f32 0.0, %v2639
  %v2641 = vpop.f32.mrf.mxu0
  %v2642 = vpop.f32.mrf.mxu0
  %v2643 = vadd.f32 0.0, %v2642
  %v2644 = vpop.f32.mrf.mxu0
  %2645 = vmatprep.mubr.bf16.mxu0 0
  %2646 = vmatmul.mubr.bf16.gmra.mxu0 %v2470
  %v2647 = vpop.f32.mrf.mxu0
  %v2648 = vadd.f32 0.0, %v2647
  %v2649 = vpop.f32.mrf.mxu0
  %v2650 = vpop.f32.mrf.mxu0
  %v2651 = vadd.f32 0.0, %v2650
  %v2652 = vpop.f32.mrf.mxu0
  %2653 = vmatprep.mubr.bf16.mxu0 0
  %2654 = vmatmul.mubr.bf16.gmra.mxu0 %v2471
  %v2655 = vpop.f32.mrf.mxu0
  %v2656 = vadd.f32 0.0, %v2655
  %v2657 = vpop.f32.mrf.mxu0
  %v2658 = vpop.f32.mrf.mxu0
  %v2659 = vadd.f32 0.0, %v2658
  %v2660 = vpop.f32.mrf.mxu0
  %2661 = vmatprep.mubr.bf16.mxu0 0
  %2662 = vmatmul.mubr.bf16.gmra.mxu0 %v2472
  %v2663 = vpop.f32.mrf.mxu0
  %v2664 = vadd.f32 0.0, %v2663
  %v2665 = vpop.f32.mrf.mxu0
  %v2666 = vpop.f32.mrf.mxu0
  %v2667 = vadd.f32 0.0, %v2666
  %v2668 = vpop.f32.mrf.mxu0
  %2669 = vmatprep.mubr.bf16.mxu0 0
  %2670 = vmatmul.mubr.bf16.gmra.mxu0 %v2473
  %v2671 = vpop.f32.mrf.mxu0
  %v2672 = vadd.f32 0.0, %v2671
  %v2673 = vpop.f32.mrf.mxu0
  %v2674 = vpop.f32.mrf.mxu0
  %v2675 = vadd.f32 0.0, %v2674
  %v2676 = vpop.f32.mrf.mxu0
  %2677 = vmatprep.mubr.bf16.mxu0 0
  %2678 = vmatmul.mubr.bf16.gmra.mxu0 %v2474
  %v2679 = vpop.f32.mrf.mxu0
  %v2680 = vadd.f32 0.0, %v2679
  %v2681 = vpop.f32.mrf.mxu0
  %v2682 = vpop.f32.mrf.mxu0
  %v2683 = vadd.f32 0.0, %v2682
  %v2684 = vpop.f32.mrf.mxu0
  %2685 = vmatprep.mubr.bf16.mxu0 0
  %2686 = vmatmul.mubr.bf16.gmra.mxu0 %v2475
  %v2687 = vpop.f32.mrf.mxu0
  %v2688 = vadd.f32 0.0, %v2687
  %v2689 = vpop.f32.mrf.mxu0
  %v2690 = vpop.f32.mrf.mxu0
  %v2691 = vadd.f32 0.0, %v2690
  %v2692 = vpop.f32.mrf.mxu0
  %2693 = vmatprep.mubr.bf16.mxu0 0
  %2694 = vmatmul.mubr.bf16.gmra.mxu0 %v2476
  %v2695 = vpop.f32.mrf.mxu0
  %v2696 = vadd.f32 0.0, %v2695
  %v2697 = vpop.f32.mrf.mxu0
  %v2698 = vpop.f32.mrf.mxu0
  %v2699 = vadd.f32 0.0, %v2698
  %v2700 = vpop.f32.mrf.mxu0
  %2701 = vdwg.mxu0
  %v2702 = vld [vmem:[#allocation3] sm:$0xff]
  %v2703 = vld [vmem:[#allocation3 + $0x8] sm:$0xff]
  %v2704 = vld [vmem:[#allocation3 + $0x10] sm:$0xff]
  %v2705 = vld [vmem:[#allocation3 + $0x18] sm:$0xff]
  %v2706 = vld [vmem:[#allocation3 + $0x20] sm:$0xff]
  %v2707 = vld [vmem:[#allocation3 + $0x28] sm:$0xff]
  %v2708 = vld [vmem:[#allocation3 + $0x30] sm:$0xff]
  %v2709 = vld [vmem:[#allocation3 + $0x38] sm:$0xff]
  %v2710 = vld [vmem:[#allocation3 + $0x40] sm:$0xff]
  %v2711 = vld [vmem:[#allocation3 + $0x48] sm:$0xff]
  %v2712 = vld [vmem:[#allocation3 + $0x50] sm:$0xff]
  %v2713 = vld [vmem:[#allocation3 + $0x58] sm:$0xff]
  %v2714 = vld [vmem:[#allocation3 + $0x60] sm:$0xff]
  %v2715 = vld [vmem:[#allocation3 + $0x68] sm:$0xff]
  %v2716 = vld [vmem:[#allocation3 + $0x70] sm:$0xff]
  %v2717 = vld [vmem:[#allocation3 + $0x78] sm:$0xff]
  %v2718 = vld [vmem:[#allocation3 + $0x80] sm:$0xff]
  %v2719 = vld [vmem:[#allocation3 + $0x88] sm:$0xff]
  %v2720 = vld [vmem:[#allocation3 + $0x90] sm:$0xff]
  %v2721 = vld [vmem:[#allocation3 + $0x98] sm:$0xff]
  %v2722 = vld [vmem:[#allocation3 + $0xa0] sm:$0xff]
  %v2723 = vld [vmem:[#allocation3 + $0xa8] sm:$0xff]
  %v2724 = vld [vmem:[#allocation3 + $0xb0] sm:$0xff]
  %v2725 = vld [vmem:[#allocation3 + $0xb8] sm:$0xff]
  %v2726 = vld [vmem:[#allocation3 + $0xc0] sm:$0xff]
  %v2727 = vld [vmem:[#allocation3 + $0xc8] sm:$0xff]
  %v2728 = vld [vmem:[#allocation3 + $0xd0] sm:$0xff]
  %v2729 = vld [vmem:[#allocation3 + $0xd8] sm:$0xff]
  %v2730 = vld [vmem:[#allocation3 + $0xe0] sm:$0xff]
  %v2731 = vld [vmem:[#allocation3 + $0xe8] sm:$0xff]
  %v2732 = vld [vmem:[#allocation3 + $0xf0] sm:$0xff]
  %v2733 = vld [vmem:[#allocation3 + $0xf8] sm:$0xff]
  %v2734 = vadd.f32 %v2702, %v2576
  %v2735 = vadd.f32 %v2703, %v2579
  %v2736 = vadd.f32 %v2704, %v2584
  %v2737 = vadd.f32 %v2705, %v2587
  %v2738 = vadd.f32 %v2706, %v2592
  %v2739 = vadd.f32 %v2707, %v2595
  %v2740 = vadd.f32 %v2708, %v2600
  %v2741 = vadd.f32 %v2709, %v2603
  %v2742 = vadd.f32 %v2710, %v2608
  %v2743 = vadd.f32 %v2711, %v2611
  %v2744 = vadd.f32 %v2712, %v2616
  %v2745 = vadd.f32 %v2713, %v2619
  %v2746 = vadd.f32 %v2714, %v2624
  %v2747 = vadd.f32 %v2715, %v2627
  %v2748 = vadd.f32 %v2716, %v2632
  %v2749 = vadd.f32 %v2717, %v2635
  %v2750 = vadd.f32 %v2718, %v2640
  %v2751 = vadd.f32 %v2719, %v2643
  %v2752 = vadd.f32 %v2720, %v2648
  %v2753 = vadd.f32 %v2721, %v2651
  %v2754 = vadd.f32 %v2722, %v2656
  %v2755 = vadd.f32 %v2723, %v2659
  %v2756 = vadd.f32 %v2724, %v2664
  %v2757 = vadd.f32 %v2725, %v2667
  %v2758 = vadd.f32 %v2726, %v2672
  %v2759 = vadd.f32 %v2727, %v2675
  %v2760 = vadd.f32 %v2728, %v2680
  %v2761 = vadd.f32 %v2729, %v2683
  %v2762 = vadd.f32 %v2730, %v2688
  %v2763 = vadd.f32 %v2731, %v2691
  %v2764 = vadd.f32 %v2732, %v2696
  %v2765 = vadd.f32 %v2733, %v2699
  %2766 = vst [vmem:[#allocation3] sm:$0xff] %v2734
  %2767 = vst [vmem:[#allocation3 + $0x8] sm:$0xff] %v2735
  %2768 = vst [vmem:[#allocation3 + $0x10] sm:$0xff] %v2736
  %2769 = vst [vmem:[#allocation3 + $0x18] sm:$0xff] %v2737
  %2770 = vst [vmem:[#allocation3 + $0x20] sm:$0xff] %v2738
  %2771 = vst [vmem:[#allocation3 + $0x28] sm:$0xff] %v2739
  %2772 = vst [vmem:[#allocation3 + $0x30] sm:$0xff] %v2740
  %2773 = vst [vmem:[#allocation3 + $0x38] sm:$0xff] %v2741
  %2774 = vst [vmem:[#allocation3 + $0x40] sm:$0xff] %v2742
  %2775 = vst [vmem:[#allocation3 + $0x48] sm:$0xff] %v2743
  %2776 = vst [vmem:[#allocation3 + $0x50] sm:$0xff] %v2744
  %2777 = vst [vmem:[#allocation3 + $0x58] sm:$0xff] %v2745
  %2778 = vst [vmem:[#allocation3 + $0x60] sm:$0xff] %v2746
  %2779 = vst [vmem:[#allocation3 + $0x68] sm:$0xff] %v2747
  %2780 = vst [vmem:[#allocation3 + $0x70] sm:$0xff] %v2748
  %2781 = vst [vmem:[#allocation3 + $0x78] sm:$0xff] %v2749
  %2782 = vst [vmem:[#allocation3 + $0x80] sm:$0xff] %v2750
  %2783 = vst [vmem:[#allocation3 + $0x88] sm:$0xff] %v2751
  %2784 = vst [vmem:[#allocation3 + $0x90] sm:$0xff] %v2752
  %2785 = vst [vmem:[#allocation3 + $0x98] sm:$0xff] %v2753
  %2786 = vst [vmem:[#allocation3 + $0xa0] sm:$0xff] %v2754
  %2787 = vst [vmem:[#allocation3 + $0xa8] sm:$0xff] %v2755
  %2788 = vst [vmem:[#allocation3 + $0xb0] sm:$0xff] %v2756
  %2789 = vst [vmem:[#allocation3 + $0xb8] sm:$0xff] %v2757
  %2790 = vst [vmem:[#allocation3 + $0xc0] sm:$0xff] %v2758
  %2791 = vst [vmem:[#allocation3 + $0xc8] sm:$0xff] %v2759
  %2792 = vst [vmem:[#allocation3 + $0xd0] sm:$0xff] %v2760
  %2793 = vst [vmem:[#allocation3 + $0xd8] sm:$0xff] %v2761
  %2794 = vst [vmem:[#allocation3 + $0xe0] sm:$0xff] %v2762
  %2795 = vst [vmem:[#allocation3 + $0xe8] sm:$0xff] %v2763
  %2796 = vst [vmem:[#allocation3 + $0xf0] sm:$0xff] %v2764
  %2797 = vst [vmem:[#allocation3 + $0xf8] sm:$0xff] %v2765
  %v2798 = vld [vmem:[%s430] sm:$0xf]
  %v2799 = vld [vmem:[%s430 + $0x4] sm:$0xf]
  %v2800 = vld [vmem:[%s430 + $0x8] sm:$0x1]
  %v2801 = vld [vmem:[%s430 + $0xc] sm:$0xf]
  %v2802 = vld [vmem:[%s430 + $0x10] sm:$0xf]
  %v2803 = vld [vmem:[%s430 + $0x14] sm:$0x1]
  %v2804 = vld [vmem:[%s430 + $0x18] sm:$0xf]
  %v2805 = vld [vmem:[%s430 + $0x1c] sm:$0xf]
  %v2806 = vld [vmem:[%s430 + $0x20] sm:$0x1]
  %v2807 = vld [vmem:[%s430 + $0x24] sm:$0xf]
  %v2808 = vld [vmem:[%s430 + $0x28] sm:$0xf]
  %v2809 = vld [vmem:[%s430 + $0x2c] sm:$0x1]
  %v2810 = vld [vmem:[%s430 + $0x30] sm:$0xf]
  %v2811 = vld [vmem:[%s430 + $0x34] sm:$0xf]
  %v2812 = vld [vmem:[%s430 + $0x38] sm:$0x1]
  %v2813 = vld [vmem:[%s430 + $0x3c] sm:$0xf]
  %v2814 = vld [vmem:[%s430 + $0x40] sm:$0xf]
  %v2815 = vld [vmem:[%s430 + $0x44] sm:$0x1]
  %v2816 = vld [vmem:[%s430 + $0x48] sm:$0xf]
  %v2817 = vld [vmem:[%s430 + $0x4c] sm:$0xf]
  %v2818 = vld [vmem:[%s430 + $0x50] sm:$0x1]
  %v2819 = vld [vmem:[%s430 + $0x54] sm:$0xf]
  %v2820 = vld [vmem:[%s430 + $0x58] sm:$0xf]
  %v2821 = vld [vmem:[%s430 + $0x5c] sm:$0x1]
  %v2822 = vld [vmem:[%s430 + $0x60] sm:$0xf]
  %v2823 = vld [vmem:[%s430 + $0x64] sm:$0xf]
  %v2824 = vld [vmem:[%s430 + $0x68] sm:$0x1]
  %v2825 = vld [vmem:[%s430 + $0x6c] sm:$0xf]
  %v2826 = vld [vmem:[%s430 + $0x70] sm:$0xf]
  %v2827 = vld [vmem:[%s430 + $0x74] sm:$0x1]
  %v2828 = vld [vmem:[%s430 + $0x78] sm:$0xf]
  %v2829 = vld [vmem:[%s430 + $0x7c] sm:$0xf]
  %v2830 = vld [vmem:[%s430 + $0x80] sm:$0x1]
  %v2831 = vld [vmem:[%s430 + $0x84] sm:$0xf]
  %v2832 = vld [vmem:[%s430 + $0x88] sm:$0xf]
  %v2833 = vld [vmem:[%s430 + $0x8c] sm:$0x1]
  %v2834 = vld [vmem:[%s430 + $0x90] sm:$0xf]
  %v2835 = vld [vmem:[%s430 + $0x94] sm:$0xf]
  %v2836 = vld [vmem:[%s430 + $0x98] sm:$0x1]
  %v2837 = vld [vmem:[%s430 + $0x9c] sm:$0xf]
  %v2838 = vld [vmem:[%s430 + $0xa0] sm:$0xf]
  %v2839 = vld [vmem:[%s430 + $0xa4] sm:$0x1]
  %v2840 = vld [vmem:[%s430 + $0xa8] sm:$0xf]
  %v2841 = vld [vmem:[%s430 + $0xac] sm:$0xf]
  %v2842 = vld [vmem:[%s430 + $0xb0] sm:$0x1]
  %v2843 = vld [vmem:[%s430 + $0xb4] sm:$0xf]
  %v2844 = vld [vmem:[%s430 + $0xb8] sm:$0xf]
  %v2845 = vld [vmem:[%s430 + $0xbc] sm:$0x1]
  %v2847 = vshrl.u32 %v2798, 16
  %v2849 = vrot.slane %v2847, 4
  %v2850 = vshll.u32 %v2798, 16
  %v2852 = vrot.slane %v2850, 5
  %v2853 = vor.u32 %v2849, %v2852
  %v2854 = vrot.slane %v2853, 4
  %v2856 = vshll.u32 %v2799, 16
  %v2858 = vrot.slane %v2856, 5
  %v2859 = vsel %vm983, %v2854, %v2858
  %v2860 = vshrl.u32 %v2799, 16
  %v2862 = vrot.slane %v2860, 4
  %v2863 = vor.u32 %v2862, %v2858
  %v2864 = vrot.slane %v2863, 4
  %v2866 = vshll.u32 %v2800, 16
  %v2868 = vrot.slane %v2866, 5
  %v2869 = vsel %vm983, %v2864, %v2868
  %v2871 = vshrl.u32 %v2801, 16
  %v2873 = vrot.slane %v2871, 4
  %v2874 = vshll.u32 %v2801, 16
  %v2876 = vrot.slane %v2874, 5
  %v2877 = vor.u32 %v2873, %v2876
  %v2878 = vrot.slane %v2877, 4
  %v2880 = vshll.u32 %v2802, 16
  %v2882 = vrot.slane %v2880, 5
  %v2883 = vsel %vm983, %v2878, %v2882
  %v2884 = vshrl.u32 %v2802, 16
  %v2886 = vrot.slane %v2884, 4
  %v2887 = vor.u32 %v2886, %v2882
  %v2888 = vrot.slane %v2887, 4
  %v2890 = vshll.u32 %v2803, 16
  %v2892 = vrot.slane %v2890, 5
  %v2893 = vsel %vm983, %v2888, %v2892
  %v2895 = vshrl.u32 %v2804, 16
  %v2897 = vrot.slane %v2895, 4
  %v2898 = vshll.u32 %v2804, 16
  %v2900 = vrot.slane %v2898, 5
  %v2901 = vor.u32 %v2897, %v2900
  %v2902 = vrot.slane %v2901, 4
  %v2904 = vshll.u32 %v2805, 16
  %v2906 = vrot.slane %v2904, 5
  %v2907 = vsel %vm983, %v2902, %v2906
  %v2908 = vshrl.u32 %v2805, 16
  %v2910 = vrot.slane %v2908, 4
  %v2911 = vor.u32 %v2910, %v2906
  %v2912 = vrot.slane %v2911, 4
  %v2914 = vshll.u32 %v2806, 16
  %v2916 = vrot.slane %v2914, 5
  %v2917 = vsel %vm983, %v2912, %v2916
  %v2919 = vshrl.u32 %v2807, 16
  %v2921 = vrot.slane %v2919, 4
  %v2922 = vshll.u32 %v2807, 16
  %v2924 = vrot.slane %v2922, 5
  %v2925 = vor.u32 %v2921, %v2924
  %v2926 = vrot.slane %v2925, 4
  %v2928 = vshll.u32 %v2808, 16
  %v2930 = vrot.slane %v2928, 5
  %v2931 = vsel %vm983, %v2926, %v2930
  %v2932 = vshrl.u32 %v2808, 16
  %v2934 = vrot.slane %v2932, 4
  %v2935 = vor.u32 %v2934, %v2930
  %v2936 = vrot.slane %v2935, 4
  %v2938 = vshll.u32 %v2809, 16
  %v2940 = vrot.slane %v2938, 5
  %v2941 = vsel %vm983, %v2936, %v2940
  %v2943 = vshrl.u32 %v2810, 16
  %v2945 = vrot.slane %v2943, 4
  %v2946 = vshll.u32 %v2810, 16
  %v2948 = vrot.slane %v2946, 5
  %v2949 = vor.u32 %v2945, %v2948
  %v2950 = vrot.slane %v2949, 4
  %v2952 = vshll.u32 %v2811, 16
  %v2954 = vrot.slane %v2952, 5
  %v2955 = vsel %vm983, %v2950, %v2954
  %v2956 = vshrl.u32 %v2811, 16
  %v2958 = vrot.slane %v2956, 4
  %v2959 = vor.u32 %v2958, %v2954
  %v2960 = vrot.slane %v2959, 4
  %v2962 = vshll.u32 %v2812, 16
  %v2964 = vrot.slane %v2962, 5
  %v2965 = vsel %vm983, %v2960, %v2964
  %v2967 = vshrl.u32 %v2813, 16
  %v2969 = vrot.slane %v2967, 4
  %v2970 = vshll.u32 %v2813, 16
  %v2972 = vrot.slane %v2970, 5
  %v2973 = vor.u32 %v2969, %v2972
  %v2974 = vrot.slane %v2973, 4
  %v2976 = vshll.u32 %v2814, 16
  %v2978 = vrot.slane %v2976, 5
  %v2979 = vsel %vm983, %v2974, %v2978
  %v2980 = vshrl.u32 %v2814, 16
  %v2982 = vrot.slane %v2980, 4
  %v2983 = vor.u32 %v2982, %v2978
  %v2984 = vrot.slane %v2983, 4
  %v2986 = vshll.u32 %v2815, 16
  %v2988 = vrot.slane %v2986, 5
  %v2989 = vsel %vm983, %v2984, %v2988
  %v2991 = vshrl.u32 %v2816, 16
  %v2993 = vrot.slane %v2991, 4
  %v2994 = vshll.u32 %v2816, 16
  %v2996 = vrot.slane %v2994, 5
  %v2997 = vor.u32 %v2993, %v2996
  %v2998 = vrot.slane %v2997, 4
  %v3000 = vshll.u32 %v2817, 16
  %v3002 = vrot.slane %v3000, 5
  %v3003 = vsel %vm983, %v2998, %v3002
  %v3004 = vshrl.u32 %v2817, 16
  %v3006 = vrot.slane %v3004, 4
  %v3007 = vor.u32 %v3006, %v3002
  %v3008 = vrot.slane %v3007, 4
  %v3010 = vshll.u32 %v2818, 16
  %v3012 = vrot.slane %v3010, 5
  %v3013 = vsel %vm983, %v3008, %v3012
  %v3015 = vshrl.u32 %v2819, 16
  %v3017 = vrot.slane %v3015, 4
  %v3018 = vshll.u32 %v2819, 16
  %v3020 = vrot.slane %v3018, 5
  %v3021 = vor.u32 %v3017, %v3020
  %v3022 = vrot.slane %v3021, 4
  %v3024 = vshll.u32 %v2820, 16
  %v3026 = vrot.slane %v3024, 5
  %v3027 = vsel %vm983, %v3022, %v3026
  %v3028 = vshrl.u32 %v2820, 16
  %v3030 = vrot.slane %v3028, 4
  %v3031 = vor.u32 %v3030, %v3026
  %v3032 = vrot.slane %v3031, 4
  %v3034 = vshll.u32 %v2821, 16
  %v3036 = vrot.slane %v3034, 5
  %v3037 = vsel %vm983, %v3032, %v3036
  %v3039 = vshrl.u32 %v2822, 16
  %v3041 = vrot.slane %v3039, 4
  %v3042 = vshll.u32 %v2822, 16
  %v3044 = vrot.slane %v3042, 5
  %v3045 = vor.u32 %v3041, %v3044
  %v3046 = vrot.slane %v3045, 4
  %v3048 = vshll.u32 %v2823, 16
  %v3050 = vrot.slane %v3048, 5
  %v3051 = vsel %vm983, %v3046, %v3050
  %v3052 = vshrl.u32 %v2823, 16
  %v3054 = vrot.slane %v3052, 4
  %v3055 = vor.u32 %v3054, %v3050
  %v3056 = vrot.slane %v3055, 4
  %v3058 = vshll.u32 %v2824, 16
  %v3060 = vrot.slane %v3058, 5
  %v3061 = vsel %vm983, %v3056, %v3060
  %v3063 = vshrl.u32 %v2825, 16
  %v3065 = vrot.slane %v3063, 4
  %v3066 = vshll.u32 %v2825, 16
  %v3068 = vrot.slane %v3066, 5
  %v3069 = vor.u32 %v3065, %v3068
  %v3070 = vrot.slane %v3069, 4
  %v3072 = vshll.u32 %v2826, 16
  %v3074 = vrot.slane %v3072, 5
  %v3075 = vsel %vm983, %v3070, %v3074
  %v3076 = vshrl.u32 %v2826, 16
  %v3078 = vrot.slane %v3076, 4
  %v3079 = vor.u32 %v3078, %v3074
  %v3080 = vrot.slane %v3079, 4
  %v3082 = vshll.u32 %v2827, 16
  %v3084 = vrot.slane %v3082, 5
  %v3085 = vsel %vm983, %v3080, %v3084
  %v3087 = vshrl.u32 %v2828, 16
  %v3089 = vrot.slane %v3087, 4
  %v3090 = vshll.u32 %v2828, 16
  %v3092 = vrot.slane %v3090, 5
  %v3093 = vor.u32 %v3089, %v3092
  %v3094 = vrot.slane %v3093, 4
  %v3096 = vshll.u32 %v2829, 16
  %v3098 = vrot.slane %v3096, 5
  %v3099 = vsel %vm983, %v3094, %v3098
  %v3100 = vshrl.u32 %v2829, 16
  %v3102 = vrot.slane %v3100, 4
  %v3103 = vor.u32 %v3102, %v3098
  %v3104 = vrot.slane %v3103, 4
  %v3106 = vshll.u32 %v2830, 16
  %v3108 = vrot.slane %v3106, 5
  %v3109 = vsel %vm983, %v3104, %v3108
  %v3111 = vshrl.u32 %v2831, 16
  %v3113 = vrot.slane %v3111, 4
  %v3114 = vshll.u32 %v2831, 16
  %v3116 = vrot.slane %v3114, 5
  %v3117 = vor.u32 %v3113, %v3116
  %v3118 = vrot.slane %v3117, 4
  %v3120 = vshll.u32 %v2832, 16
  %v3122 = vrot.slane %v3120, 5
  %v3123 = vsel %vm983, %v3118, %v3122
  %v3124 = vshrl.u32 %v2832, 16
  %v3126 = vrot.slane %v3124, 4
  %v3127 = vor.u32 %v3126, %v3122
  %v3128 = vrot.slane %v3127, 4
  %v3130 = vshll.u32 %v2833, 16
  %v3132 = vrot.slane %v3130, 5
  %v3133 = vsel %vm983, %v3128, %v3132
  %v3135 = vshrl.u32 %v2834, 16
  %v3137 = vrot.slane %v3135, 4
  %v3138 = vshll.u32 %v2834, 16
  %v3140 = vrot.slane %v3138, 5
  %v3141 = vor.u32 %v3137, %v3140
  %v3142 = vrot.slane %v3141, 4
  %v3144 = vshll.u32 %v2835, 16
  %v3146 = vrot.slane %v3144, 5
  %v3147 = vsel %vm983, %v3142, %v3146
  %v3148 = vshrl.u32 %v2835, 16
  %v3150 = vrot.slane %v3148, 4
  %v3151 = vor.u32 %v3150, %v3146
  %v3152 = vrot.slane %v3151, 4
  %v3154 = vshll.u32 %v2836, 16
  %v3156 = vrot.slane %v3154, 5
  %v3157 = vsel %vm983, %v3152, %v3156
  %v3159 = vshrl.u32 %v2837, 16
  %v3161 = vrot.slane %v3159, 4
  %v3162 = vshll.u32 %v2837, 16
  %v3164 = vrot.slane %v3162, 5
  %v3165 = vor.u32 %v3161, %v3164
  %v3166 = vrot.slane %v3165, 4
  %v3168 = vshll.u32 %v2838, 16
  %v3170 = vrot.slane %v3168, 5
  %v3171 = vsel %vm983, %v3166, %v3170
  %v3172 = vshrl.u32 %v2838, 16
  %v3174 = vrot.slane %v3172, 4
  %v3175 = vor.u32 %v3174, %v3170
  %v3176 = vrot.slane %v3175, 4
  %v3178 = vshll.u32 %v2839, 16
  %v3180 = vrot.slane %v3178, 5
  %v3181 = vsel %vm983, %v3176, %v3180
  %v3183 = vshrl.u32 %v2840, 16
  %v3185 = vrot.slane %v3183, 4
  %v3186 = vshll.u32 %v2840, 16
  %v3188 = vrot.slane %v3186, 5
  %v3189 = vor.u32 %v3185, %v3188
  %v3190 = vrot.slane %v3189, 4
  %v3192 = vshll.u32 %v2841, 16
  %v3194 = vrot.slane %v3192, 5
  %v3195 = vsel %vm983, %v3190, %v3194
  %v3196 = vshrl.u32 %v2841, 16
  %v3198 = vrot.slane %v3196, 4
  %v3199 = vor.u32 %v3198, %v3194
  %v3200 = vrot.slane %v3199, 4
  %v3202 = vshll.u32 %v2842, 16
  %v3204 = vrot.slane %v3202, 5
  %v3205 = vsel %vm983, %v3200, %v3204
  %v3207 = vshrl.u32 %v2843, 16
  %v3209 = vrot.slane %v3207, 4
  %v3210 = vshll.u32 %v2843, 16
  %v3212 = vrot.slane %v3210, 5
  %v3213 = vor.u32 %v3209, %v3212
  %v3214 = vrot.slane %v3213, 4
  %v3216 = vshll.u32 %v2844, 16
  %v3218 = vrot.slane %v3216, 5
  %v3219 = vsel %vm983, %v3214, %v3218
  %v3220 = vshrl.u32 %v2844, 16
  %v3222 = vrot.slane %v3220, 4
  %v3223 = vor.u32 %v3222, %v3218
  %v3224 = vrot.slane %v3223, 4
  %v3226 = vshll.u32 %v2845, 16
  %v3228 = vrot.slane %v3226, 5
  %v3229 = vsel %vm983, %v3224, %v3228
  %v3230 = vld [vmem:[%s1 + $0x100] sm:$0xf]
  %v3231 = vld [vmem:[%s1 + $0x104] sm:$0xf]
  %v3232 = vld [vmem:[%s1 + $0x108] sm:$0xf]
  %v3233 = vld [vmem:[%s1 + $0x10c] sm:$0xf]
  %v3234 = vld [vmem:[%s1 + $0x110] sm:$0xf]
  %v3235 = vld [vmem:[%s1 + $0x114] sm:$0xf]
  %v3236 = vld [vmem:[%s1 + $0x118] sm:$0xf]
  %v3237 = vld [vmem:[%s1 + $0x11c] sm:$0xf]
  %v3238 = vld [vmem:[%s1 + $0x120] sm:$0xf]
  %v3239 = vld [vmem:[%s1 + $0x124] sm:$0xf]
  %v3240 = vld [vmem:[%s1 + $0x128] sm:$0xf]
  %v3241 = vld [vmem:[%s1 + $0x12c] sm:$0xf]
  %v3242 = vld [vmem:[%s1 + $0x130] sm:$0xf]
  %v3243 = vld [vmem:[%s1 + $0x134] sm:$0xf]
  %v3244 = vld [vmem:[%s1 + $0x138] sm:$0xf]
  %v3245 = vld [vmem:[%s1 + $0x13c] sm:$0xf]
  %v3246 = vunpack.c.l.b16 %v2859
  %v3247 = vunpack.c.l.b16 %v2869
  %v3248 = vunpack.c.l.b16 %v2883
  %v3249 = vunpack.c.l.b16 %v2893
  %v3250 = vunpack.c.l.b16 %v2907
  %v3251 = vunpack.c.l.b16 %v2917
  %v3252 = vunpack.c.l.b16 %v2931
  %v3253 = vunpack.c.l.b16 %v2941
  %v3254 = vunpack.c.l.b16 %v2955
  %v3255 = vunpack.c.l.b16 %v2965
  %v3256 = vunpack.c.l.b16 %v2979
  %v3257 = vunpack.c.l.b16 %v2989
  %v3258 = vunpack.c.l.b16 %v3003
  %v3259 = vunpack.c.l.b16 %v3013
  %v3260 = vunpack.c.l.b16 %v3027
  %v3261 = vunpack.c.l.b16 %v3037
  %v3262 = vunpack.c.l.b16 %v3051
  %v3263 = vunpack.c.l.b16 %v3061
  %v3264 = vunpack.c.l.b16 %v3075
  %v3265 = vunpack.c.l.b16 %v3085
  %v3266 = vunpack.c.l.b16 %v3099
  %v3267 = vunpack.c.l.b16 %v3109
  %v3268 = vunpack.c.l.b16 %v3123
  %v3269 = vunpack.c.l.b16 %v3133
  %v3270 = vunpack.c.l.b16 %v3147
  %v3271 = vunpack.c.l.b16 %v3157
  %v3272 = vunpack.c.l.b16 %v3171
  %v3273 = vunpack.c.l.b16 %v3181
  %v3274 = vunpack.c.l.b16 %v3195
  %v3275 = vunpack.c.l.b16 %v3205
  %v3276 = vunpack.c.l.b16 %v3219
  %v3277 = vunpack.c.l.b16 %v3229
  %v3278 = vpack.c.b16 %v3247, %v3246
  %v3279 = vpack.c.b16 %v3249, %v3248
  %v3280 = vpack.c.b16 %v3251, %v3250
  %v3281 = vpack.c.b16 %v3253, %v3252
  %v3282 = vpack.c.b16 %v3255, %v3254
  %v3283 = vpack.c.b16 %v3257, %v3256
  %v3284 = vpack.c.b16 %v3259, %v3258
  %v3285 = vpack.c.b16 %v3261, %v3260
  %v3286 = vpack.c.b16 %v3263, %v3262
  %v3287 = vpack.c.b16 %v3265, %v3264
  %v3288 = vpack.c.b16 %v3267, %v3266
  %v3289 = vpack.c.b16 %v3269, %v3268
  %v3290 = vpack.c.b16 %v3271, %v3270
  %v3291 = vpack.c.b16 %v3273, %v3272
  %v3292 = vpack.c.b16 %v3275, %v3274
  %v3293 = vpack.c.b16 %v3277, %v3276
  %v3326 = vunpack.c.l.b16 %v3230
  %v3327 = vunpack.c.l.b16 %v3231
  %v3328 = vunpack.c.l.b16 %v3232
  %v3329 = vunpack.c.l.b16 %v3233
  %v3330 = vunpack.c.l.b16 %v3234
  %v3331 = vunpack.c.l.b16 %v3235
  %v3332 = vunpack.c.l.b16 %v3236
  %v3333 = vunpack.c.l.b16 %v3237
  %v3334 = vunpack.c.l.b16 %v3238
  %v3335 = vunpack.c.l.b16 %v3239
  %v3336 = vunpack.c.l.b16 %v3240
  %v3337 = vunpack.c.l.b16 %v3241
  %v3338 = vunpack.c.l.b16 %v3242
  %v3339 = vunpack.c.l.b16 %v3243
  %v3340 = vunpack.c.l.b16 %v3244
  %v3341 = vunpack.c.l.b16 %v3245
  %v3342 = vpack.c.b16 %v3327, %v3326
  %v3343 = vpack.c.b16 %v3329, %v3328
  %v3344 = vpack.c.b16 %v3331, %v3330
  %v3345 = vpack.c.b16 %v3333, %v3332
  %v3346 = vpack.c.b16 %v3335, %v3334
  %v3347 = vpack.c.b16 %v3337, %v3336
  %v3348 = vpack.c.b16 %v3339, %v3338
  %v3349 = vpack.c.b16 %v3341, %v3340
  %3358 = vmatprep.subr.bf16.mxu0 0
  %3359 = vmatpush1.bf16.msra.mxu0 %v3349
  %3360 = vmatprep.subr.bf16.mxu0 0
  %3361 = vmatpush1.bf16.msra.mxu0 %v3348
  %3362 = vmatprep.subr.bf16.mxu0 0
  %3363 = vmatpush1.bf16.msra.mxu0 %v3347
  %3364 = vmatprep.subr.bf16.mxu0 0
  %3365 = vmatpush1.bf16.msra.mxu0 %v3346
  %3366 = vmatprep.subr.bf16.mxu0 0
  %3367 = vmatpush1.bf16.msra.mxu0 %v3345
  %3368 = vmatprep.subr.bf16.mxu0 0
  %3369 = vmatpush1.bf16.msra.mxu0 %v3344
  %3370 = vmatprep.subr.bf16.mxu0 0
  %3371 = vmatpush1.bf16.msra.mxu0 %v3343
  %3372 = vmatprep.subr.bf16.mxu0 0
  %3373 = vmatpush1.bf16.msra.mxu0 %v3342
  %3374 = vmatprep.subr.bf16.mxu0 0
  %3375 = vmatpush2.bf16.msra.mxu0 0
  %3376 = vmatprep.subr.bf16.mxu0 0
  %3377 = vmatpush2.bf16.msra.mxu0 0
  %3378 = vmatprep.subr.bf16.mxu0 0
  %3379 = vmatpush2.bf16.msra.mxu0 0
  %3380 = vmatprep.subr.bf16.mxu0 0
  %3381 = vmatpush2.bf16.msra.mxu0 0
  %3382 = vmatprep.subr.bf16.mxu0 0
  %3383 = vmatpush2.bf16.msra.mxu0 0
  %3384 = vmatprep.subr.bf16.mxu0 0
  %3385 = vmatpush2.bf16.msra.mxu0 0
  %3386 = vmatprep.subr.bf16.mxu0 0
  %3387 = vmatpush2.bf16.msra.mxu0 0
  %3388 = vmatprep.subr.bf16.mxu0 0
  %3389 = vmatpush2.bf16.msra.mxu0 0
  %3390 = vmatprep.mubr.bf16.mxu0 0
  %3391 = vmatmul.mubr.bf16.gmra.mxu0 %v3278
  %v3392 = vpop.f32.mrf.mxu0
  %v3393 = vadd.f32 0.0, %v3392
  %v3394 = vpop.f32.mrf.mxu0
  %v3395 = vpop.f32.mrf.mxu0
  %v3396 = vadd.f32 0.0, %v3395
  %v3397 = vpop.f32.mrf.mxu0
  %3398 = vmatprep.mubr.bf16.mxu0 0
  %3399 = vmatmul.mubr.bf16.gmra.mxu0 %v3279
  %v3400 = vpop.f32.mrf.mxu0
  %v3401 = vadd.f32 0.0, %v3400
  %v3402 = vpop.f32.mrf.mxu0
  %v3403 = vpop.f32.mrf.mxu0
  %v3404 = vadd.f32 0.0, %v3403
  %v3405 = vpop.f32.mrf.mxu0
  %3406 = vmatprep.mubr.bf16.mxu0 0
  %3407 = vmatmul.mubr.bf16.gmra.mxu0 %v3280
  %v3408 = vpop.f32.mrf.mxu0
  %v3409 = vadd.f32 0.0, %v3408
  %v3410 = vpop.f32.mrf.mxu0
  %v3411 = vpop.f32.mrf.mxu0
  %v3412 = vadd.f32 0.0, %v3411
  %v3413 = vpop.f32.mrf.mxu0
  %3414 = vmatprep.mubr.bf16.mxu0 0
  %3415 = vmatmul.mubr.bf16.gmra.mxu0 %v3281
  %v3416 = vpop.f32.mrf.mxu0
  %v3417 = vadd.f32 0.0, %v3416
  %v3418 = vpop.f32.mrf.mxu0
  %v3419 = vpop.f32.mrf.mxu0
  %v3420 = vadd.f32 0.0, %v3419
  %v3421 = vpop.f32.mrf.mxu0
  %3422 = vmatprep.mubr.bf16.mxu0 0
  %3423 = vmatmul.mubr.bf16.gmra.mxu0 %v3282
  %v3424 = vpop.f32.mrf.mxu0
  %v3425 = vadd.f32 0.0, %v3424
  %v3426 = vpop.f32.mrf.mxu0
  %v3427 = vpop.f32.mrf.mxu0
  %v3428 = vadd.f32 0.0, %v3427
  %v3429 = vpop.f32.mrf.mxu0
  %3430 = vmatprep.mubr.bf16.mxu0 0
  %3431 = vmatmul.mubr.bf16.gmra.mxu0 %v3283
  %v3432 = vpop.f32.mrf.mxu0
  %v3433 = vadd.f32 0.0, %v3432
  %v3434 = vpop.f32.mrf.mxu0
  %v3435 = vpop.f32.mrf.mxu0
  %v3436 = vadd.f32 0.0, %v3435
  %v3437 = vpop.f32.mrf.mxu0
  %3438 = vmatprep.mubr.bf16.mxu0 0
  %3439 = vmatmul.mubr.bf16.gmra.mxu0 %v3284
  %v3440 = vpop.f32.mrf.mxu0
  %v3441 = vadd.f32 0.0, %v3440
  %v3442 = vpop.f32.mrf.mxu0
  %v3443 = vpop.f32.mrf.mxu0
  %v3444 = vadd.f32 0.0, %v3443
  %v3445 = vpop.f32.mrf.mxu0
  %3446 = vmatprep.mubr.bf16.mxu0 0
  %3447 = vmatmul.mubr.bf16.gmra.mxu0 %v3285
  %v3448 = vpop.f32.mrf.mxu0
  %v3449 = vadd.f32 0.0, %v3448
  %v3450 = vpop.f32.mrf.mxu0
  %v3451 = vpop.f32.mrf.mxu0
  %v3452 = vadd.f32 0.0, %v3451
  %v3453 = vpop.f32.mrf.mxu0
  %3454 = vmatprep.mubr.bf16.mxu0 0
  %3455 = vmatmul.mubr.bf16.gmra.mxu0 %v3286
  %v3456 = vpop.f32.mrf.mxu0
  %v3457 = vadd.f32 0.0, %v3456
  %v3458 = vpop.f32.mrf.mxu0
  %v3459 = vpop.f32.mrf.mxu0
  %v3460 = vadd.f32 0.0, %v3459
  %v3461 = vpop.f32.mrf.mxu0
  %3462 = vmatprep.mubr.bf16.mxu0 0
  %3463 = vmatmul.mubr.bf16.gmra.mxu0 %v3287
  %v3464 = vpop.f32.mrf.mxu0
  %v3465 = vadd.f32 0.0, %v3464
  %v3466 = vpop.f32.mrf.mxu0
  %v3467 = vpop.f32.mrf.mxu0
  %v3468 = vadd.f32 0.0, %v3467
  %v3469 = vpop.f32.mrf.mxu0
  %3470 = vmatprep.mubr.bf16.mxu0 0
  %3471 = vmatmul.mubr.bf16.gmra.mxu0 %v3288
  %v3472 = vpop.f32.mrf.mxu0
  %v3473 = vadd.f32 0.0, %v3472
  %v3474 = vpop.f32.mrf.mxu0
  %v3475 = vpop.f32.mrf.mxu0
  %v3476 = vadd.f32 0.0, %v3475
  %v3477 = vpop.f32.mrf.mxu0
  %3478 = vmatprep.mubr.bf16.mxu0 0
  %3479 = vmatmul.mubr.bf16.gmra.mxu0 %v3289
  %v3480 = vpop.f32.mrf.mxu0
  %v3481 = vadd.f32 0.0, %v3480
  %v3482 = vpop.f32.mrf.mxu0
  %v3483 = vpop.f32.mrf.mxu0
  %v3484 = vadd.f32 0.0, %v3483
  %v3485 = vpop.f32.mrf.mxu0
  %3486 = vmatprep.mubr.bf16.mxu0 0
  %3487 = vmatmul.mubr.bf16.gmra.mxu0 %v3290
  %v3488 = vpop.f32.mrf.mxu0
  %v3489 = vadd.f32 0.0, %v3488
  %v3490 = vpop.f32.mrf.mxu0
  %v3491 = vpop.f32.mrf.mxu0
  %v3492 = vadd.f32 0.0, %v3491
  %v3493 = vpop.f32.mrf.mxu0
  %3494 = vmatprep.mubr.bf16.mxu0 0
  %3495 = vmatmul.mubr.bf16.gmra.mxu0 %v3291
  %v3496 = vpop.f32.mrf.mxu0
  %v3497 = vadd.f32 0.0, %v3496
  %v3498 = vpop.f32.mrf.mxu0
  %v3499 = vpop.f32.mrf.mxu0
  %v3500 = vadd.f32 0.0, %v3499
  %v3501 = vpop.f32.mrf.mxu0
  %3502 = vmatprep.mubr.bf16.mxu0 0
  %3503 = vmatmul.mubr.bf16.gmra.mxu0 %v3292
  %v3504 = vpop.f32.mrf.mxu0
  %v3505 = vadd.f32 0.0, %v3504
  %v3506 = vpop.f32.mrf.mxu0
  %v3507 = vpop.f32.mrf.mxu0
  %v3508 = vadd.f32 0.0, %v3507
  %v3509 = vpop.f32.mrf.mxu0
  %3510 = vmatprep.mubr.bf16.mxu0 0
  %3511 = vmatmul.mubr.bf16.gmra.mxu0 %v3293
  %v3512 = vpop.f32.mrf.mxu0
  %v3513 = vadd.f32 0.0, %v3512
  %v3514 = vpop.f32.mrf.mxu0
  %v3515 = vpop.f32.mrf.mxu0
  %v3516 = vadd.f32 0.0, %v3515
  %v3517 = vpop.f32.mrf.mxu0
  %3518 = vdwg.mxu0
  %v3519 = vld [vmem:[#allocation3] sm:$0xff]
  %v3520 = vld [vmem:[#allocation3 + $0x8] sm:$0xff]
  %v3521 = vld [vmem:[#allocation3 + $0x10] sm:$0xff]
  %v3522 = vld [vmem:[#allocation3 + $0x18] sm:$0xff]
  %v3523 = vld [vmem:[#allocation3 + $0x20] sm:$0xff]
  %v3524 = vld [vmem:[#allocation3 + $0x28] sm:$0xff]
  %v3525 = vld [vmem:[#allocation3 + $0x30] sm:$0xff]
  %v3526 = vld [vmem:[#allocation3 + $0x38] sm:$0xff]
  %v3527 = vld [vmem:[#allocation3 + $0x40] sm:$0xff]
  %v3528 = vld [vmem:[#allocation3 + $0x48] sm:$0xff]
  %v3529 = vld [vmem:[#allocation3 + $0x50] sm:$0xff]
  %v3530 = vld [vmem:[#allocation3 + $0x58] sm:$0xff]
  %v3531 = vld [vmem:[#allocation3 + $0x60] sm:$0xff]
  %v3532 = vld [vmem:[#allocation3 + $0x68] sm:$0xff]
  %v3533 = vld [vmem:[#allocation3 + $0x70] sm:$0xff]
  %v3534 = vld [vmem:[#allocation3 + $0x78] sm:$0xff]
  %v3535 = vld [vmem:[#allocation3 + $0x80] sm:$0xff]
  %v3536 = vld [vmem:[#allocation3 + $0x88] sm:$0xff]
  %v3537 = vld [vmem:[#allocation3 + $0x90] sm:$0xff]
  %v3538 = vld [vmem:[#allocation3 + $0x98] sm:$0xff]
  %v3539 = vld [vmem:[#allocation3 + $0xa0] sm:$0xff]
  %v3540 = vld [vmem:[#allocation3 + $0xa8] sm:$0xff]
  %v3541 = vld [vmem:[#allocation3 + $0xb0] sm:$0xff]
  %v3542 = vld [vmem:[#allocation3 + $0xb8] sm:$0xff]
  %v3543 = vld [vmem:[#allocation3 + $0xc0] sm:$0xff]
  %v3544 = vld [vmem:[#allocation3 + $0xc8] sm:$0xff]
  %v3545 = vld [vmem:[#allocation3 + $0xd0] sm:$0xff]
  %v3546 = vld [vmem:[#allocation3 + $0xd8] sm:$0xff]
  %v3547 = vld [vmem:[#allocation3 + $0xe0] sm:$0xff]
  %v3548 = vld [vmem:[#allocation3 + $0xe8] sm:$0xff]
  %v3549 = vld [vmem:[#allocation3 + $0xf0] sm:$0xff]
  %v3550 = vld [vmem:[#allocation3 + $0xf8] sm:$0xff]
  %v3551 = vadd.f32 %v3519, %v3393
  %v3552 = vadd.f32 %v3520, %v3396
  %v3553 = vadd.f32 %v3521, %v3401
  %v3554 = vadd.f32 %v3522, %v3404
  %v3555 = vadd.f32 %v3523, %v3409
  %v3556 = vadd.f32 %v3524, %v3412
  %v3557 = vadd.f32 %v3525, %v3417
  %v3558 = vadd.f32 %v3526, %v3420
  %v3559 = vadd.f32 %v3527, %v3425
  %v3560 = vadd.f32 %v3528, %v3428
  %v3561 = vadd.f32 %v3529, %v3433
  %v3562 = vadd.f32 %v3530, %v3436
  %v3563 = vadd.f32 %v3531, %v3441
  %v3564 = vadd.f32 %v3532, %v3444
  %v3565 = vadd.f32 %v3533, %v3449
  %v3566 = vadd.f32 %v3534, %v3452
  %v3567 = vadd.f32 %v3535, %v3457
  %v3568 = vadd.f32 %v3536, %v3460
  %v3569 = vadd.f32 %v3537, %v3465
  %v3570 = vadd.f32 %v3538, %v3468
  %v3571 = vadd.f32 %v3539, %v3473
  %v3572 = vadd.f32 %v3540, %v3476
  %v3573 = vadd.f32 %v3541, %v3481
  %v3574 = vadd.f32 %v3542, %v3484
  %v3575 = vadd.f32 %v3543, %v3489
  %v3576 = vadd.f32 %v3544, %v3492
  %v3577 = vadd.f32 %v3545, %v3497
  %v3578 = vadd.f32 %v3546, %v3500
  %v3579 = vadd.f32 %v3547, %v3505
  %v3580 = vadd.f32 %v3548, %v3508
  %v3581 = vadd.f32 %v3549, %v3513
  %v3582 = vadd.f32 %v3550, %v3516
  %3583 = vst [vmem:[#allocation3] sm:$0xff] %v3551
  %3584 = vst [vmem:[#allocation3 + $0x8] sm:$0xff] %v3552
  %3585 = vst [vmem:[#allocation3 + $0x10] sm:$0xff] %v3553
  %3586 = vst [vmem:[#allocation3 + $0x18] sm:$0xff] %v3554
  %3587 = vst [vmem:[#allocation3 + $0x20] sm:$0xff] %v3555
  %3588 = vst [vmem:[#allocation3 + $0x28] sm:$0xff] %v3556
  %3589 = vst [vmem:[#allocation3 + $0x30] sm:$0xff] %v3557
  %3590 = vst [vmem:[#allocation3 + $0x38] sm:$0xff] %v3558
  %3591 = vst [vmem:[#allocation3 + $0x40] sm:$0xff] %v3559
  %3592 = vst [vmem:[#allocation3 + $0x48] sm:$0xff] %v3560
  %3593 = vst [vmem:[#allocation3 + $0x50] sm:$0xff] %v3561
  %3594 = vst [vmem:[#allocation3 + $0x58] sm:$0xff] %v3562
  %3595 = vst [vmem:[#allocation3 + $0x60] sm:$0xff] %v3563
  %3596 = vst [vmem:[#allocation3 + $0x68] sm:$0xff] %v3564
  %3597 = vst [vmem:[#allocation3 + $0x70] sm:$0xff] %v3565
  %3598 = vst [vmem:[#allocation3 + $0x78] sm:$0xff] %v3566
  %3599 = vst [vmem:[#allocation3 + $0x80] sm:$0xff] %v3567
  %3600 = vst [vmem:[#allocation3 + $0x88] sm:$0xff] %v3568
  %3601 = vst [vmem:[#allocation3 + $0x90] sm:$0xff] %v3569
  %3602 = vst [vmem:[#allocation3 + $0x98] sm:$0xff] %v3570
  %3603 = vst [vmem:[#allocation3 + $0xa0] sm:$0xff] %v3571
  %3604 = vst [vmem:[#allocation3 + $0xa8] sm:$0xff] %v3572
  %3605 = vst [vmem:[#allocation3 + $0xb0] sm:$0xff] %v3573
  %3606 = vst [vmem:[#allocation3 + $0xb8] sm:$0xff] %v3574
  %3607 = vst [vmem:[#allocation3 + $0xc0] sm:$0xff] %v3575
  %3608 = vst [vmem:[#allocation3 + $0xc8] sm:$0xff] %v3576
  %3609 = vst [vmem:[#allocation3 + $0xd0] sm:$0xff] %v3577
  %3610 = vst [vmem:[#allocation3 + $0xd8] sm:$0xff] %v3578
  %3611 = vst [vmem:[#allocation3 + $0xe0] sm:$0xff] %v3579
  %3612 = vst [vmem:[#allocation3 + $0xe8] sm:$0xff] %v3580
  %3613 = vst [vmem:[#allocation3 + $0xf0] sm:$0xff] %v3581
  %3614 = vst [vmem:[#allocation3 + $0xf8] sm:$0xff] %v3582
  %v3615 = vld [vmem:[%s430] sm:$0xe]
  %v3616 = vld [vmem:[%s430 + $0x4] sm:$0xf]
  %v3617 = vld [vmem:[%s430 + $0x8] sm:$0x1]
  %v3618 = vld [vmem:[%s430 + $0xc] sm:$0xe]
  %v3619 = vld [vmem:[%s430 + $0x10] sm:$0xf]
  %v3620 = vld [vmem:[%s430 + $0x14] sm:$0x1]
  %v3621 = vld [vmem:[%s430 + $0x18] sm:$0xe]
  %v3622 = vld [vmem:[%s430 + $0x1c] sm:$0xf]
  %v3623 = vld [vmem:[%s430 + $0x20] sm:$0x1]
  %v3624 = vld [vmem:[%s430 + $0x24] sm:$0xe]
  %v3625 = vld [vmem:[%s430 + $0x28] sm:$0xf]
  %v3626 = vld [vmem:[%s430 + $0x2c] sm:$0x1]
  %v3627 = vld [vmem:[%s430 + $0x30] sm:$0xe]
  %v3628 = vld [vmem:[%s430 + $0x34] sm:$0xf]
  %v3629 = vld [vmem:[%s430 + $0x38] sm:$0x1]
  %v3630 = vld [vmem:[%s430 + $0x3c] sm:$0xe]
  %v3631 = vld [vmem:[%s430 + $0x40] sm:$0xf]
  %v3632 = vld [vmem:[%s430 + $0x44] sm:$0x1]
  %v3633 = vld [vmem:[%s430 + $0x48] sm:$0xe]
  %v3634 = vld [vmem:[%s430 + $0x4c] sm:$0xf]
  %v3635 = vld [vmem:[%s430 + $0x50] sm:$0x1]
  %v3636 = vld [vmem:[%s430 + $0x54] sm:$0xe]
  %v3637 = vld [vmem:[%s430 + $0x58] sm:$0xf]
  %v3638 = vld [vmem:[%s430 + $0x5c] sm:$0x1]
  %v3639 = vld [vmem:[%s430 + $0x60] sm:$0xe]
  %v3640 = vld [vmem:[%s430 + $0x64] sm:$0xf]
  %v3641 = vld [vmem:[%s430 + $0x68] sm:$0x1]
  %v3642 = vld [vmem:[%s430 + $0x6c] sm:$0xe]
  %v3643 = vld [vmem:[%s430 + $0x70] sm:$0xf]
  %v3644 = vld [vmem:[%s430 + $0x74] sm:$0x1]
  %v3645 = vld [vmem:[%s430 + $0x78] sm:$0xe]
  %v3646 = vld [vmem:[%s430 + $0x7c] sm:$0xf]
  %v3647 = vld [vmem:[%s430 + $0x80] sm:$0x1]
  %v3648 = vld [vmem:[%s430 + $0x84] sm:$0xe]
  %v3649 = vld [vmem:[%s430 + $0x88] sm:$0xf]
  %v3650 = vld [vmem:[%s430 + $0x8c] sm:$0x1]
  %v3651 = vld [vmem:[%s430 + $0x90] sm:$0xe]
  %v3652 = vld [vmem:[%s430 + $0x94] sm:$0xf]
  %v3653 = vld [vmem:[%s430 + $0x98] sm:$0x1]
  %v3654 = vld [vmem:[%s430 + $0x9c] sm:$0xe]
  %v3655 = vld [vmem:[%s430 + $0xa0] sm:$0xf]
  %v3656 = vld [vmem:[%s430 + $0xa4] sm:$0x1]
  %v3657 = vld [vmem:[%s430 + $0xa8] sm:$0xe]
  %v3658 = vld [vmem:[%s430 + $0xac] sm:$0xf]
  %v3659 = vld [vmem:[%s430 + $0xb0] sm:$0x1]
  %v3660 = vld [vmem:[%s430 + $0xb4] sm:$0xe]
  %v3661 = vld [vmem:[%s430 + $0xb8] sm:$0xf]
  %v3662 = vld [vmem:[%s430 + $0xbc] sm:$0x1]
  %v3711 = vrot.slane %v3615, 5
  %v3712 = vrot.slane %v3711, 4
  %v3713 = vrot.slane %v3616, 5
  %v3714 = vsel %vm1851, %v3712, %v3713
  %v3715 = vrot.slane %v3713, 4
  %v3716 = vrot.slane %v3617, 5
  %v3717 = vsel %vm1851, %v3715, %v3716
  %v3718 = vrot.slane %v3618, 5
  %v3719 = vrot.slane %v3718, 4
  %v3720 = vrot.slane %v3619, 5
  %v3721 = vsel %vm1851, %v3719, %v3720
  %v3722 = vrot.slane %v3720, 4
  %v3723 = vrot.slane %v3620, 5
  %v3724 = vsel %vm1851, %v3722, %v3723
  %v3725 = vrot.slane %v3621, 5
  %v3726 = vrot.slane %v3725, 4
  %v3727 = vrot.slane %v3622, 5
  %v3728 = vsel %vm1851, %v3726, %v3727
  %v3729 = vrot.slane %v3727, 4
  %v3730 = vrot.slane %v3623, 5
  %v3731 = vsel %vm1851, %v3729, %v3730
  %v3732 = vrot.slane %v3624, 5
  %v3733 = vrot.slane %v3732, 4
  %v3734 = vrot.slane %v3625, 5
  %v3735 = vsel %vm1851, %v3733, %v3734
  %v3736 = vrot.slane %v3734, 4
  %v3737 = vrot.slane %v3626, 5
  %v3738 = vsel %vm1851, %v3736, %v3737
  %v3739 = vrot.slane %v3627, 5
  %v3740 = vrot.slane %v3739, 4
  %v3741 = vrot.slane %v3628, 5
  %v3742 = vsel %vm1851, %v3740, %v3741
  %v3743 = vrot.slane %v3741, 4
  %v3744 = vrot.slane %v3629, 5
  %v3745 = vsel %vm1851, %v3743, %v3744
  %v3746 = vrot.slane %v3630, 5
  %v3747 = vrot.slane %v3746, 4
  %v3748 = vrot.slane %v3631, 5
  %v3749 = vsel %vm1851, %v3747, %v3748
  %v3750 = vrot.slane %v3748, 4
  %v3751 = vrot.slane %v3632, 5
  %v3752 = vsel %vm1851, %v3750, %v3751
  %v3753 = vrot.slane %v3633, 5
  %v3754 = vrot.slane %v3753, 4
  %v3755 = vrot.slane %v3634, 5
  %v3756 = vsel %vm1851, %v3754, %v3755
  %v3757 = vrot.slane %v3755, 4
  %v3758 = vrot.slane %v3635, 5
  %v3759 = vsel %vm1851, %v3757, %v3758
  %v3760 = vrot.slane %v3636, 5
  %v3761 = vrot.slane %v3760, 4
  %v3762 = vrot.slane %v3637, 5
  %v3763 = vsel %vm1851, %v3761, %v3762
  %v3764 = vrot.slane %v3762, 4
  %v3765 = vrot.slane %v3638, 5
  %v3766 = vsel %vm1851, %v3764, %v3765
  %v3767 = vrot.slane %v3639, 5
  %v3768 = vrot.slane %v3767, 4
  %v3769 = vrot.slane %v3640, 5
  %v3770 = vsel %vm1851, %v3768, %v3769
  %v3771 = vrot.slane %v3769, 4
  %v3772 = vrot.slane %v3641, 5
  %v3773 = vsel %vm1851, %v3771, %v3772
  %v3774 = vrot.slane %v3642, 5
  %v3775 = vrot.slane %v3774, 4
  %v3776 = vrot.slane %v3643, 5
  %v3777 = vsel %vm1851, %v3775, %v3776
  %v3778 = vrot.slane %v3776, 4
  %v3779 = vrot.slane %v3644, 5
  %v3780 = vsel %vm1851, %v3778, %v3779
  %v3781 = vrot.slane %v3645, 5
  %v3782 = vrot.slane %v3781, 4
  %v3783 = vrot.slane %v3646, 5
  %v3784 = vsel %vm1851, %v3782, %v3783
  %v3785 = vrot.slane %v3783, 4
  %v3786 = vrot.slane %v3647, 5
  %v3787 = vsel %vm1851, %v3785, %v3786
  %v3788 = vrot.slane %v3648, 5
  %v3789 = vrot.slane %v3788, 4
  %v3790 = vrot.slane %v3649, 5
  %v3791 = vsel %vm1851, %v3789, %v3790
  %v3792 = vrot.slane %v3790, 4
  %v3793 = vrot.slane %v3650, 5
  %v3794 = vsel %vm1851, %v3792, %v3793
  %v3795 = vrot.slane %v3651, 5
  %v3796 = vrot.slane %v3795, 4
  %v3797 = vrot.slane %v3652, 5
  %v3798 = vsel %vm1851, %v3796, %v3797
  %v3799 = vrot.slane %v3797, 4
  %v3800 = vrot.slane %v3653, 5
  %v3801 = vsel %vm1851, %v3799, %v3800
  %v3802 = vrot.slane %v3654, 5
  %v3803 = vrot.slane %v3802, 4
  %v3804 = vrot.slane %v3655, 5
  %v3805 = vsel %vm1851, %v3803, %v3804
  %v3806 = vrot.slane %v3804, 4
  %v3807 = vrot.slane %v3656, 5
  %v3808 = vsel %vm1851, %v3806, %v3807
  %v3809 = vrot.slane %v3657, 5
  %v3810 = vrot.slane %v3809, 4
  %v3811 = vrot.slane %v3658, 5
  %v3812 = vsel %vm1851, %v3810, %v3811
  %v3813 = vrot.slane %v3811, 4
  %v3814 = vrot.slane %v3659, 5
  %v3815 = vsel %vm1851, %v3813, %v3814
  %v3816 = vrot.slane %v3660, 5
  %v3817 = vrot.slane %v3816, 4
  %v3818 = vrot.slane %v3661, 5
  %v3819 = vsel %vm1851, %v3817, %v3818
  %v3820 = vrot.slane %v3818, 4
  %v3821 = vrot.slane %v3662, 5
  %v3822 = vsel %vm1851, %v3820, %v3821
  %v3823 = vld [vmem:[%s1 + $0x140] sm:$0xf]
  %v3824 = vld [vmem:[%s1 + $0x144] sm:$0xf]
  %v3825 = vld [vmem:[%s1 + $0x148] sm:$0xf]
  %v3826 = vld [vmem:[%s1 + $0x14c] sm:$0xf]
  %v3827 = vld [vmem:[%s1 + $0x150] sm:$0xf]
  %v3828 = vld [vmem:[%s1 + $0x154] sm:$0xf]
  %v3829 = vld [vmem:[%s1 + $0x158] sm:$0xf]
  %v3830 = vld [vmem:[%s1 + $0x15c] sm:$0xf]
  %v3831 = vld [vmem:[%s1 + $0x160] sm:$0xf]
  %v3832 = vld [vmem:[%s1 + $0x164] sm:$0xf]
  %v3833 = vld [vmem:[%s1 + $0x168] sm:$0xf]
  %v3834 = vld [vmem:[%s1 + $0x16c] sm:$0xf]
  %v3835 = vld [vmem:[%s1 + $0x170] sm:$0xf]
  %v3836 = vld [vmem:[%s1 + $0x174] sm:$0xf]
  %v3837 = vld [vmem:[%s1 + $0x178] sm:$0xf]
  %v3838 = vld [vmem:[%s1 + $0x17c] sm:$0xf]
  %v3839 = vunpack.c.l.b16 %v3714
  %v3840 = vunpack.c.l.b16 %v3717
  %v3841 = vunpack.c.l.b16 %v3721
  %v3842 = vunpack.c.l.b16 %v3724
  %v3843 = vunpack.c.l.b16 %v3728
  %v3844 = vunpack.c.l.b16 %v3731
  %v3845 = vunpack.c.l.b16 %v3735
  %v3846 = vunpack.c.l.b16 %v3738
  %v3847 = vunpack.c.l.b16 %v3742
  %v3848 = vunpack.c.l.b16 %v3745
  %v3849 = vunpack.c.l.b16 %v3749
  %v3850 = vunpack.c.l.b16 %v3752
  %v3851 = vunpack.c.l.b16 %v3756
  %v3852 = vunpack.c.l.b16 %v3759
  %v3853 = vunpack.c.l.b16 %v3763
  %v3854 = vunpack.c.l.b16 %v3766
  %v3855 = vunpack.c.l.b16 %v3770
  %v3856 = vunpack.c.l.b16 %v3773
  %v3857 = vunpack.c.l.b16 %v3777
  %v3858 = vunpack.c.l.b16 %v3780
  %v3859 = vunpack.c.l.b16 %v3784
  %v3860 = vunpack.c.l.b16 %v3787
  %v3861 = vunpack.c.l.b16 %v3791
  %v3862 = vunpack.c.l.b16 %v3794
  %v3863 = vunpack.c.l.b16 %v3798
  %v3864 = vunpack.c.l.b16 %v3801
  %v3865 = vunpack.c.l.b16 %v3805
  %v3866 = vunpack.c.l.b16 %v3808
  %v3867 = vunpack.c.l.b16 %v3812
  %v3868 = vunpack.c.l.b16 %v3815
  %v3869 = vunpack.c.l.b16 %v3819
  %v3870 = vunpack.c.l.b16 %v3822
  %v3871 = vpack.c.b16 %v3840, %v3839
  %v3872 = vpack.c.b16 %v3842, %v3841
  %v3873 = vpack.c.b16 %v3844, %v3843
  %v3874 = vpack.c.b16 %v3846, %v3845
  %v3875 = vpack.c.b16 %v3848, %v3847
  %v3876 = vpack.c.b16 %v3850, %v3849
  %v3877 = vpack.c.b16 %v3852, %v3851
  %v3878 = vpack.c.b16 %v3854, %v3853
  %v3879 = vpack.c.b16 %v3856, %v3855
  %v3880 = vpack.c.b16 %v3858, %v3857
  %v3881 = vpack.c.b16 %v3860, %v3859
  %v3882 = vpack.c.b16 %v3862, %v3861
  %v3883 = vpack.c.b16 %v3864, %v3863
  %v3884 = vpack.c.b16 %v3866, %v3865
  %v3885 = vpack.c.b16 %v3868, %v3867
  %v3886 = vpack.c.b16 %v3870, %v3869
  %v3919 = vunpack.c.l.b16 %v3823
  %v3920 = vunpack.c.l.b16 %v3824
  %v3921 = vunpack.c.l.b16 %v3825
  %v3922 = vunpack.c.l.b16 %v3826
  %v3923 = vunpack.c.l.b16 %v3827
  %v3924 = vunpack.c.l.b16 %v3828
  %v3925 = vunpack.c.l.b16 %v3829
  %v3926 = vunpack.c.l.b16 %v3830
  %v3927 = vunpack.c.l.b16 %v3831
  %v3928 = vunpack.c.l.b16 %v3832
  %v3929 = vunpack.c.l.b16 %v3833
  %v3930 = vunpack.c.l.b16 %v3834
  %v3931 = vunpack.c.l.b16 %v3835
  %v3932 = vunpack.c.l.b16 %v3836
  %v3933 = vunpack.c.l.b16 %v3837
  %v3934 = vunpack.c.l.b16 %v3838
  %v3935 = vpack.c.b16 %v3920, %v3919
  %v3936 = vpack.c.b16 %v3922, %v3921
  %v3937 = vpack.c.b16 %v3924, %v3923
  %v3938 = vpack.c.b16 %v3926, %v3925
  %v3939 = vpack.c.b16 %v3928, %v3927
  %v3940 = vpack.c.b16 %v3930, %v3929
  %v3941 = vpack.c.b16 %v3932, %v3931
  %v3942 = vpack.c.b16 %v3934, %v3933
  %3951 = vmatprep.subr.bf16.mxu0 0
  %3952 = vmatpush1.bf16.msra.mxu0 %v3942
  %3953 = vmatprep.subr.bf16.mxu0 0
  %3954 = vmatpush1.bf16.msra.mxu0 %v3941
  %3955 = vmatprep.subr.bf16.mxu0 0
  %3956 = vmatpush1.bf16.msra.mxu0 %v3940
  %3957 = vmatprep.subr.bf16.mxu0 0
  %3958 = vmatpush1.bf16.msra.mxu0 %v3939
  %3959 = vmatprep.subr.bf16.mxu0 0
  %3960 = vmatpush1.bf16.msra.mxu0 %v3938
  %3961 = vmatprep.subr.bf16.mxu0 0
  %3962 = vmatpush1.bf16.msra.mxu0 %v3937
  %3963 = vmatprep.subr.bf16.mxu0 0
  %3964 = vmatpush1.bf16.msra.mxu0 %v3936
  %3965 = vmatprep.subr.bf16.mxu0 0
  %3966 = vmatpush1.bf16.msra.mxu0 %v3935
  %3967 = vmatprep.subr.bf16.mxu0 0
  %3968 = vmatpush2.bf16.msra.mxu0 0
  %3969 = vmatprep.subr.bf16.mxu0 0
  %3970 = vmatpush2.bf16.msra.mxu0 0
  %3971 = vmatprep.subr.bf16.mxu0 0
  %3972 = vmatpush2.bf16.msra.mxu0 0
  %3973 = vmatprep.subr.bf16.mxu0 0
  %3974 = vmatpush2.bf16.msra.mxu0 0
  %3975 = vmatprep.subr.bf16.mxu0 0
  %3976 = vmatpush2.bf16.msra.mxu0 0
  %3977 = vmatprep.subr.bf16.mxu0 0
  %3978 = vmatpush2.bf16.msra.mxu0 0
  %3979 = vmatprep.subr.bf16.mxu0 0
  %3980 = vmatpush2.bf16.msra.mxu0 0
  %3981 = vmatprep.subr.bf16.mxu0 0
  %3982 = vmatpush2.bf16.msra.mxu0 0
  %3983 = vmatprep.mubr.bf16.mxu0 0
  %3984 = vmatmul.mubr.bf16.gmra.mxu0 %v3871
  %v3985 = vpop.f32.mrf.mxu0
  %v3986 = vadd.f32 0.0, %v3985
  %v3987 = vpop.f32.mrf.mxu0
  %v3988 = vpop.f32.mrf.mxu0
  %v3989 = vadd.f32 0.0, %v3988
  %v3990 = vpop.f32.mrf.mxu0
  %3991 = vmatprep.mubr.bf16.mxu0 0
  %3992 = vmatmul.mubr.bf16.gmra.mxu0 %v3872
  %v3993 = vpop.f32.mrf.mxu0
  %v3994 = vadd.f32 0.0, %v3993
  %v3995 = vpop.f32.mrf.mxu0
  %v3996 = vpop.f32.mrf.mxu0
  %v3997 = vadd.f32 0.0, %v3996
  %v3998 = vpop.f32.mrf.mxu0
  %3999 = vmatprep.mubr.bf16.mxu0 0
  %4000 = vmatmul.mubr.bf16.gmra.mxu0 %v3873
  %v4001 = vpop.f32.mrf.mxu0
  %v4002 = vadd.f32 0.0, %v4001
  %v4003 = vpop.f32.mrf.mxu0
  %v4004 = vpop.f32.mrf.mxu0
  %v4005 = vadd.f32 0.0, %v4004
  %v4006 = vpop.f32.mrf.mxu0
  %4007 = vmatprep.mubr.bf16.mxu0 0
  %4008 = vmatmul.mubr.bf16.gmra.mxu0 %v3874
  %v4009 = vpop.f32.mrf.mxu0
  %v4010 = vadd.f32 0.0, %v4009
  %v4011 = vpop.f32.mrf.mxu0
  %v4012 = vpop.f32.mrf.mxu0
  %v4013 = vadd.f32 0.0, %v4012
  %v4014 = vpop.f32.mrf.mxu0
  %4015 = vmatprep.mubr.bf16.mxu0 0
  %4016 = vmatmul.mubr.bf16.gmra.mxu0 %v3875
  %v4017 = vpop.f32.mrf.mxu0
  %v4018 = vadd.f32 0.0, %v4017
  %v4019 = vpop.f32.mrf.mxu0
  %v4020 = vpop.f32.mrf.mxu0
  %v4021 = vadd.f32 0.0, %v4020
  %v4022 = vpop.f32.mrf.mxu0
  %4023 = vmatprep.mubr.bf16.mxu0 0
  %4024 = vmatmul.mubr.bf16.gmra.mxu0 %v3876
  %v4025 = vpop.f32.mrf.mxu0
  %v4026 = vadd.f32 0.0, %v4025
  %v4027 = vpop.f32.mrf.mxu0
  %v4028 = vpop.f32.mrf.mxu0
  %v4029 = vadd.f32 0.0, %v4028
  %v4030 = vpop.f32.mrf.mxu0
  %4031 = vmatprep.mubr.bf16.mxu0 0
  %4032 = vmatmul.mubr.bf16.gmra.mxu0 %v3877
  %v4033 = vpop.f32.mrf.mxu0
  %v4034 = vadd.f32 0.0, %v4033
  %v4035 = vpop.f32.mrf.mxu0
  %v4036 = vpop.f32.mrf.mxu0
  %v4037 = vadd.f32 0.0, %v4036
  %v4038 = vpop.f32.mrf.mxu0
  %4039 = vmatprep.mubr.bf16.mxu0 0
  %4040 = vmatmul.mubr.bf16.gmra.mxu0 %v3878
  %v4041 = vpop.f32.mrf.mxu0
  %v4042 = vadd.f32 0.0, %v4041
  %v4043 = vpop.f32.mrf.mxu0
  %v4044 = vpop.f32.mrf.mxu0
  %v4045 = vadd.f32 0.0, %v4044
  %v4046 = vpop.f32.mrf.mxu0
  %4047 = vmatprep.mubr.bf16.mxu0 0
  %4048 = vmatmul.mubr.bf16.gmra.mxu0 %v3879
  %v4049 = vpop.f32.mrf.mxu0
  %v4050 = vadd.f32 0.0, %v4049
  %v4051 = vpop.f32.mrf.mxu0
  %v4052 = vpop.f32.mrf.mxu0
  %v4053 = vadd.f32 0.0, %v4052
  %v4054 = vpop.f32.mrf.mxu0
  %4055 = vmatprep.mubr.bf16.mxu0 0
  %4056 = vmatmul.mubr.bf16.gmra.mxu0 %v3880
  %v4057 = vpop.f32.mrf.mxu0
  %v4058 = vadd.f32 0.0, %v4057
  %v4059 = vpop.f32.mrf.mxu0
  %v4060 = vpop.f32.mrf.mxu0
  %v4061 = vadd.f32 0.0, %v4060
  %v4062 = vpop.f32.mrf.mxu0
  %4063 = vmatprep.mubr.bf16.mxu0 0
  %4064 = vmatmul.mubr.bf16.gmra.mxu0 %v3881
  %v4065 = vpop.f32.mrf.mxu0
  %v4066 = vadd.f32 0.0, %v4065
  %v4067 = vpop.f32.mrf.mxu0
  %v4068 = vpop.f32.mrf.mxu0
  %v4069 = vadd.f32 0.0, %v4068
  %v4070 = vpop.f32.mrf.mxu0
  %4071 = vmatprep.mubr.bf16.mxu0 0
  %4072 = vmatmul.mubr.bf16.gmra.mxu0 %v3882
  %v4073 = vpop.f32.mrf.mxu0
  %v4074 = vadd.f32 0.0, %v4073
  %v4075 = vpop.f32.mrf.mxu0
  %v4076 = vpop.f32.mrf.mxu0
  %v4077 = vadd.f32 0.0, %v4076
  %v4078 = vpop.f32.mrf.mxu0
  %4079 = vmatprep.mubr.bf16.mxu0 0
  %4080 = vmatmul.mubr.bf16.gmra.mxu0 %v3883
  %v4081 = vpop.f32.mrf.mxu0
  %v4082 = vadd.f32 0.0, %v4081
  %v4083 = vpop.f32.mrf.mxu0
  %v4084 = vpop.f32.mrf.mxu0
  %v4085 = vadd.f32 0.0, %v4084
  %v4086 = vpop.f32.mrf.mxu0
  %4087 = vmatprep.mubr.bf16.mxu0 0
  %4088 = vmatmul.mubr.bf16.gmra.mxu0 %v3884
  %v4089 = vpop.f32.mrf.mxu0
  %v4090 = vadd.f32 0.0, %v4089
  %v4091 = vpop.f32.mrf.mxu0
  %v4092 = vpop.f32.mrf.mxu0
  %v4093 = vadd.f32 0.0, %v4092
  %v4094 = vpop.f32.mrf.mxu0
  %4095 = vmatprep.mubr.bf16.mxu0 0
  %4096 = vmatmul.mubr.bf16.gmra.mxu0 %v3885
  %v4097 = vpop.f32.mrf.mxu0
  %v4098 = vadd.f32 0.0, %v4097
  %v4099 = vpop.f32.mrf.mxu0
  %v4100 = vpop.f32.mrf.mxu0
  %v4101 = vadd.f32 0.0, %v4100
  %v4102 = vpop.f32.mrf.mxu0
  %4103 = vmatprep.mubr.bf16.mxu0 0
  %4104 = vmatmul.mubr.bf16.gmra.mxu0 %v3886
  %v4105 = vpop.f32.mrf.mxu0
  %v4106 = vadd.f32 0.0, %v4105
  %v4107 = vpop.f32.mrf.mxu0
  %v4108 = vpop.f32.mrf.mxu0
  %v4109 = vadd.f32 0.0, %v4108
  %v4110 = vpop.f32.mrf.mxu0
  %4111 = vdwg.mxu0
  %v4112 = vld [vmem:[#allocation3] sm:$0xff]
  %v4113 = vld [vmem:[#allocation3 + $0x8] sm:$0xff]
  %v4114 = vld [vmem:[#allocation3 + $0x10] sm:$0xff]
  %v4115 = vld [vmem:[#allocation3 + $0x18] sm:$0xff]
  %v4116 = vld [vmem:[#allocation3 + $0x20] sm:$0xff]
  %v4117 = vld [vmem:[#allocation3 + $0x28] sm:$0xff]
  %v4118 = vld [vmem:[#allocation3 + $0x30] sm:$0xff]
  %v4119 = vld [vmem:[#allocation3 + $0x38] sm:$0xff]
  %v4120 = vld [vmem:[#allocation3 + $0x40] sm:$0xff]
  %v4121 = vld [vmem:[#allocation3 + $0x48] sm:$0xff]
  %v4122 = vld [vmem:[#allocation3 + $0x50] sm:$0xff]
  %v4123 = vld [vmem:[#allocation3 + $0x58] sm:$0xff]
  %v4124 = vld [vmem:[#allocation3 + $0x60] sm:$0xff]
  %v4125 = vld [vmem:[#allocation3 + $0x68] sm:$0xff]
  %v4126 = vld [vmem:[#allocation3 + $0x70] sm:$0xff]
  %v4127 = vld [vmem:[#allocation3 + $0x78] sm:$0xff]
  %v4128 = vld [vmem:[#allocation3 + $0x80] sm:$0xff]
  %v4129 = vld [vmem:[#allocation3 + $0x88] sm:$0xff]
  %v4130 = vld [vmem:[#allocation3 + $0x90] sm:$0xff]
  %v4131 = vld [vmem:[#allocation3 + $0x98] sm:$0xff]
  %v4132 = vld [vmem:[#allocation3 + $0xa0] sm:$0xff]
  %v4133 = vld [vmem:[#allocation3 + $0xa8] sm:$0xff]
  %v4134 = vld [vmem:[#allocation3 + $0xb0] sm:$0xff]
  %v4135 = vld [vmem:[#allocation3 + $0xb8] sm:$0xff]
  %v4136 = vld [vmem:[#allocation3 + $0xc0] sm:$0xff]
  %v4137 = vld [vmem:[#allocation3 + $0xc8] sm:$0xff]
  %v4138 = vld [vmem:[#allocation3 + $0xd0] sm:$0xff]
  %v4139 = vld [vmem:[#allocation3 + $0xd8] sm:$0xff]
  %v4140 = vld [vmem:[#allocation3 + $0xe0] sm:$0xff]
  %v4141 = vld [vmem:[#allocation3 + $0xe8] sm:$0xff]
  %v4142 = vld [vmem:[#allocation3 + $0xf0] sm:$0xff]
  %v4143 = vld [vmem:[#allocation3 + $0xf8] sm:$0xff]
  %v4144 = vadd.f32 %v4112, %v3986
  %v4145 = vadd.f32 %v4113, %v3989
  %v4146 = vadd.f32 %v4114, %v3994
  %v4147 = vadd.f32 %v4115, %v3997
  %v4148 = vadd.f32 %v4116, %v4002
  %v4149 = vadd.f32 %v4117, %v4005
  %v4150 = vadd.f32 %v4118, %v4010
  %v4151 = vadd.f32 %v4119, %v4013
  %v4152 = vadd.f32 %v4120, %v4018
  %v4153 = vadd.f32 %v4121, %v4021
  %v4154 = vadd.f32 %v4122, %v4026
  %v4155 = vadd.f32 %v4123, %v4029
  %v4156 = vadd.f32 %v4124, %v4034
  %v4157 = vadd.f32 %v4125, %v4037
  %v4158 = vadd.f32 %v4126, %v4042
  %v4159 = vadd.f32 %v4127, %v4045
  %v4160 = vadd.f32 %v4128, %v4050
  %v4161 = vadd.f32 %v4129, %v4053
  %v4162 = vadd.f32 %v4130, %v4058
  %v4163 = vadd.f32 %v4131, %v4061
  %v4164 = vadd.f32 %v4132, %v4066
  %v4165 = vadd.f32 %v4133, %v4069
  %v4166 = vadd.f32 %v4134, %v4074
  %v4167 = vadd.f32 %v4135, %v4077
  %v4168 = vadd.f32 %v4136, %v4082
  %v4169 = vadd.f32 %v4137, %v4085
  %v4170 = vadd.f32 %v4138, %v4090
  %v4171 = vadd.f32 %v4139, %v4093
  %v4172 = vadd.f32 %v4140, %v4098
  %v4173 = vadd.f32 %v4141, %v4101
  %v4174 = vadd.f32 %v4142, %v4106
  %v4175 = vadd.f32 %v4143, %v4109
  %4176 = vst [vmem:[#allocation3] sm:$0xff] %v4144
  %4177 = vst [vmem:[#allocation3 + $0x8] sm:$0xff] %v4145
  %4178 = vst [vmem:[#allocation3 + $0x10] sm:$0xff] %v4146
  %4179 = vst [vmem:[#allocation3 + $0x18] sm:$0xff] %v4147
  %4180 = vst [vmem:[#allocation3 + $0x20] sm:$0xff] %v4148
  %4181 = vst [vmem:[#allocation3 + $0x28] sm:$0xff] %v4149
  %4182 = vst [vmem:[#allocation3 + $0x30] sm:$0xff] %v4150
  %4183 = vst [vmem:[#allocation3 + $0x38] sm:$0xff] %v4151
  %4184 = vst [vmem:[#allocation3 + $0x40] sm:$0xff] %v4152
  %4185 = vst [vmem:[#allocation3 + $0x48] sm:$0xff] %v4153
  %4186 = vst [vmem:[#allocation3 + $0x50] sm:$0xff] %v4154
  %4187 = vst [vmem:[#allocation3 + $0x58] sm:$0xff] %v4155
  %4188 = vst [vmem:[#allocation3 + $0x60] sm:$0xff] %v4156
  %4189 = vst [vmem:[#allocation3 + $0x68] sm:$0xff] %v4157
  %4190 = vst [vmem:[#allocation3 + $0x70] sm:$0xff] %v4158
  %4191 = vst [vmem:[#allocation3 + $0x78] sm:$0xff] %v4159
  %4192 = vst [vmem:[#allocation3 + $0x80] sm:$0xff] %v4160
  %4193 = vst [vmem:[#allocation3 + $0x88] sm:$0xff] %v4161
  %4194 = vst [vmem:[#allocation3 + $0x90] sm:$0xff] %v4162
  %4195 = vst [vmem:[#allocation3 + $0x98] sm:$0xff] %v4163
  %4196 = vst [vmem:[#allocation3 + $0xa0] sm:$0xff] %v4164
  %4197 = vst [vmem:[#allocation3 + $0xa8] sm:$0xff] %v4165
  %4198 = vst [vmem:[#allocation3 + $0xb0] sm:$0xff] %v4166
  %4199 = vst [vmem:[#allocation3 + $0xb8] sm:$0xff] %v4167
  %4200 = vst [vmem:[#allocation3 + $0xc0] sm:$0xff] %v4168
  %4201 = vst [vmem:[#allocation3 + $0xc8] sm:$0xff] %v4169
  %4202 = vst [vmem:[#allocation3 + $0xd0] sm:$0xff] %v4170
  %4203 = vst [vmem:[#allocation3 + $0xd8] sm:$0xff] %v4171
  %4204 = vst [vmem:[#allocation3 + $0xe0] sm:$0xff] %v4172
  %4205 = vst [vmem:[#allocation3 + $0xe8] sm:$0xff] %v4173
  %4206 = vst [vmem:[#allocation3 + $0xf0] sm:$0xff] %v4174
  %4207 = vst [vmem:[#allocation3 + $0xf8] sm:$0xff] %v4175
  %s4208 = scalar_lea.vmem [#allocation2], 24
  %v4209 = vld [vmem:[%s4208] sm:$0xf]
  %v4210 = vld [vmem:[%s4208 + $0x4] sm:$0xf]
  %v4211 = vld [vmem:[%s4208 + $0xc] sm:$0xf]
  %v4212 = vld [vmem:[%s4208 + $0x10] sm:$0xf]
  %v4213 = vld [vmem:[%s4208 + $0x18] sm:$0xf]
  %v4214 = vld [vmem:[%s4208 + $0x1c] sm:$0xf]
  %v4215 = vld [vmem:[%s4208 + $0x24] sm:$0xf]
  %v4216 = vld [vmem:[%s4208 + $0x28] sm:$0xf]
  %v4217 = vld [vmem:[%s4208 + $0x30] sm:$0xf]
  %v4218 = vld [vmem:[%s4208 + $0x34] sm:$0xf]
  %v4219 = vld [vmem:[%s4208 + $0x3c] sm:$0xf]
  %v4220 = vld [vmem:[%s4208 + $0x40] sm:$0xf]
  %v4221 = vld [vmem:[%s4208 + $0x48] sm:$0xf]
  %v4222 = vld [vmem:[%s4208 + $0x4c] sm:$0xf]
  %v4223 = vld [vmem:[%s4208 + $0x54] sm:$0xf]
  %v4224 = vld [vmem:[%s4208 + $0x58] sm:$0xf]
  %v4225 = vld [vmem:[%s4208 + $0x60] sm:$0xf]
  %v4226 = vld [vmem:[%s4208 + $0x64] sm:$0xf]
  %v4227 = vld [vmem:[%s4208 + $0x6c] sm:$0xf]
  %v4228 = vld [vmem:[%s4208 + $0x70] sm:$0xf]
  %v4229 = vld [vmem:[%s4208 + $0x78] sm:$0xf]
  %v4230 = vld [vmem:[%s4208 + $0x7c] sm:$0xf]
  %v4231 = vld [vmem:[%s4208 + $0x84] sm:$0xf]
  %v4232 = vld [vmem:[%s4208 + $0x88] sm:$0xf]
  %v4233 = vld [vmem:[%s4208 + $0x90] sm:$0xf]
  %v4234 = vld [vmem:[%s4208 + $0x94] sm:$0xf]
  %v4235 = vld [vmem:[%s4208 + $0x9c] sm:$0xf]
  %v4236 = vld [vmem:[%s4208 + $0xa0] sm:$0xf]
  %v4237 = vld [vmem:[%s4208 + $0xa8] sm:$0xf]
  %v4238 = vld [vmem:[%s4208 + $0xac] sm:$0xf]
  %v4239 = vld [vmem:[%s4208 + $0xb4] sm:$0xf]
  %v4240 = vld [vmem:[%s4208 + $0xb8] sm:$0xf]
  %v4241 = vld [vmem:[%s1 + $0x180] sm:$0xf]
  %v4242 = vld [vmem:[%s1 + $0x184] sm:$0xf]
  %v4243 = vld [vmem:[%s1 + $0x188] sm:$0xf]
  %v4244 = vld [vmem:[%s1 + $0x18c] sm:$0xf]
  %v4245 = vld [vmem:[%s1 + $0x190] sm:$0xf]
  %v4246 = vld [vmem:[%s1 + $0x194] sm:$0xf]
  %v4247 = vld [vmem:[%s1 + $0x198] sm:$0xf]
  %v4248 = vld [vmem:[%s1 + $0x19c] sm:$0xf]
  %v4249 = vld [vmem:[%s1 + $0x1a0] sm:$0xf]
  %v4250 = vld [vmem:[%s1 + $0x1a4] sm:$0xf]
  %v4251 = vld [vmem:[%s1 + $0x1a8] sm:$0xf]
  %v4252 = vld [vmem:[%s1 + $0x1ac] sm:$0xf]
  %v4253 = vld [vmem:[%s1 + $0x1b0] sm:$0xf]
  %v4254 = vld [vmem:[%s1 + $0x1b4] sm:$0xf]
  %v4255 = vld [vmem:[%s1 + $0x1b8] sm:$0xf]
  %v4256 = vld [vmem:[%s1 + $0x1bc] sm:$0xf]
  %v4289 = vunpack.c.l.b16 %v4209
  %v4290 = vunpack.c.l.b16 %v4210
  %v4291 = vunpack.c.l.b16 %v4211
  %v4292 = vunpack.c.l.b16 %v4212
  %v4293 = vunpack.c.l.b16 %v4213
  %v4294 = vunpack.c.l.b16 %v4214
  %v4295 = vunpack.c.l.b16 %v4215
  %v4296 = vunpack.c.l.b16 %v4216
  %v4297 = vunpack.c.l.b16 %v4217
  %v4298 = vunpack.c.l.b16 %v4218
  %v4299 = vunpack.c.l.b16 %v4219
  %v4300 = vunpack.c.l.b16 %v4220
  %v4301 = vunpack.c.l.b16 %v4221
  %v4302 = vunpack.c.l.b16 %v4222
  %v4303 = vunpack.c.l.b16 %v4223
  %v4304 = vunpack.c.l.b16 %v4224
  %v4305 = vunpack.c.l.b16 %v4225
  %v4306 = vunpack.c.l.b16 %v4226
  %v4307 = vunpack.c.l.b16 %v4227
  %v4308 = vunpack.c.l.b16 %v4228
  %v4309 = vunpack.c.l.b16 %v4229
  %v4310 = vunpack.c.l.b16 %v4230
  %v4311 = vunpack.c.l.b16 %v4231
  %v4312 = vunpack.c.l.b16 %v4232
  %v4313 = vunpack.c.l.b16 %v4233
  %v4314 = vunpack.c.l.b16 %v4234
  %v4315 = vunpack.c.l.b16 %v4235
  %v4316 = vunpack.c.l.b16 %v4236
  %v4317 = vunpack.c.l.b16 %v4237
  %v4318 = vunpack.c.l.b16 %v4238
  %v4319 = vunpack.c.l.b16 %v4239
  %v4320 = vunpack.c.l.b16 %v4240
  %v4321 = vpack.c.b16 %v4290, %v4289
  %v4322 = vpack.c.b16 %v4292, %v4291
  %v4323 = vpack.c.b16 %v4294, %v4293
  %v4324 = vpack.c.b16 %v4296, %v4295
  %v4325 = vpack.c.b16 %v4298, %v4297
  %v4326 = vpack.c.b16 %v4300, %v4299
  %v4327 = vpack.c.b16 %v4302, %v4301
  %v4328 = vpack.c.b16 %v4304, %v4303
  %v4329 = vpack.c.b16 %v4306, %v4305
  %v4330 = vpack.c.b16 %v4308, %v4307
  %v4331 = vpack.c.b16 %v4310, %v4309
  %v4332 = vpack.c.b16 %v4312, %v4311
  %v4333 = vpack.c.b16 %v4314, %v4313
  %v4334 = vpack.c.b16 %v4316, %v4315
  %v4335 = vpack.c.b16 %v4318, %v4317
  %v4336 = vpack.c.b16 %v4320, %v4319
  %v4369 = vunpack.c.l.b16 %v4241
  %v4370 = vunpack.c.l.b16 %v4242
  %v4371 = vunpack.c.l.b16 %v4243
  %v4372 = vunpack.c.l.b16 %v4244
  %v4373 = vunpack.c.l.b16 %v4245
  %v4374 = vunpack.c.l.b16 %v4246
  %v4375 = vunpack.c.l.b16 %v4247
  %v4376 = vunpack.c.l.b16 %v4248
  %v4377 = vunpack.c.l.b16 %v4249
  %v4378 = vunpack.c.l.b16 %v4250
  %v4379 = vunpack.c.l.b16 %v4251
  %v4380 = vunpack.c.l.b16 %v4252
  %v4381 = vunpack.c.l.b16 %v4253
  %v4382 = vunpack.c.l.b16 %v4254
  %v4383 = vunpack.c.l.b16 %v4255
  %v4384 = vunpack.c.l.b16 %v4256
  %v4385 = vpack.c.b16 %v4370, %v4369
  %v4386 = vpack.c.b16 %v4372, %v4371
  %v4387 = vpack.c.b16 %v4374, %v4373
  %v4388 = vpack.c.b16 %v4376, %v4375
  %v4389 = vpack.c.b16 %v4378, %v4377
  %v4390 = vpack.c.b16 %v4380, %v4379
  %v4391 = vpack.c.b16 %v4382, %v4381
  %v4392 = vpack.c.b16 %v4384, %v4383
  %4401 = vmatprep.subr.bf16.mxu0 0
  %4402 = vmatpush1.bf16.msra.mxu0 %v4392
  %4403 = vmatprep.subr.bf16.mxu0 0
  %4404 = vmatpush1.bf16.msra.mxu0 %v4391
  %4405 = vmatprep.subr.bf16.mxu0 0
  %4406 = vmatpush1.bf16.msra.mxu0 %v4390
  %4407 = vmatprep.subr.bf16.mxu0 0
  %4408 = vmatpush1.bf16.msra.mxu0 %v4389
  %4409 = vmatprep.subr.bf16.mxu0 0
  %4410 = vmatpush1.bf16.msra.mxu0 %v4388
  %4411 = vmatprep.subr.bf16.mxu0 0
  %4412 = vmatpush1.bf16.msra.mxu0 %v4387
  %4413 = vmatprep.subr.bf16.mxu0 0
  %4414 = vmatpush1.bf16.msra.mxu0 %v4386
  %4415 = vmatprep.subr.bf16.mxu0 0
  %4416 = vmatpush1.bf16.msra.mxu0 %v4385
  %4417 = vmatprep.subr.bf16.mxu0 0
  %4418 = vmatpush2.bf16.msra.mxu0 0
  %4419 = vmatprep.subr.bf16.mxu0 0
  %4420 = vmatpush2.bf16.msra.mxu0 0
  %4421 = vmatprep.subr.bf16.mxu0 0
  %4422 = vmatpush2.bf16.msra.mxu0 0
  %4423 = vmatprep.subr.bf16.mxu0 0
  %4424 = vmatpush2.bf16.msra.mxu0 0
  %4425 = vmatprep.subr.bf16.mxu0 0
  %4426 = vmatpush2.bf16.msra.mxu0 0
  %4427 = vmatprep.subr.bf16.mxu0 0
  %4428 = vmatpush2.bf16.msra.mxu0 0
  %4429 = vmatprep.subr.bf16.mxu0 0
  %4430 = vmatpush2.bf16.msra.mxu0 0
  %4431 = vmatprep.subr.bf16.mxu0 0
  %4432 = vmatpush2.bf16.msra.mxu0 0
  %4433 = vmatprep.mubr.bf16.mxu0 0
  %4434 = vmatmul.mubr.bf16.gmra.mxu0 %v4321
  %v4435 = vpop.f32.mrf.mxu0
  %v4436 = vadd.f32 0.0, %v4435
  %v4437 = vpop.f32.mrf.mxu0
  %v4438 = vpop.f32.mrf.mxu0
  %v4439 = vadd.f32 0.0, %v4438
  %v4440 = vpop.f32.mrf.mxu0
  %4441 = vmatprep.mubr.bf16.mxu0 0
  %4442 = vmatmul.mubr.bf16.gmra.mxu0 %v4322
  %v4443 = vpop.f32.mrf.mxu0
  %v4444 = vadd.f32 0.0, %v4443
  %v4445 = vpop.f32.mrf.mxu0
  %v4446 = vpop.f32.mrf.mxu0
  %v4447 = vadd.f32 0.0, %v4446
  %v4448 = vpop.f32.mrf.mxu0
  %4449 = vmatprep.mubr.bf16.mxu0 0
  %4450 = vmatmul.mubr.bf16.gmra.mxu0 %v4323
  %v4451 = vpop.f32.mrf.mxu0
  %v4452 = vadd.f32 0.0, %v4451
  %v4453 = vpop.f32.mrf.mxu0
  %v4454 = vpop.f32.mrf.mxu0
  %v4455 = vadd.f32 0.0, %v4454
  %v4456 = vpop.f32.mrf.mxu0
  %4457 = vmatprep.mubr.bf16.mxu0 0
  %4458 = vmatmul.mubr.bf16.gmra.mxu0 %v4324
  %v4459 = vpop.f32.mrf.mxu0
  %v4460 = vadd.f32 0.0, %v4459
  %v4461 = vpop.f32.mrf.mxu0
  %v4462 = vpop.f32.mrf.mxu0
  %v4463 = vadd.f32 0.0, %v4462
  %v4464 = vpop.f32.mrf.mxu0
  %4465 = vmatprep.mubr.bf16.mxu0 0
  %4466 = vmatmul.mubr.bf16.gmra.mxu0 %v4325
  %v4467 = vpop.f32.mrf.mxu0
  %v4468 = vadd.f32 0.0, %v4467
  %v4469 = vpop.f32.mrf.mxu0
  %v4470 = vpop.f32.mrf.mxu0
  %v4471 = vadd.f32 0.0, %v4470
  %v4472 = vpop.f32.mrf.mxu0
  %4473 = vmatprep.mubr.bf16.mxu0 0
  %4474 = vmatmul.mubr.bf16.gmra.mxu0 %v4326
  %v4475 = vpop.f32.mrf.mxu0
  %v4476 = vadd.f32 0.0, %v4475
  %v4477 = vpop.f32.mrf.mxu0
  %v4478 = vpop.f32.mrf.mxu0
  %v4479 = vadd.f32 0.0, %v4478
  %v4480 = vpop.f32.mrf.mxu0
  %4481 = vmatprep.mubr.bf16.mxu0 0
  %4482 = vmatmul.mubr.bf16.gmra.mxu0 %v4327
  %v4483 = vpop.f32.mrf.mxu0
  %v4484 = vadd.f32 0.0, %v4483
  %v4485 = vpop.f32.mrf.mxu0
  %v4486 = vpop.f32.mrf.mxu0
  %v4487 = vadd.f32 0.0, %v4486
  %v4488 = vpop.f32.mrf.mxu0
  %4489 = vmatprep.mubr.bf16.mxu0 0
  %4490 = vmatmul.mubr.bf16.gmra.mxu0 %v4328
  %v4491 = vpop.f32.mrf.mxu0
  %v4492 = vadd.f32 0.0, %v4491
  %v4493 = vpop.f32.mrf.mxu0
  %v4494 = vpop.f32.mrf.mxu0
  %v4495 = vadd.f32 0.0, %v4494
  %v4496 = vpop.f32.mrf.mxu0
  %4497 = vmatprep.mubr.bf16.mxu0 0
  %4498 = vmatmul.mubr.bf16.gmra.mxu0 %v4329
  %v4499 = vpop.f32.mrf.mxu0
  %v4500 = vadd.f32 0.0, %v4499
  %v4501 = vpop.f32.mrf.mxu0
  %v4502 = vpop.f32.mrf.mxu0
  %v4503 = vadd.f32 0.0, %v4502
  %v4504 = vpop.f32.mrf.mxu0
  %4505 = vmatprep.mubr.bf16.mxu0 0
  %4506 = vmatmul.mubr.bf16.gmra.mxu0 %v4330
  %v4507 = vpop.f32.mrf.mxu0
  %v4508 = vadd.f32 0.0, %v4507
  %v4509 = vpop.f32.mrf.mxu0
  %v4510 = vpop.f32.mrf.mxu0
  %v4511 = vadd.f32 0.0, %v4510
  %v4512 = vpop.f32.mrf.mxu0
  %4513 = vmatprep.mubr.bf16.mxu0 0
  %4514 = vmatmul.mubr.bf16.gmra.mxu0 %v4331
  %v4515 = vpop.f32.mrf.mxu0
  %v4516 = vadd.f32 0.0, %v4515
  %v4517 = vpop.f32.mrf.mxu0
  %v4518 = vpop.f32.mrf.mxu0
  %v4519 = vadd.f32 0.0, %v4518
  %v4520 = vpop.f32.mrf.mxu0
  %4521 = vmatprep.mubr.bf16.mxu0 0
  %4522 = vmatmul.mubr.bf16.gmra.mxu0 %v4332
  %v4523 = vpop.f32.mrf.mxu0
  %v4524 = vadd.f32 0.0, %v4523
  %v4525 = vpop.f32.mrf.mxu0
  %v4526 = vpop.f32.mrf.mxu0
  %v4527 = vadd.f32 0.0, %v4526
  %v4528 = vpop.f32.mrf.mxu0
  %4529 = vmatprep.mubr.bf16.mxu0 0
  %4530 = vmatmul.mubr.bf16.gmra.mxu0 %v4333
  %v4531 = vpop.f32.mrf.mxu0
  %v4532 = vadd.f32 0.0, %v4531
  %v4533 = vpop.f32.mrf.mxu0
  %v4534 = vpop.f32.mrf.mxu0
  %v4535 = vadd.f32 0.0, %v4534
  %v4536 = vpop.f32.mrf.mxu0
  %4537 = vmatprep.mubr.bf16.mxu0 0
  %4538 = vmatmul.mubr.bf16.gmra.mxu0 %v4334
  %v4539 = vpop.f32.mrf.mxu0
  %v4540 = vadd.f32 0.0, %v4539
  %v4541 = vpop.f32.mrf.mxu0
  %v4542 = vpop.f32.mrf.mxu0
  %v4543 = vadd.f32 0.0, %v4542
  %v4544 = vpop.f32.mrf.mxu0
  %4545 = vmatprep.mubr.bf16.mxu0 0
  %4546 = vmatmul.mubr.bf16.gmra.mxu0 %v4335
  %v4547 = vpop.f32.mrf.mxu0
  %v4548 = vadd.f32 0.0, %v4547
  %v4549 = vpop.f32.mrf.mxu0
  %v4550 = vpop.f32.mrf.mxu0
  %v4551 = vadd.f32 0.0, %v4550
  %v4552 = vpop.f32.mrf.mxu0
  %4553 = vmatprep.mubr.bf16.mxu0 0
  %4554 = vmatmul.mubr.bf16.gmra.mxu0 %v4336
  %v4555 = vpop.f32.mrf.mxu0
  %v4556 = vadd.f32 0.0, %v4555
  %v4557 = vpop.f32.mrf.mxu0
  %v4558 = vpop.f32.mrf.mxu0
  %v4559 = vadd.f32 0.0, %v4558
  %v4560 = vpop.f32.mrf.mxu0
  %4561 = vdwg.mxu0
  %v4562 = vld [vmem:[#allocation3] sm:$0xff]
  %v4563 = vld [vmem:[#allocation3 + $0x8] sm:$0xff]
  %v4564 = vld [vmem:[#allocation3 + $0x10] sm:$0xff]
  %v4565 = vld [vmem:[#allocation3 + $0x18] sm:$0xff]
  %v4566 = vld [vmem:[#allocation3 + $0x20] sm:$0xff]
  %v4567 = vld [vmem:[#allocation3 + $0x28] sm:$0xff]
  %v4568 = vld [vmem:[#allocation3 + $0x30] sm:$0xff]
  %v4569 = vld [vmem:[#allocation3 + $0x38] sm:$0xff]
  %v4570 = vld [vmem:[#allocation3 + $0x40] sm:$0xff]
  %v4571 = vld [vmem:[#allocation3 + $0x48] sm:$0xff]
  %v4572 = vld [vmem:[#allocation3 + $0x50] sm:$0xff]
  %v4573 = vld [vmem:[#allocation3 + $0x58] sm:$0xff]
  %v4574 = vld [vmem:[#allocation3 + $0x60] sm:$0xff]
  %v4575 = vld [vmem:[#allocation3 + $0x68] sm:$0xff]
  %v4576 = vld [vmem:[#allocation3 + $0x70] sm:$0xff]
  %v4577 = vld [vmem:[#allocation3 + $0x78] sm:$0xff]
  %v4578 = vld [vmem:[#allocation3 + $0x80] sm:$0xff]
  %v4579 = vld [vmem:[#allocation3 + $0x88] sm:$0xff]
  %v4580 = vld [vmem:[#allocation3 + $0x90] sm:$0xff]
  %v4581 = vld [vmem:[#allocation3 + $0x98] sm:$0xff]
  %v4582 = vld [vmem:[#allocation3 + $0xa0] sm:$0xff]
  %v4583 = vld [vmem:[#allocation3 + $0xa8] sm:$0xff]
  %v4584 = vld [vmem:[#allocation3 + $0xb0] sm:$0xff]
  %v4585 = vld [vmem:[#allocation3 + $0xb8] sm:$0xff]
  %v4586 = vld [vmem:[#allocation3 + $0xc0] sm:$0xff]
  %v4587 = vld [vmem:[#allocation3 + $0xc8] sm:$0xff]
  %v4588 = vld [vmem:[#allocation3 + $0xd0] sm:$0xff]
  %v4589 = vld [vmem:[#allocation3 + $0xd8] sm:$0xff]
  %v4590 = vld [vmem:[#allocation3 + $0xe0] sm:$0xff]
  %v4591 = vld [vmem:[#allocation3 + $0xe8] sm:$0xff]
  %v4592 = vld [vmem:[#allocation3 + $0xf0] sm:$0xff]
  %v4593 = vld [vmem:[#allocation3 + $0xf8] sm:$0xff]
  %v4594 = vadd.f32 %v4562, %v4436
  %v4595 = vadd.f32 %v4563, %v4439
  %v4596 = vadd.f32 %v4564, %v4444
  %v4597 = vadd.f32 %v4565, %v4447
  %v4598 = vadd.f32 %v4566, %v4452
  %v4599 = vadd.f32 %v4567, %v4455
  %v4600 = vadd.f32 %v4568, %v4460
  %v4601 = vadd.f32 %v4569, %v4463
  %v4602 = vadd.f32 %v4570, %v4468
  %v4603 = vadd.f32 %v4571, %v4471
  %v4604 = vadd.f32 %v4572, %v4476
  %v4605 = vadd.f32 %v4573, %v4479
  %v4606 = vadd.f32 %v4574, %v4484
  %v4607 = vadd.f32 %v4575, %v4487
  %v4608 = vadd.f32 %v4576, %v4492
  %v4609 = vadd.f32 %v4577, %v4495
  %v4610 = vadd.f32 %v4578, %v4500
  %v4611 = vadd.f32 %v4579, %v4503
  %v4612 = vadd.f32 %v4580, %v4508
  %v4613 = vadd.f32 %v4581, %v4511
  %v4614 = vadd.f32 %v4582, %v4516
  %v4615 = vadd.f32 %v4583, %v4519
  %v4616 = vadd.f32 %v4584, %v4524
  %v4617 = vadd.f32 %v4585, %v4527
  %v4618 = vadd.f32 %v4586, %v4532
  %v4619 = vadd.f32 %v4587, %v4535
  %v4620 = vadd.f32 %v4588, %v4540
  %v4621 = vadd.f32 %v4589, %v4543
  %v4622 = vadd.f32 %v4590, %v4548
  %v4623 = vadd.f32 %v4591, %v4551
  %v4624 = vadd.f32 %v4592, %v4556
  %v4625 = vadd.f32 %v4593, %v4559
  %4626 = vst [vmem:[#allocation3] sm:$0xff] %v4594
  %4627 = vst [vmem:[#allocation3 + $0x8] sm:$0xff] %v4595
  %4628 = vst [vmem:[#allocation3 + $0x10] sm:$0xff] %v4596
  %4629 = vst [vmem:[#allocation3 + $0x18] sm:$0xff] %v4597
  %4630 = vst [vmem:[#allocation3 + $0x20] sm:$0xff] %v4598
  %4631 = vst [vmem:[#allocation3 + $0x28] sm:$0xff] %v4599
  %4632 = vst [vmem:[#allocation3 + $0x30] sm:$0xff] %v4600
  %4633 = vst [vmem:[#allocation3 + $0x38] sm:$0xff] %v4601
  %4634 = vst [vmem:[#allocation3 + $0x40] sm:$0xff] %v4602
  %4635 = vst [vmem:[#allocation3 + $0x48] sm:$0xff] %v4603
  %4636 = vst [vmem:[#allocation3 + $0x50] sm:$0xff] %v4604
  %4637 = vst [vmem:[#allocation3 + $0x58] sm:$0xff] %v4605
  %4638 = vst [vmem:[#allocation3 + $0x60] sm:$0xff] %v4606
  %4639 = vst [vmem:[#allocation3 + $0x68] sm:$0xff] %v4607
  %4640 = vst [vmem:[#allocation3 + $0x70] sm:$0xff] %v4608
  %4641 = vst [vmem:[#allocation3 + $0x78] sm:$0xff] %v4609
  %4642 = vst [vmem:[#allocation3 + $0x80] sm:$0xff] %v4610
  %4643 = vst [vmem:[#allocation3 + $0x88] sm:$0xff] %v4611
  %4644 = vst [vmem:[#allocation3 + $0x90] sm:$0xff] %v4612
  %4645 = vst [vmem:[#allocation3 + $0x98] sm:$0xff] %v4613
  %4646 = vst [vmem:[#allocation3 + $0xa0] sm:$0xff] %v4614
  %4647 = vst [vmem:[#allocation3 + $0xa8] sm:$0xff] %v4615
  %4648 = vst [vmem:[#allocation3 + $0xb0] sm:$0xff] %v4616
  %4649 = vst [vmem:[#allocation3 + $0xb8] sm:$0xff] %v4617
  %4650 = vst [vmem:[#allocation3 + $0xc0] sm:$0xff] %v4618
  %4651 = vst [vmem:[#allocation3 + $0xc8] sm:$0xff] %v4619
  %4652 = vst [vmem:[#allocation3 + $0xd0] sm:$0xff] %v4620
  %4653 = vst [vmem:[#allocation3 + $0xd8] sm:$0xff] %v4621
  %4654 = vst [vmem:[#allocation3 + $0xe0] sm:$0xff] %v4622
  %4655 = vst [vmem:[#allocation3 + $0xe8] sm:$0xff] %v4623
  %4656 = vst [vmem:[#allocation3 + $0xf0] sm:$0xff] %v4624
  %4657 = vst [vmem:[#allocation3 + $0xf8] sm:$0xff] %v4625
  %v4658 = vld [vmem:[%s4208] sm:$0xf]
  %v4659 = vld [vmem:[%s4208 + $0x4] sm:$0xf]
  %v4660 = vld [vmem:[%s4208 + $0x8] sm:$0x1]
  %v4661 = vld [vmem:[%s4208 + $0xc] sm:$0xf]
  %v4662 = vld [vmem:[%s4208 + $0x10] sm:$0xf]
  %v4663 = vld [vmem:[%s4208 + $0x14] sm:$0x1]
  %v4664 = vld [vmem:[%s4208 + $0x18] sm:$0xf]
  %v4665 = vld [vmem:[%s4208 + $0x1c] sm:$0xf]
  %v4666 = vld [vmem:[%s4208 + $0x20] sm:$0x1]
  %v4667 = vld [vmem:[%s4208 + $0x24] sm:$0xf]
  %v4668 = vld [vmem:[%s4208 + $0x28] sm:$0xf]
  %v4669 = vld [vmem:[%s4208 + $0x2c] sm:$0x1]
  %v4670 = vld [vmem:[%s4208 + $0x30] sm:$0xf]
  %v4671 = vld [vmem:[%s4208 + $0x34] sm:$0xf]
  %v4672 = vld [vmem:[%s4208 + $0x38] sm:$0x1]
  %v4673 = vld [vmem:[%s4208 + $0x3c] sm:$0xf]
  %v4674 = vld [vmem:[%s4208 + $0x40] sm:$0xf]
  %v4675 = vld [vmem:[%s4208 + $0x44] sm:$0x1]
  %v4676 = vld [vmem:[%s4208 + $0x48] sm:$0xf]
  %v4677 = vld [vmem:[%s4208 + $0x4c] sm:$0xf]
  %v4678 = vld [vmem:[%s4208 + $0x50] sm:$0x1]
  %v4679 = vld [vmem:[%s4208 + $0x54] sm:$0xf]
  %v4680 = vld [vmem:[%s4208 + $0x58] sm:$0xf]
  %v4681 = vld [vmem:[%s4208 + $0x5c] sm:$0x1]
  %v4682 = vld [vmem:[%s4208 + $0x60] sm:$0xf]
  %v4683 = vld [vmem:[%s4208 + $0x64] sm:$0xf]
  %v4684 = vld [vmem:[%s4208 + $0x68] sm:$0x1]
  %v4685 = vld [vmem:[%s4208 + $0x6c] sm:$0xf]
  %v4686 = vld [vmem:[%s4208 + $0x70] sm:$0xf]
  %v4687 = vld [vmem:[%s4208 + $0x74] sm:$0x1]
  %v4688 = vld [vmem:[%s4208 + $0x78] sm:$0xf]
  %v4689 = vld [vmem:[%s4208 + $0x7c] sm:$0xf]
  %v4690 = vld [vmem:[%s4208 + $0x80] sm:$0x1]
  %v4691 = vld [vmem:[%s4208 + $0x84] sm:$0xf]
  %v4692 = vld [vmem:[%s4208 + $0x88] sm:$0xf]
  %v4693 = vld [vmem:[%s4208 + $0x8c] sm:$0x1]
  %v4694 = vld [vmem:[%s4208 + $0x90] sm:$0xf]
  %v4695 = vld [vmem:[%s4208 + $0x94] sm:$0xf]
  %v4696 = vld [vmem:[%s4208 + $0x98] sm:$0x1]
  %v4697 = vld [vmem:[%s4208 + $0x9c] sm:$0xf]
  %v4698 = vld [vmem:[%s4208 + $0xa0] sm:$0xf]
  %v4699 = vld [vmem:[%s4208 + $0xa4] sm:$0x1]
  %v4700 = vld [vmem:[%s4208 + $0xa8] sm:$0xf]
  %v4701 = vld [vmem:[%s4208 + $0xac] sm:$0xf]
  %v4702 = vld [vmem:[%s4208 + $0xb0] sm:$0x1]
  %v4703 = vld [vmem:[%s4208 + $0xb4] sm:$0xf]
  %v4704 = vld [vmem:[%s4208 + $0xb8] sm:$0xf]
  %v4705 = vld [vmem:[%s4208 + $0xbc] sm:$0x1]
  %v4707 = vshrl.u32 %v4658, 16
  %v4709 = vrot.slane %v4707, 4
  %v4710 = vshll.u32 %v4658, 16
  %v4712 = vrot.slane %v4710, 5
  %v4713 = vor.u32 %v4709, %v4712
  %v4714 = vrot.slane %v4713, 4
  %v4716 = vshll.u32 %v4659, 16
  %v4718 = vrot.slane %v4716, 5
  %v4719 = vsel %vm983, %v4714, %v4718
  %v4720 = vshrl.u32 %v4659, 16
  %v4722 = vrot.slane %v4720, 4
  %v4723 = vor.u32 %v4722, %v4718
  %v4724 = vrot.slane %v4723, 4
  %v4726 = vshll.u32 %v4660, 16
  %v4728 = vrot.slane %v4726, 5
  %v4729 = vsel %vm983, %v4724, %v4728
  %v4731 = vshrl.u32 %v4661, 16
  %v4733 = vrot.slane %v4731, 4
  %v4734 = vshll.u32 %v4661, 16
  %v4736 = vrot.slane %v4734, 5
  %v4737 = vor.u32 %v4733, %v4736
  %v4738 = vrot.slane %v4737, 4
  %v4740 = vshll.u32 %v4662, 16
  %v4742 = vrot.slane %v4740, 5
  %v4743 = vsel %vm983, %v4738, %v4742
  %v4744 = vshrl.u32 %v4662, 16
  %v4746 = vrot.slane %v4744, 4
  %v4747 = vor.u32 %v4746, %v4742
  %v4748 = vrot.slane %v4747, 4
  %v4750 = vshll.u32 %v4663, 16
  %v4752 = vrot.slane %v4750, 5
  %v4753 = vsel %vm983, %v4748, %v4752
  %v4755 = vshrl.u32 %v4664, 16
  %v4757 = vrot.slane %v4755, 4
  %v4758 = vshll.u32 %v4664, 16
  %v4760 = vrot.slane %v4758, 5
  %v4761 = vor.u32 %v4757, %v4760
  %v4762 = vrot.slane %v4761, 4
  %v4764 = vshll.u32 %v4665, 16
  %v4766 = vrot.slane %v4764, 5
  %v4767 = vsel %vm983, %v4762, %v4766
  %v4768 = vshrl.u32 %v4665, 16
  %v4770 = vrot.slane %v4768, 4
  %v4771 = vor.u32 %v4770, %v4766
  %v4772 = vrot.slane %v4771, 4
  %v4774 = vshll.u32 %v4666, 16
  %v4776 = vrot.slane %v4774, 5
  %v4777 = vsel %vm983, %v4772, %v4776
  %v4779 = vshrl.u32 %v4667, 16
  %v4781 = vrot.slane %v4779, 4
  %v4782 = vshll.u32 %v4667, 16
  %v4784 = vrot.slane %v4782, 5
  %v4785 = vor.u32 %v4781, %v4784
  %v4786 = vrot.slane %v4785, 4
  %v4788 = vshll.u32 %v4668, 16
  %v4790 = vrot.slane %v4788, 5
  %v4791 = vsel %vm983, %v4786, %v4790
  %v4792 = vshrl.u32 %v4668, 16
  %v4794 = vrot.slane %v4792, 4
  %v4795 = vor.u32 %v4794, %v4790
  %v4796 = vrot.slane %v4795, 4
  %v4798 = vshll.u32 %v4669, 16
  %v4800 = vrot.slane %v4798, 5
  %v4801 = vsel %vm983, %v4796, %v4800
  %v4803 = vshrl.u32 %v4670, 16
  %v4805 = vrot.slane %v4803, 4
  %v4806 = vshll.u32 %v4670, 16
  %v4808 = vrot.slane %v4806, 5
  %v4809 = vor.u32 %v4805, %v4808
  %v4810 = vrot.slane %v4809, 4
  %v4812 = vshll.u32 %v4671, 16
  %v4814 = vrot.slane %v4812, 5
  %v4815 = vsel %vm983, %v4810, %v4814
  %v4816 = vshrl.u32 %v4671, 16
  %v4818 = vrot.slane %v4816, 4
  %v4819 = vor.u32 %v4818, %v4814
  %v4820 = vrot.slane %v4819, 4
  %v4822 = vshll.u32 %v4672, 16
  %v4824 = vrot.slane %v4822, 5
  %v4825 = vsel %vm983, %v4820, %v4824
  %v4827 = vshrl.u32 %v4673, 16
  %v4829 = vrot.slane %v4827, 4
  %v4830 = vshll.u32 %v4673, 16
  %v4832 = vrot.slane %v4830, 5
  %v4833 = vor.u32 %v4829, %v4832
  %v4834 = vrot.slane %v4833, 4
  %v4836 = vshll.u32 %v4674, 16
  %v4838 = vrot.slane %v4836, 5
  %v4839 = vsel %vm983, %v4834, %v4838
  %v4840 = vshrl.u32 %v4674, 16
  %v4842 = vrot.slane %v4840, 4
  %v4843 = vor.u32 %v4842, %v4838
  %v4844 = vrot.slane %v4843, 4
  %v4846 = vshll.u32 %v4675, 16
  %v4848 = vrot.slane %v4846, 5
  %v4849 = vsel %vm983, %v4844, %v4848
  %v4851 = vshrl.u32 %v4676, 16
  %v4853 = vrot.slane %v4851, 4
  %v4854 = vshll.u32 %v4676, 16
  %v4856 = vrot.slane %v4854, 5
  %v4857 = vor.u32 %v4853, %v4856
  %v4858 = vrot.slane %v4857, 4
  %v4860 = vshll.u32 %v4677, 16
  %v4862 = vrot.slane %v4860, 5
  %v4863 = vsel %vm983, %v4858, %v4862
  %v4864 = vshrl.u32 %v4677, 16
  %v4866 = vrot.slane %v4864, 4
  %v4867 = vor.u32 %v4866, %v4862
  %v4868 = vrot.slane %v4867, 4
  %v4870 = vshll.u32 %v4678, 16
  %v4872 = vrot.slane %v4870, 5
  %v4873 = vsel %vm983, %v4868, %v4872
  %v4875 = vshrl.u32 %v4679, 16
  %v4877 = vrot.slane %v4875, 4
  %v4878 = vshll.u32 %v4679, 16
  %v4880 = vrot.slane %v4878, 5
  %v4881 = vor.u32 %v4877, %v4880
  %v4882 = vrot.slane %v4881, 4
  %v4884 = vshll.u32 %v4680, 16
  %v4886 = vrot.slane %v4884, 5
  %v4887 = vsel %vm983, %v4882, %v4886
  %v4888 = vshrl.u32 %v4680, 16
  %v4890 = vrot.slane %v4888, 4
  %v4891 = vor.u32 %v4890, %v4886
  %v4892 = vrot.slane %v4891, 4
  %v4894 = vshll.u32 %v4681, 16
  %v4896 = vrot.slane %v4894, 5
  %v4897 = vsel %vm983, %v4892, %v4896
  %v4899 = vshrl.u32 %v4682, 16
  %v4901 = vrot.slane %v4899, 4
  %v4902 = vshll.u32 %v4682, 16
  %v4904 = vrot.slane %v4902, 5
  %v4905 = vor.u32 %v4901, %v4904
  %v4906 = vrot.slane %v4905, 4
  %v4908 = vshll.u32 %v4683, 16
  %v4910 = vrot.slane %v4908, 5
  %v4911 = vsel %vm983, %v4906, %v4910
  %v4912 = vshrl.u32 %v4683, 16
  %v4914 = vrot.slane %v4912, 4
  %v4915 = vor.u32 %v4914, %v4910
  %v4916 = vrot.slane %v4915, 4
  %v4918 = vshll.u32 %v4684, 16
  %v4920 = vrot.slane %v4918, 5
  %v4921 = vsel %vm983, %v4916, %v4920
  %v4923 = vshrl.u32 %v4685, 16
  %v4925 = vrot.slane %v4923, 4
  %v4926 = vshll.u32 %v4685, 16
  %v4928 = vrot.slane %v4926, 5
  %v4929 = vor.u32 %v4925, %v4928
  %v4930 = vrot.slane %v4929, 4
  %v4932 = vshll.u32 %v4686, 16
  %v4934 = vrot.slane %v4932, 5
  %v4935 = vsel %vm983, %v4930, %v4934
  %v4936 = vshrl.u32 %v4686, 16
  %v4938 = vrot.slane %v4936, 4
  %v4939 = vor.u32 %v4938, %v4934
  %v4940 = vrot.slane %v4939, 4
  %v4942 = vshll.u32 %v4687, 16
  %v4944 = vrot.slane %v4942, 5
  %v4945 = vsel %vm983, %v4940, %v4944
  %v4947 = vshrl.u32 %v4688, 16
  %v4949 = vrot.slane %v4947, 4
  %v4950 = vshll.u32 %v4688, 16
  %v4952 = vrot.slane %v4950, 5
  %v4953 = vor.u32 %v4949, %v4952
  %v4954 = vrot.slane %v4953, 4
  %v4956 = vshll.u32 %v4689, 16
  %v4958 = vrot.slane %v4956, 5
  %v4959 = vsel %vm983, %v4954, %v4958
  %v4960 = vshrl.u32 %v4689, 16
  %v4962 = vrot.slane %v4960, 4
  %v4963 = vor.u32 %v4962, %v4958
  %v4964 = vrot.slane %v4963, 4
  %v4966 = vshll.u32 %v4690, 16
  %v4968 = vrot.slane %v4966, 5
  %v4969 = vsel %vm983, %v4964, %v4968
  %v4971 = vshrl.u32 %v4691, 16
  %v4973 = vrot.slane %v4971, 4
  %v4974 = vshll.u32 %v4691, 16
  %v4976 = vrot.slane %v4974, 5
  %v4977 = vor.u32 %v4973, %v4976
  %v4978 = vrot.slane %v4977, 4
  %v4980 = vshll.u32 %v4692, 16
  %v4982 = vrot.slane %v4980, 5
  %v4983 = vsel %vm983, %v4978, %v4982
  %v4984 = vshrl.u32 %v4692, 16
  %v4986 = vrot.slane %v4984, 4
  %v4987 = vor.u32 %v4986, %v4982
  %v4988 = vrot.slane %v4987, 4
  %v4990 = vshll.u32 %v4693, 16
  %v4992 = vrot.slane %v4990, 5
  %v4993 = vsel %vm983, %v4988, %v4992
  %v4995 = vshrl.u32 %v4694, 16
  %v4997 = vrot.slane %v4995, 4
  %v4998 = vshll.u32 %v4694, 16
  %v5000 = vrot.slane %v4998, 5
  %v5001 = vor.u32 %v4997, %v5000
  %v5002 = vrot.slane %v5001, 4
  %v5004 = vshll.u32 %v4695, 16
  %v5006 = vrot.slane %v5004, 5
  %v5007 = vsel %vm983, %v5002, %v5006
  %v5008 = vshrl.u32 %v4695, 16
  %v5010 = vrot.slane %v5008, 4
  %v5011 = vor.u32 %v5010, %v5006
  %v5012 = vrot.slane %v5011, 4
  %v5014 = vshll.u32 %v4696, 16
  %v5016 = vrot.slane %v5014, 5
  %v5017 = vsel %vm983, %v5012, %v5016
  %v5019 = vshrl.u32 %v4697, 16
  %v5021 = vrot.slane %v5019, 4
  %v5022 = vshll.u32 %v4697, 16
  %v5024 = vrot.slane %v5022, 5
  %v5025 = vor.u32 %v5021, %v5024
  %v5026 = vrot.slane %v5025, 4
  %v5028 = vshll.u32 %v4698, 16
  %v5030 = vrot.slane %v5028, 5
  %v5031 = vsel %vm983, %v5026, %v5030
  %v5032 = vshrl.u32 %v4698, 16
  %v5034 = vrot.slane %v5032, 4
  %v5035 = vor.u32 %v5034, %v5030
  %v5036 = vrot.slane %v5035, 4
  %v5038 = vshll.u32 %v4699, 16
  %v5040 = vrot.slane %v5038, 5
  %v5041 = vsel %vm983, %v5036, %v5040
  %v5043 = vshrl.u32 %v4700, 16
  %v5045 = vrot.slane %v5043, 4
  %v5046 = vshll.u32 %v4700, 16
  %v5048 = vrot.slane %v5046, 5
  %v5049 = vor.u32 %v5045, %v5048
  %v5050 = vrot.slane %v5049, 4
  %v5052 = vshll.u32 %v4701, 16
  %v5054 = vrot.slane %v5052, 5
  %v5055 = vsel %vm983, %v5050, %v5054
  %v5056 = vshrl.u32 %v4701, 16
  %v5058 = vrot.slane %v5056, 4
  %v5059 = vor.u32 %v5058, %v5054
  %v5060 = vrot.slane %v5059, 4
  %v5062 = vshll.u32 %v4702, 16
  %v5064 = vrot.slane %v5062, 5
  %v5065 = vsel %vm983, %v5060, %v5064
  %v5067 = vshrl.u32 %v4703, 16
  %v5069 = vrot.slane %v5067, 4
  %v5070 = vshll.u32 %v4703, 16
  %v5072 = vrot.slane %v5070, 5
  %v5073 = vor.u32 %v5069, %v5072
  %v5074 = vrot.slane %v5073, 4
  %v5076 = vshll.u32 %v4704, 16
  %v5078 = vrot.slane %v5076, 5
  %v5079 = vsel %vm983, %v5074, %v5078
  %v5080 = vshrl.u32 %v4704, 16
  %v5082 = vrot.slane %v5080, 4
  %v5083 = vor.u32 %v5082, %v5078
  %v5084 = vrot.slane %v5083, 4
  %v5086 = vshll.u32 %v4705, 16
  %v5088 = vrot.slane %v5086, 5
  %v5089 = vsel %vm983, %v5084, %v5088
  %v5090 = vld [vmem:[%s1 + $0x1c0] sm:$0xf]
  %v5091 = vld [vmem:[%s1 + $0x1c4] sm:$0xf]
  %v5092 = vld [vmem:[%s1 + $0x1c8] sm:$0xf]
  %v5093 = vld [vmem:[%s1 + $0x1cc] sm:$0xf]
  %v5094 = vld [vmem:[%s1 + $0x1d0] sm:$0xf]
  %v5095 = vld [vmem:[%s1 + $0x1d4] sm:$0xf]
  %v5096 = vld [vmem:[%s1 + $0x1d8] sm:$0xf]
  %v5097 = vld [vmem:[%s1 + $0x1dc] sm:$0xf]
  %v5098 = vld [vmem:[%s1 + $0x1e0] sm:$0xf]
  %v5099 = vld [vmem:[%s1 + $0x1e4] sm:$0xf]
  %v5100 = vld [vmem:[%s1 + $0x1e8] sm:$0xf]
  %v5101 = vld [vmem:[%s1 + $0x1ec] sm:$0xf]
  %v5102 = vld [vmem:[%s1 + $0x1f0] sm:$0xf]
  %v5103 = vld [vmem:[%s1 + $0x1f4] sm:$0xf]
  %v5104 = vld [vmem:[%s1 + $0x1f8] sm:$0xf]
  %v5105 = vld [vmem:[%s1 + $0x1fc] sm:$0xf]
  %v5106 = vunpack.c.l.b16 %v4719
  %v5107 = vunpack.c.l.b16 %v4729
  %v5108 = vunpack.c.l.b16 %v4743
  %v5109 = vunpack.c.l.b16 %v4753
  %v5110 = vunpack.c.l.b16 %v4767
  %v5111 = vunpack.c.l.b16 %v4777
  %v5112 = vunpack.c.l.b16 %v4791
  %v5113 = vunpack.c.l.b16 %v4801
  %v5114 = vunpack.c.l.b16 %v4815
  %v5115 = vunpack.c.l.b16 %v4825
  %v5116 = vunpack.c.l.b16 %v4839
  %v5117 = vunpack.c.l.b16 %v4849
  %v5118 = vunpack.c.l.b16 %v4863
  %v5119 = vunpack.c.l.b16 %v4873
  %v5120 = vunpack.c.l.b16 %v4887
  %v5121 = vunpack.c.l.b16 %v4897
  %v5122 = vunpack.c.l.b16 %v4911
  %v5123 = vunpack.c.l.b16 %v4921
  %v5124 = vunpack.c.l.b16 %v4935
  %v5125 = vunpack.c.l.b16 %v4945
  %v5126 = vunpack.c.l.b16 %v4959
  %v5127 = vunpack.c.l.b16 %v4969
  %v5128 = vunpack.c.l.b16 %v4983
  %v5129 = vunpack.c.l.b16 %v4993
  %v5130 = vunpack.c.l.b16 %v5007
  %v5131 = vunpack.c.l.b16 %v5017
  %v5132 = vunpack.c.l.b16 %v5031
  %v5133 = vunpack.c.l.b16 %v5041
  %v5134 = vunpack.c.l.b16 %v5055
  %v5135 = vunpack.c.l.b16 %v5065
  %v5136 = vunpack.c.l.b16 %v5079
  %v5137 = vunpack.c.l.b16 %v5089
  %v5138 = vpack.c.b16 %v5107, %v5106
  %v5139 = vpack.c.b16 %v5109, %v5108
  %v5140 = vpack.c.b16 %v5111, %v5110
  %v5141 = vpack.c.b16 %v5113, %v5112
  %v5142 = vpack.c.b16 %v5115, %v5114
  %v5143 = vpack.c.b16 %v5117, %v5116
  %v5144 = vpack.c.b16 %v5119, %v5118
  %v5145 = vpack.c.b16 %v5121, %v5120
  %v5146 = vpack.c.b16 %v5123, %v5122
  %v5147 = vpack.c.b16 %v5125, %v5124
  %v5148 = vpack.c.b16 %v5127, %v5126
  %v5149 = vpack.c.b16 %v5129, %v5128
  %v5150 = vpack.c.b16 %v5131, %v5130
  %v5151 = vpack.c.b16 %v5133, %v5132
  %v5152 = vpack.c.b16 %v5135, %v5134
  %v5153 = vpack.c.b16 %v5137, %v5136
  %v5186 = vunpack.c.l.b16 %v5090
  %v5187 = vunpack.c.l.b16 %v5091
  %v5188 = vunpack.c.l.b16 %v5092
  %v5189 = vunpack.c.l.b16 %v5093
  %v5190 = vunpack.c.l.b16 %v5094
  %v5191 = vunpack.c.l.b16 %v5095
  %v5192 = vunpack.c.l.b16 %v5096
  %v5193 = vunpack.c.l.b16 %v5097
  %v5194 = vunpack.c.l.b16 %v5098
  %v5195 = vunpack.c.l.b16 %v5099
  %v5196 = vunpack.c.l.b16 %v5100
  %v5197 = vunpack.c.l.b16 %v5101
  %v5198 = vunpack.c.l.b16 %v5102
  %v5199 = vunpack.c.l.b16 %v5103
  %v5200 = vunpack.c.l.b16 %v5104
  %v5201 = vunpack.c.l.b16 %v5105
  %v5202 = vpack.c.b16 %v5187, %v5186
  %v5203 = vpack.c.b16 %v5189, %v5188
  %v5204 = vpack.c.b16 %v5191, %v5190
  %v5205 = vpack.c.b16 %v5193, %v5192
  %v5206 = vpack.c.b16 %v5195, %v5194
  %v5207 = vpack.c.b16 %v5197, %v5196
  %v5208 = vpack.c.b16 %v5199, %v5198
  %v5209 = vpack.c.b16 %v5201, %v5200
  %5218 = vmatprep.subr.bf16.mxu0 0
  %5219 = vmatpush1.bf16.msra.mxu0 %v5209
  %5220 = vmatprep.subr.bf16.mxu0 0
  %5221 = vmatpush1.bf16.msra.mxu0 %v5208
  %5222 = vmatprep.subr.bf16.mxu0 0
  %5223 = vmatpush1.bf16.msra.mxu0 %v5207
  %5224 = vmatprep.subr.bf16.mxu0 0
  %5225 = vmatpush1.bf16.msra.mxu0 %v5206
  %5226 = vmatprep.subr.bf16.mxu0 0
  %5227 = vmatpush1.bf16.msra.mxu0 %v5205
  %5228 = vmatprep.subr.bf16.mxu0 0
  %5229 = vmatpush1.bf16.msra.mxu0 %v5204
  %5230 = vmatprep.subr.bf16.mxu0 0
  %5231 = vmatpush1.bf16.msra.mxu0 %v5203
  %5232 = vmatprep.subr.bf16.mxu0 0
  %5233 = vmatpush1.bf16.msra.mxu0 %v5202
  %5234 = vmatprep.subr.bf16.mxu0 0
  %5235 = vmatpush2.bf16.msra.mxu0 0
  %5236 = vmatprep.subr.bf16.mxu0 0
  %5237 = vmatpush2.bf16.msra.mxu0 0
  %5238 = vmatprep.subr.bf16.mxu0 0
  %5239 = vmatpush2.bf16.msra.mxu0 0
  %5240 = vmatprep.subr.bf16.mxu0 0
  %5241 = vmatpush2.bf16.msra.mxu0 0
  %5242 = vmatprep.subr.bf16.mxu0 0
  %5243 = vmatpush2.bf16.msra.mxu0 0
  %5244 = vmatprep.subr.bf16.mxu0 0
  %5245 = vmatpush2.bf16.msra.mxu0 0
  %5246 = vmatprep.subr.bf16.mxu0 0
  %5247 = vmatpush2.bf16.msra.mxu0 0
  %5248 = vmatprep.subr.bf16.mxu0 0
  %5249 = vmatpush2.bf16.msra.mxu0 0
  %5250 = vmatprep.mubr.bf16.mxu0 0
  %5251 = vmatmul.mubr.bf16.gmra.mxu0 %v5138
  %v5252 = vpop.f32.mrf.mxu0
  %v5253 = vadd.f32 0.0, %v5252
  %v5254 = vpop.f32.mrf.mxu0
  %v5255 = vpop.f32.mrf.mxu0
  %v5256 = vadd.f32 0.0, %v5255
  %v5257 = vpop.f32.mrf.mxu0
  %5258 = vmatprep.mubr.bf16.mxu0 0
  %5259 = vmatmul.mubr.bf16.gmra.mxu0 %v5139
  %v5260 = vpop.f32.mrf.mxu0
  %v5261 = vadd.f32 0.0, %v5260
  %v5262 = vpop.f32.mrf.mxu0
  %v5263 = vpop.f32.mrf.mxu0
  %v5264 = vadd.f32 0.0, %v5263
  %v5265 = vpop.f32.mrf.mxu0
  %5266 = vmatprep.mubr.bf16.mxu0 0
  %5267 = vmatmul.mubr.bf16.gmra.mxu0 %v5140
  %v5268 = vpop.f32.mrf.mxu0
  %v5269 = vadd.f32 0.0, %v5268
  %v5270 = vpop.f32.mrf.mxu0
  %v5271 = vpop.f32.mrf.mxu0
  %v5272 = vadd.f32 0.0, %v5271
  %v5273 = vpop.f32.mrf.mxu0
  %5274 = vmatprep.mubr.bf16.mxu0 0
  %5275 = vmatmul.mubr.bf16.gmra.mxu0 %v5141
  %v5276 = vpop.f32.mrf.mxu0
  %v5277 = vadd.f32 0.0, %v5276
  %v5278 = vpop.f32.mrf.mxu0
  %v5279 = vpop.f32.mrf.mxu0
  %v5280 = vadd.f32 0.0, %v5279
  %v5281 = vpop.f32.mrf.mxu0
  %5282 = vmatprep.mubr.bf16.mxu0 0
  %5283 = vmatmul.mubr.bf16.gmra.mxu0 %v5142
  %v5284 = vpop.f32.mrf.mxu0
  %v5285 = vadd.f32 0.0, %v5284
  %v5286 = vpop.f32.mrf.mxu0
  %v5287 = vpop.f32.mrf.mxu0
  %v5288 = vadd.f32 0.0, %v5287
  %v5289 = vpop.f32.mrf.mxu0
  %5290 = vmatprep.mubr.bf16.mxu0 0
  %5291 = vmatmul.mubr.bf16.gmra.mxu0 %v5143
  %v5292 = vpop.f32.mrf.mxu0
  %v5293 = vadd.f32 0.0, %v5292
  %v5294 = vpop.f32.mrf.mxu0
  %v5295 = vpop.f32.mrf.mxu0
  %v5296 = vadd.f32 0.0, %v5295
  %v5297 = vpop.f32.mrf.mxu0
  %5298 = vmatprep.mubr.bf16.mxu0 0
  %5299 = vmatmul.mubr.bf16.gmra.mxu0 %v5144
  %v5300 = vpop.f32.mrf.mxu0
  %v5301 = vadd.f32 0.0, %v5300
  %v5302 = vpop.f32.mrf.mxu0
  %v5303 = vpop.f32.mrf.mxu0
  %v5304 = vadd.f32 0.0, %v5303
  %v5305 = vpop.f32.mrf.mxu0
  %5306 = vmatprep.mubr.bf16.mxu0 0
  %5307 = vmatmul.mubr.bf16.gmra.mxu0 %v5145
  %v5308 = vpop.f32.mrf.mxu0
  %v5309 = vadd.f32 0.0, %v5308
  %v5310 = vpop.f32.mrf.mxu0
  %v5311 = vpop.f32.mrf.mxu0
  %v5312 = vadd.f32 0.0, %v5311
  %v5313 = vpop.f32.mrf.mxu0
  %5314 = vmatprep.mubr.bf16.mxu0 0
  %5315 = vmatmul.mubr.bf16.gmra.mxu0 %v5146
  %v5316 = vpop.f32.mrf.mxu0
  %v5317 = vadd.f32 0.0, %v5316
  %v5318 = vpop.f32.mrf.mxu0
  %v5319 = vpop.f32.mrf.mxu0
  %v5320 = vadd.f32 0.0, %v5319
  %v5321 = vpop.f32.mrf.mxu0
  %5322 = vmatprep.mubr.bf16.mxu0 0
  %5323 = vmatmul.mubr.bf16.gmra.mxu0 %v5147
  %v5324 = vpop.f32.mrf.mxu0
  %v5325 = vadd.f32 0.0, %v5324
  %v5326 = vpop.f32.mrf.mxu0
  %v5327 = vpop.f32.mrf.mxu0
  %v5328 = vadd.f32 0.0, %v5327
  %v5329 = vpop.f32.mrf.mxu0
  %5330 = vmatprep.mubr.bf16.mxu0 0
  %5331 = vmatmul.mubr.bf16.gmra.mxu0 %v5148
  %v5332 = vpop.f32.mrf.mxu0
  %v5333 = vadd.f32 0.0, %v5332
  %v5334 = vpop.f32.mrf.mxu0
  %v5335 = vpop.f32.mrf.mxu0
  %v5336 = vadd.f32 0.0, %v5335
  %v5337 = vpop.f32.mrf.mxu0
  %5338 = vmatprep.mubr.bf16.mxu0 0
  %5339 = vmatmul.mubr.bf16.gmra.mxu0 %v5149
  %v5340 = vpop.f32.mrf.mxu0
  %v5341 = vadd.f32 0.0, %v5340
  %v5342 = vpop.f32.mrf.mxu0
  %v5343 = vpop.f32.mrf.mxu0
  %v5344 = vadd.f32 0.0, %v5343
  %v5345 = vpop.f32.mrf.mxu0
  %5346 = vmatprep.mubr.bf16.mxu0 0
  %5347 = vmatmul.mubr.bf16.gmra.mxu0 %v5150
  %v5348 = vpop.f32.mrf.mxu0
  %v5349 = vadd.f32 0.0, %v5348
  %v5350 = vpop.f32.mrf.mxu0
  %v5351 = vpop.f32.mrf.mxu0
  %v5352 = vadd.f32 0.0, %v5351
  %v5353 = vpop.f32.mrf.mxu0
  %5354 = vmatprep.mubr.bf16.mxu0 0
  %5355 = vmatmul.mubr.bf16.gmra.mxu0 %v5151
  %v5356 = vpop.f32.mrf.mxu0
  %v5357 = vadd.f32 0.0, %v5356
  %v5358 = vpop.f32.mrf.mxu0
  %v5359 = vpop.f32.mrf.mxu0
  %v5360 = vadd.f32 0.0, %v5359
  %v5361 = vpop.f32.mrf.mxu0
  %5362 = vmatprep.mubr.bf16.mxu0 0
  %5363 = vmatmul.mubr.bf16.gmra.mxu0 %v5152
  %v5364 = vpop.f32.mrf.mxu0
  %v5365 = vadd.f32 0.0, %v5364
  %v5366 = vpop.f32.mrf.mxu0
  %v5367 = vpop.f32.mrf.mxu0
  %v5368 = vadd.f32 0.0, %v5367
  %v5369 = vpop.f32.mrf.mxu0
  %5370 = vmatprep.mubr.bf16.mxu0 0
  %5371 = vmatmul.mubr.bf16.gmra.mxu0 %v5153
  %v5372 = vpop.f32.mrf.mxu0
  %v5373 = vadd.f32 0.0, %v5372
  %v5374 = vpop.f32.mrf.mxu0
  %v5375 = vpop.f32.mrf.mxu0
  %v5376 = vadd.f32 0.0, %v5375
  %v5377 = vpop.f32.mrf.mxu0
  %5378 = vdwg.mxu0
  %v5379 = vld [vmem:[#allocation3] sm:$0xff]
  %v5380 = vld [vmem:[#allocation3 + $0x8] sm:$0xff]
  %v5381 = vld [vmem:[#allocation3 + $0x10] sm:$0xff]
  %v5382 = vld [vmem:[#allocation3 + $0x18] sm:$0xff]
  %v5383 = vld [vmem:[#allocation3 + $0x20] sm:$0xff]
  %v5384 = vld [vmem:[#allocation3 + $0x28] sm:$0xff]
  %v5385 = vld [vmem:[#allocation3 + $0x30] sm:$0xff]
  %v5386 = vld [vmem:[#allocation3 + $0x38] sm:$0xff]
  %v5387 = vld [vmem:[#allocation3 + $0x40] sm:$0xff]
  %v5388 = vld [vmem:[#allocation3 + $0x48] sm:$0xff]
  %v5389 = vld [vmem:[#allocation3 + $0x50] sm:$0xff]
  %v5390 = vld [vmem:[#allocation3 + $0x58] sm:$0xff]
  %v5391 = vld [vmem:[#allocation3 + $0x60] sm:$0xff]
  %v5392 = vld [vmem:[#allocation3 + $0x68] sm:$0xff]
  %v5393 = vld [vmem:[#allocation3 + $0x70] sm:$0xff]
  %v5394 = vld [vmem:[#allocation3 + $0x78] sm:$0xff]
  %v5395 = vld [vmem:[#allocation3 + $0x80] sm:$0xff]
  %v5396 = vld [vmem:[#allocation3 + $0x88] sm:$0xff]
  %v5397 = vld [vmem:[#allocation3 + $0x90] sm:$0xff]
  %v5398 = vld [vmem:[#allocation3 + $0x98] sm:$0xff]
  %v5399 = vld [vmem:[#allocation3 + $0xa0] sm:$0xff]
  %v5400 = vld [vmem:[#allocation3 + $0xa8] sm:$0xff]
  %v5401 = vld [vmem:[#allocation3 + $0xb0] sm:$0xff]
  %v5402 = vld [vmem:[#allocation3 + $0xb8] sm:$0xff]
  %v5403 = vld [vmem:[#allocation3 + $0xc0] sm:$0xff]
  %v5404 = vld [vmem:[#allocation3 + $0xc8] sm:$0xff]
  %v5405 = vld [vmem:[#allocation3 + $0xd0] sm:$0xff]
  %v5406 = vld [vmem:[#allocation3 + $0xd8] sm:$0xff]
  %v5407 = vld [vmem:[#allocation3 + $0xe0] sm:$0xff]
  %v5408 = vld [vmem:[#allocation3 + $0xe8] sm:$0xff]
  %v5409 = vld [vmem:[#allocation3 + $0xf0] sm:$0xff]
  %v5410 = vld [vmem:[#allocation3 + $0xf8] sm:$0xff]
  %v5411 = vadd.f32 %v5379, %v5253
  %v5412 = vadd.f32 %v5380, %v5256
  %v5413 = vadd.f32 %v5381, %v5261
  %v5414 = vadd.f32 %v5382, %v5264
  %v5415 = vadd.f32 %v5383, %v5269
  %v5416 = vadd.f32 %v5384, %v5272
  %v5417 = vadd.f32 %v5385, %v5277
  %v5418 = vadd.f32 %v5386, %v5280
  %v5419 = vadd.f32 %v5387, %v5285
  %v5420 = vadd.f32 %v5388, %v5288
  %v5421 = vadd.f32 %v5389, %v5293
  %v5422 = vadd.f32 %v5390, %v5296
  %v5423 = vadd.f32 %v5391, %v5301
  %v5424 = vadd.f32 %v5392, %v5304
  %v5425 = vadd.f32 %v5393, %v5309
  %v5426 = vadd.f32 %v5394, %v5312
  %v5427 = vadd.f32 %v5395, %v5317
  %v5428 = vadd.f32 %v5396, %v5320
  %v5429 = vadd.f32 %v5397, %v5325
  %v5430 = vadd.f32 %v5398, %v5328
  %v5431 = vadd.f32 %v5399, %v5333
  %v5432 = vadd.f32 %v5400, %v5336
  %v5433 = vadd.f32 %v5401, %v5341
  %v5434 = vadd.f32 %v5402, %v5344
  %v5435 = vadd.f32 %v5403, %v5349
  %v5436 = vadd.f32 %v5404, %v5352
  %v5437 = vadd.f32 %v5405, %v5357
  %v5438 = vadd.f32 %v5406, %v5360
  %v5439 = vadd.f32 %v5407, %v5365
  %v5440 = vadd.f32 %v5408, %v5368
  %v5441 = vadd.f32 %v5409, %v5373
  %v5442 = vadd.f32 %v5410, %v5376
  %5443 = vst [vmem:[#allocation3] sm:$0xff] %v5411
  %5444 = vst [vmem:[#allocation3 + $0x8] sm:$0xff] %v5412
  %5445 = vst [vmem:[#allocation3 + $0x10] sm:$0xff] %v5413
  %5446 = vst [vmem:[#allocation3 + $0x18] sm:$0xff] %v5414
  %5447 = vst [vmem:[#allocation3 + $0x20] sm:$0xff] %v5415
  %5448 = vst [vmem:[#allocation3 + $0x28] sm:$0xff] %v5416
  %5449 = vst [vmem:[#allocation3 + $0x30] sm:$0xff] %v5417
  %5450 = vst [vmem:[#allocation3 + $0x38] sm:$0xff] %v5418
  %5451 = vst [vmem:[#allocation3 + $0x40] sm:$0xff] %v5419
  %5452 = vst [vmem:[#allocation3 + $0x48] sm:$0xff] %v5420
  %5453 = vst [vmem:[#allocation3 + $0x50] sm:$0xff] %v5421
  %5454 = vst [vmem:[#allocation3 + $0x58] sm:$0xff] %v5422
  %5455 = vst [vmem:[#allocation3 + $0x60] sm:$0xff] %v5423
  %5456 = vst [vmem:[#allocation3 + $0x68] sm:$0xff] %v5424
  %5457 = vst [vmem:[#allocation3 + $0x70] sm:$0xff] %v5425
  %5458 = vst [vmem:[#allocation3 + $0x78] sm:$0xff] %v5426
  %5459 = vst [vmem:[#allocation3 + $0x80] sm:$0xff] %v5427
  %5460 = vst [vmem:[#allocation3 + $0x88] sm:$0xff] %v5428
  %5461 = vst [vmem:[#allocation3 + $0x90] sm:$0xff] %v5429
  %5462 = vst [vmem:[#allocation3 + $0x98] sm:$0xff] %v5430
  %5463 = vst [vmem:[#allocation3 + $0xa0] sm:$0xff] %v5431
  %5464 = vst [vmem:[#allocation3 + $0xa8] sm:$0xff] %v5432
  %5465 = vst [vmem:[#allocation3 + $0xb0] sm:$0xff] %v5433
  %5466 = vst [vmem:[#allocation3 + $0xb8] sm:$0xff] %v5434
  %5467 = vst [vmem:[#allocation3 + $0xc0] sm:$0xff] %v5435
  %5468 = vst [vmem:[#allocation3 + $0xc8] sm:$0xff] %v5436
  %5469 = vst [vmem:[#allocation3 + $0xd0] sm:$0xff] %v5437
  %5470 = vst [vmem:[#allocation3 + $0xd8] sm:$0xff] %v5438
  %5471 = vst [vmem:[#allocation3 + $0xe0] sm:$0xff] %v5439
  %5472 = vst [vmem:[#allocation3 + $0xe8] sm:$0xff] %v5440
  %5473 = vst [vmem:[#allocation3 + $0xf0] sm:$0xff] %v5441
  %5474 = vst [vmem:[#allocation3 + $0xf8] sm:$0xff] %v5442
  %v5475 = vld [vmem:[%s4208] sm:$0xe]
  %v5476 = vld [vmem:[%s4208 + $0x4] sm:$0xf]
  %v5477 = vld [vmem:[%s4208 + $0x8] sm:$0x1]
  %v5478 = vld [vmem:[%s4208 + $0xc] sm:$0xe]
  %v5479 = vld [vmem:[%s4208 + $0x10] sm:$0xf]
  %v5480 = vld [vmem:[%s4208 + $0x14] sm:$0x1]
  %v5481 = vld [vmem:[%s4208 + $0x18] sm:$0xe]
  %v5482 = vld [vmem:[%s4208 + $0x1c] sm:$0xf]
  %v5483 = vld [vmem:[%s4208 + $0x20] sm:$0x1]
  %v5484 = vld [vmem:[%s4208 + $0x24] sm:$0xe]
  %v5485 = vld [vmem:[%s4208 + $0x28] sm:$0xf]
  %v5486 = vld [vmem:[%s4208 + $0x2c] sm:$0x1]
  %v5487 = vld [vmem:[%s4208 + $0x30] sm:$0xe]
  %v5488 = vld [vmem:[%s4208 + $0x34] sm:$0xf]
  %v5489 = vld [vmem:[%s4208 + $0x38] sm:$0x1]
  %v5490 = vld [vmem:[%s4208 + $0x3c] sm:$0xe]
  %v5491 = vld [vmem:[%s4208 + $0x40] sm:$0xf]
  %v5492 = vld [vmem:[%s4208 + $0x44] sm:$0x1]
  %v5493 = vld [vmem:[%s4208 + $0x48] sm:$0xe]
  %v5494 = vld [vmem:[%s4208 + $0x4c] sm:$0xf]
  %v5495 = vld [vmem:[%s4208 + $0x50] sm:$0x1]
  %v5496 = vld [vmem:[%s4208 + $0x54] sm:$0xe]
  %v5497 = vld [vmem:[%s4208 + $0x58] sm:$0xf]
  %v5498 = vld [vmem:[%s4208 + $0x5c] sm:$0x1]
  %v5499 = vld [vmem:[%s4208 + $0x60] sm:$0xe]
  %v5500 = vld [vmem:[%s4208 + $0x64] sm:$0xf]
  %v5501 = vld [vmem:[%s4208 + $0x68] sm:$0x1]
  %v5502 = vld [vmem:[%s4208 + $0x6c] sm:$0xe]
  %v5503 = vld [vmem:[%s4208 + $0x70] sm:$0xf]
  %v5504 = vld [vmem:[%s4208 + $0x74] sm:$0x1]
  %v5505 = vld [vmem:[%s4208 + $0x78] sm:$0xe]
  %v5506 = vld [vmem:[%s4208 + $0x7c] sm:$0xf]
  %v5507 = vld [vmem:[%s4208 + $0x80] sm:$0x1]
  %v5508 = vld [vmem:[%s4208 + $0x84] sm:$0xe]
  %v5509 = vld [vmem:[%s4208 + $0x88] sm:$0xf]
  %v5510 = vld [vmem:[%s4208 + $0x8c] sm:$0x1]
  %v5511 = vld [vmem:[%s4208 + $0x90] sm:$0xe]
  %v5512 = vld [vmem:[%s4208 + $0x94] sm:$0xf]
  %v5513 = vld [vmem:[%s4208 + $0x98] sm:$0x1]
  %v5514 = vld [vmem:[%s4208 + $0x9c] sm:$0xe]
  %v5515 = vld [vmem:[%s4208 + $0xa0] sm:$0xf]
  %v5516 = vld [vmem:[%s4208 + $0xa4] sm:$0x1]
  %v5517 = vld [vmem:[%s4208 + $0xa8] sm:$0xe]
  %v5518 = vld [vmem:[%s4208 + $0xac] sm:$0xf]
  %v5519 = vld [vmem:[%s4208 + $0xb0] sm:$0x1]
  %v5520 = vld [vmem:[%s4208 + $0xb4] sm:$0xe]
  %v5521 = vld [vmem:[%s4208 + $0xb8] sm:$0xf]
  %v5522 = vld [vmem:[%s4208 + $0xbc] sm:$0x1]
  %v5571 = vrot.slane %v5475, 5
  %v5572 = vrot.slane %v5571, 4
  %v5573 = vrot.slane %v5476, 5
  %v5574 = vsel %vm1851, %v5572, %v5573
  %v5575 = vrot.slane %v5573, 4
  %v5576 = vrot.slane %v5477, 5
  %v5577 = vsel %vm1851, %v5575, %v5576
  %v5578 = vrot.slane %v5478, 5
  %v5579 = vrot.slane %v5578, 4
  %v5580 = vrot.slane %v5479, 5
  %v5581 = vsel %vm1851, %v5579, %v5580
  %v5582 = vrot.slane %v5580, 4
  %v5583 = vrot.slane %v5480, 5
  %v5584 = vsel %vm1851, %v5582, %v5583
  %v5585 = vrot.slane %v5481, 5
  %v5586 = vrot.slane %v5585, 4
  %v5587 = vrot.slane %v5482, 5
  %v5588 = vsel %vm1851, %v5586, %v5587
  %v5589 = vrot.slane %v5587, 4
  %v5590 = vrot.slane %v5483, 5
  %v5591 = vsel %vm1851, %v5589, %v5590
  %v5592 = vrot.slane %v5484, 5
  %v5593 = vrot.slane %v5592, 4
  %v5594 = vrot.slane %v5485, 5
  %v5595 = vsel %vm1851, %v5593, %v5594
  %v5596 = vrot.slane %v5594, 4
  %v5597 = vrot.slane %v5486, 5
  %v5598 = vsel %vm1851, %v5596, %v5597
  %v5599 = vrot.slane %v5487, 5
  %v5600 = vrot.slane %v5599, 4
  %v5601 = vrot.slane %v5488, 5
  %v5602 = vsel %vm1851, %v5600, %v5601
  %v5603 = vrot.slane %v5601, 4
  %v5604 = vrot.slane %v5489, 5
  %v5605 = vsel %vm1851, %v5603, %v5604
  %v5606 = vrot.slane %v5490, 5
  %v5607 = vrot.slane %v5606, 4
  %v5608 = vrot.slane %v5491, 5
  %v5609 = vsel %vm1851, %v5607, %v5608
  %v5610 = vrot.slane %v5608, 4
  %v5611 = vrot.slane %v5492, 5
  %v5612 = vsel %vm1851, %v5610, %v5611
  %v5613 = vrot.slane %v5493, 5
  %v5614 = vrot.slane %v5613, 4
  %v5615 = vrot.slane %v5494, 5
  %v5616 = vsel %vm1851, %v5614, %v5615
  %v5617 = vrot.slane %v5615, 4
  %v5618 = vrot.slane %v5495, 5
  %v5619 = vsel %vm1851, %v5617, %v5618
  %v5620 = vrot.slane %v5496, 5
  %v5621 = vrot.slane %v5620, 4
  %v5622 = vrot.slane %v5497, 5
  %v5623 = vsel %vm1851, %v5621, %v5622
  %v5624 = vrot.slane %v5622, 4
  %v5625 = vrot.slane %v5498, 5
  %v5626 = vsel %vm1851, %v5624, %v5625
  %v5627 = vrot.slane %v5499, 5
  %v5628 = vrot.slane %v5627, 4
  %v5629 = vrot.slane %v5500, 5
  %v5630 = vsel %vm1851, %v5628, %v5629
  %v5631 = vrot.slane %v5629, 4
  %v5632 = vrot.slane %v5501, 5
  %v5633 = vsel %vm1851, %v5631, %v5632
  %v5634 = vrot.slane %v5502, 5
  %v5635 = vrot.slane %v5634, 4
  %v5636 = vrot.slane %v5503, 5
  %v5637 = vsel %vm1851, %v5635, %v5636
  %v5638 = vrot.slane %v5636, 4
  %v5639 = vrot.slane %v5504, 5
  %v5640 = vsel %vm1851, %v5638, %v5639
  %v5641 = vrot.slane %v5505, 5
  %v5642 = vrot.slane %v5641, 4
  %v5643 = vrot.slane %v5506, 5
  %v5644 = vsel %vm1851, %v5642, %v5643
  %v5645 = vrot.slane %v5643, 4
  %v5646 = vrot.slane %v5507, 5
  %v5647 = vsel %vm1851, %v5645, %v5646
  %v5648 = vrot.slane %v5508, 5
  %v5649 = vrot.slane %v5648, 4
  %v5650 = vrot.slane %v5509, 5
  %v5651 = vsel %vm1851, %v5649, %v5650
  %v5652 = vrot.slane %v5650, 4
  %v5653 = vrot.slane %v5510, 5
  %v5654 = vsel %vm1851, %v5652, %v5653
  %v5655 = vrot.slane %v5511, 5
  %v5656 = vrot.slane %v5655, 4
  %v5657 = vrot.slane %v5512, 5
  %v5658 = vsel %vm1851, %v5656, %v5657
  %v5659 = vrot.slane %v5657, 4
  %v5660 = vrot.slane %v5513, 5
  %v5661 = vsel %vm1851, %v5659, %v5660
  %v5662 = vrot.slane %v5514, 5
  %v5663 = vrot.slane %v5662, 4
  %v5664 = vrot.slane %v5515, 5
  %v5665 = vsel %vm1851, %v5663, %v5664
  %v5666 = vrot.slane %v5664, 4
  %v5667 = vrot.slane %v5516, 5
  %v5668 = vsel %vm1851, %v5666, %v5667
  %v5669 = vrot.slane %v5517, 5
  %v5670 = vrot.slane %v5669, 4
  %v5671 = vrot.slane %v5518, 5
  %v5672 = vsel %vm1851, %v5670, %v5671
  %v5673 = vrot.slane %v5671, 4
  %v5674 = vrot.slane %v5519, 5
  %v5675 = vsel %vm1851, %v5673, %v5674
  %v5676 = vrot.slane %v5520, 5
  %v5677 = vrot.slane %v5676, 4
  %v5678 = vrot.slane %v5521, 5
  %v5679 = vsel %vm1851, %v5677, %v5678
  %v5680 = vrot.slane %v5678, 4
  %v5681 = vrot.slane %v5522, 5
  %v5682 = vsel %vm1851, %v5680, %v5681
  %v5683 = vld [vmem:[%s1 + $0x200] sm:$0xf]
  %v5684 = vld [vmem:[%s1 + $0x204] sm:$0xf]
  %v5685 = vld [vmem:[%s1 + $0x208] sm:$0xf]
  %v5686 = vld [vmem:[%s1 + $0x20c] sm:$0xf]
  %v5687 = vld [vmem:[%s1 + $0x210] sm:$0xf]
  %v5688 = vld [vmem:[%s1 + $0x214] sm:$0xf]
  %v5689 = vld [vmem:[%s1 + $0x218] sm:$0xf]
  %v5690 = vld [vmem:[%s1 + $0x21c] sm:$0xf]
  %v5691 = vld [vmem:[%s1 + $0x220] sm:$0xf]
  %v5692 = vld [vmem:[%s1 + $0x224] sm:$0xf]
  %v5693 = vld [vmem:[%s1 + $0x228] sm:$0xf]
  %v5694 = vld [vmem:[%s1 + $0x22c] sm:$0xf]
  %v5695 = vld [vmem:[%s1 + $0x230] sm:$0xf]
  %v5696 = vld [vmem:[%s1 + $0x234] sm:$0xf]
  %v5697 = vld [vmem:[%s1 + $0x238] sm:$0xf]
  %v5698 = vld [vmem:[%s1 + $0x23c] sm:$0xf]
  %v5699 = vunpack.c.l.b16 %v5574
  %v5700 = vunpack.c.l.b16 %v5577
  %v5701 = vunpack.c.l.b16 %v5581
  %v5702 = vunpack.c.l.b16 %v5584
  %v5703 = vunpack.c.l.b16 %v5588
  %v5704 = vunpack.c.l.b16 %v5591
  %v5705 = vunpack.c.l.b16 %v5595
  %v5706 = vunpack.c.l.b16 %v5598
  %v5707 = vunpack.c.l.b16 %v5602
  %v5708 = vunpack.c.l.b16 %v5605
  %v5709 = vunpack.c.l.b16 %v5609
  %v5710 = vunpack.c.l.b16 %v5612
  %v5711 = vunpack.c.l.b16 %v5616
  %v5712 = vunpack.c.l.b16 %v5619
  %v5713 = vunpack.c.l.b16 %v5623
  %v5714 = vunpack.c.l.b16 %v5626
  %v5715 = vunpack.c.l.b16 %v5630
  %v5716 = vunpack.c.l.b16 %v5633
  %v5717 = vunpack.c.l.b16 %v5637
  %v5718 = vunpack.c.l.b16 %v5640
  %v5719 = vunpack.c.l.b16 %v5644
  %v5720 = vunpack.c.l.b16 %v5647
  %v5721 = vunpack.c.l.b16 %v5651
  %v5722 = vunpack.c.l.b16 %v5654
  %v5723 = vunpack.c.l.b16 %v5658
  %v5724 = vunpack.c.l.b16 %v5661
  %v5725 = vunpack.c.l.b16 %v5665
  %v5726 = vunpack.c.l.b16 %v5668
  %v5727 = vunpack.c.l.b16 %v5672
  %v5728 = vunpack.c.l.b16 %v5675
  %v5729 = vunpack.c.l.b16 %v5679
  %v5730 = vunpack.c.l.b16 %v5682
  %v5731 = vpack.c.b16 %v5700, %v5699
  %v5732 = vpack.c.b16 %v5702, %v5701
  %v5733 = vpack.c.b16 %v5704, %v5703
  %v5734 = vpack.c.b16 %v5706, %v5705
  %v5735 = vpack.c.b16 %v5708, %v5707
  %v5736 = vpack.c.b16 %v5710, %v5709
  %v5737 = vpack.c.b16 %v5712, %v5711
  %v5738 = vpack.c.b16 %v5714, %v5713
  %v5739 = vpack.c.b16 %v5716, %v5715
  %v5740 = vpack.c.b16 %v5718, %v5717
  %v5741 = vpack.c.b16 %v5720, %v5719
  %v5742 = vpack.c.b16 %v5722, %v5721
  %v5743 = vpack.c.b16 %v5724, %v5723
  %v5744 = vpack.c.b16 %v5726, %v5725
  %v5745 = vpack.c.b16 %v5728, %v5727
  %v5746 = vpack.c.b16 %v5730, %v5729
  %v5779 = vunpack.c.l.b16 %v5683
  %v5780 = vunpack.c.l.b16 %v5684
  %v5781 = vunpack.c.l.b16 %v5685
  %v5782 = vunpack.c.l.b16 %v5686
  %v5783 = vunpack.c.l.b16 %v5687
  %v5784 = vunpack.c.l.b16 %v5688
  %v5785 = vunpack.c.l.b16 %v5689
  %v5786 = vunpack.c.l.b16 %v5690
  %v5787 = vunpack.c.l.b16 %v5691
  %v5788 = vunpack.c.l.b16 %v5692
  %v5789 = vunpack.c.l.b16 %v5693
  %v5790 = vunpack.c.l.b16 %v5694
  %v5791 = vunpack.c.l.b16 %v5695
  %v5792 = vunpack.c.l.b16 %v5696
  %v5793 = vunpack.c.l.b16 %v5697
  %v5794 = vunpack.c.l.b16 %v5698
  %v5795 = vpack.c.b16 %v5780, %v5779
  %v5796 = vpack.c.b16 %v5782, %v5781
  %v5797 = vpack.c.b16 %v5784, %v5783
  %v5798 = vpack.c.b16 %v5786, %v5785
  %v5799 = vpack.c.b16 %v5788, %v5787
  %v5800 = vpack.c.b16 %v5790, %v5789
  %v5801 = vpack.c.b16 %v5792, %v5791
  %v5802 = vpack.c.b16 %v5794, %v5793
  %5811 = vmatprep.subr.bf16.mxu0 0
  %5812 = vmatpush1.bf16.msra.mxu0 %v5802
  %5813 = vmatprep.subr.bf16.mxu0 0
  %5814 = vmatpush1.bf16.msra.mxu0 %v5801
  %5815 = vmatprep.subr.bf16.mxu0 0
  %5816 = vmatpush1.bf16.msra.mxu0 %v5800
  %5817 = vmatprep.subr.bf16.mxu0 0
  %5818 = vmatpush1.bf16.msra.mxu0 %v5799
  %5819 = vmatprep.subr.bf16.mxu0 0
  %5820 = vmatpush1.bf16.msra.mxu0 %v5798
  %5821 = vmatprep.subr.bf16.mxu0 0
  %5822 = vmatpush1.bf16.msra.mxu0 %v5797
  %5823 = vmatprep.subr.bf16.mxu0 0
  %5824 = vmatpush1.bf16.msra.mxu0 %v5796
  %5825 = vmatprep.subr.bf16.mxu0 0
  %5826 = vmatpush1.bf16.msra.mxu0 %v5795
  %5827 = vmatprep.subr.bf16.mxu0 0
  %5828 = vmatpush2.bf16.msra.mxu0 0
  %5829 = vmatprep.subr.bf16.mxu0 0
  %5830 = vmatpush2.bf16.msra.mxu0 0
  %5831 = vmatprep.subr.bf16.mxu0 0
  %5832 = vmatpush2.bf16.msra.mxu0 0
  %5833 = vmatprep.subr.bf16.mxu0 0
  %5834 = vmatpush2.bf16.msra.mxu0 0
  %5835 = vmatprep.subr.bf16.mxu0 0
  %5836 = vmatpush2.bf16.msra.mxu0 0
  %5837 = vmatprep.subr.bf16.mxu0 0
  %5838 = vmatpush2.bf16.msra.mxu0 0
  %5839 = vmatprep.subr.bf16.mxu0 0
  %5840 = vmatpush2.bf16.msra.mxu0 0
  %5841 = vmatprep.subr.bf16.mxu0 0
  %5842 = vmatpush2.bf16.msra.mxu0 0
  %5843 = vmatprep.mubr.bf16.mxu0 0
  %5844 = vmatmul.mubr.bf16.gmra.mxu0 %v5731
  %v5845 = vpop.f32.mrf.mxu0
  %v5846 = vadd.f32 0.0, %v5845
  %v5847 = vpop.f32.mrf.mxu0
  %v5848 = vpop.f32.mrf.mxu0
  %v5849 = vadd.f32 0.0, %v5848
  %v5850 = vpop.f32.mrf.mxu0
  %5851 = vmatprep.mubr.bf16.mxu0 0
  %5852 = vmatmul.mubr.bf16.gmra.mxu0 %v5732
  %v5853 = vpop.f32.mrf.mxu0
  %v5854 = vadd.f32 0.0, %v5853
  %v5855 = vpop.f32.mrf.mxu0
  %v5856 = vpop.f32.mrf.mxu0
  %v5857 = vadd.f32 0.0, %v5856
  %v5858 = vpop.f32.mrf.mxu0
  %5859 = vmatprep.mubr.bf16.mxu0 0
  %5860 = vmatmul.mubr.bf16.gmra.mxu0 %v5733
  %v5861 = vpop.f32.mrf.mxu0
  %v5862 = vadd.f32 0.0, %v5861
  %v5863 = vpop.f32.mrf.mxu0
  %v5864 = vpop.f32.mrf.mxu0
  %v5865 = vadd.f32 0.0, %v5864
  %v5866 = vpop.f32.mrf.mxu0
  %5867 = vmatprep.mubr.bf16.mxu0 0
  %5868 = vmatmul.mubr.bf16.gmra.mxu0 %v5734
  %v5869 = vpop.f32.mrf.mxu0
  %v5870 = vadd.f32 0.0, %v5869
  %v5871 = vpop.f32.mrf.mxu0
  %v5872 = vpop.f32.mrf.mxu0
  %v5873 = vadd.f32 0.0, %v5872
  %v5874 = vpop.f32.mrf.mxu0
  %5875 = vmatprep.mubr.bf16.mxu0 0
  %5876 = vmatmul.mubr.bf16.gmra.mxu0 %v5735
  %v5877 = vpop.f32.mrf.mxu0
  %v5878 = vadd.f32 0.0, %v5877
  %v5879 = vpop.f32.mrf.mxu0
  %v5880 = vpop.f32.mrf.mxu0
  %v5881 = vadd.f32 0.0, %v5880
  %v5882 = vpop.f32.mrf.mxu0
  %5883 = vmatprep.mubr.bf16.mxu0 0
  %5884 = vmatmul.mubr.bf16.gmra.mxu0 %v5736
  %v5885 = vpop.f32.mrf.mxu0
  %v5886 = vadd.f32 0.0, %v5885
  %v5887 = vpop.f32.mrf.mxu0
  %v5888 = vpop.f32.mrf.mxu0
  %v5889 = vadd.f32 0.0, %v5888
  %v5890 = vpop.f32.mrf.mxu0
  %5891 = vmatprep.mubr.bf16.mxu0 0
  %5892 = vmatmul.mubr.bf16.gmra.mxu0 %v5737
  %v5893 = vpop.f32.mrf.mxu0
  %v5894 = vadd.f32 0.0, %v5893
  %v5895 = vpop.f32.mrf.mxu0
  %v5896 = vpop.f32.mrf.mxu0
  %v5897 = vadd.f32 0.0, %v5896
  %v5898 = vpop.f32.mrf.mxu0
  %5899 = vmatprep.mubr.bf16.mxu0 0
  %5900 = vmatmul.mubr.bf16.gmra.mxu0 %v5738
  %v5901 = vpop.f32.mrf.mxu0
  %v5902 = vadd.f32 0.0, %v5901
  %v5903 = vpop.f32.mrf.mxu0
  %v5904 = vpop.f32.mrf.mxu0
  %v5905 = vadd.f32 0.0, %v5904
  %v5906 = vpop.f32.mrf.mxu0
  %5907 = vmatprep.mubr.bf16.mxu0 0
  %5908 = vmatmul.mubr.bf16.gmra.mxu0 %v5739
  %v5909 = vpop.f32.mrf.mxu0
  %v5910 = vadd.f32 0.0, %v5909
  %v5911 = vpop.f32.mrf.mxu0
  %v5912 = vpop.f32.mrf.mxu0
  %v5913 = vadd.f32 0.0, %v5912
  %v5914 = vpop.f32.mrf.mxu0
  %5915 = vmatprep.mubr.bf16.mxu0 0
  %5916 = vmatmul.mubr.bf16.gmra.mxu0 %v5740
  %v5917 = vpop.f32.mrf.mxu0
  %v5918 = vadd.f32 0.0, %v5917
  %v5919 = vpop.f32.mrf.mxu0
  %v5920 = vpop.f32.mrf.mxu0
  %v5921 = vadd.f32 0.0, %v5920
  %v5922 = vpop.f32.mrf.mxu0
  %5923 = vmatprep.mubr.bf16.mxu0 0
  %5924 = vmatmul.mubr.bf16.gmra.mxu0 %v5741
  %v5925 = vpop.f32.mrf.mxu0
  %v5926 = vadd.f32 0.0, %v5925
  %v5927 = vpop.f32.mrf.mxu0
  %v5928 = vpop.f32.mrf.mxu0
  %v5929 = vadd.f32 0.0, %v5928
  %v5930 = vpop.f32.mrf.mxu0
  %5931 = vmatprep.mubr.bf16.mxu0 0
  %5932 = vmatmul.mubr.bf16.gmra.mxu0 %v5742
  %v5933 = vpop.f32.mrf.mxu0
  %v5934 = vadd.f32 0.0, %v5933
  %v5935 = vpop.f32.mrf.mxu0
  %v5936 = vpop.f32.mrf.mxu0
  %v5937 = vadd.f32 0.0, %v5936
  %v5938 = vpop.f32.mrf.mxu0
  %5939 = vmatprep.mubr.bf16.mxu0 0
  %5940 = vmatmul.mubr.bf16.gmra.mxu0 %v5743
  %v5941 = vpop.f32.mrf.mxu0
  %v5942 = vadd.f32 0.0, %v5941
  %v5943 = vpop.f32.mrf.mxu0
  %v5944 = vpop.f32.mrf.mxu0
  %v5945 = vadd.f32 0.0, %v5944
  %v5946 = vpop.f32.mrf.mxu0
  %5947 = vmatprep.mubr.bf16.mxu0 0
  %5948 = vmatmul.mubr.bf16.gmra.mxu0 %v5744
  %v5949 = vpop.f32.mrf.mxu0
  %v5950 = vadd.f32 0.0, %v5949
  %v5951 = vpop.f32.mrf.mxu0
  %v5952 = vpop.f32.mrf.mxu0
  %v5953 = vadd.f32 0.0, %v5952
  %v5954 = vpop.f32.mrf.mxu0
  %5955 = vmatprep.mubr.bf16.mxu0 0
  %5956 = vmatmul.mubr.bf16.gmra.mxu0 %v5745
  %v5957 = vpop.f32.mrf.mxu0
  %v5958 = vadd.f32 0.0, %v5957
  %v5959 = vpop.f32.mrf.mxu0
  %v5960 = vpop.f32.mrf.mxu0
  %v5961 = vadd.f32 0.0, %v5960
  %v5962 = vpop.f32.mrf.mxu0
  %5963 = vmatprep.mubr.bf16.mxu0 0
  %5964 = vmatmul.mubr.bf16.gmra.mxu0 %v5746
  %v5965 = vpop.f32.mrf.mxu0
  %v5966 = vadd.f32 0.0, %v5965
  %v5967 = vpop.f32.mrf.mxu0
  %v5968 = vpop.f32.mrf.mxu0
  %v5969 = vadd.f32 0.0, %v5968
  %v5970 = vpop.f32.mrf.mxu0
  %5971 = vdwg.mxu0
  %v5972 = vld [vmem:[#allocation3] sm:$0xff]
  %v5973 = vld [vmem:[#allocation3 + $0x8] sm:$0xff]
  %v5974 = vld [vmem:[#allocation3 + $0x10] sm:$0xff]
  %v5975 = vld [vmem:[#allocation3 + $0x18] sm:$0xff]
  %v5976 = vld [vmem:[#allocation3 + $0x20] sm:$0xff]
  %v5977 = vld [vmem:[#allocation3 + $0x28] sm:$0xff]
  %v5978 = vld [vmem:[#allocation3 + $0x30] sm:$0xff]
  %v5979 = vld [vmem:[#allocation3 + $0x38] sm:$0xff]
  %v5980 = vld [vmem:[#allocation3 + $0x40] sm:$0xff]
  %v5981 = vld [vmem:[#allocation3 + $0x48] sm:$0xff]
  %v5982 = vld [vmem:[#allocation3 + $0x50] sm:$0xff]
  %v5983 = vld [vmem:[#allocation3 + $0x58] sm:$0xff]
  %v5984 = vld [vmem:[#allocation3 + $0x60] sm:$0xff]
  %v5985 = vld [vmem:[#allocation3 + $0x68] sm:$0xff]
  %v5986 = vld [vmem:[#allocation3 + $0x70] sm:$0xff]
  %v5987 = vld [vmem:[#allocation3 + $0x78] sm:$0xff]
  %v5988 = vld [vmem:[#allocation3 + $0x80] sm:$0xff]
  %v5989 = vld [vmem:[#allocation3 + $0x88] sm:$0xff]
  %v5990 = vld [vmem:[#allocation3 + $0x90] sm:$0xff]
  %v5991 = vld [vmem:[#allocation3 + $0x98] sm:$0xff]
  %v5992 = vld [vmem:[#allocation3 + $0xa0] sm:$0xff]
  %v5993 = vld [vmem:[#allocation3 + $0xa8] sm:$0xff]
  %v5994 = vld [vmem:[#allocation3 + $0xb0] sm:$0xff]
  %v5995 = vld [vmem:[#allocation3 + $0xb8] sm:$0xff]
  %v5996 = vld [vmem:[#allocation3 + $0xc0] sm:$0xff]
  %v5997 = vld [vmem:[#allocation3 + $0xc8] sm:$0xff]
  %v5998 = vld [vmem:[#allocation3 + $0xd0] sm:$0xff]
  %v5999 = vld [vmem:[#allocation3 + $0xd8] sm:$0xff]
  %v6000 = vld [vmem:[#allocation3 + $0xe0] sm:$0xff]
  %v6001 = vld [vmem:[#allocation3 + $0xe8] sm:$0xff]
  %v6002 = vld [vmem:[#allocation3 + $0xf0] sm:$0xff]
  %v6003 = vld [vmem:[#allocation3 + $0xf8] sm:$0xff]
  %v6004 = vadd.f32 %v5972, %v5846
  %v6005 = vadd.f32 %v5973, %v5849
  %v6006 = vadd.f32 %v5974, %v5854
  %v6007 = vadd.f32 %v5975, %v5857
  %v6008 = vadd.f32 %v5976, %v5862
  %v6009 = vadd.f32 %v5977, %v5865
  %v6010 = vadd.f32 %v5978, %v5870
  %v6011 = vadd.f32 %v5979, %v5873
  %v6012 = vadd.f32 %v5980, %v5878
  %v6013 = vadd.f32 %v5981, %v5881
  %v6014 = vadd.f32 %v5982, %v5886
  %v6015 = vadd.f32 %v5983, %v5889
  %v6016 = vadd.f32 %v5984, %v5894
  %v6017 = vadd.f32 %v5985, %v5897
  %v6018 = vadd.f32 %v5986, %v5902
  %v6019 = vadd.f32 %v5987, %v5905
  %v6020 = vadd.f32 %v5988, %v5910
  %v6021 = vadd.f32 %v5989, %v5913
  %v6022 = vadd.f32 %v5990, %v5918
  %v6023 = vadd.f32 %v5991, %v5921
  %v6024 = vadd.f32 %v5992, %v5926
  %v6025 = vadd.f32 %v5993, %v5929
  %v6026 = vadd.f32 %v5994, %v5934
  %v6027 = vadd.f32 %v5995, %v5937
  %v6028 = vadd.f32 %v5996, %v5942
  %v6029 = vadd.f32 %v5997, %v5945
  %v6030 = vadd.f32 %v5998, %v5950
  %v6031 = vadd.f32 %v5999, %v5953
  %v6032 = vadd.f32 %v6000, %v5958
  %v6033 = vadd.f32 %v6001, %v5961
  %v6034 = vadd.f32 %v6002, %v5966
  %v6035 = vadd.f32 %v6003, %v5969
  %6036 = vst [vmem:[#allocation3] sm:$0xff] %v6004
  %6037 = vst [vmem:[#allocation3 + $0x8] sm:$0xff] %v6005
  %6038 = vst [vmem:[#allocation3 + $0x10] sm:$0xff] %v6006
  %6039 = vst [vmem:[#allocation3 + $0x18] sm:$0xff] %v6007
  %6040 = vst [vmem:[#allocation3 + $0x20] sm:$0xff] %v6008
  %6041 = vst [vmem:[#allocation3 + $0x28] sm:$0xff] %v6009
  %6042 = vst [vmem:[#allocation3 + $0x30] sm:$0xff] %v6010
  %6043 = vst [vmem:[#allocation3 + $0x38] sm:$0xff] %v6011
  %6044 = vst [vmem:[#allocation3 + $0x40] sm:$0xff] %v6012
  %6045 = vst [vmem:[#allocation3 + $0x48] sm:$0xff] %v6013
  %6046 = vst [vmem:[#allocation3 + $0x50] sm:$0xff] %v6014
  %6047 = vst [vmem:[#allocation3 + $0x58] sm:$0xff] %v6015
  %6048 = vst [vmem:[#allocation3 + $0x60] sm:$0xff] %v6016
  %6049 = vst [vmem:[#allocation3 + $0x68] sm:$0xff] %v6017
  %6050 = vst [vmem:[#allocation3 + $0x70] sm:$0xff] %v6018
  %6051 = vst [vmem:[#allocation3 + $0x78] sm:$0xff] %v6019
  %6052 = vst [vmem:[#allocation3 + $0x80] sm:$0xff] %v6020
  %6053 = vst [vmem:[#allocation3 + $0x88] sm:$0xff] %v6021
  %6054 = vst [vmem:[#allocation3 + $0x90] sm:$0xff] %v6022
  %6055 = vst [vmem:[#allocation3 + $0x98] sm:$0xff] %v6023
  %6056 = vst [vmem:[#allocation3 + $0xa0] sm:$0xff] %v6024
  %6057 = vst [vmem:[#allocation3 + $0xa8] sm:$0xff] %v6025
  %6058 = vst [vmem:[#allocation3 + $0xb0] sm:$0xff] %v6026
  %6059 = vst [vmem:[#allocation3 + $0xb8] sm:$0xff] %v6027
  %6060 = vst [vmem:[#allocation3 + $0xc0] sm:$0xff] %v6028
  %6061 = vst [vmem:[#allocation3 + $0xc8] sm:$0xff] %v6029
  %6062 = vst [vmem:[#allocation3 + $0xd0] sm:$0xff] %v6030
  %6063 = vst [vmem:[#allocation3 + $0xd8] sm:$0xff] %v6031
  %6064 = vst [vmem:[#allocation3 + $0xe0] sm:$0xff] %v6032
  %6065 = vst [vmem:[#allocation3 + $0xe8] sm:$0xff] %v6033
  %6066 = vst [vmem:[#allocation3 + $0xf0] sm:$0xff] %v6034
  %6067 = vst [vmem:[#allocation3 + $0xf8] sm:$0xff] %v6035
  %v6068 = vld [vmem:[#allocation3] sm:$0xff]
  %v6069 = vld [vmem:[#allocation3 + $0x8] sm:$0xff]
  %v6070 = vld [vmem:[#allocation3 + $0x10] sm:$0xff]
  %v6071 = vld [vmem:[#allocation3 + $0x18] sm:$0xff]
  %v6072 = vld [vmem:[#allocation3 + $0x20] sm:$0xff]
  %v6073 = vld [vmem:[#allocation3 + $0x28] sm:$0xff]
  %v6074 = vld [vmem:[#allocation3 + $0x30] sm:$0xff]
  %v6075 = vld [vmem:[#allocation3 + $0x38] sm:$0xff]
  %v6076 = vld [vmem:[#allocation3 + $0x40] sm:$0xff]
  %v6077 = vld [vmem:[#allocation3 + $0x48] sm:$0xff]
  %v6078 = vld [vmem:[#allocation3 + $0x50] sm:$0xff]
  %v6079 = vld [vmem:[#allocation3 + $0x58] sm:$0xff]
  %v6080 = vld [vmem:[#allocation3 + $0x60] sm:$0xff]
  %v6081 = vld [vmem:[#allocation3 + $0x68] sm:$0xff]
  %v6082 = vld [vmem:[#allocation3 + $0x70] sm:$0xff]
  %v6083 = vld [vmem:[#allocation3 + $0x78] sm:$0xff]
  %v6084 = vld [vmem:[#allocation3 + $0x80] sm:$0xff]
  %v6085 = vld [vmem:[#allocation3 + $0x88] sm:$0xff]
  %v6086 = vld [vmem:[#allocation3 + $0x90] sm:$0xff]
  %v6087 = vld [vmem:[#allocation3 + $0x98] sm:$0xff]
  %v6088 = vld [vmem:[#allocation3 + $0xa0] sm:$0xff]
  %v6089 = vld [vmem:[#allocation3 + $0xa8] sm:$0xff]
  %v6090 = vld [vmem:[#allocation3 + $0xb0] sm:$0xff]
  %v6091 = vld [vmem:[#allocation3 + $0xb8] sm:$0xff]
  %v6092 = vld [vmem:[#allocation3 + $0xc0] sm:$0xff]
  %v6093 = vld [vmem:[#allocation3 + $0xc8] sm:$0xff]
  %v6094 = vld [vmem:[#allocation3 + $0xd0] sm:$0xff]
  %v6095 = vld [vmem:[#allocation3 + $0xd8] sm:$0xff]
  %v6096 = vld [vmem:[#allocation3 + $0xe0] sm:$0xff]
  %v6097 = vld [vmem:[#allocation3 + $0xe8] sm:$0xff]
  %v6098 = vld [vmem:[#allocation3 + $0xf0] sm:$0xff]
  %v6099 = vld [vmem:[#allocation3 + $0xf8] sm:$0xff]
  %v6100 = vld [vmem:[%s2] sm:$0x1]
  %v6102 = vlaneseq
  %v6103 = vshrl.u32 %v6102, 7
  %v6104 = vsub.s32 0, %v6103
  %v6105 = vrot.slane %v6100, %v6104
  %v6107 = vadd.f32 %v6068, %v6105
  %v6108 = vadd.f32 %v6069, %v6105
  %v6109 = vadd.f32 %v6070, %v6105
  %v6110 = vadd.f32 %v6071, %v6105
  %v6111 = vadd.f32 %v6072, %v6105
  %v6112 = vadd.f32 %v6073, %v6105
  %v6113 = vadd.f32 %v6074, %v6105
  %v6114 = vadd.f32 %v6075, %v6105
  %v6115 = vadd.f32 %v6076, %v6105
  %v6116 = vadd.f32 %v6077, %v6105
  %v6117 = vadd.f32 %v6078, %v6105
  %v6118 = vadd.f32 %v6079, %v6105
  %v6119 = vadd.f32 %v6080, %v6105
  %v6120 = vadd.f32 %v6081, %v6105
  %v6121 = vadd.f32 %v6082, %v6105
  %v6122 = vadd.f32 %v6083, %v6105
  %v6123 = vadd.f32 %v6084, %v6105
  %v6124 = vadd.f32 %v6085, %v6105
  %v6125 = vadd.f32 %v6086, %v6105
  %v6126 = vadd.f32 %v6087, %v6105
  %v6127 = vadd.f32 %v6088, %v6105
  %v6128 = vadd.f32 %v6089, %v6105
  %v6129 = vadd.f32 %v6090, %v6105
  %v6130 = vadd.f32 %v6091, %v6105
  %v6131 = vadd.f32 %v6092, %v6105
  %v6132 = vadd.f32 %v6093, %v6105
  %v6133 = vadd.f32 %v6094, %v6105
  %v6134 = vadd.f32 %v6095, %v6105
  %v6135 = vadd.f32 %v6096, %v6105
  %v6136 = vadd.f32 %v6097, %v6105
  %v6137 = vadd.f32 %v6098, %v6105
  %v6138 = vadd.f32 %v6099, %v6105
  %v6139 = vmax.f32 %v6107, 0.0
  %v6140 = vmax.f32 %v6108, 0.0
  %v6141 = vmax.f32 %v6109, 0.0
  %v6142 = vmax.f32 %v6110, 0.0
  %v6143 = vmax.f32 %v6111, 0.0
  %v6144 = vmax.f32 %v6112, 0.0
  %v6145 = vmax.f32 %v6113, 0.0
  %v6146 = vmax.f32 %v6114, 0.0
  %v6147 = vmax.f32 %v6115, 0.0
  %v6148 = vmax.f32 %v6116, 0.0
  %v6149 = vmax.f32 %v6117, 0.0
  %v6150 = vmax.f32 %v6118, 0.0
  %v6151 = vmax.f32 %v6119, 0.0
  %v6152 = vmax.f32 %v6120, 0.0
  %v6153 = vmax.f32 %v6121, 0.0
  %v6154 = vmax.f32 %v6122, 0.0
  %v6155 = vmax.f32 %v6123, 0.0
  %v6156 = vmax.f32 %v6124, 0.0
  %v6157 = vmax.f32 %v6125, 0.0
  %v6158 = vmax.f32 %v6126, 0.0
  %v6159 = vmax.f32 %v6127, 0.0
  %v6160 = vmax.f32 %v6128, 0.0
  %v6161 = vmax.f32 %v6129, 0.0
  %v6162 = vmax.f32 %v6130, 0.0
  %v6163 = vmax.f32 %v6131, 0.0
  %v6164 = vmax.f32 %v6132, 0.0
  %v6165 = vmax.f32 %v6133, 0.0
  %v6166 = vmax.f32 %v6134, 0.0
  %v6167 = vmax.f32 %v6135, 0.0
  %v6168 = vmax.f32 %v6136, 0.0
  %v6169 = vmax.f32 %v6137, 0.0
  %v6170 = vmax.f32 %v6138, 0.0
  %v6171 = vpack.c.bf16 %v6140, %v6139
  %v6172 = vpack.c.bf16 %v6142, %v6141
  %v6173 = vpack.c.bf16 %v6144, %v6143
  %v6174 = vpack.c.bf16 %v6146, %v6145
  %v6175 = vpack.c.bf16 %v6148, %v6147
  %v6176 = vpack.c.bf16 %v6150, %v6149
  %v6177 = vpack.c.bf16 %v6152, %v6151
  %v6178 = vpack.c.bf16 %v6154, %v6153
  %v6179 = vpack.c.bf16 %v6156, %v6155
  %v6180 = vpack.c.bf16 %v6158, %v6157
  %v6181 = vpack.c.bf16 %v6160, %v6159
  %v6182 = vpack.c.bf16 %v6162, %v6161
  %v6183 = vpack.c.bf16 %v6164, %v6163
  %v6184 = vpack.c.bf16 %v6166, %v6165
  %v6185 = vpack.c.bf16 %v6168, %v6167
  %v6186 = vpack.c.bf16 %v6170, %v6169
  %v6203 = vunpack.c.l.b16 %v6171
  %v6204 = vunpack.c.h.b16 %v6171
  %v6205 = vunpack.c.l.b16 %v6172
  %v6206 = vunpack.c.h.b16 %v6172
  %v6207 = vunpack.c.l.b16 %v6173
  %v6208 = vunpack.c.h.b16 %v6173
  %v6209 = vunpack.c.l.b16 %v6174
  %v6210 = vunpack.c.h.b16 %v6174
  %v6211 = vunpack.c.l.b16 %v6175
  %v6212 = vunpack.c.h.b16 %v6175
  %v6213 = vunpack.c.l.b16 %v6176
  %v6214 = vunpack.c.h.b16 %v6176
  %v6215 = vunpack.c.l.b16 %v6177
  %v6216 = vunpack.c.h.b16 %v6177
  %v6217 = vunpack.c.l.b16 %v6178
  %v6218 = vunpack.c.h.b16 %v6178
  %v6219 = vunpack.c.l.b16 %v6179
  %v6220 = vunpack.c.h.b16 %v6179
  %v6221 = vunpack.c.l.b16 %v6180
  %v6222 = vunpack.c.h.b16 %v6180
  %v6223 = vunpack.c.l.b16 %v6181
  %v6224 = vunpack.c.h.b16 %v6181
  %v6225 = vunpack.c.l.b16 %v6182
  %v6226 = vunpack.c.h.b16 %v6182
  %v6227 = vunpack.c.l.b16 %v6183
  %v6228 = vunpack.c.h.b16 %v6183
  %v6229 = vunpack.c.l.b16 %v6184
  %v6230 = vunpack.c.h.b16 %v6184
  %v6231 = vunpack.c.l.b16 %v6185
  %v6232 = vunpack.c.h.b16 %v6185
  %v6233 = vunpack.c.l.b16 %v6186
  %v6234 = vunpack.c.h.b16 %v6186
  %v6235 = vpack.c.b16 %v6203, %v6203
  %v6236 = vpack.c.b16 %v6204, %v6204
  %v6237 = vpack.c.b16 %v6205, %v6205
  %v6238 = vpack.c.b16 %v6206, %v6206
  %v6239 = vpack.c.b16 %v6207, %v6207
  %v6240 = vpack.c.b16 %v6208, %v6208
  %v6241 = vpack.c.b16 %v6209, %v6209
  %v6242 = vpack.c.b16 %v6210, %v6210
  %v6243 = vpack.c.b16 %v6211, %v6211
  %v6244 = vpack.c.b16 %v6212, %v6212
  %v6245 = vpack.c.b16 %v6213, %v6213
  %v6246 = vpack.c.b16 %v6214, %v6214
  %v6247 = vpack.c.b16 %v6215, %v6215
  %v6248 = vpack.c.b16 %v6216, %v6216
  %v6249 = vpack.c.b16 %v6217, %v6217
  %v6250 = vpack.c.b16 %v6218, %v6218
  %v6251 = vpack.c.b16 %v6219, %v6219
  %v6252 = vpack.c.b16 %v6220, %v6220
  %v6253 = vpack.c.b16 %v6221, %v6221
  %v6254 = vpack.c.b16 %v6222, %v6222
  %v6255 = vpack.c.b16 %v6223, %v6223
  %v6256 = vpack.c.b16 %v6224, %v6224
  %v6257 = vpack.c.b16 %v6225, %v6225
  %v6258 = vpack.c.b16 %v6226, %v6226
  %v6259 = vpack.c.b16 %v6227, %v6227
  %v6260 = vpack.c.b16 %v6228, %v6228
  %v6261 = vpack.c.b16 %v6229, %v6229
  %v6262 = vpack.c.b16 %v6230, %v6230
  %v6263 = vpack.c.b16 %v6231, %v6231
  %v6264 = vpack.c.b16 %v6232, %v6232
  %v6265 = vpack.c.b16 %v6233, %v6233
  %v6266 = vpack.c.b16 %v6234, %v6234
  %v6268 = vshrl.u32 %v6235, 16
  %v6270 = vrot.slane %v6268, 7
  %v6271 = vshll.u32 %v6235, 16
  %v6273 = vor.u32 %v6270, %v6271
  %v6274 = vrot.slane %v6270, 4
  %v6276 = vshrl.u32 %v6236, 16
  %v6278 = vrot.slane %v6276, 7
  %v6279 = vshll.u32 %v6236, 16
  %v6281 = vor.u32 %v6278, %v6279
  %v6282 = vsel %vm109, %v6274, %v6281
  %v6283 = vrot.slane %v6278, 4
  %v6285 = vshrl.u32 %v6237, 16
  %v6287 = vrot.slane %v6285, 7
  %v6288 = vshll.u32 %v6237, 16
  %v6290 = vor.u32 %v6287, %v6288
  %v6291 = vrot.slane %v6287, 4
  %v6293 = vshrl.u32 %v6238, 16
  %v6295 = vrot.slane %v6293, 7
  %v6296 = vshll.u32 %v6238, 16
  %v6298 = vor.u32 %v6295, %v6296
  %v6299 = vsel %vm109, %v6291, %v6298
  %v6300 = vrot.slane %v6295, 4
  %v6302 = vshrl.u32 %v6239, 16
  %v6304 = vrot.slane %v6302, 7
  %v6305 = vshll.u32 %v6239, 16
  %v6307 = vor.u32 %v6304, %v6305
  %v6308 = vrot.slane %v6304, 4
  %v6310 = vshrl.u32 %v6240, 16
  %v6312 = vrot.slane %v6310, 7
  %v6313 = vshll.u32 %v6240, 16
  %v6315 = vor.u32 %v6312, %v6313
  %v6316 = vsel %vm109, %v6308, %v6315
  %v6317 = vrot.slane %v6312, 4
  %v6319 = vshrl.u32 %v6241, 16
  %v6321 = vrot.slane %v6319, 7
  %v6322 = vshll.u32 %v6241, 16
  %v6324 = vor.u32 %v6321, %v6322
  %v6325 = vrot.slane %v6321, 4
  %v6327 = vshrl.u32 %v6242, 16
  %v6329 = vrot.slane %v6327, 7
  %v6330 = vshll.u32 %v6242, 16
  %v6332 = vor.u32 %v6329, %v6330
  %v6333 = vsel %vm109, %v6325, %v6332
  %v6334 = vrot.slane %v6329, 4
  %v6336 = vshrl.u32 %v6243, 16
  %v6338 = vrot.slane %v6336, 7
  %v6339 = vshll.u32 %v6243, 16
  %v6341 = vor.u32 %v6338, %v6339
  %v6342 = vrot.slane %v6338, 4
  %v6344 = vshrl.u32 %v6244, 16
  %v6346 = vrot.slane %v6344, 7
  %v6347 = vshll.u32 %v6244, 16
  %v6349 = vor.u32 %v6346, %v6347
  %v6350 = vsel %vm109, %v6342, %v6349
  %v6351 = vrot.slane %v6346, 4
  %v6353 = vshrl.u32 %v6245, 16
  %v6355 = vrot.slane %v6353, 7
  %v6356 = vshll.u32 %v6245, 16
  %v6358 = vor.u32 %v6355, %v6356
  %v6359 = vrot.slane %v6355, 4
  %v6361 = vshrl.u32 %v6246, 16
  %v6363 = vrot.slane %v6361, 7
  %v6364 = vshll.u32 %v6246, 16
  %v6366 = vor.u32 %v6363, %v6364
  %v6367 = vsel %vm109, %v6359, %v6366
  %v6368 = vrot.slane %v6363, 4
  %v6370 = vshrl.u32 %v6247, 16
  %v6372 = vrot.slane %v6370, 7
  %v6373 = vshll.u32 %v6247, 16
  %v6375 = vor.u32 %v6372, %v6373
  %v6376 = vrot.slane %v6372, 4
  %v6378 = vshrl.u32 %v6248, 16
  %v6380 = vrot.slane %v6378, 7
  %v6381 = vshll.u32 %v6248, 16
  %v6383 = vor.u32 %v6380, %v6381
  %v6384 = vsel %vm109, %v6376, %v6383
  %v6385 = vrot.slane %v6380, 4
  %v6387 = vshrl.u32 %v6249, 16
  %v6389 = vrot.slane %v6387, 7
  %v6390 = vshll.u32 %v6249, 16
  %v6392 = vor.u32 %v6389, %v6390
  %v6393 = vrot.slane %v6389, 4
  %v6395 = vshrl.u32 %v6250, 16
  %v6397 = vrot.slane %v6395, 7
  %v6398 = vshll.u32 %v6250, 16
  %v6400 = vor.u32 %v6397, %v6398
  %v6401 = vsel %vm109, %v6393, %v6400
  %v6402 = vrot.slane %v6397, 4
  %v6404 = vshrl.u32 %v6251, 16
  %v6406 = vrot.slane %v6404, 7
  %v6407 = vshll.u32 %v6251, 16
  %v6409 = vor.u32 %v6406, %v6407
  %v6410 = vrot.slane %v6406, 4
  %v6412 = vshrl.u32 %v6252, 16
  %v6414 = vrot.slane %v6412, 7
  %v6415 = vshll.u32 %v6252, 16
  %v6417 = vor.u32 %v6414, %v6415
  %v6418 = vsel %vm109, %v6410, %v6417
  %v6419 = vrot.slane %v6414, 4
  %v6421 = vshrl.u32 %v6253, 16
  %v6423 = vrot.slane %v6421, 7
  %v6424 = vshll.u32 %v6253, 16
  %v6426 = vor.u32 %v6423, %v6424
  %v6427 = vrot.slane %v6423, 4
  %v6429 = vshrl.u32 %v6254, 16
  %v6431 = vrot.slane %v6429, 7
  %v6432 = vshll.u32 %v6254, 16
  %v6434 = vor.u32 %v6431, %v6432
  %v6435 = vsel %vm109, %v6427, %v6434
  %v6436 = vrot.slane %v6431, 4
  %v6438 = vshrl.u32 %v6255, 16
  %v6440 = vrot.slane %v6438, 7
  %v6441 = vshll.u32 %v6255, 16
  %v6443 = vor.u32 %v6440, %v6441
  %v6444 = vrot.slane %v6440, 4
  %v6446 = vshrl.u32 %v6256, 16
  %v6448 = vrot.slane %v6446, 7
  %v6449 = vshll.u32 %v6256, 16
  %v6451 = vor.u32 %v6448, %v6449
  %v6452 = vsel %vm109, %v6444, %v6451
  %v6453 = vrot.slane %v6448, 4
  %v6455 = vshrl.u32 %v6257, 16
  %v6457 = vrot.slane %v6455, 7
  %v6458 = vshll.u32 %v6257, 16
  %v6460 = vor.u32 %v6457, %v6458
  %v6461 = vrot.slane %v6457, 4
  %v6463 = vshrl.u32 %v6258, 16
  %v6465 = vrot.slane %v6463, 7
  %v6466 = vshll.u32 %v6258, 16
  %v6468 = vor.u32 %v6465, %v6466
  %v6469 = vsel %vm109, %v6461, %v6468
  %v6470 = vrot.slane %v6465, 4
  %v6472 = vshrl.u32 %v6259, 16
  %v6474 = vrot.slane %v6472, 7
  %v6475 = vshll.u32 %v6259, 16
  %v6477 = vor.u32 %v6474, %v6475
  %v6478 = vrot.slane %v6474, 4
  %v6480 = vshrl.u32 %v6260, 16
  %v6482 = vrot.slane %v6480, 7
  %v6483 = vshll.u32 %v6260, 16
  %v6485 = vor.u32 %v6482, %v6483
  %v6486 = vsel %vm109, %v6478, %v6485
  %v6487 = vrot.slane %v6482, 4
  %v6489 = vshrl.u32 %v6261, 16
  %v6491 = vrot.slane %v6489, 7
  %v6492 = vshll.u32 %v6261, 16
  %v6494 = vor.u32 %v6491, %v6492
  %v6495 = vrot.slane %v6491, 4
  %v6497 = vshrl.u32 %v6262, 16
  %v6499 = vrot.slane %v6497, 7
  %v6500 = vshll.u32 %v6262, 16
  %v6502 = vor.u32 %v6499, %v6500
  %v6503 = vsel %vm109, %v6495, %v6502
  %v6504 = vrot.slane %v6499, 4
  %v6506 = vshrl.u32 %v6263, 16
  %v6508 = vrot.slane %v6506, 7
  %v6509 = vshll.u32 %v6263, 16
  %v6511 = vor.u32 %v6508, %v6509
  %v6512 = vrot.slane %v6508, 4
  %v6514 = vshrl.u32 %v6264, 16
  %v6516 = vrot.slane %v6514, 7
  %v6517 = vshll.u32 %v6264, 16
  %v6519 = vor.u32 %v6516, %v6517
  %v6520 = vsel %vm109, %v6512, %v6519
  %v6521 = vrot.slane %v6516, 4
  %v6523 = vshrl.u32 %v6265, 16
  %v6525 = vrot.slane %v6523, 7
  %v6526 = vshll.u32 %v6265, 16
  %v6528 = vor.u32 %v6525, %v6526
  %v6529 = vrot.slane %v6525, 4
  %v6531 = vshrl.u32 %v6266, 16
  %v6533 = vrot.slane %v6531, 7
  %v6534 = vshll.u32 %v6266, 16
  %v6536 = vor.u32 %v6533, %v6534
  %v6537 = vsel %vm109, %v6529, %v6536
  %v6538 = vrot.slane %v6533, 4
  %v6587 = vld [vmem:[%s430] sm:$0xf]
  %v6588 = vsel %vm433, %v6273, %v6587
  %6589 = vst [vmem:[%s430] sm:$0xf] %v6588
  %6590 = vst [vmem:[%s430 + $0x4] sm:$0xf] %v6282
  %v6591 = vld [vmem:[%s430 + $0x8] sm:$0x1]
  %v6592 = vsel %vm439, %v6283, %v6591
  %6593 = vst [vmem:[%s430 + $0x8] sm:$0x1] %v6592
  %v6594 = vld [vmem:[%s430 + $0xc] sm:$0xf]
  %v6595 = vsel %vm433, %v6290, %v6594
  %6596 = vst [vmem:[%s430 + $0xc] sm:$0xf] %v6595
  %6597 = vst [vmem:[%s430 + $0x10] sm:$0xf] %v6299
  %v6598 = vld [vmem:[%s430 + $0x14] sm:$0x1]
  %v6599 = vsel %vm439, %v6300, %v6598
  %6600 = vst [vmem:[%s430 + $0x14] sm:$0x1] %v6599
  %v6601 = vld [vmem:[%s430 + $0x18] sm:$0xf]
  %v6602 = vsel %vm433, %v6307, %v6601
  %6603 = vst [vmem:[%s430 + $0x18] sm:$0xf] %v6602
  %6604 = vst [vmem:[%s430 + $0x1c] sm:$0xf] %v6316
  %v6605 = vld [vmem:[%s430 + $0x20] sm:$0x1]
  %v6606 = vsel %vm439, %v6317, %v6605
  %6607 = vst [vmem:[%s430 + $0x20] sm:$0x1] %v6606
  %v6608 = vld [vmem:[%s430 + $0x24] sm:$0xf]
  %v6609 = vsel %vm433, %v6324, %v6608
  %6610 = vst [vmem:[%s430 + $0x24] sm:$0xf] %v6609
  %6611 = vst [vmem:[%s430 + $0x28] sm:$0xf] %v6333
  %v6612 = vld [vmem:[%s430 + $0x2c] sm:$0x1]
  %v6613 = vsel %vm439, %v6334, %v6612
  %6614 = vst [vmem:[%s430 + $0x2c] sm:$0x1] %v6613
  %v6615 = vld [vmem:[%s430 + $0x30] sm:$0xf]
  %v6616 = vsel %vm433, %v6341, %v6615
  %6617 = vst [vmem:[%s430 + $0x30] sm:$0xf] %v6616
  %6618 = vst [vmem:[%s430 + $0x34] sm:$0xf] %v6350
  %v6619 = vld [vmem:[%s430 + $0x38] sm:$0x1]
  %v6620 = vsel %vm439, %v6351, %v6619
  %6621 = vst [vmem:[%s430 + $0x38] sm:$0x1] %v6620
  %v6622 = vld [vmem:[%s430 + $0x3c] sm:$0xf]
  %v6623 = vsel %vm433, %v6358, %v6622
  %6624 = vst [vmem:[%s430 + $0x3c] sm:$0xf] %v6623
  %6625 = vst [vmem:[%s430 + $0x40] sm:$0xf] %v6367
  %v6626 = vld [vmem:[%s430 + $0x44] sm:$0x1]
  %v6627 = vsel %vm439, %v6368, %v6626
  %6628 = vst [vmem:[%s430 + $0x44] sm:$0x1] %v6627
  %v6629 = vld [vmem:[%s430 + $0x48] sm:$0xf]
  %v6630 = vsel %vm433, %v6375, %v6629
  %6631 = vst [vmem:[%s430 + $0x48] sm:$0xf] %v6630
  %6632 = vst [vmem:[%s430 + $0x4c] sm:$0xf] %v6384
  %v6633 = vld [vmem:[%s430 + $0x50] sm:$0x1]
  %v6634 = vsel %vm439, %v6385, %v6633
  %6635 = vst [vmem:[%s430 + $0x50] sm:$0x1] %v6634
  %v6636 = vld [vmem:[%s430 + $0x54] sm:$0xf]
  %v6637 = vsel %vm433, %v6392, %v6636
  %6638 = vst [vmem:[%s430 + $0x54] sm:$0xf] %v6637
  %6639 = vst [vmem:[%s430 + $0x58] sm:$0xf] %v6401
  %v6640 = vld [vmem:[%s430 + $0x5c] sm:$0x1]
  %v6641 = vsel %vm439, %v6402, %v6640
  %6642 = vst [vmem:[%s430 + $0x5c] sm:$0x1] %v6641
  %v6643 = vld [vmem:[%s430 + $0x60] sm:$0xf]
  %v6644 = vsel %vm433, %v6409, %v6643
  %6645 = vst [vmem:[%s430 + $0x60] sm:$0xf] %v6644
  %6646 = vst [vmem:[%s430 + $0x64] sm:$0xf] %v6418
  %v6647 = vld [vmem:[%s430 + $0x68] sm:$0x1]
  %v6648 = vsel %vm439, %v6419, %v6647
  %6649 = vst [vmem:[%s430 + $0x68] sm:$0x1] %v6648
  %v6650 = vld [vmem:[%s430 + $0x6c] sm:$0xf]
  %v6651 = vsel %vm433, %v6426, %v6650
  %6652 = vst [vmem:[%s430 + $0x6c] sm:$0xf] %v6651
  %6653 = vst [vmem:[%s430 + $0x70] sm:$0xf] %v6435
  %v6654 = vld [vmem:[%s430 + $0x74] sm:$0x1]
  %v6655 = vsel %vm439, %v6436, %v6654
  %6656 = vst [vmem:[%s430 + $0x74] sm:$0x1] %v6655
  %v6657 = vld [vmem:[%s430 + $0x78] sm:$0xf]
  %v6658 = vsel %vm433, %v6443, %v6657
  %6659 = vst [vmem:[%s430 + $0x78] sm:$0xf] %v6658
  %6660 = vst [vmem:[%s430 + $0x7c] sm:$0xf] %v6452
  %v6661 = vld [vmem:[%s430 + $0x80] sm:$0x1]
  %v6662 = vsel %vm439, %v6453, %v6661
  %6663 = vst [vmem:[%s430 + $0x80] sm:$0x1] %v6662
  %v6664 = vld [vmem:[%s430 + $0x84] sm:$0xf]
  %v6665 = vsel %vm433, %v6460, %v6664
  %6666 = vst [vmem:[%s430 + $0x84] sm:$0xf] %v6665
  %6667 = vst [vmem:[%s430 + $0x88] sm:$0xf] %v6469
  %v6668 = vld [vmem:[%s430 + $0x8c] sm:$0x1]
  %v6669 = vsel %vm439, %v6470, %v6668
  %6670 = vst [vmem:[%s430 + $0x8c] sm:$0x1] %v6669
  %v6671 = vld [vmem:[%s430 + $0x90] sm:$0xf]
  %v6672 = vsel %vm433, %v6477, %v6671
  %6673 = vst [vmem:[%s430 + $0x90] sm:$0xf] %v6672
  %6674 = vst [vmem:[%s430 + $0x94] sm:$0xf] %v6486
  %v6675 = vld [vmem:[%s430 + $0x98] sm:$0x1]
  %v6676 = vsel %vm439, %v6487, %v6675
  %6677 = vst [vmem:[%s430 + $0x98] sm:$0x1] %v6676
  %v6678 = vld [vmem:[%s430 + $0x9c] sm:$0xf]
  %v6679 = vsel %vm433, %v6494, %v6678
  %6680 = vst [vmem:[%s430 + $0x9c] sm:$0xf] %v6679
  %6681 = vst [vmem:[%s430 + $0xa0] sm:$0xf] %v6503
  %v6682 = vld [vmem:[%s430 + $0xa4] sm:$0x1]
  %v6683 = vsel %vm439, %v6504, %v6682
  %6684 = vst [vmem:[%s430 + $0xa4] sm:$0x1] %v6683
  %v6685 = vld [vmem:[%s430 + $0xa8] sm:$0xf]
  %v6686 = vsel %vm433, %v6511, %v6685
  %6687 = vst [vmem:[%s430 + $0xa8] sm:$0xf] %v6686
  %6688 = vst [vmem:[%s430 + $0xac] sm:$0xf] %v6520
  %v6689 = vld [vmem:[%s430 + $0xb0] sm:$0x1]
  %v6690 = vsel %vm439, %v6521, %v6689
  %6691 = vst [vmem:[%s430 + $0xb0] sm:$0x1] %v6690
  %v6692 = vld [vmem:[%s430 + $0xb4] sm:$0xf]
  %v6693 = vsel %vm433, %v6528, %v6692
  %6694 = vst [vmem:[%s430 + $0xb4] sm:$0xf] %v6693
  %6695 = vst [vmem:[%s430 + $0xb8] sm:$0xf] %v6537
  %v6696 = vld [vmem:[%s430 + $0xbc] sm:$0x1]
  %v6697 = vsel %vm439, %v6538, %v6696
  %6698 = vst [vmem:[%s430 + $0xbc] sm:$0x1] %v6697
  %v6699 = vld [vmem:[#allocation2] sm:$0xf]
  %v6700 = vld [vmem:[#allocation2 + $0x4] sm:$0xf]
  %v6701 = vld [vmem:[#allocation2 + $0xc] sm:$0xf]
  %v6702 = vld [vmem:[#allocation2 + $0x10] sm:$0xf]
  %v6703 = vld [vmem:[#allocation2 + $0x18] sm:$0xf]
  %v6704 = vld [vmem:[#allocation2 + $0x1c] sm:$0xf]
  %v6705 = vld [vmem:[#allocation2 + $0x24] sm:$0xf]
  %v6706 = vld [vmem:[#allocation2 + $0x28] sm:$0xf]
  %v6707 = vld [vmem:[#allocation2 + $0x30] sm:$0xf]
  %v6708 = vld [vmem:[#allocation2 + $0x34] sm:$0xf]
  %v6709 = vld [vmem:[#allocation2 + $0x3c] sm:$0xf]
  %v6710 = vld [vmem:[#allocation2 + $0x40] sm:$0xf]
  %v6711 = vld [vmem:[#allocation2 + $0x48] sm:$0xf]
  %v6712 = vld [vmem:[#allocation2 + $0x4c] sm:$0xf]
  %v6713 = vld [vmem:[#allocation2 + $0x54] sm:$0xf]
  %v6714 = vld [vmem:[#allocation2 + $0x58] sm:$0xf]
  %v6715 = vld [vmem:[#allocation2 + $0x60] sm:$0xf]
  %v6716 = vld [vmem:[#allocation2 + $0x64] sm:$0xf]
  %v6717 = vld [vmem:[#allocation2 + $0x6c] sm:$0xf]
  %v6718 = vld [vmem:[#allocation2 + $0x70] sm:$0xf]
  %v6719 = vld [vmem:[#allocation2 + $0x78] sm:$0xf]
  %v6720 = vld [vmem:[#allocation2 + $0x7c] sm:$0xf]
  %v6721 = vld [vmem:[#allocation2 + $0x84] sm:$0xf]
  %v6722 = vld [vmem:[#allocation2 + $0x88] sm:$0xf]
  %v6723 = vld [vmem:[#allocation2 + $0x90] sm:$0xf]
  %v6724 = vld [vmem:[#allocation2 + $0x94] sm:$0xf]
  %v6725 = vld [vmem:[#allocation2 + $0x9c] sm:$0xf]
  %v6726 = vld [vmem:[#allocation2 + $0xa0] sm:$0xf]
  %v6727 = vld [vmem:[#allocation2 + $0xa8] sm:$0xf]
  %v6728 = vld [vmem:[#allocation2 + $0xac] sm:$0xf]
  %v6729 = vld [vmem:[#allocation2 + $0xb4] sm:$0xf]
  %v6730 = vld [vmem:[#allocation2 + $0xb8] sm:$0xf]
  %v6731 = vld [vmem:[%s3] sm:$0xf]
  %v6732 = vld [vmem:[%s3 + $0x4] sm:$0xf]
  %v6733 = vld [vmem:[%s3 + $0x8] sm:$0xf]
  %v6734 = vld [vmem:[%s3 + $0xc] sm:$0xf]
  %v6735 = vld [vmem:[%s3 + $0x10] sm:$0xf]
  %v6736 = vld [vmem:[%s3 + $0x14] sm:$0xf]
  %v6737 = vld [vmem:[%s3 + $0x18] sm:$0xf]
  %v6738 = vld [vmem:[%s3 + $0x1c] sm:$0xf]
  %v6739 = vld [vmem:[%s3 + $0x20] sm:$0xf]
  %v6740 = vld [vmem:[%s3 + $0x24] sm:$0xf]
  %v6741 = vld [vmem:[%s3 + $0x28] sm:$0xf]
  %v6742 = vld [vmem:[%s3 + $0x2c] sm:$0xf]
  %v6743 = vld [vmem:[%s3 + $0x30] sm:$0xf]
  %v6744 = vld [vmem:[%s3 + $0x34] sm:$0xf]
  %v6745 = vld [vmem:[%s3 + $0x38] sm:$0xf]
  %v6746 = vld [vmem:[%s3 + $0x3c] sm:$0xf]
  %v6779 = vunpack.c.l.b16 %v6699
  %v6780 = vunpack.c.l.b16 %v6700
  %v6781 = vunpack.c.l.b16 %v6701
  %v6782 = vunpack.c.l.b16 %v6702
  %v6783 = vunpack.c.l.b16 %v6703
  %v6784 = vunpack.c.l.b16 %v6704
  %v6785 = vunpack.c.l.b16 %v6705
  %v6786 = vunpack.c.l.b16 %v6706
  %v6787 = vunpack.c.l.b16 %v6707
  %v6788 = vunpack.c.l.b16 %v6708
  %v6789 = vunpack.c.l.b16 %v6709
  %v6790 = vunpack.c.l.b16 %v6710
  %v6791 = vunpack.c.l.b16 %v6711
  %v6792 = vunpack.c.l.b16 %v6712
  %v6793 = vunpack.c.l.b16 %v6713
  %v6794 = vunpack.c.l.b16 %v6714
  %v6795 = vunpack.c.l.b16 %v6715
  %v6796 = vunpack.c.l.b16 %v6716
  %v6797 = vunpack.c.l.b16 %v6717
  %v6798 = vunpack.c.l.b16 %v6718
  %v6799 = vunpack.c.l.b16 %v6719
  %v6800 = vunpack.c.l.b16 %v6720
  %v6801 = vunpack.c.l.b16 %v6721
  %v6802 = vunpack.c.l.b16 %v6722
  %v6803 = vunpack.c.l.b16 %v6723
  %v6804 = vunpack.c.l.b16 %v6724
  %v6805 = vunpack.c.l.b16 %v6725
  %v6806 = vunpack.c.l.b16 %v6726
  %v6807 = vunpack.c.l.b16 %v6727
  %v6808 = vunpack.c.l.b16 %v6728
  %v6809 = vunpack.c.l.b16 %v6729
  %v6810 = vunpack.c.l.b16 %v6730
  %v6811 = vpack.c.b16 %v6780, %v6779
  %v6812 = vpack.c.b16 %v6782, %v6781
  %v6813 = vpack.c.b16 %v6784, %v6783
  %v6814 = vpack.c.b16 %v6786, %v6785
  %v6815 = vpack.c.b16 %v6788, %v6787
  %v6816 = vpack.c.b16 %v6790, %v6789
  %v6817 = vpack.c.b16 %v6792, %v6791
  %v6818 = vpack.c.b16 %v6794, %v6793
  %v6819 = vpack.c.b16 %v6796, %v6795
  %v6820 = vpack.c.b16 %v6798, %v6797
  %v6821 = vpack.c.b16 %v6800, %v6799
  %v6822 = vpack.c.b16 %v6802, %v6801
  %v6823 = vpack.c.b16 %v6804, %v6803
  %v6824 = vpack.c.b16 %v6806, %v6805
  %v6825 = vpack.c.b16 %v6808, %v6807
  %v6826 = vpack.c.b16 %v6810, %v6809
  %v6859 = vunpack.c.l.b16 %v6731
  %v6860 = vunpack.c.l.b16 %v6732
  %v6861 = vunpack.c.l.b16 %v6733
  %v6862 = vunpack.c.l.b16 %v6734
  %v6863 = vunpack.c.l.b16 %v6735
  %v6864 = vunpack.c.l.b16 %v6736
  %v6865 = vunpack.c.l.b16 %v6737
  %v6866 = vunpack.c.l.b16 %v6738
  %v6867 = vunpack.c.l.b16 %v6739
  %v6868 = vunpack.c.l.b16 %v6740
  %v6869 = vunpack.c.l.b16 %v6741
  %v6870 = vunpack.c.l.b16 %v6742
  %v6871 = vunpack.c.l.b16 %v6743
  %v6872 = vunpack.c.l.b16 %v6744
  %v6873 = vunpack.c.l.b16 %v6745
  %v6874 = vunpack.c.l.b16 %v6746
  %v6875 = vpack.c.b16 %v6860, %v6859
  %v6876 = vpack.c.b16 %v6862, %v6861
  %v6877 = vpack.c.b16 %v6864, %v6863
  %v6878 = vpack.c.b16 %v6866, %v6865
  %v6879 = vpack.c.b16 %v6868, %v6867
  %v6880 = vpack.c.b16 %v6870, %v6869
  %v6881 = vpack.c.b16 %v6872, %v6871
  %v6882 = vpack.c.b16 %v6874, %v6873
  %6891 = vmatprep.subr.bf16.mxu0 0
  %6892 = vmatpush1.bf16.msra.mxu0 %v6882
  %6893 = vmatprep.subr.bf16.mxu0 0
  %6894 = vmatpush1.bf16.msra.mxu0 %v6881
  %6895 = vmatprep.subr.bf16.mxu0 0
  %6896 = vmatpush1.bf16.msra.mxu0 %v6880
  %6897 = vmatprep.subr.bf16.mxu0 0
  %6898 = vmatpush1.bf16.msra.mxu0 %v6879
  %6899 = vmatprep.subr.bf16.mxu0 0
  %6900 = vmatpush1.bf16.msra.mxu0 %v6878
  %6901 = vmatprep.subr.bf16.mxu0 0
  %6902 = vmatpush1.bf16.msra.mxu0 %v6877
  %6903 = vmatprep.subr.bf16.mxu0 0
  %6904 = vmatpush1.bf16.msra.mxu0 %v6876
  %6905 = vmatprep.subr.bf16.mxu0 0
  %6906 = vmatpush1.bf16.msra.mxu0 %v6875
  %6907 = vmatprep.subr.bf16.mxu0 0
  %6908 = vmatpush2.bf16.msra.mxu0 0
  %6909 = vmatprep.subr.bf16.mxu0 0
  %6910 = vmatpush2.bf16.msra.mxu0 0
  %6911 = vmatprep.subr.bf16.mxu0 0
  %6912 = vmatpush2.bf16.msra.mxu0 0
  %6913 = vmatprep.subr.bf16.mxu0 0
  %6914 = vmatpush2.bf16.msra.mxu0 0
  %6915 = vmatprep.subr.bf16.mxu0 0
  %6916 = vmatpush2.bf16.msra.mxu0 0
  %6917 = vmatprep.subr.bf16.mxu0 0
  %6918 = vmatpush2.bf16.msra.mxu0 0
  %6919 = vmatprep.subr.bf16.mxu0 0
  %6920 = vmatpush2.bf16.msra.mxu0 0
  %6921 = vmatprep.subr.bf16.mxu0 0
  %6922 = vmatpush2.bf16.msra.mxu0 0
  %6923 = vmatprep.mubr.bf16.mxu0 0
  %6924 = vmatmul.mubr.bf16.gmra.mxu0 %v6811
  %v6925 = vpop.f32.mrf.mxu0
  %v6926 = vadd.f32 0.0, %v6925
  %v6927 = vpop.f32.mrf.mxu0
  %v6928 = vpop.f32.mrf.mxu0
  %v6929 = vadd.f32 0.0, %v6928
  %v6930 = vpop.f32.mrf.mxu0
  %6931 = vmatprep.mubr.bf16.mxu0 0
  %6932 = vmatmul.mubr.bf16.gmra.mxu0 %v6812
  %v6933 = vpop.f32.mrf.mxu0
  %v6934 = vadd.f32 0.0, %v6933
  %v6935 = vpop.f32.mrf.mxu0
  %v6936 = vpop.f32.mrf.mxu0
  %v6937 = vadd.f32 0.0, %v6936
  %v6938 = vpop.f32.mrf.mxu0
  %6939 = vmatprep.mubr.bf16.mxu0 0
  %6940 = vmatmul.mubr.bf16.gmra.mxu0 %v6813
  %v6941 = vpop.f32.mrf.mxu0
  %v6942 = vadd.f32 0.0, %v6941
  %v6943 = vpop.f32.mrf.mxu0
  %v6944 = vpop.f32.mrf.mxu0
  %v6945 = vadd.f32 0.0, %v6944
  %v6946 = vpop.f32.mrf.mxu0
  %6947 = vmatprep.mubr.bf16.mxu0 0
  %6948 = vmatmul.mubr.bf16.gmra.mxu0 %v6814
  %v6949 = vpop.f32.mrf.mxu0
  %v6950 = vadd.f32 0.0, %v6949
  %v6951 = vpop.f32.mrf.mxu0
  %v6952 = vpop.f32.mrf.mxu0
  %v6953 = vadd.f32 0.0, %v6952
  %v6954 = vpop.f32.mrf.mxu0
  %6955 = vmatprep.mubr.bf16.mxu0 0
  %6956 = vmatmul.mubr.bf16.gmra.mxu0 %v6815
  %v6957 = vpop.f32.mrf.mxu0
  %v6958 = vadd.f32 0.0, %v6957
  %v6959 = vpop.f32.mrf.mxu0
  %v6960 = vpop.f32.mrf.mxu0
  %v6961 = vadd.f32 0.0, %v6960
  %v6962 = vpop.f32.mrf.mxu0
  %6963 = vmatprep.mubr.bf16.mxu0 0
  %6964 = vmatmul.mubr.bf16.gmra.mxu0 %v6816
  %v6965 = vpop.f32.mrf.mxu0
  %v6966 = vadd.f32 0.0, %v6965
  %v6967 = vpop.f32.mrf.mxu0
  %v6968 = vpop.f32.mrf.mxu0
  %v6969 = vadd.f32 0.0, %v6968
  %v6970 = vpop.f32.mrf.mxu0
  %6971 = vmatprep.mubr.bf16.mxu0 0
  %6972 = vmatmul.mubr.bf16.gmra.mxu0 %v6817
  %v6973 = vpop.f32.mrf.mxu0
  %v6974 = vadd.f32 0.0, %v6973
  %v6975 = vpop.f32.mrf.mxu0
  %v6976 = vpop.f32.mrf.mxu0
  %v6977 = vadd.f32 0.0, %v6976
  %v6978 = vpop.f32.mrf.mxu0
  %6979 = vmatprep.mubr.bf16.mxu0 0
  %6980 = vmatmul.mubr.bf16.gmra.mxu0 %v6818
  %v6981 = vpop.f32.mrf.mxu0
  %v6982 = vadd.f32 0.0, %v6981
  %v6983 = vpop.f32.mrf.mxu0
  %v6984 = vpop.f32.mrf.mxu0
  %v6985 = vadd.f32 0.0, %v6984
  %v6986 = vpop.f32.mrf.mxu0
  %6987 = vmatprep.mubr.bf16.mxu0 0
  %6988 = vmatmul.mubr.bf16.gmra.mxu0 %v6819
  %v6989 = vpop.f32.mrf.mxu0
  %v6990 = vadd.f32 0.0, %v6989
  %v6991 = vpop.f32.mrf.mxu0
  %v6992 = vpop.f32.mrf.mxu0
  %v6993 = vadd.f32 0.0, %v6992
  %v6994 = vpop.f32.mrf.mxu0
  %6995 = vmatprep.mubr.bf16.mxu0 0
  %6996 = vmatmul.mubr.bf16.gmra.mxu0 %v6820
  %v6997 = vpop.f32.mrf.mxu0
  %v6998 = vadd.f32 0.0, %v6997
  %v6999 = vpop.f32.mrf.mxu0
  %v7000 = vpop.f32.mrf.mxu0
  %v7001 = vadd.f32 0.0, %v7000
  %v7002 = vpop.f32.mrf.mxu0
  %7003 = vmatprep.mubr.bf16.mxu0 0
  %7004 = vmatmul.mubr.bf16.gmra.mxu0 %v6821
  %v7005 = vpop.f32.mrf.mxu0
  %v7006 = vadd.f32 0.0, %v7005
  %v7007 = vpop.f32.mrf.mxu0
  %v7008 = vpop.f32.mrf.mxu0
  %v7009 = vadd.f32 0.0, %v7008
  %v7010 = vpop.f32.mrf.mxu0
  %7011 = vmatprep.mubr.bf16.mxu0 0
  %7012 = vmatmul.mubr.bf16.gmra.mxu0 %v6822
  %v7013 = vpop.f32.mrf.mxu0
  %v7014 = vadd.f32 0.0, %v7013
  %v7015 = vpop.f32.mrf.mxu0
  %v7016 = vpop.f32.mrf.mxu0
  %v7017 = vadd.f32 0.0, %v7016
  %v7018 = vpop.f32.mrf.mxu0
  %7019 = vmatprep.mubr.bf16.mxu0 0
  %7020 = vmatmul.mubr.bf16.gmra.mxu0 %v6823
  %v7021 = vpop.f32.mrf.mxu0
  %v7022 = vadd.f32 0.0, %v7021
  %v7023 = vpop.f32.mrf.mxu0
  %v7024 = vpop.f32.mrf.mxu0
  %v7025 = vadd.f32 0.0, %v7024
  %v7026 = vpop.f32.mrf.mxu0
  %7027 = vmatprep.mubr.bf16.mxu0 0
  %7028 = vmatmul.mubr.bf16.gmra.mxu0 %v6824
  %v7029 = vpop.f32.mrf.mxu0
  %v7030 = vadd.f32 0.0, %v7029
  %v7031 = vpop.f32.mrf.mxu0
  %v7032 = vpop.f32.mrf.mxu0
  %v7033 = vadd.f32 0.0, %v7032
  %v7034 = vpop.f32.mrf.mxu0
  %7035 = vmatprep.mubr.bf16.mxu0 0
  %7036 = vmatmul.mubr.bf16.gmra.mxu0 %v6825
  %v7037 = vpop.f32.mrf.mxu0
  %v7038 = vadd.f32 0.0, %v7037
  %v7039 = vpop.f32.mrf.mxu0
  %v7040 = vpop.f32.mrf.mxu0
  %v7041 = vadd.f32 0.0, %v7040
  %v7042 = vpop.f32.mrf.mxu0
  %7043 = vmatprep.mubr.bf16.mxu0 0
  %7044 = vmatmul.mubr.bf16.gmra.mxu0 %v6826
  %v7045 = vpop.f32.mrf.mxu0
  %v7046 = vadd.f32 0.0, %v7045
  %v7047 = vpop.f32.mrf.mxu0
  %v7048 = vpop.f32.mrf.mxu0
  %v7049 = vadd.f32 0.0, %v7048
  %v7050 = vpop.f32.mrf.mxu0
  %7051 = vdwg.mxu0
  %7052 = vst [vmem:[#allocation3] sm:$0xff] %v6926
  %7053 = vst [vmem:[#allocation3 + $0x8] sm:$0xff] %v6929
  %7054 = vst [vmem:[#allocation3 + $0x10] sm:$0xff] %v6934
  %7055 = vst [vmem:[#allocation3 + $0x18] sm:$0xff] %v6937
  %7056 = vst [vmem:[#allocation3 + $0x20] sm:$0xff] %v6942
  %7057 = vst [vmem:[#allocation3 + $0x28] sm:$0xff] %v6945
  %7058 = vst [vmem:[#allocation3 + $0x30] sm:$0xff] %v6950
  %7059 = vst [vmem:[#allocation3 + $0x38] sm:$0xff] %v6953
  %7060 = vst [vmem:[#allocation3 + $0x40] sm:$0xff] %v6958
  %7061 = vst [vmem:[#allocation3 + $0x48] sm:$0xff] %v6961
  %7062 = vst [vmem:[#allocation3 + $0x50] sm:$0xff] %v6966
  %7063 = vst [vmem:[#allocation3 + $0x58] sm:$0xff] %v6969
  %7064 = vst [vmem:[#allocation3 + $0x60] sm:$0xff] %v6974
  %7065 = vst [vmem:[#allocation3 + $0x68] sm:$0xff] %v6977
  %7066 = vst [vmem:[#allocation3 + $0x70] sm:$0xff] %v6982
  %7067 = vst [vmem:[#allocation3 + $0x78] sm:$0xff] %v6985
  %7068 = vst [vmem:[#allocation3 + $0x80] sm:$0xff] %v6990
  %7069 = vst [vmem:[#allocation3 + $0x88] sm:$0xff] %v6993
  %7070 = vst [vmem:[#allocation3 + $0x90] sm:$0xff] %v6998
  %7071 = vst [vmem:[#allocation3 + $0x98] sm:$0xff] %v7001
  %7072 = vst [vmem:[#allocation3 + $0xa0] sm:$0xff] %v7006
  %7073 = vst [vmem:[#allocation3 + $0xa8] sm:$0xff] %v7009
  %7074 = vst [vmem:[#allocation3 + $0xb0] sm:$0xff] %v7014
  %7075 = vst [vmem:[#allocation3 + $0xb8] sm:$0xff] %v7017
  %7076 = vst [vmem:[#allocation3 + $0xc0] sm:$0xff] %v7022
  %7077 = vst [vmem:[#allocation3 + $0xc8] sm:$0xff] %v7025
  %7078 = vst [vmem:[#allocation3 + $0xd0] sm:$0xff] %v7030
  %7079 = vst [vmem:[#allocation3 + $0xd8] sm:$0xff] %v7033
  %7080 = vst [vmem:[#allocation3 + $0xe0] sm:$0xff] %v7038
  %7081 = vst [vmem:[#allocation3 + $0xe8] sm:$0xff] %v7041
  %7082 = vst [vmem:[#allocation3 + $0xf0] sm:$0xff] %v7046
  %7083 = vst [vmem:[#allocation3 + $0xf8] sm:$0xff] %v7049
  %v7084 = vld [vmem:[#allocation2] sm:$0xf]
  %v7085 = vld [vmem:[#allocation2 + $0x4] sm:$0xf]
  %v7086 = vld [vmem:[#allocation2 + $0x8] sm:$0x1]
  %v7087 = vld [vmem:[#allocation2 + $0xc] sm:$0xf]
  %v7088 = vld [vmem:[#allocation2 + $0x10] sm:$0xf]
  %v7089 = vld [vmem:[#allocation2 + $0x14] sm:$0x1]
  %v7090 = vld [vmem:[#allocation2 + $0x18] sm:$0xf]
  %v7091 = vld [vmem:[#allocation2 + $0x1c] sm:$0xf]
  %v7092 = vld [vmem:[#allocation2 + $0x20] sm:$0x1]
  %v7093 = vld [vmem:[#allocation2 + $0x24] sm:$0xf]
  %v7094 = vld [vmem:[#allocation2 + $0x28] sm:$0xf]
  %v7095 = vld [vmem:[#allocation2 + $0x2c] sm:$0x1]
  %v7096 = vld [vmem:[#allocation2 + $0x30] sm:$0xf]
  %v7097 = vld [vmem:[#allocation2 + $0x34] sm:$0xf]
  %v7098 = vld [vmem:[#allocation2 + $0x38] sm:$0x1]
  %v7099 = vld [vmem:[#allocation2 + $0x3c] sm:$0xf]
  %v7100 = vld [vmem:[#allocation2 + $0x40] sm:$0xf]
  %v7101 = vld [vmem:[#allocation2 + $0x44] sm:$0x1]
  %v7102 = vld [vmem:[#allocation2 + $0x48] sm:$0xf]
  %v7103 = vld [vmem:[#allocation2 + $0x4c] sm:$0xf]
  %v7104 = vld [vmem:[#allocation2 + $0x50] sm:$0x1]
  %v7105 = vld [vmem:[#allocation2 + $0x54] sm:$0xf]
  %v7106 = vld [vmem:[#allocation2 + $0x58] sm:$0xf]
  %v7107 = vld [vmem:[#allocation2 + $0x5c] sm:$0x1]
  %v7108 = vld [vmem:[#allocation2 + $0x60] sm:$0xf]
  %v7109 = vld [vmem:[#allocation2 + $0x64] sm:$0xf]
  %v7110 = vld [vmem:[#allocation2 + $0x68] sm:$0x1]
  %v7111 = vld [vmem:[#allocation2 + $0x6c] sm:$0xf]
  %v7112 = vld [vmem:[#allocation2 + $0x70] sm:$0xf]
  %v7113 = vld [vmem:[#allocation2 + $0x74] sm:$0x1]
  %v7114 = vld [vmem:[#allocation2 + $0x78] sm:$0xf]
  %v7115 = vld [vmem:[#allocation2 + $0x7c] sm:$0xf]
  %v7116 = vld [vmem:[#allocation2 + $0x80] sm:$0x1]
  %v7117 = vld [vmem:[#allocation2 + $0x84] sm:$0xf]
  %v7118 = vld [vmem:[#allocation2 + $0x88] sm:$0xf]
  %v7119 = vld [vmem:[#allocation2 + $0x8c] sm:$0x1]
  %v7120 = vld [vmem:[#allocation2 + $0x90] sm:$0xf]
  %v7121 = vld [vmem:[#allocation2 + $0x94] sm:$0xf]
  %v7122 = vld [vmem:[#allocation2 + $0x98] sm:$0x1]
  %v7123 = vld [vmem:[#allocation2 + $0x9c] sm:$0xf]
  %v7124 = vld [vmem:[#allocation2 + $0xa0] sm:$0xf]
  %v7125 = vld [vmem:[#allocation2 + $0xa4] sm:$0x1]
  %v7126 = vld [vmem:[#allocation2 + $0xa8] sm:$0xf]
  %v7127 = vld [vmem:[#allocation2 + $0xac] sm:$0xf]
  %v7128 = vld [vmem:[#allocation2 + $0xb0] sm:$0x1]
  %v7129 = vld [vmem:[#allocation2 + $0xb4] sm:$0xf]
  %v7130 = vld [vmem:[#allocation2 + $0xb8] sm:$0xf]
  %v7131 = vld [vmem:[#allocation2 + $0xbc] sm:$0x1]
  %v7133 = vshrl.u32 %v7084, 16
  %v7135 = vrot.slane %v7133, 4
  %v7136 = vshll.u32 %v7084, 16
  %v7138 = vrot.slane %v7136, 5
  %v7139 = vor.u32 %v7135, %v7138
  %v7140 = vrot.slane %v7139, 4
  %v7142 = vshll.u32 %v7085, 16
  %v7144 = vrot.slane %v7142, 5
  %v7145 = vsel %vm983, %v7140, %v7144
  %v7146 = vshrl.u32 %v7085, 16
  %v7148 = vrot.slane %v7146, 4
  %v7149 = vor.u32 %v7148, %v7144
  %v7150 = vrot.slane %v7149, 4
  %v7152 = vshll.u32 %v7086, 16
  %v7154 = vrot.slane %v7152, 5
  %v7155 = vsel %vm983, %v7150, %v7154
  %v7157 = vshrl.u32 %v7087, 16
  %v7159 = vrot.slane %v7157, 4
  %v7160 = vshll.u32 %v7087, 16
  %v7162 = vrot.slane %v7160, 5
  %v7163 = vor.u32 %v7159, %v7162
  %v7164 = vrot.slane %v7163, 4
  %v7166 = vshll.u32 %v7088, 16
  %v7168 = vrot.slane %v7166, 5
  %v7169 = vsel %vm983, %v7164, %v7168
  %v7170 = vshrl.u32 %v7088, 16
  %v7172 = vrot.slane %v7170, 4
  %v7173 = vor.u32 %v7172, %v7168
  %v7174 = vrot.slane %v7173, 4
  %v7176 = vshll.u32 %v7089, 16
  %v7178 = vrot.slane %v7176, 5
  %v7179 = vsel %vm983, %v7174, %v7178
  %v7181 = vshrl.u32 %v7090, 16
  %v7183 = vrot.slane %v7181, 4
  %v7184 = vshll.u32 %v7090, 16
  %v7186 = vrot.slane %v7184, 5
  %v7187 = vor.u32 %v7183, %v7186
  %v7188 = vrot.slane %v7187, 4
  %v7190 = vshll.u32 %v7091, 16
  %v7192 = vrot.slane %v7190, 5
  %v7193 = vsel %vm983, %v7188, %v7192
  %v7194 = vshrl.u32 %v7091, 16
  %v7196 = vrot.slane %v7194, 4
  %v7197 = vor.u32 %v7196, %v7192
  %v7198 = vrot.slane %v7197, 4
  %v7200 = vshll.u32 %v7092, 16
  %v7202 = vrot.slane %v7200, 5
  %v7203 = vsel %vm983, %v7198, %v7202
  %v7205 = vshrl.u32 %v7093, 16
  %v7207 = vrot.slane %v7205, 4
  %v7208 = vshll.u32 %v7093, 16
  %v7210 = vrot.slane %v7208, 5
  %v7211 = vor.u32 %v7207, %v7210
  %v7212 = vrot.slane %v7211, 4
  %v7214 = vshll.u32 %v7094, 16
  %v7216 = vrot.slane %v7214, 5
  %v7217 = vsel %vm983, %v7212, %v7216
  %v7218 = vshrl.u32 %v7094, 16
  %v7220 = vrot.slane %v7218, 4
  %v7221 = vor.u32 %v7220, %v7216
  %v7222 = vrot.slane %v7221, 4
  %v7224 = vshll.u32 %v7095, 16
  %v7226 = vrot.slane %v7224, 5
  %v7227 = vsel %vm983, %v7222, %v7226
  %v7229 = vshrl.u32 %v7096, 16
  %v7231 = vrot.slane %v7229, 4
  %v7232 = vshll.u32 %v7096, 16
  %v7234 = vrot.slane %v7232, 5
  %v7235 = vor.u32 %v7231, %v7234
  %v7236 = vrot.slane %v7235, 4
  %v7238 = vshll.u32 %v7097, 16
  %v7240 = vrot.slane %v7238, 5
  %v7241 = vsel %vm983, %v7236, %v7240
  %v7242 = vshrl.u32 %v7097, 16
  %v7244 = vrot.slane %v7242, 4
  %v7245 = vor.u32 %v7244, %v7240
  %v7246 = vrot.slane %v7245, 4
  %v7248 = vshll.u32 %v7098, 16
  %v7250 = vrot.slane %v7248, 5
  %v7251 = vsel %vm983, %v7246, %v7250
  %v7253 = vshrl.u32 %v7099, 16
  %v7255 = vrot.slane %v7253, 4
  %v7256 = vshll.u32 %v7099, 16
  %v7258 = vrot.slane %v7256, 5
  %v7259 = vor.u32 %v7255, %v7258
  %v7260 = vrot.slane %v7259, 4
  %v7262 = vshll.u32 %v7100, 16
  %v7264 = vrot.slane %v7262, 5
  %v7265 = vsel %vm983, %v7260, %v7264
  %v7266 = vshrl.u32 %v7100, 16
  %v7268 = vrot.slane %v7266, 4
  %v7269 = vor.u32 %v7268, %v7264
  %v7270 = vrot.slane %v7269, 4
  %v7272 = vshll.u32 %v7101, 16
  %v7274 = vrot.slane %v7272, 5
  %v7275 = vsel %vm983, %v7270, %v7274
  %v7277 = vshrl.u32 %v7102, 16
  %v7279 = vrot.slane %v7277, 4
  %v7280 = vshll.u32 %v7102, 16
  %v7282 = vrot.slane %v7280, 5
  %v7283 = vor.u32 %v7279, %v7282
  %v7284 = vrot.slane %v7283, 4
  %v7286 = vshll.u32 %v7103, 16
  %v7288 = vrot.slane %v7286, 5
  %v7289 = vsel %vm983, %v7284, %v7288
  %v7290 = vshrl.u32 %v7103, 16
  %v7292 = vrot.slane %v7290, 4
  %v7293 = vor.u32 %v7292, %v7288
  %v7294 = vrot.slane %v7293, 4
  %v7296 = vshll.u32 %v7104, 16
  %v7298 = vrot.slane %v7296, 5
  %v7299 = vsel %vm983, %v7294, %v7298
  %v7301 = vshrl.u32 %v7105, 16
  %v7303 = vrot.slane %v7301, 4
  %v7304 = vshll.u32 %v7105, 16
  %v7306 = vrot.slane %v7304, 5
  %v7307 = vor.u32 %v7303, %v7306
  %v7308 = vrot.slane %v7307, 4
  %v7310 = vshll.u32 %v7106, 16
  %v7312 = vrot.slane %v7310, 5
  %v7313 = vsel %vm983, %v7308, %v7312
  %v7314 = vshrl.u32 %v7106, 16
  %v7316 = vrot.slane %v7314, 4
  %v7317 = vor.u32 %v7316, %v7312
  %v7318 = vrot.slane %v7317, 4
  %v7320 = vshll.u32 %v7107, 16
  %v7322 = vrot.slane %v7320, 5
  %v7323 = vsel %vm983, %v7318, %v7322
  %v7325 = vshrl.u32 %v7108, 16
  %v7327 = vrot.slane %v7325, 4
  %v7328 = vshll.u32 %v7108, 16
  %v7330 = vrot.slane %v7328, 5
  %v7331 = vor.u32 %v7327, %v7330
  %v7332 = vrot.slane %v7331, 4
  %v7334 = vshll.u32 %v7109, 16
  %v7336 = vrot.slane %v7334, 5
  %v7337 = vsel %vm983, %v7332, %v7336
  %v7338 = vshrl.u32 %v7109, 16
  %v7340 = vrot.slane %v7338, 4
  %v7341 = vor.u32 %v7340, %v7336
  %v7342 = vrot.slane %v7341, 4
  %v7344 = vshll.u32 %v7110, 16
  %v7346 = vrot.slane %v7344, 5
  %v7347 = vsel %vm983, %v7342, %v7346
  %v7349 = vshrl.u32 %v7111, 16
  %v7351 = vrot.slane %v7349, 4
  %v7352 = vshll.u32 %v7111, 16
  %v7354 = vrot.slane %v7352, 5
  %v7355 = vor.u32 %v7351, %v7354
  %v7356 = vrot.slane %v7355, 4
  %v7358 = vshll.u32 %v7112, 16
  %v7360 = vrot.slane %v7358, 5
  %v7361 = vsel %vm983, %v7356, %v7360
  %v7362 = vshrl.u32 %v7112, 16
  %v7364 = vrot.slane %v7362, 4
  %v7365 = vor.u32 %v7364, %v7360
  %v7366 = vrot.slane %v7365, 4
  %v7368 = vshll.u32 %v7113, 16
  %v7370 = vrot.slane %v7368, 5
  %v7371 = vsel %vm983, %v7366, %v7370
  %v7373 = vshrl.u32 %v7114, 16
  %v7375 = vrot.slane %v7373, 4
  %v7376 = vshll.u32 %v7114, 16
  %v7378 = vrot.slane %v7376, 5
  %v7379 = vor.u32 %v7375, %v7378
  %v7380 = vrot.slane %v7379, 4
  %v7382 = vshll.u32 %v7115, 16
  %v7384 = vrot.slane %v7382, 5
  %v7385 = vsel %vm983, %v7380, %v7384
  %v7386 = vshrl.u32 %v7115, 16
  %v7388 = vrot.slane %v7386, 4
  %v7389 = vor.u32 %v7388, %v7384
  %v7390 = vrot.slane %v7389, 4
  %v7392 = vshll.u32 %v7116, 16
  %v7394 = vrot.slane %v7392, 5
  %v7395 = vsel %vm983, %v7390, %v7394
  %v7397 = vshrl.u32 %v7117, 16
  %v7399 = vrot.slane %v7397, 4
  %v7400 = vshll.u32 %v7117, 16
  %v7402 = vrot.slane %v7400, 5
  %v7403 = vor.u32 %v7399, %v7402
  %v7404 = vrot.slane %v7403, 4
  %v7406 = vshll.u32 %v7118, 16
  %v7408 = vrot.slane %v7406, 5
  %v7409 = vsel %vm983, %v7404, %v7408
  %v7410 = vshrl.u32 %v7118, 16
  %v7412 = vrot.slane %v7410, 4
  %v7413 = vor.u32 %v7412, %v7408
  %v7414 = vrot.slane %v7413, 4
  %v7416 = vshll.u32 %v7119, 16
  %v7418 = vrot.slane %v7416, 5
  %v7419 = vsel %vm983, %v7414, %v7418
  %v7421 = vshrl.u32 %v7120, 16
  %v7423 = vrot.slane %v7421, 4
  %v7424 = vshll.u32 %v7120, 16
  %v7426 = vrot.slane %v7424, 5
  %v7427 = vor.u32 %v7423, %v7426
  %v7428 = vrot.slane %v7427, 4
  %v7430 = vshll.u32 %v7121, 16
  %v7432 = vrot.slane %v7430, 5
  %v7433 = vsel %vm983, %v7428, %v7432
  %v7434 = vshrl.u32 %v7121, 16
  %v7436 = vrot.slane %v7434, 4
  %v7437 = vor.u32 %v7436, %v7432
  %v7438 = vrot.slane %v7437, 4
  %v7440 = vshll.u32 %v7122, 16
  %v7442 = vrot.slane %v7440, 5
  %v7443 = vsel %vm983, %v7438, %v7442
  %v7445 = vshrl.u32 %v7123, 16
  %v7447 = vrot.slane %v7445, 4
  %v7448 = vshll.u32 %v7123, 16
  %v7450 = vrot.slane %v7448, 5
  %v7451 = vor.u32 %v7447, %v7450
  %v7452 = vrot.slane %v7451, 4
  %v7454 = vshll.u32 %v7124, 16
  %v7456 = vrot.slane %v7454, 5
  %v7457 = vsel %vm983, %v7452, %v7456
  %v7458 = vshrl.u32 %v7124, 16
  %v7460 = vrot.slane %v7458, 4
  %v7461 = vor.u32 %v7460, %v7456
  %v7462 = vrot.slane %v7461, 4
  %v7464 = vshll.u32 %v7125, 16
  %v7466 = vrot.slane %v7464, 5
  %v7467 = vsel %vm983, %v7462, %v7466
  %v7469 = vshrl.u32 %v7126, 16
  %v7471 = vrot.slane %v7469, 4
  %v7472 = vshll.u32 %v7126, 16
  %v7474 = vrot.slane %v7472, 5
  %v7475 = vor.u32 %v7471, %v7474
  %v7476 = vrot.slane %v7475, 4
  %v7478 = vshll.u32 %v7127, 16
  %v7480 = vrot.slane %v7478, 5
  %v7481 = vsel %vm983, %v7476, %v7480
  %v7482 = vshrl.u32 %v7127, 16
  %v7484 = vrot.slane %v7482, 4
  %v7485 = vor.u32 %v7484, %v7480
  %v7486 = vrot.slane %v7485, 4
  %v7488 = vshll.u32 %v7128, 16
  %v7490 = vrot.slane %v7488, 5
  %v7491 = vsel %vm983, %v7486, %v7490
  %v7493 = vshrl.u32 %v7129, 16
  %v7495 = vrot.slane %v7493, 4
  %v7496 = vshll.u32 %v7129, 16
  %v7498 = vrot.slane %v7496, 5
  %v7499 = vor.u32 %v7495, %v7498
  %v7500 = vrot.slane %v7499, 4
  %v7502 = vshll.u32 %v7130, 16
  %v7504 = vrot.slane %v7502, 5
  %v7505 = vsel %vm983, %v7500, %v7504
  %v7506 = vshrl.u32 %v7130, 16
  %v7508 = vrot.slane %v7506, 4
  %v7509 = vor.u32 %v7508, %v7504
  %v7510 = vrot.slane %v7509, 4
  %v7512 = vshll.u32 %v7131, 16
  %v7514 = vrot.slane %v7512, 5
  %v7515 = vsel %vm983, %v7510, %v7514
  %v7516 = vld [vmem:[%s3 + $0x40] sm:$0xf]
  %v7517 = vld [vmem:[%s3 + $0x44] sm:$0xf]
  %v7518 = vld [vmem:[%s3 + $0x48] sm:$0xf]
  %v7519 = vld [vmem:[%s3 + $0x4c] sm:$0xf]
  %v7520 = vld [vmem:[%s3 + $0x50] sm:$0xf]
  %v7521 = vld [vmem:[%s3 + $0x54] sm:$0xf]
  %v7522 = vld [vmem:[%s3 + $0x58] sm:$0xf]
  %v7523 = vld [vmem:[%s3 + $0x5c] sm:$0xf]
  %v7524 = vld [vmem:[%s3 + $0x60] sm:$0xf]
  %v7525 = vld [vmem:[%s3 + $0x64] sm:$0xf]
  %v7526 = vld [vmem:[%s3 + $0x68] sm:$0xf]
  %v7527 = vld [vmem:[%s3 + $0x6c] sm:$0xf]
  %v7528 = vld [vmem:[%s3 + $0x70] sm:$0xf]
  %v7529 = vld [vmem:[%s3 + $0x74] sm:$0xf]
  %v7530 = vld [vmem:[%s3 + $0x78] sm:$0xf]
  %v7531 = vld [vmem:[%s3 + $0x7c] sm:$0xf]
  %v7532 = vunpack.c.l.b16 %v7145
  %v7533 = vunpack.c.l.b16 %v7155
  %v7534 = vunpack.c.l.b16 %v7169
  %v7535 = vunpack.c.l.b16 %v7179
  %v7536 = vunpack.c.l.b16 %v7193
  %v7537 = vunpack.c.l.b16 %v7203
  %v7538 = vunpack.c.l.b16 %v7217
  %v7539 = vunpack.c.l.b16 %v7227
  %v7540 = vunpack.c.l.b16 %v7241
  %v7541 = vunpack.c.l.b16 %v7251
  %v7542 = vunpack.c.l.b16 %v7265
  %v7543 = vunpack.c.l.b16 %v7275
  %v7544 = vunpack.c.l.b16 %v7289
  %v7545 = vunpack.c.l.b16 %v7299
  %v7546 = vunpack.c.l.b16 %v7313
  %v7547 = vunpack.c.l.b16 %v7323
  %v7548 = vunpack.c.l.b16 %v7337
  %v7549 = vunpack.c.l.b16 %v7347
  %v7550 = vunpack.c.l.b16 %v7361
  %v7551 = vunpack.c.l.b16 %v7371
  %v7552 = vunpack.c.l.b16 %v7385
  %v7553 = vunpack.c.l.b16 %v7395
  %v7554 = vunpack.c.l.b16 %v7409
  %v7555 = vunpack.c.l.b16 %v7419
  %v7556 = vunpack.c.l.b16 %v7433
  %v7557 = vunpack.c.l.b16 %v7443
  %v7558 = vunpack.c.l.b16 %v7457
  %v7559 = vunpack.c.l.b16 %v7467
  %v7560 = vunpack.c.l.b16 %v7481
  %v7561 = vunpack.c.l.b16 %v7491
  %v7562 = vunpack.c.l.b16 %v7505
  %v7563 = vunpack.c.l.b16 %v7515
  %v7564 = vpack.c.b16 %v7533, %v7532
  %v7565 = vpack.c.b16 %v7535, %v7534
  %v7566 = vpack.c.b16 %v7537, %v7536
  %v7567 = vpack.c.b16 %v7539, %v7538
  %v7568 = vpack.c.b16 %v7541, %v7540
  %v7569 = vpack.c.b16 %v7543, %v7542
  %v7570 = vpack.c.b16 %v7545, %v7544
  %v7571 = vpack.c.b16 %v7547, %v7546
  %v7572 = vpack.c.b16 %v7549, %v7548
  %v7573 = vpack.c.b16 %v7551, %v7550
  %v7574 = vpack.c.b16 %v7553, %v7552
  %v7575 = vpack.c.b16 %v7555, %v7554
  %v7576 = vpack.c.b16 %v7557, %v7556
  %v7577 = vpack.c.b16 %v7559, %v7558
  %v7578 = vpack.c.b16 %v7561, %v7560
  %v7579 = vpack.c.b16 %v7563, %v7562
  %v7612 = vunpack.c.l.b16 %v7516
  %v7613 = vunpack.c.l.b16 %v7517
  %v7614 = vunpack.c.l.b16 %v7518
  %v7615 = vunpack.c.l.b16 %v7519
  %v7616 = vunpack.c.l.b16 %v7520
  %v7617 = vunpack.c.l.b16 %v7521
  %v7618 = vunpack.c.l.b16 %v7522
  %v7619 = vunpack.c.l.b16 %v7523
  %v7620 = vunpack.c.l.b16 %v7524
  %v7621 = vunpack.c.l.b16 %v7525
  %v7622 = vunpack.c.l.b16 %v7526
  %v7623 = vunpack.c.l.b16 %v7527
  %v7624 = vunpack.c.l.b16 %v7528
  %v7625 = vunpack.c.l.b16 %v7529
  %v7626 = vunpack.c.l.b16 %v7530
  %v7627 = vunpack.c.l.b16 %v7531
  %v7628 = vpack.c.b16 %v7613, %v7612
  %v7629 = vpack.c.b16 %v7615, %v7614
  %v7630 = vpack.c.b16 %v7617, %v7616
  %v7631 = vpack.c.b16 %v7619, %v7618
  %v7632 = vpack.c.b16 %v7621, %v7620
  %v7633 = vpack.c.b16 %v7623, %v7622
  %v7634 = vpack.c.b16 %v7625, %v7624
  %v7635 = vpack.c.b16 %v7627, %v7626
  %7644 = vmatprep.subr.bf16.mxu0 0
  %7645 = vmatpush1.bf16.msra.mxu0 %v7635
  %7646 = vmatprep.subr.bf16.mxu0 0
  %7647 = vmatpush1.bf16.msra.mxu0 %v7634
  %7648 = vmatprep.subr.bf16.mxu0 0
  %7649 = vmatpush1.bf16.msra.mxu0 %v7633
  %7650 = vmatprep.subr.bf16.mxu0 0
  %7651 = vmatpush1.bf16.msra.mxu0 %v7632
  %7652 = vmatprep.subr.bf16.mxu0 0
  %7653 = vmatpush1.bf16.msra.mxu0 %v7631
  %7654 = vmatprep.subr.bf16.mxu0 0
  %7655 = vmatpush1.bf16.msra.mxu0 %v7630
  %7656 = vmatprep.subr.bf16.mxu0 0
  %7657 = vmatpush1.bf16.msra.mxu0 %v7629
  %7658 = vmatprep.subr.bf16.mxu0 0
  %7659 = vmatpush1.bf16.msra.mxu0 %v7628
  %7660 = vmatprep.subr.bf16.mxu0 0
  %7661 = vmatpush2.bf16.msra.mxu0 0
  %7662 = vmatprep.subr.bf16.mxu0 0
  %7663 = vmatpush2.bf16.msra.mxu0 0
  %7664 = vmatprep.subr.bf16.mxu0 0
  %7665 = vmatpush2.bf16.msra.mxu0 0
  %7666 = vmatprep.subr.bf16.mxu0 0
  %7667 = vmatpush2.bf16.msra.mxu0 0
  %7668 = vmatprep.subr.bf16.mxu0 0
  %7669 = vmatpush2.bf16.msra.mxu0 0
  %7670 = vmatprep.subr.bf16.mxu0 0
  %7671 = vmatpush2.bf16.msra.mxu0 0
  %7672 = vmatprep.subr.bf16.mxu0 0
  %7673 = vmatpush2.bf16.msra.mxu0 0
  %7674 = vmatprep.subr.bf16.mxu0 0
  %7675 = vmatpush2.bf16.msra.mxu0 0
  %7676 = vmatprep.mubr.bf16.mxu0 0
  %7677 = vmatmul.mubr.bf16.gmra.mxu0 %v7564
  %v7678 = vpop.f32.mrf.mxu0
  %v7679 = vadd.f32 0.0, %v7678
  %v7680 = vpop.f32.mrf.mxu0
  %v7681 = vpop.f32.mrf.mxu0
  %v7682 = vadd.f32 0.0, %v7681
  %v7683 = vpop.f32.mrf.mxu0
  %7684 = vmatprep.mubr.bf16.mxu0 0
  %7685 = vmatmul.mubr.bf16.gmra.mxu0 %v7565
  %v7686 = vpop.f32.mrf.mxu0
  %v7687 = vadd.f32 0.0, %v7686
  %v7688 = vpop.f32.mrf.mxu0
  %v7689 = vpop.f32.mrf.mxu0
  %v7690 = vadd.f32 0.0, %v7689
  %v7691 = vpop.f32.mrf.mxu0
  %7692 = vmatprep.mubr.bf16.mxu0 0
  %7693 = vmatmul.mubr.bf16.gmra.mxu0 %v7566
  %v7694 = vpop.f32.mrf.mxu0
  %v7695 = vadd.f32 0.0, %v7694
  %v7696 = vpop.f32.mrf.mxu0
  %v7697 = vpop.f32.mrf.mxu0
  %v7698 = vadd.f32 0.0, %v7697
  %v7699 = vpop.f32.mrf.mxu0
  %7700 = vmatprep.mubr.bf16.mxu0 0
  %7701 = vmatmul.mubr.bf16.gmra.mxu0 %v7567
  %v7702 = vpop.f32.mrf.mxu0
  %v7703 = vadd.f32 0.0, %v7702
  %v7704 = vpop.f32.mrf.mxu0
  %v7705 = vpop.f32.mrf.mxu0
  %v7706 = vadd.f32 0.0, %v7705
  %v7707 = vpop.f32.mrf.mxu0
  %7708 = vmatprep.mubr.bf16.mxu0 0
  %7709 = vmatmul.mubr.bf16.gmra.mxu0 %v7568
  %v7710 = vpop.f32.mrf.mxu0
  %v7711 = vadd.f32 0.0, %v7710
  %v7712 = vpop.f32.mrf.mxu0
  %v7713 = vpop.f32.mrf.mxu0
  %v7714 = vadd.f32 0.0, %v7713
  %v7715 = vpop.f32.mrf.mxu0
  %7716 = vmatprep.mubr.bf16.mxu0 0
  %7717 = vmatmul.mubr.bf16.gmra.mxu0 %v7569
  %v7718 = vpop.f32.mrf.mxu0
  %v7719 = vadd.f32 0.0, %v7718
  %v7720 = vpop.f32.mrf.mxu0
  %v7721 = vpop.f32.mrf.mxu0
  %v7722 = vadd.f32 0.0, %v7721
  %v7723 = vpop.f32.mrf.mxu0
  %7724 = vmatprep.mubr.bf16.mxu0 0
  %7725 = vmatmul.mubr.bf16.gmra.mxu0 %v7570
  %v7726 = vpop.f32.mrf.mxu0
  %v7727 = vadd.f32 0.0, %v7726
  %v7728 = vpop.f32.mrf.mxu0
  %v7729 = vpop.f32.mrf.mxu0
  %v7730 = vadd.f32 0.0, %v7729
  %v7731 = vpop.f32.mrf.mxu0
  %7732 = vmatprep.mubr.bf16.mxu0 0
  %7733 = vmatmul.mubr.bf16.gmra.mxu0 %v7571
  %v7734 = vpop.f32.mrf.mxu0
  %v7735 = vadd.f32 0.0, %v7734
  %v7736 = vpop.f32.mrf.mxu0
  %v7737 = vpop.f32.mrf.mxu0
  %v7738 = vadd.f32 0.0, %v7737
  %v7739 = vpop.f32.mrf.mxu0
  %7740 = vmatprep.mubr.bf16.mxu0 0
  %7741 = vmatmul.mubr.bf16.gmra.mxu0 %v7572
  %v7742 = vpop.f32.mrf.mxu0
  %v7743 = vadd.f32 0.0, %v7742
  %v7744 = vpop.f32.mrf.mxu0
  %v7745 = vpop.f32.mrf.mxu0
  %v7746 = vadd.f32 0.0, %v7745
  %v7747 = vpop.f32.mrf.mxu0
  %7748 = vmatprep.mubr.bf16.mxu0 0
  %7749 = vmatmul.mubr.bf16.gmra.mxu0 %v7573
  %v7750 = vpop.f32.mrf.mxu0
  %v7751 = vadd.f32 0.0, %v7750
  %v7752 = vpop.f32.mrf.mxu0
  %v7753 = vpop.f32.mrf.mxu0
  %v7754 = vadd.f32 0.0, %v7753
  %v7755 = vpop.f32.mrf.mxu0
  %7756 = vmatprep.mubr.bf16.mxu0 0
  %7757 = vmatmul.mubr.bf16.gmra.mxu0 %v7574
  %v7758 = vpop.f32.mrf.mxu0
  %v7759 = vadd.f32 0.0, %v7758
  %v7760 = vpop.f32.mrf.mxu0
  %v7761 = vpop.f32.mrf.mxu0
  %v7762 = vadd.f32 0.0, %v7761
  %v7763 = vpop.f32.mrf.mxu0
  %7764 = vmatprep.mubr.bf16.mxu0 0
  %7765 = vmatmul.mubr.bf16.gmra.mxu0 %v7575
  %v7766 = vpop.f32.mrf.mxu0
  %v7767 = vadd.f32 0.0, %v7766
  %v7768 = vpop.f32.mrf.mxu0
  %v7769 = vpop.f32.mrf.mxu0
  %v7770 = vadd.f32 0.0, %v7769
  %v7771 = vpop.f32.mrf.mxu0
  %7772 = vmatprep.mubr.bf16.mxu0 0
  %7773 = vmatmul.mubr.bf16.gmra.mxu0 %v7576
  %v7774 = vpop.f32.mrf.mxu0
  %v7775 = vadd.f32 0.0, %v7774
  %v7776 = vpop.f32.mrf.mxu0
  %v7777 = vpop.f32.mrf.mxu0
  %v7778 = vadd.f32 0.0, %v7777
  %v7779 = vpop.f32.mrf.mxu0
  %7780 = vmatprep.mubr.bf16.mxu0 0
  %7781 = vmatmul.mubr.bf16.gmra.mxu0 %v7577
  %v7782 = vpop.f32.mrf.mxu0
  %v7783 = vadd.f32 0.0, %v7782
  %v7784 = vpop.f32.mrf.mxu0
  %v7785 = vpop.f32.mrf.mxu0
  %v7786 = vadd.f32 0.0, %v7785
  %v7787 = vpop.f32.mrf.mxu0
  %7788 = vmatprep.mubr.bf16.mxu0 0
  %7789 = vmatmul.mubr.bf16.gmra.mxu0 %v7578
  %v7790 = vpop.f32.mrf.mxu0
  %v7791 = vadd.f32 0.0, %v7790
  %v7792 = vpop.f32.mrf.mxu0
  %v7793 = vpop.f32.mrf.mxu0
  %v7794 = vadd.f32 0.0, %v7793
  %v7795 = vpop.f32.mrf.mxu0
  %7796 = vmatprep.mubr.bf16.mxu0 0
  %7797 = vmatmul.mubr.bf16.gmra.mxu0 %v7579
  %v7798 = vpop.f32.mrf.mxu0
  %v7799 = vadd.f32 0.0, %v7798
  %v7800 = vpop.f32.mrf.mxu0
  %v7801 = vpop.f32.mrf.mxu0
  %v7802 = vadd.f32 0.0, %v7801
  %v7803 = vpop.f32.mrf.mxu0
  %7804 = vdwg.mxu0
  %v7805 = vld [vmem:[#allocation3] sm:$0xff]
  %v7806 = vld [vmem:[#allocation3 + $0x8] sm:$0xff]
  %v7807 = vld [vmem:[#allocation3 + $0x10] sm:$0xff]
  %v7808 = vld [vmem:[#allocation3 + $0x18] sm:$0xff]
  %v7809 = vld [vmem:[#allocation3 + $0x20] sm:$0xff]
  %v7810 = vld [vmem:[#allocation3 + $0x28] sm:$0xff]
  %v7811 = vld [vmem:[#allocation3 + $0x30] sm:$0xff]
  %v7812 = vld [vmem:[#allocation3 + $0x38] sm:$0xff]
  %v7813 = vld [vmem:[#allocation3 + $0x40] sm:$0xff]
  %v7814 = vld [vmem:[#allocation3 + $0x48] sm:$0xff]
  %v7815 = vld [vmem:[#allocation3 + $0x50] sm:$0xff]
  %v7816 = vld [vmem:[#allocation3 + $0x58] sm:$0xff]
  %v7817 = vld [vmem:[#allocation3 + $0x60] sm:$0xff]
  %v7818 = vld [vmem:[#allocation3 + $0x68] sm:$0xff]
  %v7819 = vld [vmem:[#allocation3 + $0x70] sm:$0xff]
  %v7820 = vld [vmem:[#allocation3 + $0x78] sm:$0xff]
  %v7821 = vld [vmem:[#allocation3 + $0x80] sm:$0xff]
  %v7822 = vld [vmem:[#allocation3 + $0x88] sm:$0xff]
  %v7823 = vld [vmem:[#allocation3 + $0x90] sm:$0xff]
  %v7824 = vld [vmem:[#allocation3 + $0x98] sm:$0xff]
  %v7825 = vld [vmem:[#allocation3 + $0xa0] sm:$0xff]
  %v7826 = vld [vmem:[#allocation3 + $0xa8] sm:$0xff]
  %v7827 = vld [vmem:[#allocation3 + $0xb0] sm:$0xff]
  %v7828 = vld [vmem:[#allocation3 + $0xb8] sm:$0xff]
  %v7829 = vld [vmem:[#allocation3 + $0xc0] sm:$0xff]
  %v7830 = vld [vmem:[#allocation3 + $0xc8] sm:$0xff]
  %v7831 = vld [vmem:[#allocation3 + $0xd0] sm:$0xff]
  %v7832 = vld [vmem:[#allocation3 + $0xd8] sm:$0xff]
  %v7833 = vld [vmem:[#allocation3 + $0xe0] sm:$0xff]
  %v7834 = vld [vmem:[#allocation3 + $0xe8] sm:$0xff]
  %v7835 = vld [vmem:[#allocation3 + $0xf0] sm:$0xff]
  %v7836 = vld [vmem:[#allocation3 + $0xf8] sm:$0xff]
  %v7837 = vadd.f32 %v7805, %v7679
  %v7838 = vadd.f32 %v7806, %v7682
  %v7839 = vadd.f32 %v7807, %v7687
  %v7840 = vadd.f32 %v7808, %v7690
  %v7841 = vadd.f32 %v7809, %v7695
  %v7842 = vadd.f32 %v7810, %v7698
  %v7843 = vadd.f32 %v7811, %v7703
  %v7844 = vadd.f32 %v7812, %v7706
  %v7845 = vadd.f32 %v7813, %v7711
  %v7846 = vadd.f32 %v7814, %v7714
  %v7847 = vadd.f32 %v7815, %v7719
  %v7848 = vadd.f32 %v7816, %v7722
  %v7849 = vadd.f32 %v7817, %v7727
  %v7850 = vadd.f32 %v7818, %v7730
  %v7851 = vadd.f32 %v7819, %v7735
  %v7852 = vadd.f32 %v7820, %v7738
  %v7853 = vadd.f32 %v7821, %v7743
  %v7854 = vadd.f32 %v7822, %v7746
  %v7855 = vadd.f32 %v7823, %v7751
  %v7856 = vadd.f32 %v7824, %v7754
  %v7857 = vadd.f32 %v7825, %v7759
  %v7858 = vadd.f32 %v7826, %v7762
  %v7859 = vadd.f32 %v7827, %v7767
  %v7860 = vadd.f32 %v7828, %v7770
  %v7861 = vadd.f32 %v7829, %v7775
  %v7862 = vadd.f32 %v7830, %v7778
  %v7863 = vadd.f32 %v7831, %v7783
  %v7864 = vadd.f32 %v7832, %v7786
  %v7865 = vadd.f32 %v7833, %v7791
  %v7866 = vadd.f32 %v7834, %v7794
  %v7867 = vadd.f32 %v7835, %v7799
  %v7868 = vadd.f32 %v7836, %v7802
  %7869 = vst [vmem:[#allocation3] sm:$0xff] %v7837
  %7870 = vst [vmem:[#allocation3 + $0x8] sm:$0xff] %v7838
  %7871 = vst [vmem:[#allocation3 + $0x10] sm:$0xff] %v7839
  %7872 = vst [vmem:[#allocation3 + $0x18] sm:$0xff] %v7840
  %7873 = vst [vmem:[#allocation3 + $0x20] sm:$0xff] %v7841
  %7874 = vst [vmem:[#allocation3 + $0x28] sm:$0xff] %v7842
  %7875 = vst [vmem:[#allocation3 + $0x30] sm:$0xff] %v7843
  %7876 = vst [vmem:[#allocation3 + $0x38] sm:$0xff] %v7844
  %7877 = vst [vmem:[#allocation3 + $0x40] sm:$0xff] %v7845
  %7878 = vst [vmem:[#allocation3 + $0x48] sm:$0xff] %v7846
  %7879 = vst [vmem:[#allocation3 + $0x50] sm:$0xff] %v7847
  %7880 = vst [vmem:[#allocation3 + $0x58] sm:$0xff] %v7848
  %7881 = vst [vmem:[#allocation3 + $0x60] sm:$0xff] %v7849
  %7882 = vst [vmem:[#allocation3 + $0x68] sm:$0xff] %v7850
  %7883 = vst [vmem:[#allocation3 + $0x70] sm:$0xff] %v7851
  %7884 = vst [vmem:[#allocation3 + $0x78] sm:$0xff] %v7852
  %7885 = vst [vmem:[#allocation3 + $0x80] sm:$0xff] %v7853
  %7886 = vst [vmem:[#allocation3 + $0x88] sm:$0xff] %v7854
  %7887 = vst [vmem:[#allocation3 + $0x90] sm:$0xff] %v7855
  %7888 = vst [vmem:[#allocation3 + $0x98] sm:$0xff] %v7856
  %7889 = vst [vmem:[#allocation3 + $0xa0] sm:$0xff] %v7857
  %7890 = vst [vmem:[#allocation3 + $0xa8] sm:$0xff] %v7858
  %7891 = vst [vmem:[#allocation3 + $0xb0] sm:$0xff] %v7859
  %7892 = vst [vmem:[#allocation3 + $0xb8] sm:$0xff] %v7860
  %7893 = vst [vmem:[#allocation3 + $0xc0] sm:$0xff] %v7861
  %7894 = vst [vmem:[#allocation3 + $0xc8] sm:$0xff] %v7862
  %7895 = vst [vmem:[#allocation3 + $0xd0] sm:$0xff] %v7863
  %7896 = vst [vmem:[#allocation3 + $0xd8] sm:$0xff] %v7864
  %7897 = vst [vmem:[#allocation3 + $0xe0] sm:$0xff] %v7865
  %7898 = vst [vmem:[#allocation3 + $0xe8] sm:$0xff] %v7866
  %7899 = vst [vmem:[#allocation3 + $0xf0] sm:$0xff] %v7867
  %7900 = vst [vmem:[#allocation3 + $0xf8] sm:$0xff] %v7868
  %v7901 = vld [vmem:[#allocation2] sm:$0xe]
  %v7902 = vld [vmem:[#allocation2 + $0x4] sm:$0xf]
  %v7903 = vld [vmem:[#allocation2 + $0x8] sm:$0x1]
  %v7904 = vld [vmem:[#allocation2 + $0xc] sm:$0xe]
  %v7905 = vld [vmem:[#allocation2 + $0x10] sm:$0xf]
  %v7906 = vld [vmem:[#allocation2 + $0x14] sm:$0x1]
  %v7907 = vld [vmem:[#allocation2 + $0x18] sm:$0xe]
  %v7908 = vld [vmem:[#allocation2 + $0x1c] sm:$0xf]
  %v7909 = vld [vmem:[#allocation2 + $0x20] sm:$0x1]
  %v7910 = vld [vmem:[#allocation2 + $0x24] sm:$0xe]
  %v7911 = vld [vmem:[#allocation2 + $0x28] sm:$0xf]
  %v7912 = vld [vmem:[#allocation2 + $0x2c] sm:$0x1]
  %v7913 = vld [vmem:[#allocation2 + $0x30] sm:$0xe]
  %v7914 = vld [vmem:[#allocation2 + $0x34] sm:$0xf]
  %v7915 = vld [vmem:[#allocation2 + $0x38] sm:$0x1]
  %v7916 = vld [vmem:[#allocation2 + $0x3c] sm:$0xe]
  %v7917 = vld [vmem:[#allocation2 + $0x40] sm:$0xf]
  %v7918 = vld [vmem:[#allocation2 + $0x44] sm:$0x1]
  %v7919 = vld [vmem:[#allocation2 + $0x48] sm:$0xe]
  %v7920 = vld [vmem:[#allocation2 + $0x4c] sm:$0xf]
  %v7921 = vld [vmem:[#allocation2 + $0x50] sm:$0x1]
  %v7922 = vld [vmem:[#allocation2 + $0x54] sm:$0xe]
  %v7923 = vld [vmem:[#allocation2 + $0x58] sm:$0xf]
  %v7924 = vld [vmem:[#allocation2 + $0x5c] sm:$0x1]
  %v7925 = vld [vmem:[#allocation2 + $0x60] sm:$0xe]
  %v7926 = vld [vmem:[#allocation2 + $0x64] sm:$0xf]
  %v7927 = vld [vmem:[#allocation2 + $0x68] sm:$0x1]
  %v7928 = vld [vmem:[#allocation2 + $0x6c] sm:$0xe]
  %v7929 = vld [vmem:[#allocation2 + $0x70] sm:$0xf]
  %v7930 = vld [vmem:[#allocation2 + $0x74] sm:$0x1]
  %v7931 = vld [vmem:[#allocation2 + $0x78] sm:$0xe]
  %v7932 = vld [vmem:[#allocation2 + $0x7c] sm:$0xf]
  %v7933 = vld [vmem:[#allocation2 + $0x80] sm:$0x1]
  %v7934 = vld [vmem:[#allocation2 + $0x84] sm:$0xe]
  %v7935 = vld [vmem:[#allocation2 + $0x88] sm:$0xf]
  %v7936 = vld [vmem:[#allocation2 + $0x8c] sm:$0x1]
  %v7937 = vld [vmem:[#allocation2 + $0x90] sm:$0xe]
  %v7938 = vld [vmem:[#allocation2 + $0x94] sm:$0xf]
  %v7939 = vld [vmem:[#allocation2 + $0x98] sm:$0x1]
  %v7940 = vld [vmem:[#allocation2 + $0x9c] sm:$0xe]
  %v7941 = vld [vmem:[#allocation2 + $0xa0] sm:$0xf]
  %v7942 = vld [vmem:[#allocation2 + $0xa4] sm:$0x1]
  %v7943 = vld [vmem:[#allocation2 + $0xa8] sm:$0xe]
  %v7944 = vld [vmem:[#allocation2 + $0xac] sm:$0xf]
  %v7945 = vld [vmem:[#allocation2 + $0xb0] sm:$0x1]
  %v7946 = vld [vmem:[#allocation2 + $0xb4] sm:$0xe]
  %v7947 = vld [vmem:[#allocation2 + $0xb8] sm:$0xf]
  %v7948 = vld [vmem:[#allocation2 + $0xbc] sm:$0x1]
  %v7997 = vrot.slane %v7901, 5
  %v7998 = vrot.slane %v7997, 4
  %v7999 = vrot.slane %v7902, 5
  %v8000 = vsel %vm1851, %v7998, %v7999
  %v8001 = vrot.slane %v7999, 4
  %v8002 = vrot.slane %v7903, 5
  %v8003 = vsel %vm1851, %v8001, %v8002
  %v8004 = vrot.slane %v7904, 5
  %v8005 = vrot.slane %v8004, 4
  %v8006 = vrot.slane %v7905, 5
  %v8007 = vsel %vm1851, %v8005, %v8006
  %v8008 = vrot.slane %v8006, 4
  %v8009 = vrot.slane %v7906, 5
  %v8010 = vsel %vm1851, %v8008, %v8009
  %v8011 = vrot.slane %v7907, 5
  %v8012 = vrot.slane %v8011, 4
  %v8013 = vrot.slane %v7908, 5
  %v8014 = vsel %vm1851, %v8012, %v8013
  %v8015 = vrot.slane %v8013, 4
  %v8016 = vrot.slane %v7909, 5
  %v8017 = vsel %vm1851, %v8015, %v8016
  %v8018 = vrot.slane %v7910, 5
  %v8019 = vrot.slane %v8018, 4
  %v8020 = vrot.slane %v7911, 5
  %v8021 = vsel %vm1851, %v8019, %v8020
  %v8022 = vrot.slane %v8020, 4
  %v8023 = vrot.slane %v7912, 5
  %v8024 = vsel %vm1851, %v8022, %v8023
  %v8025 = vrot.slane %v7913, 5
  %v8026 = vrot.slane %v8025, 4
  %v8027 = vrot.slane %v7914, 5
  %v8028 = vsel %vm1851, %v8026, %v8027
  %v8029 = vrot.slane %v8027, 4
  %v8030 = vrot.slane %v7915, 5
  %v8031 = vsel %vm1851, %v8029, %v8030
  %v8032 = vrot.slane %v7916, 5
  %v8033 = vrot.slane %v8032, 4
  %v8034 = vrot.slane %v7917, 5
  %v8035 = vsel %vm1851, %v8033, %v8034
  %v8036 = vrot.slane %v8034, 4
  %v8037 = vrot.slane %v7918, 5
  %v8038 = vsel %vm1851, %v8036, %v8037
  %v8039 = vrot.slane %v7919, 5
  %v8040 = vrot.slane %v8039, 4
  %v8041 = vrot.slane %v7920, 5
  %v8042 = vsel %vm1851, %v8040, %v8041
  %v8043 = vrot.slane %v8041, 4
  %v8044 = vrot.slane %v7921, 5
  %v8045 = vsel %vm1851, %v8043, %v8044
  %v8046 = vrot.slane %v7922, 5
  %v8047 = vrot.slane %v8046, 4
  %v8048 = vrot.slane %v7923, 5
  %v8049 = vsel %vm1851, %v8047, %v8048
  %v8050 = vrot.slane %v8048, 4
  %v8051 = vrot.slane %v7924, 5
  %v8052 = vsel %vm1851, %v8050, %v8051
  %v8053 = vrot.slane %v7925, 5
  %v8054 = vrot.slane %v8053, 4
  %v8055 = vrot.slane %v7926, 5
  %v8056 = vsel %vm1851, %v8054, %v8055
  %v8057 = vrot.slane %v8055, 4
  %v8058 = vrot.slane %v7927, 5
  %v8059 = vsel %vm1851, %v8057, %v8058
  %v8060 = vrot.slane %v7928, 5
  %v8061 = vrot.slane %v8060, 4
  %v8062 = vrot.slane %v7929, 5
  %v8063 = vsel %vm1851, %v8061, %v8062
  %v8064 = vrot.slane %v8062, 4
  %v8065 = vrot.slane %v7930, 5
  %v8066 = vsel %vm1851, %v8064, %v8065
  %v8067 = vrot.slane %v7931, 5
  %v8068 = vrot.slane %v8067, 4
  %v8069 = vrot.slane %v7932, 5
  %v8070 = vsel %vm1851, %v8068, %v8069
  %v8071 = vrot.slane %v8069, 4
  %v8072 = vrot.slane %v7933, 5
  %v8073 = vsel %vm1851, %v8071, %v8072
  %v8074 = vrot.slane %v7934, 5
  %v8075 = vrot.slane %v8074, 4
  %v8076 = vrot.slane %v7935, 5
  %v8077 = vsel %vm1851, %v8075, %v8076
  %v8078 = vrot.slane %v8076, 4
  %v8079 = vrot.slane %v7936, 5
  %v8080 = vsel %vm1851, %v8078, %v8079
  %v8081 = vrot.slane %v7937, 5
  %v8082 = vrot.slane %v8081, 4
  %v8083 = vrot.slane %v7938, 5
  %v8084 = vsel %vm1851, %v8082, %v8083
  %v8085 = vrot.slane %v8083, 4
  %v8086 = vrot.slane %v7939, 5
  %v8087 = vsel %vm1851, %v8085, %v8086
  %v8088 = vrot.slane %v7940, 5
  %v8089 = vrot.slane %v8088, 4
  %v8090 = vrot.slane %v7941, 5
  %v8091 = vsel %vm1851, %v8089, %v8090
  %v8092 = vrot.slane %v8090, 4
  %v8093 = vrot.slane %v7942, 5
  %v8094 = vsel %vm1851, %v8092, %v8093
  %v8095 = vrot.slane %v7943, 5
  %v8096 = vrot.slane %v8095, 4
  %v8097 = vrot.slane %v7944, 5
  %v8098 = vsel %vm1851, %v8096, %v8097
  %v8099 = vrot.slane %v8097, 4
  %v8100 = vrot.slane %v7945, 5
  %v8101 = vsel %vm1851, %v8099, %v8100
  %v8102 = vrot.slane %v7946, 5
  %v8103 = vrot.slane %v8102, 4
  %v8104 = vrot.slane %v7947, 5
  %v8105 = vsel %vm1851, %v8103, %v8104
  %v8106 = vrot.slane %v8104, 4
  %v8107 = vrot.slane %v7948, 5
  %v8108 = vsel %vm1851, %v8106, %v8107
  %v8109 = vld [vmem:[%s3 + $0x80] sm:$0xf]
  %v8110 = vld [vmem:[%s3 + $0x84] sm:$0xf]
  %v8111 = vld [vmem:[%s3 + $0x88] sm:$0xf]
  %v8112 = vld [vmem:[%s3 + $0x8c] sm:$0xf]
  %v8113 = vld [vmem:[%s3 + $0x90] sm:$0xf]
  %v8114 = vld [vmem:[%s3 + $0x94] sm:$0xf]
  %v8115 = vld [vmem:[%s3 + $0x98] sm:$0xf]
  %v8116 = vld [vmem:[%s3 + $0x9c] sm:$0xf]
  %v8117 = vld [vmem:[%s3 + $0xa0] sm:$0xf]
  %v8118 = vld [vmem:[%s3 + $0xa4] sm:$0xf]
  %v8119 = vld [vmem:[%s3 + $0xa8] sm:$0xf]
  %v8120 = vld [vmem:[%s3 + $0xac] sm:$0xf]
  %v8121 = vld [vmem:[%s3 + $0xb0] sm:$0xf]
  %v8122 = vld [vmem:[%s3 + $0xb4] sm:$0xf]
  %v8123 = vld [vmem:[%s3 + $0xb8] sm:$0xf]
  %v8124 = vld [vmem:[%s3 + $0xbc] sm:$0xf]
  %v8125 = vunpack.c.l.b16 %v8000
  %v8126 = vunpack.c.l.b16 %v8003
  %v8127 = vunpack.c.l.b16 %v8007
  %v8128 = vunpack.c.l.b16 %v8010
  %v8129 = vunpack.c.l.b16 %v8014
  %v8130 = vunpack.c.l.b16 %v8017
  %v8131 = vunpack.c.l.b16 %v8021
  %v8132 = vunpack.c.l.b16 %v8024
  %v8133 = vunpack.c.l.b16 %v8028
  %v8134 = vunpack.c.l.b16 %v8031
  %v8135 = vunpack.c.l.b16 %v8035
  %v8136 = vunpack.c.l.b16 %v8038
  %v8137 = vunpack.c.l.b16 %v8042
  %v8138 = vunpack.c.l.b16 %v8045
  %v8139 = vunpack.c.l.b16 %v8049
  %v8140 = vunpack.c.l.b16 %v8052
  %v8141 = vunpack.c.l.b16 %v8056
  %v8142 = vunpack.c.l.b16 %v8059
  %v8143 = vunpack.c.l.b16 %v8063
  %v8144 = vunpack.c.l.b16 %v8066
  %v8145 = vunpack.c.l.b16 %v8070
  %v8146 = vunpack.c.l.b16 %v8073
  %v8147 = vunpack.c.l.b16 %v8077
  %v8148 = vunpack.c.l.b16 %v8080
  %v8149 = vunpack.c.l.b16 %v8084
  %v8150 = vunpack.c.l.b16 %v8087
  %v8151 = vunpack.c.l.b16 %v8091
  %v8152 = vunpack.c.l.b16 %v8094
  %v8153 = vunpack.c.l.b16 %v8098
  %v8154 = vunpack.c.l.b16 %v8101
  %v8155 = vunpack.c.l.b16 %v8105
  %v8156 = vunpack.c.l.b16 %v8108
  %v8157 = vpack.c.b16 %v8126, %v8125
  %v8158 = vpack.c.b16 %v8128, %v8127
  %v8159 = vpack.c.b16 %v8130, %v8129
  %v8160 = vpack.c.b16 %v8132, %v8131
  %v8161 = vpack.c.b16 %v8134, %v8133
  %v8162 = vpack.c.b16 %v8136, %v8135
  %v8163 = vpack.c.b16 %v8138, %v8137
  %v8164 = vpack.c.b16 %v8140, %v8139
  %v8165 = vpack.c.b16 %v8142, %v8141
  %v8166 = vpack.c.b16 %v8144, %v8143
  %v8167 = vpack.c.b16 %v8146, %v8145
  %v8168 = vpack.c.b16 %v8148, %v8147
  %v8169 = vpack.c.b16 %v8150, %v8149
  %v8170 = vpack.c.b16 %v8152, %v8151
  %v8171 = vpack.c.b16 %v8154, %v8153
  %v8172 = vpack.c.b16 %v8156, %v8155
  %v8205 = vunpack.c.l.b16 %v8109
  %v8206 = vunpack.c.l.b16 %v8110
  %v8207 = vunpack.c.l.b16 %v8111
  %v8208 = vunpack.c.l.b16 %v8112
  %v8209 = vunpack.c.l.b16 %v8113
  %v8210 = vunpack.c.l.b16 %v8114
  %v8211 = vunpack.c.l.b16 %v8115
  %v8212 = vunpack.c.l.b16 %v8116
  %v8213 = vunpack.c.l.b16 %v8117
  %v8214 = vunpack.c.l.b16 %v8118
  %v8215 = vunpack.c.l.b16 %v8119
  %v8216 = vunpack.c.l.b16 %v8120
  %v8217 = vunpack.c.l.b16 %v8121
  %v8218 = vunpack.c.l.b16 %v8122
  %v8219 = vunpack.c.l.b16 %v8123
  %v8220 = vunpack.c.l.b16 %v8124
  %v8221 = vpack.c.b16 %v8206, %v8205
  %v8222 = vpack.c.b16 %v8208, %v8207
  %v8223 = vpack.c.b16 %v8210, %v8209
  %v8224 = vpack.c.b16 %v8212, %v8211
  %v8225 = vpack.c.b16 %v8214, %v8213
  %v8226 = vpack.c.b16 %v8216, %v8215
  %v8227 = vpack.c.b16 %v8218, %v8217
  %v8228 = vpack.c.b16 %v8220, %v8219
  %8237 = vmatprep.subr.bf16.mxu0 0
  %8238 = vmatpush1.bf16.msra.mxu0 %v8228
  %8239 = vmatprep.subr.bf16.mxu0 0
  %8240 = vmatpush1.bf16.msra.mxu0 %v8227
  %8241 = vmatprep.subr.bf16.mxu0 0
  %8242 = vmatpush1.bf16.msra.mxu0 %v8226
  %8243 = vmatprep.subr.bf16.mxu0 0
  %8244 = vmatpush1.bf16.msra.mxu0 %v8225
  %8245 = vmatprep.subr.bf16.mxu0 0
  %8246 = vmatpush1.bf16.msra.mxu0 %v8224
  %8247 = vmatprep.subr.bf16.mxu0 0
  %8248 = vmatpush1.bf16.msra.mxu0 %v8223
  %8249 = vmatprep.subr.bf16.mxu0 0
  %8250 = vmatpush1.bf16.msra.mxu0 %v8222
  %8251 = vmatprep.subr.bf16.mxu0 0
  %8252 = vmatpush1.bf16.msra.mxu0 %v8221
  %8253 = vmatprep.subr.bf16.mxu0 0
  %8254 = vmatpush2.bf16.msra.mxu0 0
  %8255 = vmatprep.subr.bf16.mxu0 0
  %8256 = vmatpush2.bf16.msra.mxu0 0
  %8257 = vmatprep.subr.bf16.mxu0 0
  %8258 = vmatpush2.bf16.msra.mxu0 0
  %8259 = vmatprep.subr.bf16.mxu0 0
  %8260 = vmatpush2.bf16.msra.mxu0 0
  %8261 = vmatprep.subr.bf16.mxu0 0
  %8262 = vmatpush2.bf16.msra.mxu0 0
  %8263 = vmatprep.subr.bf16.mxu0 0
  %8264 = vmatpush2.bf16.msra.mxu0 0
  %8265 = vmatprep.subr.bf16.mxu0 0
  %8266 = vmatpush2.bf16.msra.mxu0 0
  %8267 = vmatprep.subr.bf16.mxu0 0
  %8268 = vmatpush2.bf16.msra.mxu0 0
  %8269 = vmatprep.mubr.bf16.mxu0 0
  %8270 = vmatmul.mubr.bf16.gmra.mxu0 %v8157
  %v8271 = vpop.f32.mrf.mxu0
  %v8272 = vadd.f32 0.0, %v8271
  %v8273 = vpop.f32.mrf.mxu0
  %v8274 = vpop.f32.mrf.mxu0
  %v8275 = vadd.f32 0.0, %v8274
  %v8276 = vpop.f32.mrf.mxu0
  %8277 = vmatprep.mubr.bf16.mxu0 0
  %8278 = vmatmul.mubr.bf16.gmra.mxu0 %v8158
  %v8279 = vpop.f32.mrf.mxu0
  %v8280 = vadd.f32 0.0, %v8279
  %v8281 = vpop.f32.mrf.mxu0
  %v8282 = vpop.f32.mrf.mxu0
  %v8283 = vadd.f32 0.0, %v8282
  %v8284 = vpop.f32.mrf.mxu0
  %8285 = vmatprep.mubr.bf16.mxu0 0
  %8286 = vmatmul.mubr.bf16.gmra.mxu0 %v8159
  %v8287 = vpop.f32.mrf.mxu0
  %v8288 = vadd.f32 0.0, %v8287
  %v8289 = vpop.f32.mrf.mxu0
  %v8290 = vpop.f32.mrf.mxu0
  %v8291 = vadd.f32 0.0, %v8290
  %v8292 = vpop.f32.mrf.mxu0
  %8293 = vmatprep.mubr.bf16.mxu0 0
  %8294 = vmatmul.mubr.bf16.gmra.mxu0 %v8160
  %v8295 = vpop.f32.mrf.mxu0
  %v8296 = vadd.f32 0.0, %v8295
  %v8297 = vpop.f32.mrf.mxu0
  %v8298 = vpop.f32.mrf.mxu0
  %v8299 = vadd.f32 0.0, %v8298
  %v8300 = vpop.f32.mrf.mxu0
  %8301 = vmatprep.mubr.bf16.mxu0 0
  %8302 = vmatmul.mubr.bf16.gmra.mxu0 %v8161
  %v8303 = vpop.f32.mrf.mxu0
  %v8304 = vadd.f32 0.0, %v8303
  %v8305 = vpop.f32.mrf.mxu0
  %v8306 = vpop.f32.mrf.mxu0
  %v8307 = vadd.f32 0.0, %v8306
  %v8308 = vpop.f32.mrf.mxu0
  %8309 = vmatprep.mubr.bf16.mxu0 0
  %8310 = vmatmul.mubr.bf16.gmra.mxu0 %v8162
  %v8311 = vpop.f32.mrf.mxu0
  %v8312 = vadd.f32 0.0, %v8311
  %v8313 = vpop.f32.mrf.mxu0
  %v8314 = vpop.f32.mrf.mxu0
  %v8315 = vadd.f32 0.0, %v8314
  %v8316 = vpop.f32.mrf.mxu0
  %8317 = vmatprep.mubr.bf16.mxu0 0
  %8318 = vmatmul.mubr.bf16.gmra.mxu0 %v8163
  %v8319 = vpop.f32.mrf.mxu0
  %v8320 = vadd.f32 0.0, %v8319
  %v8321 = vpop.f32.mrf.mxu0
  %v8322 = vpop.f32.mrf.mxu0
  %v8323 = vadd.f32 0.0, %v8322
  %v8324 = vpop.f32.mrf.mxu0
  %8325 = vmatprep.mubr.bf16.mxu0 0
  %8326 = vmatmul.mubr.bf16.gmra.mxu0 %v8164
  %v8327 = vpop.f32.mrf.mxu0
  %v8328 = vadd.f32 0.0, %v8327
  %v8329 = vpop.f32.mrf.mxu0
  %v8330 = vpop.f32.mrf.mxu0
  %v8331 = vadd.f32 0.0, %v8330
  %v8332 = vpop.f32.mrf.mxu0
  %8333 = vmatprep.mubr.bf16.mxu0 0
  %8334 = vmatmul.mubr.bf16.gmra.mxu0 %v8165
  %v8335 = vpop.f32.mrf.mxu0
  %v8336 = vadd.f32 0.0, %v8335
  %v8337 = vpop.f32.mrf.mxu0
  %v8338 = vpop.f32.mrf.mxu0
  %v8339 = vadd.f32 0.0, %v8338
  %v8340 = vpop.f32.mrf.mxu0
  %8341 = vmatprep.mubr.bf16.mxu0 0
  %8342 = vmatmul.mubr.bf16.gmra.mxu0 %v8166
  %v8343 = vpop.f32.mrf.mxu0
  %v8344 = vadd.f32 0.0, %v8343
  %v8345 = vpop.f32.mrf.mxu0
  %v8346 = vpop.f32.mrf.mxu0
  %v8347 = vadd.f32 0.0, %v8346
  %v8348 = vpop.f32.mrf.mxu0
  %8349 = vmatprep.mubr.bf16.mxu0 0
  %8350 = vmatmul.mubr.bf16.gmra.mxu0 %v8167
  %v8351 = vpop.f32.mrf.mxu0
  %v8352 = vadd.f32 0.0, %v8351
  %v8353 = vpop.f32.mrf.mxu0
  %v8354 = vpop.f32.mrf.mxu0
  %v8355 = vadd.f32 0.0, %v8354
  %v8356 = vpop.f32.mrf.mxu0
  %8357 = vmatprep.mubr.bf16.mxu0 0
  %8358 = vmatmul.mubr.bf16.gmra.mxu0 %v8168
  %v8359 = vpop.f32.mrf.mxu0
  %v8360 = vadd.f32 0.0, %v8359
  %v8361 = vpop.f32.mrf.mxu0
  %v8362 = vpop.f32.mrf.mxu0
  %v8363 = vadd.f32 0.0, %v8362
  %v8364 = vpop.f32.mrf.mxu0
  %8365 = vmatprep.mubr.bf16.mxu0 0
  %8366 = vmatmul.mubr.bf16.gmra.mxu0 %v8169
  %v8367 = vpop.f32.mrf.mxu0
  %v8368 = vadd.f32 0.0, %v8367
  %v8369 = vpop.f32.mrf.mxu0
  %v8370 = vpop.f32.mrf.mxu0
  %v8371 = vadd.f32 0.0, %v8370
  %v8372 = vpop.f32.mrf.mxu0
  %8373 = vmatprep.mubr.bf16.mxu0 0
  %8374 = vmatmul.mubr.bf16.gmra.mxu0 %v8170
  %v8375 = vpop.f32.mrf.mxu0
  %v8376 = vadd.f32 0.0, %v8375
  %v8377 = vpop.f32.mrf.mxu0
  %v8378 = vpop.f32.mrf.mxu0
  %v8379 = vadd.f32 0.0, %v8378
  %v8380 = vpop.f32.mrf.mxu0
  %8381 = vmatprep.mubr.bf16.mxu0 0
  %8382 = vmatmul.mubr.bf16.gmra.mxu0 %v8171
  %v8383 = vpop.f32.mrf.mxu0
  %v8384 = vadd.f32 0.0, %v8383
  %v8385 = vpop.f32.mrf.mxu0
  %v8386 = vpop.f32.mrf.mxu0
  %v8387 = vadd.f32 0.0, %v8386
  %v8388 = vpop.f32.mrf.mxu0
  %8389 = vmatprep.mubr.bf16.mxu0 0
  %8390 = vmatmul.mubr.bf16.gmra.mxu0 %v8172
  %v8391 = vpop.f32.mrf.mxu0
  %v8392 = vadd.f32 0.0, %v8391
  %v8393 = vpop.f32.mrf.mxu0
  %v8394 = vpop.f32.mrf.mxu0
  %v8395 = vadd.f32 0.0, %v8394
  %v8396 = vpop.f32.mrf.mxu0
  %8397 = vdwg.mxu0
  %v8398 = vld [vmem:[#allocation3] sm:$0xff]
  %v8399 = vld [vmem:[#allocation3 + $0x8] sm:$0xff]
  %v8400 = vld [vmem:[#allocation3 + $0x10] sm:$0xff]
  %v8401 = vld [vmem:[#allocation3 + $0x18] sm:$0xff]
  %v8402 = vld [vmem:[#allocation3 + $0x20] sm:$0xff]
  %v8403 = vld [vmem:[#allocation3 + $0x28] sm:$0xff]
  %v8404 = vld [vmem:[#allocation3 + $0x30] sm:$0xff]
  %v8405 = vld [vmem:[#allocation3 + $0x38] sm:$0xff]
  %v8406 = vld [vmem:[#allocation3 + $0x40] sm:$0xff]
  %v8407 = vld [vmem:[#allocation3 + $0x48] sm:$0xff]
  %v8408 = vld [vmem:[#allocation3 + $0x50] sm:$0xff]
  %v8409 = vld [vmem:[#allocation3 + $0x58] sm:$0xff]
  %v8410 = vld [vmem:[#allocation3 + $0x60] sm:$0xff]
  %v8411 = vld [vmem:[#allocation3 + $0x68] sm:$0xff]
  %v8412 = vld [vmem:[#allocation3 + $0x70] sm:$0xff]
  %v8413 = vld [vmem:[#allocation3 + $0x78] sm:$0xff]
  %v8414 = vld [vmem:[#allocation3 + $0x80] sm:$0xff]
  %v8415 = vld [vmem:[#allocation3 + $0x88] sm:$0xff]
  %v8416 = vld [vmem:[#allocation3 + $0x90] sm:$0xff]
  %v8417 = vld [vmem:[#allocation3 + $0x98] sm:$0xff]
  %v8418 = vld [vmem:[#allocation3 + $0xa0] sm:$0xff]
  %v8419 = vld [vmem:[#allocation3 + $0xa8] sm:$0xff]
  %v8420 = vld [vmem:[#allocation3 + $0xb0] sm:$0xff]
  %v8421 = vld [vmem:[#allocation3 + $0xb8] sm:$0xff]
  %v8422 = vld [vmem:[#allocation3 + $0xc0] sm:$0xff]
  %v8423 = vld [vmem:[#allocation3 + $0xc8] sm:$0xff]
  %v8424 = vld [vmem:[#allocation3 + $0xd0] sm:$0xff]
  %v8425 = vld [vmem:[#allocation3 + $0xd8] sm:$0xff]
  %v8426 = vld [vmem:[#allocation3 + $0xe0] sm:$0xff]
  %v8427 = vld [vmem:[#allocation3 + $0xe8] sm:$0xff]
  %v8428 = vld [vmem:[#allocation3 + $0xf0] sm:$0xff]
  %v8429 = vld [vmem:[#allocation3 + $0xf8] sm:$0xff]
  %v8430 = vadd.f32 %v8398, %v8272
  %v8431 = vadd.f32 %v8399, %v8275
  %v8432 = vadd.f32 %v8400, %v8280
  %v8433 = vadd.f32 %v8401, %v8283
  %v8434 = vadd.f32 %v8402, %v8288
  %v8435 = vadd.f32 %v8403, %v8291
  %v8436 = vadd.f32 %v8404, %v8296
  %v8437 = vadd.f32 %v8405, %v8299
  %v8438 = vadd.f32 %v8406, %v8304
  %v8439 = vadd.f32 %v8407, %v8307
  %v8440 = vadd.f32 %v8408, %v8312
  %v8441 = vadd.f32 %v8409, %v8315
  %v8442 = vadd.f32 %v8410, %v8320
  %v8443 = vadd.f32 %v8411, %v8323
  %v8444 = vadd.f32 %v8412, %v8328
  %v8445 = vadd.f32 %v8413, %v8331
  %v8446 = vadd.f32 %v8414, %v8336
  %v8447 = vadd.f32 %v8415, %v8339
  %v8448 = vadd.f32 %v8416, %v8344
  %v8449 = vadd.f32 %v8417, %v8347
  %v8450 = vadd.f32 %v8418, %v8352
  %v8451 = vadd.f32 %v8419, %v8355
  %v8452 = vadd.f32 %v8420, %v8360
  %v8453 = vadd.f32 %v8421, %v8363
  %v8454 = vadd.f32 %v8422, %v8368
  %v8455 = vadd.f32 %v8423, %v8371
  %v8456 = vadd.f32 %v8424, %v8376
  %v8457 = vadd.f32 %v8425, %v8379
  %v8458 = vadd.f32 %v8426, %v8384
  %v8459 = vadd.f32 %v8427, %v8387
  %v8460 = vadd.f32 %v8428, %v8392
  %v8461 = vadd.f32 %v8429, %v8395
  %8462 = vst [vmem:[#allocation3] sm:$0xff] %v8430
  %8463 = vst [vmem:[#allocation3 + $0x8] sm:$0xff] %v8431
  %8464 = vst [vmem:[#allocation3 + $0x10] sm:$0xff] %v8432
  %8465 = vst [vmem:[#allocation3 + $0x18] sm:$0xff] %v8433
  %8466 = vst [vmem:[#allocation3 + $0x20] sm:$0xff] %v8434
  %8467 = vst [vmem:[#allocation3 + $0x28] sm:$0xff] %v8435
  %8468 = vst [vmem:[#allocation3 + $0x30] sm:$0xff] %v8436
  %8469 = vst [vmem:[#allocation3 + $0x38] sm:$0xff] %v8437
  %8470 = vst [vmem:[#allocation3 + $0x40] sm:$0xff] %v8438
  %8471 = vst [vmem:[#allocation3 + $0x48] sm:$0xff] %v8439
  %8472 = vst [vmem:[#allocation3 + $0x50] sm:$0xff] %v8440
  %8473 = vst [vmem:[#allocation3 + $0x58] sm:$0xff] %v8441
  %8474 = vst [vmem:[#allocation3 + $0x60] sm:$0xff] %v8442
  %8475 = vst [vmem:[#allocation3 + $0x68] sm:$0xff] %v8443
  %8476 = vst [vmem:[#allocation3 + $0x70] sm:$0xff] %v8444
  %8477 = vst [vmem:[#allocation3 + $0x78] sm:$0xff] %v8445
  %8478 = vst [vmem:[#allocation3 + $0x80] sm:$0xff] %v8446
  %8479 = vst [vmem:[#allocation3 + $0x88] sm:$0xff] %v8447
  %8480 = vst [vmem:[#allocation3 + $0x90] sm:$0xff] %v8448
  %8481 = vst [vmem:[#allocation3 + $0x98] sm:$0xff] %v8449
  %8482 = vst [vmem:[#allocation3 + $0xa0] sm:$0xff] %v8450
  %8483 = vst [vmem:[#allocation3 + $0xa8] sm:$0xff] %v8451
  %8484 = vst [vmem:[#allocation3 + $0xb0] sm:$0xff] %v8452
  %8485 = vst [vmem:[#allocation3 + $0xb8] sm:$0xff] %v8453
  %8486 = vst [vmem:[#allocation3 + $0xc0] sm:$0xff] %v8454
  %8487 = vst [vmem:[#allocation3 + $0xc8] sm:$0xff] %v8455
  %8488 = vst [vmem:[#allocation3 + $0xd0] sm:$0xff] %v8456
  %8489 = vst [vmem:[#allocation3 + $0xd8] sm:$0xff] %v8457
  %8490 = vst [vmem:[#allocation3 + $0xe0] sm:$0xff] %v8458
  %8491 = vst [vmem:[#allocation3 + $0xe8] sm:$0xff] %v8459
  %8492 = vst [vmem:[#allocation3 + $0xf0] sm:$0xff] %v8460
  %8493 = vst [vmem:[#allocation3 + $0xf8] sm:$0xff] %v8461
  %v8494 = vld [vmem:[%s430] sm:$0xf]
  %v8495 = vld [vmem:[%s430 + $0x4] sm:$0xf]
  %v8496 = vld [vmem:[%s430 + $0xc] sm:$0xf]
  %v8497 = vld [vmem:[%s430 + $0x10] sm:$0xf]
  %v8498 = vld [vmem:[%s430 + $0x18] sm:$0xf]
  %v8499 = vld [vmem:[%s430 + $0x1c] sm:$0xf]
  %v8500 = vld [vmem:[%s430 + $0x24] sm:$0xf]
  %v8501 = vld [vmem:[%s430 + $0x28] sm:$0xf]
  %v8502 = vld [vmem:[%s430 + $0x30] sm:$0xf]
  %v8503 = vld [vmem:[%s430 + $0x34] sm:$0xf]
  %v8504 = vld [vmem:[%s430 + $0x3c] sm:$0xf]
  %v8505 = vld [vmem:[%s430 + $0x40] sm:$0xf]
  %v8506 = vld [vmem:[%s430 + $0x48] sm:$0xf]
  %v8507 = vld [vmem:[%s430 + $0x4c] sm:$0xf]
  %v8508 = vld [vmem:[%s430 + $0x54] sm:$0xf]
  %v8509 = vld [vmem:[%s430 + $0x58] sm:$0xf]
  %v8510 = vld [vmem:[%s430 + $0x60] sm:$0xf]
  %v8511 = vld [vmem:[%s430 + $0x64] sm:$0xf]
  %v8512 = vld [vmem:[%s430 + $0x6c] sm:$0xf]
  %v8513 = vld [vmem:[%s430 + $0x70] sm:$0xf]
  %v8514 = vld [vmem:[%s430 + $0x78] sm:$0xf]
  %v8515 = vld [vmem:[%s430 + $0x7c] sm:$0xf]
  %v8516 = vld [vmem:[%s430 + $0x84] sm:$0xf]
  %v8517 = vld [vmem:[%s430 + $0x88] sm:$0xf]
  %v8518 = vld [vmem:[%s430 + $0x90] sm:$0xf]
  %v8519 = vld [vmem:[%s430 + $0x94] sm:$0xf]
  %v8520 = vld [vmem:[%s430 + $0x9c] sm:$0xf]
  %v8521 = vld [vmem:[%s430 + $0xa0] sm:$0xf]
  %v8522 = vld [vmem:[%s430 + $0xa8] sm:$0xf]
  %v8523 = vld [vmem:[%s430 + $0xac] sm:$0xf]
  %v8524 = vld [vmem:[%s430 + $0xb4] sm:$0xf]
  %v8525 = vld [vmem:[%s430 + $0xb8] sm:$0xf]
  %v8526 = vld [vmem:[%s3 + $0xc0] sm:$0xf]
  %v8527 = vld [vmem:[%s3 + $0xc4] sm:$0xf]
  %v8528 = vld [vmem:[%s3 + $0xc8] sm:$0xf]
  %v8529 = vld [vmem:[%s3 + $0xcc] sm:$0xf]
  %v8530 = vld [vmem:[%s3 + $0xd0] sm:$0xf]
  %v8531 = vld [vmem:[%s3 + $0xd4] sm:$0xf]
  %v8532 = vld [vmem:[%s3 + $0xd8] sm:$0xf]
  %v8533 = vld [vmem:[%s3 + $0xdc] sm:$0xf]
  %v8534 = vld [vmem:[%s3 + $0xe0] sm:$0xf]
  %v8535 = vld [vmem:[%s3 + $0xe4] sm:$0xf]
  %v8536 = vld [vmem:[%s3 + $0xe8] sm:$0xf]
  %v8537 = vld [vmem:[%s3 + $0xec] sm:$0xf]
  %v8538 = vld [vmem:[%s3 + $0xf0] sm:$0xf]
  %v8539 = vld [vmem:[%s3 + $0xf4] sm:$0xf]
  %v8540 = vld [vmem:[%s3 + $0xf8] sm:$0xf]
  %v8541 = vld [vmem:[%s3 + $0xfc] sm:$0xf]
  %v8574 = vunpack.c.l.b16 %v8494
  %v8575 = vunpack.c.l.b16 %v8495
  %v8576 = vunpack.c.l.b16 %v8496
  %v8577 = vunpack.c.l.b16 %v8497
  %v8578 = vunpack.c.l.b16 %v8498
  %v8579 = vunpack.c.l.b16 %v8499
  %v8580 = vunpack.c.l.b16 %v8500
  %v8581 = vunpack.c.l.b16 %v8501
  %v8582 = vunpack.c.l.b16 %v8502
  %v8583 = vunpack.c.l.b16 %v8503
  %v8584 = vunpack.c.l.b16 %v8504
  %v8585 = vunpack.c.l.b16 %v8505
  %v8586 = vunpack.c.l.b16 %v8506
  %v8587 = vunpack.c.l.b16 %v8507
  %v8588 = vunpack.c.l.b16 %v8508
  %v8589 = vunpack.c.l.b16 %v8509
  %v8590 = vunpack.c.l.b16 %v8510
  %v8591 = vunpack.c.l.b16 %v8511
  %v8592 = vunpack.c.l.b16 %v8512
  %v8593 = vunpack.c.l.b16 %v8513
  %v8594 = vunpack.c.l.b16 %v8514
  %v8595 = vunpack.c.l.b16 %v8515
  %v8596 = vunpack.c.l.b16 %v8516
  %v8597 = vunpack.c.l.b16 %v8517
  %v8598 = vunpack.c.l.b16 %v8518
  %v8599 = vunpack.c.l.b16 %v8519
  %v8600 = vunpack.c.l.b16 %v8520
  %v8601 = vunpack.c.l.b16 %v8521
  %v8602 = vunpack.c.l.b16 %v8522
  %v8603 = vunpack.c.l.b16 %v8523
  %v8604 = vunpack.c.l.b16 %v8524
  %v8605 = vunpack.c.l.b16 %v8525
  %v8606 = vpack.c.b16 %v8575, %v8574
  %v8607 = vpack.c.b16 %v8577, %v8576
  %v8608 = vpack.c.b16 %v8579, %v8578
  %v8609 = vpack.c.b16 %v8581, %v8580
  %v8610 = vpack.c.b16 %v8583, %v8582
  %v8611 = vpack.c.b16 %v8585, %v8584
  %v8612 = vpack.c.b16 %v8587, %v8586
  %v8613 = vpack.c.b16 %v8589, %v8588
  %v8614 = vpack.c.b16 %v8591, %v8590
  %v8615 = vpack.c.b16 %v8593, %v8592
  %v8616 = vpack.c.b16 %v8595, %v8594
  %v8617 = vpack.c.b16 %v8597, %v8596
  %v8618 = vpack.c.b16 %v8599, %v8598
  %v8619 = vpack.c.b16 %v8601, %v8600
  %v8620 = vpack.c.b16 %v8603, %v8602
  %v8621 = vpack.c.b16 %v8605, %v8604
  %v8654 = vunpack.c.l.b16 %v8526
  %v8655 = vunpack.c.l.b16 %v8527
  %v8656 = vunpack.c.l.b16 %v8528
  %v8657 = vunpack.c.l.b16 %v8529
  %v8658 = vunpack.c.l.b16 %v8530
  %v8659 = vunpack.c.l.b16 %v8531
  %v8660 = vunpack.c.l.b16 %v8532
  %v8661 = vunpack.c.l.b16 %v8533
  %v8662 = vunpack.c.l.b16 %v8534
  %v8663 = vunpack.c.l.b16 %v8535
  %v8664 = vunpack.c.l.b16 %v8536
  %v8665 = vunpack.c.l.b16 %v8537
  %v8666 = vunpack.c.l.b16 %v8538
  %v8667 = vunpack.c.l.b16 %v8539
  %v8668 = vunpack.c.l.b16 %v8540
  %v8669 = vunpack.c.l.b16 %v8541
  %v8670 = vpack.c.b16 %v8655, %v8654
  %v8671 = vpack.c.b16 %v8657, %v8656
  %v8672 = vpack.c.b16 %v8659, %v8658
  %v8673 = vpack.c.b16 %v8661, %v8660
  %v8674 = vpack.c.b16 %v8663, %v8662
  %v8675 = vpack.c.b16 %v8665, %v8664
  %v8676 = vpack.c.b16 %v8667, %v8666
  %v8677 = vpack.c.b16 %v8669, %v8668
  %8686 = vmatprep.subr.bf16.mxu0 0
  %8687 = vmatpush1.bf16.msra.mxu0 %v8677
  %8688 = vmatprep.subr.bf16.mxu0 0
  %8689 = vmatpush1.bf16.msra.mxu0 %v8676
  %8690 = vmatprep.subr.bf16.mxu0 0
  %8691 = vmatpush1.bf16.msra.mxu0 %v8675
  %8692 = vmatprep.subr.bf16.mxu0 0
  %8693 = vmatpush1.bf16.msra.mxu0 %v8674
  %8694 = vmatprep.subr.bf16.mxu0 0
  %8695 = vmatpush1.bf16.msra.mxu0 %v8673
  %8696 = vmatprep.subr.bf16.mxu0 0
  %8697 = vmatpush1.bf16.msra.mxu0 %v8672
  %8698 = vmatprep.subr.bf16.mxu0 0
  %8699 = vmatpush1.bf16.msra.mxu0 %v8671
  %8700 = vmatprep.subr.bf16.mxu0 0
  %8701 = vmatpush1.bf16.msra.mxu0 %v8670
  %8702 = vmatprep.subr.bf16.mxu0 0
  %8703 = vmatpush2.bf16.msra.mxu0 0
  %8704 = vmatprep.subr.bf16.mxu0 0
  %8705 = vmatpush2.bf16.msra.mxu0 0
  %8706 = vmatprep.subr.bf16.mxu0 0
  %8707 = vmatpush2.bf16.msra.mxu0 0
  %8708 = vmatprep.subr.bf16.mxu0 0
  %8709 = vmatpush2.bf16.msra.mxu0 0
  %8710 = vmatprep.subr.bf16.mxu0 0
  %8711 = vmatpush2.bf16.msra.mxu0 0
  %8712 = vmatprep.subr.bf16.mxu0 0
  %8713 = vmatpush2.bf16.msra.mxu0 0
  %8714 = vmatprep.subr.bf16.mxu0 0
  %8715 = vmatpush2.bf16.msra.mxu0 0
  %8716 = vmatprep.subr.bf16.mxu0 0
  %8717 = vmatpush2.bf16.msra.mxu0 0
  %8718 = vmatprep.mubr.bf16.mxu0 0
  %8719 = vmatmul.mubr.bf16.gmra.mxu0 %v8606
  %v8720 = vpop.f32.mrf.mxu0
  %v8721 = vadd.f32 0.0, %v8720
  %v8722 = vpop.f32.mrf.mxu0
  %v8723 = vpop.f32.mrf.mxu0
  %v8724 = vadd.f32 0.0, %v8723
  %v8725 = vpop.f32.mrf.mxu0
  %8726 = vmatprep.mubr.bf16.mxu0 0
  %8727 = vmatmul.mubr.bf16.gmra.mxu0 %v8607
  %v8728 = vpop.f32.mrf.mxu0
  %v8729 = vadd.f32 0.0, %v8728
  %v8730 = vpop.f32.mrf.mxu0
  %v8731 = vpop.f32.mrf.mxu0
  %v8732 = vadd.f32 0.0, %v8731
  %v8733 = vpop.f32.mrf.mxu0
  %8734 = vmatprep.mubr.bf16.mxu0 0
  %8735 = vmatmul.mubr.bf16.gmra.mxu0 %v8608
  %v8736 = vpop.f32.mrf.mxu0
  %v8737 = vadd.f32 0.0, %v8736
  %v8738 = vpop.f32.mrf.mxu0
  %v8739 = vpop.f32.mrf.mxu0
  %v8740 = vadd.f32 0.0, %v8739
  %v8741 = vpop.f32.mrf.mxu0
  %8742 = vmatprep.mubr.bf16.mxu0 0
  %8743 = vmatmul.mubr.bf16.gmra.mxu0 %v8609
  %v8744 = vpop.f32.mrf.mxu0
  %v8745 = vadd.f32 0.0, %v8744
  %v8746 = vpop.f32.mrf.mxu0
  %v8747 = vpop.f32.mrf.mxu0
  %v8748 = vadd.f32 0.0, %v8747
  %v8749 = vpop.f32.mrf.mxu0
  %8750 = vmatprep.mubr.bf16.mxu0 0
  %8751 = vmatmul.mubr.bf16.gmra.mxu0 %v8610
  %v8752 = vpop.f32.mrf.mxu0
  %v8753 = vadd.f32 0.0, %v8752
  %v8754 = vpop.f32.mrf.mxu0
  %v8755 = vpop.f32.mrf.mxu0
  %v8756 = vadd.f32 0.0, %v8755
  %v8757 = vpop.f32.mrf.mxu0
  %8758 = vmatprep.mubr.bf16.mxu0 0
  %8759 = vmatmul.mubr.bf16.gmra.mxu0 %v8611
  %v8760 = vpop.f32.mrf.mxu0
  %v8761 = vadd.f32 0.0, %v8760
  %v8762 = vpop.f32.mrf.mxu0
  %v8763 = vpop.f32.mrf.mxu0
  %v8764 = vadd.f32 0.0, %v8763
  %v8765 = vpop.f32.mrf.mxu0
  %8766 = vmatprep.mubr.bf16.mxu0 0
  %8767 = vmatmul.mubr.bf16.gmra.mxu0 %v8612
  %v8768 = vpop.f32.mrf.mxu0
  %v8769 = vadd.f32 0.0, %v8768
  %v8770 = vpop.f32.mrf.mxu0
  %v8771 = vpop.f32.mrf.mxu0
  %v8772 = vadd.f32 0.0, %v8771
  %v8773 = vpop.f32.mrf.mxu0
  %8774 = vmatprep.mubr.bf16.mxu0 0
  %8775 = vmatmul.mubr.bf16.gmra.mxu0 %v8613
  %v8776 = vpop.f32.mrf.mxu0
  %v8777 = vadd.f32 0.0, %v8776
  %v8778 = vpop.f32.mrf.mxu0
  %v8779 = vpop.f32.mrf.mxu0
  %v8780 = vadd.f32 0.0, %v8779
  %v8781 = vpop.f32.mrf.mxu0
  %8782 = vmatprep.mubr.bf16.mxu0 0
  %8783 = vmatmul.mubr.bf16.gmra.mxu0 %v8614
  %v8784 = vpop.f32.mrf.mxu0
  %v8785 = vadd.f32 0.0, %v8784
  %v8786 = vpop.f32.mrf.mxu0
  %v8787 = vpop.f32.mrf.mxu0
  %v8788 = vadd.f32 0.0, %v8787
  %v8789 = vpop.f32.mrf.mxu0
  %8790 = vmatprep.mubr.bf16.mxu0 0
  %8791 = vmatmul.mubr.bf16.gmra.mxu0 %v8615
  %v8792 = vpop.f32.mrf.mxu0
  %v8793 = vadd.f32 0.0, %v8792
  %v8794 = vpop.f32.mrf.mxu0
  %v8795 = vpop.f32.mrf.mxu0
  %v8796 = vadd.f32 0.0, %v8795
  %v8797 = vpop.f32.mrf.mxu0
  %8798 = vmatprep.mubr.bf16.mxu0 0
  %8799 = vmatmul.mubr.bf16.gmra.mxu0 %v8616
  %v8800 = vpop.f32.mrf.mxu0
  %v8801 = vadd.f32 0.0, %v8800
  %v8802 = vpop.f32.mrf.mxu0
  %v8803 = vpop.f32.mrf.mxu0
  %v8804 = vadd.f32 0.0, %v8803
  %v8805 = vpop.f32.mrf.mxu0
  %8806 = vmatprep.mubr.bf16.mxu0 0
  %8807 = vmatmul.mubr.bf16.gmra.mxu0 %v8617
  %v8808 = vpop.f32.mrf.mxu0
  %v8809 = vadd.f32 0.0, %v8808
  %v8810 = vpop.f32.mrf.mxu0
  %v8811 = vpop.f32.mrf.mxu0
  %v8812 = vadd.f32 0.0, %v8811
  %v8813 = vpop.f32.mrf.mxu0
  %8814 = vmatprep.mubr.bf16.mxu0 0
  %8815 = vmatmul.mubr.bf16.gmra.mxu0 %v8618
  %v8816 = vpop.f32.mrf.mxu0
  %v8817 = vadd.f32 0.0, %v8816
  %v8818 = vpop.f32.mrf.mxu0
  %v8819 = vpop.f32.mrf.mxu0
  %v8820 = vadd.f32 0.0, %v8819
  %v8821 = vpop.f32.mrf.mxu0
  %8822 = vmatprep.mubr.bf16.mxu0 0
  %8823 = vmatmul.mubr.bf16.gmra.mxu0 %v8619
  %v8824 = vpop.f32.mrf.mxu0
  %v8825 = vadd.f32 0.0, %v8824
  %v8826 = vpop.f32.mrf.mxu0
  %v8827 = vpop.f32.mrf.mxu0
  %v8828 = vadd.f32 0.0, %v8827
  %v8829 = vpop.f32.mrf.mxu0
  %8830 = vmatprep.mubr.bf16.mxu0 0
  %8831 = vmatmul.mubr.bf16.gmra.mxu0 %v8620
  %v8832 = vpop.f32.mrf.mxu0
  %v8833 = vadd.f32 0.0, %v8832
  %v8834 = vpop.f32.mrf.mxu0
  %v8835 = vpop.f32.mrf.mxu0
  %v8836 = vadd.f32 0.0, %v8835
  %v8837 = vpop.f32.mrf.mxu0
  %8838 = vmatprep.mubr.bf16.mxu0 0
  %8839 = vmatmul.mubr.bf16.gmra.mxu0 %v8621
  %v8840 = vpop.f32.mrf.mxu0
  %v8841 = vadd.f32 0.0, %v8840
  %v8842 = vpop.f32.mrf.mxu0
  %v8843 = vpop.f32.mrf.mxu0
  %v8844 = vadd.f32 0.0, %v8843
  %v8845 = vpop.f32.mrf.mxu0
  %8846 = vdwg.mxu0
  %v8847 = vld [vmem:[#allocation3] sm:$0xff]
  %v8848 = vld [vmem:[#allocation3 + $0x8] sm:$0xff]
  %v8849 = vld [vmem:[#allocation3 + $0x10] sm:$0xff]
  %v8850 = vld [vmem:[#allocation3 + $0x18] sm:$0xff]
  %v8851 = vld [vmem:[#allocation3 + $0x20] sm:$0xff]
  %v8852 = vld [vmem:[#allocation3 + $0x28] sm:$0xff]
  %v8853 = vld [vmem:[#allocation3 + $0x30] sm:$0xff]
  %v8854 = vld [vmem:[#allocation3 + $0x38] sm:$0xff]
  %v8855 = vld [vmem:[#allocation3 + $0x40] sm:$0xff]
  %v8856 = vld [vmem:[#allocation3 + $0x48] sm:$0xff]
  %v8857 = vld [vmem:[#allocation3 + $0x50] sm:$0xff]
  %v8858 = vld [vmem:[#allocation3 + $0x58] sm:$0xff]
  %v8859 = vld [vmem:[#allocation3 + $0x60] sm:$0xff]
  %v8860 = vld [vmem:[#allocation3 + $0x68] sm:$0xff]
  %v8861 = vld [vmem:[#allocation3 + $0x70] sm:$0xff]
  %v8862 = vld [vmem:[#allocation3 + $0x78] sm:$0xff]
  %v8863 = vld [vmem:[#allocation3 + $0x80] sm:$0xff]
  %v8864 = vld [vmem:[#allocation3 + $0x88] sm:$0xff]
  %v8865 = vld [vmem:[#allocation3 + $0x90] sm:$0xff]
  %v8866 = vld [vmem:[#allocation3 + $0x98] sm:$0xff]
  %v8867 = vld [vmem:[#allocation3 + $0xa0] sm:$0xff]
  %v8868 = vld [vmem:[#allocation3 + $0xa8] sm:$0xff]
  %v8869 = vld [vmem:[#allocation3 + $0xb0] sm:$0xff]
  %v8870 = vld [vmem:[#allocation3 + $0xb8] sm:$0xff]
  %v8871 = vld [vmem:[#allocation3 + $0xc0] sm:$0xff]
  %v8872 = vld [vmem:[#allocation3 + $0xc8] sm:$0xff]
  %v8873 = vld [vmem:[#allocation3 + $0xd0] sm:$0xff]
  %v8874 = vld [vmem:[#allocation3 + $0xd8] sm:$0xff]
  %v8875 = vld [vmem:[#allocation3 + $0xe0] sm:$0xff]
  %v8876 = vld [vmem:[#allocation3 + $0xe8] sm:$0xff]
  %v8877 = vld [vmem:[#allocation3 + $0xf0] sm:$0xff]
  %v8878 = vld [vmem:[#allocation3 + $0xf8] sm:$0xff]
  %v8879 = vadd.f32 %v8847, %v8721
  %v8880 = vadd.f32 %v8848, %v8724
  %v8881 = vadd.f32 %v8849, %v8729
  %v8882 = vadd.f32 %v8850, %v8732
  %v8883 = vadd.f32 %v8851, %v8737
  %v8884 = vadd.f32 %v8852, %v8740
  %v8885 = vadd.f32 %v8853, %v8745
  %v8886 = vadd.f32 %v8854, %v8748
  %v8887 = vadd.f32 %v8855, %v8753
  %v8888 = vadd.f32 %v8856, %v8756
  %v8889 = vadd.f32 %v8857, %v8761
  %v8890 = vadd.f32 %v8858, %v8764
  %v8891 = vadd.f32 %v8859, %v8769
  %v8892 = vadd.f32 %v8860, %v8772
  %v8893 = vadd.f32 %v8861, %v8777
  %v8894 = vadd.f32 %v8862, %v8780
  %v8895 = vadd.f32 %v8863, %v8785
  %v8896 = vadd.f32 %v8864, %v8788
  %v8897 = vadd.f32 %v8865, %v8793
  %v8898 = vadd.f32 %v8866, %v8796
  %v8899 = vadd.f32 %v8867, %v8801
  %v8900 = vadd.f32 %v8868, %v8804
  %v8901 = vadd.f32 %v8869, %v8809
  %v8902 = vadd.f32 %v8870, %v8812
  %v8903 = vadd.f32 %v8871, %v8817
  %v8904 = vadd.f32 %v8872, %v8820
  %v8905 = vadd.f32 %v8873, %v8825
  %v8906 = vadd.f32 %v8874, %v8828
  %v8907 = vadd.f32 %v8875, %v8833
  %v8908 = vadd.f32 %v8876, %v8836
  %v8909 = vadd.f32 %v8877, %v8841
  %v8910 = vadd.f32 %v8878, %v8844
  %8911 = vst [vmem:[#allocation3] sm:$0xff] %v8879
  %8912 = vst [vmem:[#allocation3 + $0x8] sm:$0xff] %v8880
  %8913 = vst [vmem:[#allocation3 + $0x10] sm:$0xff] %v8881
  %8914 = vst [vmem:[#allocation3 + $0x18] sm:$0xff] %v8882
  %8915 = vst [vmem:[#allocation3 + $0x20] sm:$0xff] %v8883
  %8916 = vst [vmem:[#allocation3 + $0x28] sm:$0xff] %v8884
  %8917 = vst [vmem:[#allocation3 + $0x30] sm:$0xff] %v8885
  %8918 = vst [vmem:[#allocation3 + $0x38] sm:$0xff] %v8886
  %8919 = vst [vmem:[#allocation3 + $0x40] sm:$0xff] %v8887
  %8920 = vst [vmem:[#allocation3 + $0x48] sm:$0xff] %v8888
  %8921 = vst [vmem:[#allocation3 + $0x50] sm:$0xff] %v8889
  %8922 = vst [vmem:[#allocation3 + $0x58] sm:$0xff] %v8890
  %8923 = vst [vmem:[#allocation3 + $0x60] sm:$0xff] %v8891
  %8924 = vst [vmem:[#allocation3 + $0x68] sm:$0xff] %v8892
  %8925 = vst [vmem:[#allocation3 + $0x70] sm:$0xff] %v8893
  %8926 = vst [vmem:[#allocation3 + $0x78] sm:$0xff] %v8894
  %8927 = vst [vmem:[#allocation3 + $0x80] sm:$0xff] %v8895
  %8928 = vst [vmem:[#allocation3 + $0x88] sm:$0xff] %v8896
  %8929 = vst [vmem:[#allocation3 + $0x90] sm:$0xff] %v8897
  %8930 = vst [vmem:[#allocation3 + $0x98] sm:$0xff] %v8898
  %8931 = vst [vmem:[#allocation3 + $0xa0] sm:$0xff] %v8899
  %8932 = vst [vmem:[#allocation3 + $0xa8] sm:$0xff] %v8900
  %8933 = vst [vmem:[#allocation3 + $0xb0] sm:$0xff] %v8901
  %8934 = vst [vmem:[#allocation3 + $0xb8] sm:$0xff] %v8902
  %8935 = vst [vmem:[#allocation3 + $0xc0] sm:$0xff] %v8903
  %8936 = vst [vmem:[#allocation3 + $0xc8] sm:$0xff] %v8904
  %8937 = vst [vmem:[#allocation3 + $0xd0] sm:$0xff] %v8905
  %8938 = vst [vmem:[#allocation3 + $0xd8] sm:$0xff] %v8906
  %8939 = vst [vmem:[#allocation3 + $0xe0] sm:$0xff] %v8907
  %8940 = vst [vmem:[#allocation3 + $0xe8] sm:$0xff] %v8908
  %8941 = vst [vmem:[#allocation3 + $0xf0] sm:$0xff] %v8909
  %8942 = vst [vmem:[#allocation3 + $0xf8] sm:$0xff] %v8910
  %v8943 = vld [vmem:[%s430] sm:$0xf]
  %v8944 = vld [vmem:[%s430 + $0x4] sm:$0xf]
  %v8945 = vld [vmem:[%s430 + $0x8] sm:$0x1]
  %v8946 = vld [vmem:[%s430 + $0xc] sm:$0xf]
  %v8947 = vld [vmem:[%s430 + $0x10] sm:$0xf]
  %v8948 = vld [vmem:[%s430 + $0x14] sm:$0x1]
  %v8949 = vld [vmem:[%s430 + $0x18] sm:$0xf]
  %v8950 = vld [vmem:[%s430 + $0x1c] sm:$0xf]
  %v8951 = vld [vmem:[%s430 + $0x20] sm:$0x1]
  %v8952 = vld [vmem:[%s430 + $0x24] sm:$0xf]
  %v8953 = vld [vmem:[%s430 + $0x28] sm:$0xf]
  %v8954 = vld [vmem:[%s430 + $0x2c] sm:$0x1]
  %v8955 = vld [vmem:[%s430 + $0x30] sm:$0xf]
  %v8956 = vld [vmem:[%s430 + $0x34] sm:$0xf]
  %v8957 = vld [vmem:[%s430 + $0x38] sm:$0x1]
  %v8958 = vld [vmem:[%s430 + $0x3c] sm:$0xf]
  %v8959 = vld [vmem:[%s430 + $0x40] sm:$0xf]
  %v8960 = vld [vmem:[%s430 + $0x44] sm:$0x1]
  %v8961 = vld [vmem:[%s430 + $0x48] sm:$0xf]
  %v8962 = vld [vmem:[%s430 + $0x4c] sm:$0xf]
  %v8963 = vld [vmem:[%s430 + $0x50] sm:$0x1]
  %v8964 = vld [vmem:[%s430 + $0x54] sm:$0xf]
  %v8965 = vld [vmem:[%s430 + $0x58] sm:$0xf]
  %v8966 = vld [vmem:[%s430 + $0x5c] sm:$0x1]
  %v8967 = vld [vmem:[%s430 + $0x60] sm:$0xf]
  %v8968 = vld [vmem:[%s430 + $0x64] sm:$0xf]
  %v8969 = vld [vmem:[%s430 + $0x68] sm:$0x1]
  %v8970 = vld [vmem:[%s430 + $0x6c] sm:$0xf]
  %v8971 = vld [vmem:[%s430 + $0x70] sm:$0xf]
  %v8972 = vld [vmem:[%s430 + $0x74] sm:$0x1]
  %v8973 = vld [vmem:[%s430 + $0x78] sm:$0xf]
  %v8974 = vld [vmem:[%s430 + $0x7c] sm:$0xf]
  %v8975 = vld [vmem:[%s430 + $0x80] sm:$0x1]
  %v8976 = vld [vmem:[%s430 + $0x84] sm:$0xf]
  %v8977 = vld [vmem:[%s430 + $0x88] sm:$0xf]
  %v8978 = vld [vmem:[%s430 + $0x8c] sm:$0x1]
  %v8979 = vld [vmem:[%s430 + $0x90] sm:$0xf]
  %v8980 = vld [vmem:[%s430 + $0x94] sm:$0xf]
  %v8981 = vld [vmem:[%s430 + $0x98] sm:$0x1]
  %v8982 = vld [vmem:[%s430 + $0x9c] sm:$0xf]
  %v8983 = vld [vmem:[%s430 + $0xa0] sm:$0xf]
  %v8984 = vld [vmem:[%s430 + $0xa4] sm:$0x1]
  %v8985 = vld [vmem:[%s430 + $0xa8] sm:$0xf]
  %v8986 = vld [vmem:[%s430 + $0xac] sm:$0xf]
  %v8987 = vld [vmem:[%s430 + $0xb0] sm:$0x1]
  %v8988 = vld [vmem:[%s430 + $0xb4] sm:$0xf]
  %v8989 = vld [vmem:[%s430 + $0xb8] sm:$0xf]
  %v8990 = vld [vmem:[%s430 + $0xbc] sm:$0x1]
  %v8992 = vshrl.u32 %v8943, 16
  %v8994 = vrot.slane %v8992, 4
  %v8995 = vshll.u32 %v8943, 16
  %v8997 = vrot.slane %v8995, 5
  %v8998 = vor.u32 %v8994, %v8997
  %v8999 = vrot.slane %v8998, 4
  %v9001 = vshll.u32 %v8944, 16
  %v9003 = vrot.slane %v9001, 5
  %v9004 = vsel %vm983, %v8999, %v9003
  %v9005 = vshrl.u32 %v8944, 16
  %v9007 = vrot.slane %v9005, 4
  %v9008 = vor.u32 %v9007, %v9003
  %v9009 = vrot.slane %v9008, 4
  %v9011 = vshll.u32 %v8945, 16
  %v9013 = vrot.slane %v9011, 5
  %v9014 = vsel %vm983, %v9009, %v9013
  %v9016 = vshrl.u32 %v8946, 16
  %v9018 = vrot.slane %v9016, 4
  %v9019 = vshll.u32 %v8946, 16
  %v9021 = vrot.slane %v9019, 5
  %v9022 = vor.u32 %v9018, %v9021
  %v9023 = vrot.slane %v9022, 4
  %v9025 = vshll.u32 %v8947, 16
  %v9027 = vrot.slane %v9025, 5
  %v9028 = vsel %vm983, %v9023, %v9027
  %v9029 = vshrl.u32 %v8947, 16
  %v9031 = vrot.slane %v9029, 4
  %v9032 = vor.u32 %v9031, %v9027
  %v9033 = vrot.slane %v9032, 4
  %v9035 = vshll.u32 %v8948, 16
  %v9037 = vrot.slane %v9035, 5
  %v9038 = vsel %vm983, %v9033, %v9037
  %v9040 = vshrl.u32 %v8949, 16
  %v9042 = vrot.slane %v9040, 4
  %v9043 = vshll.u32 %v8949, 16
  %v9045 = vrot.slane %v9043, 5
  %v9046 = vor.u32 %v9042, %v9045
  %v9047 = vrot.slane %v9046, 4
  %v9049 = vshll.u32 %v8950, 16
  %v9051 = vrot.slane %v9049, 5
  %v9052 = vsel %vm983, %v9047, %v9051
  %v9053 = vshrl.u32 %v8950, 16
  %v9055 = vrot.slane %v9053, 4
  %v9056 = vor.u32 %v9055, %v9051
  %v9057 = vrot.slane %v9056, 4
  %v9059 = vshll.u32 %v8951, 16
  %v9061 = vrot.slane %v9059, 5
  %v9062 = vsel %vm983, %v9057, %v9061
  %v9064 = vshrl.u32 %v8952, 16
  %v9066 = vrot.slane %v9064, 4
  %v9067 = vshll.u32 %v8952, 16
  %v9069 = vrot.slane %v9067, 5
  %v9070 = vor.u32 %v9066, %v9069
  %v9071 = vrot.slane %v9070, 4
  %v9073 = vshll.u32 %v8953, 16
  %v9075 = vrot.slane %v9073, 5
  %v9076 = vsel %vm983, %v9071, %v9075
  %v9077 = vshrl.u32 %v8953, 16
  %v9079 = vrot.slane %v9077, 4
  %v9080 = vor.u32 %v9079, %v9075
  %v9081 = vrot.slane %v9080, 4
  %v9083 = vshll.u32 %v8954, 16
  %v9085 = vrot.slane %v9083, 5
  %v9086 = vsel %vm983, %v9081, %v9085
  %v9088 = vshrl.u32 %v8955, 16
  %v9090 = vrot.slane %v9088, 4
  %v9091 = vshll.u32 %v8955, 16
  %v9093 = vrot.slane %v9091, 5
  %v9094 = vor.u32 %v9090, %v9093
  %v9095 = vrot.slane %v9094, 4
  %v9097 = vshll.u32 %v8956, 16
  %v9099 = vrot.slane %v9097, 5
  %v9100 = vsel %vm983, %v9095, %v9099
  %v9101 = vshrl.u32 %v8956, 16
  %v9103 = vrot.slane %v9101, 4
  %v9104 = vor.u32 %v9103, %v9099
  %v9105 = vrot.slane %v9104, 4
  %v9107 = vshll.u32 %v8957, 16
  %v9109 = vrot.slane %v9107, 5
  %v9110 = vsel %vm983, %v9105, %v9109
  %v9112 = vshrl.u32 %v8958, 16
  %v9114 = vrot.slane %v9112, 4
  %v9115 = vshll.u32 %v8958, 16
  %v9117 = vrot.slane %v9115, 5
  %v9118 = vor.u32 %v9114, %v9117
  %v9119 = vrot.slane %v9118, 4
  %v9121 = vshll.u32 %v8959, 16
  %v9123 = vrot.slane %v9121, 5
  %v9124 = vsel %vm983, %v9119, %v9123
  %v9125 = vshrl.u32 %v8959, 16
  %v9127 = vrot.slane %v9125, 4
  %v9128 = vor.u32 %v9127, %v9123
  %v9129 = vrot.slane %v9128, 4
  %v9131 = vshll.u32 %v8960, 16
  %v9133 = vrot.slane %v9131, 5
  %v9134 = vsel %vm983, %v9129, %v9133
  %v9136 = vshrl.u32 %v8961, 16
  %v9138 = vrot.slane %v9136, 4
  %v9139 = vshll.u32 %v8961, 16
  %v9141 = vrot.slane %v9139, 5
  %v9142 = vor.u32 %v9138, %v9141
  %v9143 = vrot.slane %v9142, 4
  %v9145 = vshll.u32 %v8962, 16
  %v9147 = vrot.slane %v9145, 5
  %v9148 = vsel %vm983, %v9143, %v9147
  %v9149 = vshrl.u32 %v8962, 16
  %v9151 = vrot.slane %v9149, 4
  %v9152 = vor.u32 %v9151, %v9147
  %v9153 = vrot.slane %v9152, 4
  %v9155 = vshll.u32 %v8963, 16
  %v9157 = vrot.slane %v9155, 5
  %v9158 = vsel %vm983, %v9153, %v9157
  %v9160 = vshrl.u32 %v8964, 16
  %v9162 = vrot.slane %v9160, 4
  %v9163 = vshll.u32 %v8964, 16
  %v9165 = vrot.slane %v9163, 5
  %v9166 = vor.u32 %v9162, %v9165
  %v9167 = vrot.slane %v9166, 4
  %v9169 = vshll.u32 %v8965, 16
  %v9171 = vrot.slane %v9169, 5
  %v9172 = vsel %vm983, %v9167, %v9171
  %v9173 = vshrl.u32 %v8965, 16
  %v9175 = vrot.slane %v9173, 4
  %v9176 = vor.u32 %v9175, %v9171
  %v9177 = vrot.slane %v9176, 4
  %v9179 = vshll.u32 %v8966, 16
  %v9181 = vrot.slane %v9179, 5
  %v9182 = vsel %vm983, %v9177, %v9181
  %v9184 = vshrl.u32 %v8967, 16
  %v9186 = vrot.slane %v9184, 4
  %v9187 = vshll.u32 %v8967, 16
  %v9189 = vrot.slane %v9187, 5
  %v9190 = vor.u32 %v9186, %v9189
  %v9191 = vrot.slane %v9190, 4
  %v9193 = vshll.u32 %v8968, 16
  %v9195 = vrot.slane %v9193, 5
  %v9196 = vsel %vm983, %v9191, %v9195
  %v9197 = vshrl.u32 %v8968, 16
  %v9199 = vrot.slane %v9197, 4
  %v9200 = vor.u32 %v9199, %v9195
  %v9201 = vrot.slane %v9200, 4
  %v9203 = vshll.u32 %v8969, 16
  %v9205 = vrot.slane %v9203, 5
  %v9206 = vsel %vm983, %v9201, %v9205
  %v9208 = vshrl.u32 %v8970, 16
  %v9210 = vrot.slane %v9208, 4
  %v9211 = vshll.u32 %v8970, 16
  %v9213 = vrot.slane %v9211, 5
  %v9214 = vor.u32 %v9210, %v9213
  %v9215 = vrot.slane %v9214, 4
  %v9217 = vshll.u32 %v8971, 16
  %v9219 = vrot.slane %v9217, 5
  %v9220 = vsel %vm983, %v9215, %v9219
  %v9221 = vshrl.u32 %v8971, 16
  %v9223 = vrot.slane %v9221, 4
  %v9224 = vor.u32 %v9223, %v9219
  %v9225 = vrot.slane %v9224, 4
  %v9227 = vshll.u32 %v8972, 16
  %v9229 = vrot.slane %v9227, 5
  %v9230 = vsel %vm983, %v9225, %v9229
  %v9232 = vshrl.u32 %v8973, 16
  %v9234 = vrot.slane %v9232, 4
  %v9235 = vshll.u32 %v8973, 16
  %v9237 = vrot.slane %v9235, 5
  %v9238 = vor.u32 %v9234, %v9237
  %v9239 = vrot.slane %v9238, 4
  %v9241 = vshll.u32 %v8974, 16
  %v9243 = vrot.slane %v9241, 5
  %v9244 = vsel %vm983, %v9239, %v9243
  %v9245 = vshrl.u32 %v8974, 16
  %v9247 = vrot.slane %v9245, 4
  %v9248 = vor.u32 %v9247, %v9243
  %v9249 = vrot.slane %v9248, 4
  %v9251 = vshll.u32 %v8975, 16
  %v9253 = vrot.slane %v9251, 5
  %v9254 = vsel %vm983, %v9249, %v9253
  %v9256 = vshrl.u32 %v8976, 16
  %v9258 = vrot.slane %v9256, 4
  %v9259 = vshll.u32 %v8976, 16
  %v9261 = vrot.slane %v9259, 5
  %v9262 = vor.u32 %v9258, %v9261
  %v9263 = vrot.slane %v9262, 4
  %v9265 = vshll.u32 %v8977, 16
  %v9267 = vrot.slane %v9265, 5
  %v9268 = vsel %vm983, %v9263, %v9267
  %v9269 = vshrl.u32 %v8977, 16
  %v9271 = vrot.slane %v9269, 4
  %v9272 = vor.u32 %v9271, %v9267
  %v9273 = vrot.slane %v9272, 4
  %v9275 = vshll.u32 %v8978, 16
  %v9277 = vrot.slane %v9275, 5
  %v9278 = vsel %vm983, %v9273, %v9277
  %v9280 = vshrl.u32 %v8979, 16
  %v9282 = vrot.slane %v9280, 4
  %v9283 = vshll.u32 %v8979, 16
  %v9285 = vrot.slane %v9283, 5
  %v9286 = vor.u32 %v9282, %v9285
  %v9287 = vrot.slane %v9286, 4
  %v9289 = vshll.u32 %v8980, 16
  %v9291 = vrot.slane %v9289, 5
  %v9292 = vsel %vm983, %v9287, %v9291
  %v9293 = vshrl.u32 %v8980, 16
  %v9295 = vrot.slane %v9293, 4
  %v9296 = vor.u32 %v9295, %v9291
  %v9297 = vrot.slane %v9296, 4
  %v9299 = vshll.u32 %v8981, 16
  %v9301 = vrot.slane %v9299, 5
  %v9302 = vsel %vm983, %v9297, %v9301
  %v9304 = vshrl.u32 %v8982, 16
  %v9306 = vrot.slane %v9304, 4
  %v9307 = vshll.u32 %v8982, 16
  %v9309 = vrot.slane %v9307, 5
  %v9310 = vor.u32 %v9306, %v9309
  %v9311 = vrot.slane %v9310, 4
  %v9313 = vshll.u32 %v8983, 16
  %v9315 = vrot.slane %v9313, 5
  %v9316 = vsel %vm983, %v9311, %v9315
  %v9317 = vshrl.u32 %v8983, 16
  %v9319 = vrot.slane %v9317, 4
  %v9320 = vor.u32 %v9319, %v9315
  %v9321 = vrot.slane %v9320, 4
  %v9323 = vshll.u32 %v8984, 16
  %v9325 = vrot.slane %v9323, 5
  %v9326 = vsel %vm983, %v9321, %v9325
  %v9328 = vshrl.u32 %v8985, 16
  %v9330 = vrot.slane %v9328, 4
  %v9331 = vshll.u32 %v8985, 16
  %v9333 = vrot.slane %v9331, 5
  %v9334 = vor.u32 %v9330, %v9333
  %v9335 = vrot.slane %v9334, 4
  %v9337 = vshll.u32 %v8986, 16
  %v9339 = vrot.slane %v9337, 5
  %v9340 = vsel %vm983, %v9335, %v9339
  %v9341 = vshrl.u32 %v8986, 16
  %v9343 = vrot.slane %v9341, 4
  %v9344 = vor.u32 %v9343, %v9339
  %v9345 = vrot.slane %v9344, 4
  %v9347 = vshll.u32 %v8987, 16
  %v9349 = vrot.slane %v9347, 5
  %v9350 = vsel %vm983, %v9345, %v9349
  %v9352 = vshrl.u32 %v8988, 16
  %v9354 = vrot.slane %v9352, 4
  %v9355 = vshll.u32 %v8988, 16
  %v9357 = vrot.slane %v9355, 5
  %v9358 = vor.u32 %v9354, %v9357
  %v9359 = vrot.slane %v9358, 4
  %v9361 = vshll.u32 %v8989, 16
  %v9363 = vrot.slane %v9361, 5
  %v9364 = vsel %vm983, %v9359, %v9363
  %v9365 = vshrl.u32 %v8989, 16
  %v9367 = vrot.slane %v9365, 4
  %v9368 = vor.u32 %v9367, %v9363
  %v9369 = vrot.slane %v9368, 4
  %v9371 = vshll.u32 %v8990, 16
  %v9373 = vrot.slane %v9371, 5
  %v9374 = vsel %vm983, %v9369, %v9373
  %v9375 = vld [vmem:[%s3 + $0x100] sm:$0xf]
  %v9376 = vld [vmem:[%s3 + $0x104] sm:$0xf]
  %v9377 = vld [vmem:[%s3 + $0x108] sm:$0xf]
  %v9378 = vld [vmem:[%s3 + $0x10c] sm:$0xf]
  %v9379 = vld [vmem:[%s3 + $0x110] sm:$0xf]
  %v9380 = vld [vmem:[%s3 + $0x114] sm:$0xf]
  %v9381 = vld [vmem:[%s3 + $0x118] sm:$0xf]
  %v9382 = vld [vmem:[%s3 + $0x11c] sm:$0xf]
  %v9383 = vld [vmem:[%s3 + $0x120] sm:$0xf]
  %v9384 = vld [vmem:[%s3 + $0x124] sm:$0xf]
  %v9385 = vld [vmem:[%s3 + $0x128] sm:$0xf]
  %v9386 = vld [vmem:[%s3 + $0x12c] sm:$0xf]
  %v9387 = vld [vmem:[%s3 + $0x130] sm:$0xf]
  %v9388 = vld [vmem:[%s3 + $0x134] sm:$0xf]
  %v9389 = vld [vmem:[%s3 + $0x138] sm:$0xf]
  %v9390 = vld [vmem:[%s3 + $0x13c] sm:$0xf]
  %v9391 = vunpack.c.l.b16 %v9004
  %v9392 = vunpack.c.l.b16 %v9014
  %v9393 = vunpack.c.l.b16 %v9028
  %v9394 = vunpack.c.l.b16 %v9038
  %v9395 = vunpack.c.l.b16 %v9052
  %v9396 = vunpack.c.l.b16 %v9062
  %v9397 = vunpack.c.l.b16 %v9076
  %v9398 = vunpack.c.l.b16 %v9086
  %v9399 = vunpack.c.l.b16 %v9100
  %v9400 = vunpack.c.l.b16 %v9110
  %v9401 = vunpack.c.l.b16 %v9124
  %v9402 = vunpack.c.l.b16 %v9134
  %v9403 = vunpack.c.l.b16 %v9148
  %v9404 = vunpack.c.l.b16 %v9158
  %v9405 = vunpack.c.l.b16 %v9172
  %v9406 = vunpack.c.l.b16 %v9182
  %v9407 = vunpack.c.l.b16 %v9196
  %v9408 = vunpack.c.l.b16 %v9206
  %v9409 = vunpack.c.l.b16 %v9220
  %v9410 = vunpack.c.l.b16 %v9230
  %v9411 = vunpack.c.l.b16 %v9244
  %v9412 = vunpack.c.l.b16 %v9254
  %v9413 = vunpack.c.l.b16 %v9268
  %v9414 = vunpack.c.l.b16 %v9278
  %v9415 = vunpack.c.l.b16 %v9292
  %v9416 = vunpack.c.l.b16 %v9302
  %v9417 = vunpack.c.l.b16 %v9316
  %v9418 = vunpack.c.l.b16 %v9326
  %v9419 = vunpack.c.l.b16 %v9340
  %v9420 = vunpack.c.l.b16 %v9350
  %v9421 = vunpack.c.l.b16 %v9364
  %v9422 = vunpack.c.l.b16 %v9374
  %v9423 = vpack.c.b16 %v9392, %v9391
  %v9424 = vpack.c.b16 %v9394, %v9393
  %v9425 = vpack.c.b16 %v9396, %v9395
  %v9426 = vpack.c.b16 %v9398, %v9397
  %v9427 = vpack.c.b16 %v9400, %v9399
  %v9428 = vpack.c.b16 %v9402, %v9401
  %v9429 = vpack.c.b16 %v9404, %v9403
  %v9430 = vpack.c.b16 %v9406, %v9405
  %v9431 = vpack.c.b16 %v9408, %v9407
  %v9432 = vpack.c.b16 %v9410, %v9409
  %v9433 = vpack.c.b16 %v9412, %v9411
  %v9434 = vpack.c.b16 %v9414, %v9413
  %v9435 = vpack.c.b16 %v9416, %v9415
  %v9436 = vpack.c.b16 %v9418, %v9417
  %v9437 = vpack.c.b16 %v9420, %v9419
  %v9438 = vpack.c.b16 %v9422, %v9421
  %v9471 = vunpack.c.l.b16 %v9375
  %v9472 = vunpack.c.l.b16 %v9376
  %v9473 = vunpack.c.l.b16 %v9377
  %v9474 = vunpack.c.l.b16 %v9378
  %v9475 = vunpack.c.l.b16 %v9379
  %v9476 = vunpack.c.l.b16 %v9380
  %v9477 = vunpack.c.l.b16 %v9381
  %v9478 = vunpack.c.l.b16 %v9382
  %v9479 = vunpack.c.l.b16 %v9383
  %v9480 = vunpack.c.l.b16 %v9384
  %v9481 = vunpack.c.l.b16 %v9385
  %v9482 = vunpack.c.l.b16 %v9386
  %v9483 = vunpack.c.l.b16 %v9387
  %v9484 = vunpack.c.l.b16 %v9388
  %v9485 = vunpack.c.l.b16 %v9389
  %v9486 = vunpack.c.l.b16 %v9390
  %v9487 = vpack.c.b16 %v9472, %v9471
  %v9488 = vpack.c.b16 %v9474, %v9473
  %v9489 = vpack.c.b16 %v9476, %v9475
  %v9490 = vpack.c.b16 %v9478, %v9477
  %v9491 = vpack.c.b16 %v9480, %v9479
  %v9492 = vpack.c.b16 %v9482, %v9481
  %v9493 = vpack.c.b16 %v9484, %v9483
  %v9494 = vpack.c.b16 %v9486, %v9485
  %9503 = vmatprep.subr.bf16.mxu0 0
  %9504 = vmatpush1.bf16.msra.mxu0 %v9494
  %9505 = vmatprep.subr.bf16.mxu0 0
  %9506 = vmatpush1.bf16.msra.mxu0 %v9493
  %9507 = vmatprep.subr.bf16.mxu0 0
  %9508 = vmatpush1.bf16.msra.mxu0 %v9492
  %9509 = vmatprep.subr.bf16.mxu0 0
  %9510 = vmatpush1.bf16.msra.mxu0 %v9491
  %9511 = vmatprep.subr.bf16.mxu0 0
  %9512 = vmatpush1.bf16.msra.mxu0 %v9490
  %9513 = vmatprep.subr.bf16.mxu0 0
  %9514 = vmatpush1.bf16.msra.mxu0 %v9489
  %9515 = vmatprep.subr.bf16.mxu0 0
  %9516 = vmatpush1.bf16.msra.mxu0 %v9488
  %9517 = vmatprep.subr.bf16.mxu0 0
  %9518 = vmatpush1.bf16.msra.mxu0 %v9487
  %9519 = vmatprep.subr.bf16.mxu0 0
  %9520 = vmatpush2.bf16.msra.mxu0 0
  %9521 = vmatprep.subr.bf16.mxu0 0
  %9522 = vmatpush2.bf16.msra.mxu0 0
  %9523 = vmatprep.subr.bf16.mxu0 0
  %9524 = vmatpush2.bf16.msra.mxu0 0
  %9525 = vmatprep.subr.bf16.mxu0 0
  %9526 = vmatpush2.bf16.msra.mxu0 0
  %9527 = vmatprep.subr.bf16.mxu0 0
  %9528 = vmatpush2.bf16.msra.mxu0 0
  %9529 = vmatprep.subr.bf16.mxu0 0
  %9530 = vmatpush2.bf16.msra.mxu0 0
  %9531 = vmatprep.subr.bf16.mxu0 0
  %9532 = vmatpush2.bf16.msra.mxu0 0
  %9533 = vmatprep.subr.bf16.mxu0 0
  %9534 = vmatpush2.bf16.msra.mxu0 0
  %9535 = vmatprep.mubr.bf16.mxu0 0
  %9536 = vmatmul.mubr.bf16.gmra.mxu0 %v9423
  %v9537 = vpop.f32.mrf.mxu0
  %v9538 = vadd.f32 0.0, %v9537
  %v9539 = vpop.f32.mrf.mxu0
  %v9540 = vpop.f32.mrf.mxu0
  %v9541 = vadd.f32 0.0, %v9540
  %v9542 = vpop.f32.mrf.mxu0
  %9543 = vmatprep.mubr.bf16.mxu0 0
  %9544 = vmatmul.mubr.bf16.gmra.mxu0 %v9424
  %v9545 = vpop.f32.mrf.mxu0
  %v9546 = vadd.f32 0.0, %v9545
  %v9547 = vpop.f32.mrf.mxu0
  %v9548 = vpop.f32.mrf.mxu0
  %v9549 = vadd.f32 0.0, %v9548
  %v9550 = vpop.f32.mrf.mxu0
  %9551 = vmatprep.mubr.bf16.mxu0 0
  %9552 = vmatmul.mubr.bf16.gmra.mxu0 %v9425
  %v9553 = vpop.f32.mrf.mxu0
  %v9554 = vadd.f32 0.0, %v9553
  %v9555 = vpop.f32.mrf.mxu0
  %v9556 = vpop.f32.mrf.mxu0
  %v9557 = vadd.f32 0.0, %v9556
  %v9558 = vpop.f32.mrf.mxu0
  %9559 = vmatprep.mubr.bf16.mxu0 0
  %9560 = vmatmul.mubr.bf16.gmra.mxu0 %v9426
  %v9561 = vpop.f32.mrf.mxu0
  %v9562 = vadd.f32 0.0, %v9561
  %v9563 = vpop.f32.mrf.mxu0
  %v9564 = vpop.f32.mrf.mxu0
  %v9565 = vadd.f32 0.0, %v9564
  %v9566 = vpop.f32.mrf.mxu0
  %9567 = vmatprep.mubr.bf16.mxu0 0
  %9568 = vmatmul.mubr.bf16.gmra.mxu0 %v9427
  %v9569 = vpop.f32.mrf.mxu0
  %v9570 = vadd.f32 0.0, %v9569
  %v9571 = vpop.f32.mrf.mxu0
  %v9572 = vpop.f32.mrf.mxu0
  %v9573 = vadd.f32 0.0, %v9572
  %v9574 = vpop.f32.mrf.mxu0
  %9575 = vmatprep.mubr.bf16.mxu0 0
  %9576 = vmatmul.mubr.bf16.gmra.mxu0 %v9428
  %v9577 = vpop.f32.mrf.mxu0
  %v9578 = vadd.f32 0.0, %v9577
  %v9579 = vpop.f32.mrf.mxu0
  %v9580 = vpop.f32.mrf.mxu0
  %v9581 = vadd.f32 0.0, %v9580
  %v9582 = vpop.f32.mrf.mxu0
  %9583 = vmatprep.mubr.bf16.mxu0 0
  %9584 = vmatmul.mubr.bf16.gmra.mxu0 %v9429
  %v9585 = vpop.f32.mrf.mxu0
  %v9586 = vadd.f32 0.0, %v9585
  %v9587 = vpop.f32.mrf.mxu0
  %v9588 = vpop.f32.mrf.mxu0
  %v9589 = vadd.f32 0.0, %v9588
  %v9590 = vpop.f32.mrf.mxu0
  %9591 = vmatprep.mubr.bf16.mxu0 0
  %9592 = vmatmul.mubr.bf16.gmra.mxu0 %v9430
  %v9593 = vpop.f32.mrf.mxu0
  %v9594 = vadd.f32 0.0, %v9593
  %v9595 = vpop.f32.mrf.mxu0
  %v9596 = vpop.f32.mrf.mxu0
  %v9597 = vadd.f32 0.0, %v9596
  %v9598 = vpop.f32.mrf.mxu0
  %9599 = vmatprep.mubr.bf16.mxu0 0
  %9600 = vmatmul.mubr.bf16.gmra.mxu0 %v9431
  %v9601 = vpop.f32.mrf.mxu0
  %v9602 = vadd.f32 0.0, %v9601
  %v9603 = vpop.f32.mrf.mxu0
  %v9604 = vpop.f32.mrf.mxu0
  %v9605 = vadd.f32 0.0, %v9604
  %v9606 = vpop.f32.mrf.mxu0
  %9607 = vmatprep.mubr.bf16.mxu0 0
  %9608 = vmatmul.mubr.bf16.gmra.mxu0 %v9432
  %v9609 = vpop.f32.mrf.mxu0
  %v9610 = vadd.f32 0.0, %v9609
  %v9611 = vpop.f32.mrf.mxu0
  %v9612 = vpop.f32.mrf.mxu0
  %v9613 = vadd.f32 0.0, %v9612
  %v9614 = vpop.f32.mrf.mxu0
  %9615 = vmatprep.mubr.bf16.mxu0 0
  %9616 = vmatmul.mubr.bf16.gmra.mxu0 %v9433
  %v9617 = vpop.f32.mrf.mxu0
  %v9618 = vadd.f32 0.0, %v9617
  %v9619 = vpop.f32.mrf.mxu0
  %v9620 = vpop.f32.mrf.mxu0
  %v9621 = vadd.f32 0.0, %v9620
  %v9622 = vpop.f32.mrf.mxu0
  %9623 = vmatprep.mubr.bf16.mxu0 0
  %9624 = vmatmul.mubr.bf16.gmra.mxu0 %v9434
  %v9625 = vpop.f32.mrf.mxu0
  %v9626 = vadd.f32 0.0, %v9625
  %v9627 = vpop.f32.mrf.mxu0
  %v9628 = vpop.f32.mrf.mxu0
  %v9629 = vadd.f32 0.0, %v9628
  %v9630 = vpop.f32.mrf.mxu0
  %9631 = vmatprep.mubr.bf16.mxu0 0
  %9632 = vmatmul.mubr.bf16.gmra.mxu0 %v9435
  %v9633 = vpop.f32.mrf.mxu0
  %v9634 = vadd.f32 0.0, %v9633
  %v9635 = vpop.f32.mrf.mxu0
  %v9636 = vpop.f32.mrf.mxu0
  %v9637 = vadd.f32 0.0, %v9636
  %v9638 = vpop.f32.mrf.mxu0
  %9639 = vmatprep.mubr.bf16.mxu0 0
  %9640 = vmatmul.mubr.bf16.gmra.mxu0 %v9436
  %v9641 = vpop.f32.mrf.mxu0
  %v9642 = vadd.f32 0.0, %v9641
  %v9643 = vpop.f32.mrf.mxu0
  %v9644 = vpop.f32.mrf.mxu0
  %v9645 = vadd.f32 0.0, %v9644
  %v9646 = vpop.f32.mrf.mxu0
  %9647 = vmatprep.mubr.bf16.mxu0 0
  %9648 = vmatmul.mubr.bf16.gmra.mxu0 %v9437
  %v9649 = vpop.f32.mrf.mxu0
  %v9650 = vadd.f32 0.0, %v9649
  %v9651 = vpop.f32.mrf.mxu0
  %v9652 = vpop.f32.mrf.mxu0
  %v9653 = vadd.f32 0.0, %v9652
  %v9654 = vpop.f32.mrf.mxu0
  %9655 = vmatprep.mubr.bf16.mxu0 0
  %9656 = vmatmul.mubr.bf16.gmra.mxu0 %v9438
  %v9657 = vpop.f32.mrf.mxu0
  %v9658 = vadd.f32 0.0, %v9657
  %v9659 = vpop.f32.mrf.mxu0
  %v9660 = vpop.f32.mrf.mxu0
  %v9661 = vadd.f32 0.0, %v9660
  %v9662 = vpop.f32.mrf.mxu0
  %9663 = vdwg.mxu0
  %v9664 = vld [vmem:[#allocation3] sm:$0xff]
  %v9665 = vld [vmem:[#allocation3 + $0x8] sm:$0xff]
  %v9666 = vld [vmem:[#allocation3 + $0x10] sm:$0xff]
  %v9667 = vld [vmem:[#allocation3 + $0x18] sm:$0xff]
  %v9668 = vld [vmem:[#allocation3 + $0x20] sm:$0xff]
  %v9669 = vld [vmem:[#allocation3 + $0x28] sm:$0xff]
  %v9670 = vld [vmem:[#allocation3 + $0x30] sm:$0xff]
  %v9671 = vld [vmem:[#allocation3 + $0x38] sm:$0xff]
  %v9672 = vld [vmem:[#allocation3 + $0x40] sm:$0xff]
  %v9673 = vld [vmem:[#allocation3 + $0x48] sm:$0xff]
  %v9674 = vld [vmem:[#allocation3 + $0x50] sm:$0xff]
  %v9675 = vld [vmem:[#allocation3 + $0x58] sm:$0xff]
  %v9676 = vld [vmem:[#allocation3 + $0x60] sm:$0xff]
  %v9677 = vld [vmem:[#allocation3 + $0x68] sm:$0xff]
  %v9678 = vld [vmem:[#allocation3 + $0x70] sm:$0xff]
  %v9679 = vld [vmem:[#allocation3 + $0x78] sm:$0xff]
  %v9680 = vld [vmem:[#allocation3 + $0x80] sm:$0xff]
  %v9681 = vld [vmem:[#allocation3 + $0x88] sm:$0xff]
  %v9682 = vld [vmem:[#allocation3 + $0x90] sm:$0xff]
  %v9683 = vld [vmem:[#allocation3 + $0x98] sm:$0xff]
  %v9684 = vld [vmem:[#allocation3 + $0xa0] sm:$0xff]
  %v9685 = vld [vmem:[#allocation3 + $0xa8] sm:$0xff]
  %v9686 = vld [vmem:[#allocation3 + $0xb0] sm:$0xff]
  %v9687 = vld [vmem:[#allocation3 + $0xb8] sm:$0xff]
  %v9688 = vld [vmem:[#allocation3 + $0xc0] sm:$0xff]
  %v9689 = vld [vmem:[#allocation3 + $0xc8] sm:$0xff]
  %v9690 = vld [vmem:[#allocation3 + $0xd0] sm:$0xff]
  %v9691 = vld [vmem:[#allocation3 + $0xd8] sm:$0xff]
  %v9692 = vld [vmem:[#allocation3 + $0xe0] sm:$0xff]
  %v9693 = vld [vmem:[#allocation3 + $0xe8] sm:$0xff]
  %v9694 = vld [vmem:[#allocation3 + $0xf0] sm:$0xff]
  %v9695 = vld [vmem:[#allocation3 + $0xf8] sm:$0xff]
  %v9696 = vadd.f32 %v9664, %v9538
  %v9697 = vadd.f32 %v9665, %v9541
  %v9698 = vadd.f32 %v9666, %v9546
  %v9699 = vadd.f32 %v9667, %v9549
  %v9700 = vadd.f32 %v9668, %v9554
  %v9701 = vadd.f32 %v9669, %v9557
  %v9702 = vadd.f32 %v9670, %v9562
  %v9703 = vadd.f32 %v9671, %v9565
  %v9704 = vadd.f32 %v9672, %v9570
  %v9705 = vadd.f32 %v9673, %v9573
  %v9706 = vadd.f32 %v9674, %v9578
  %v9707 = vadd.f32 %v9675, %v9581
  %v9708 = vadd.f32 %v9676, %v9586
  %v9709 = vadd.f32 %v9677, %v9589
  %v9710 = vadd.f32 %v9678, %v9594
  %v9711 = vadd.f32 %v9679, %v9597
  %v9712 = vadd.f32 %v9680, %v9602
  %v9713 = vadd.f32 %v9681, %v9605
  %v9714 = vadd.f32 %v9682, %v9610
  %v9715 = vadd.f32 %v9683, %v9613
  %v9716 = vadd.f32 %v9684, %v9618
  %v9717 = vadd.f32 %v9685, %v9621
  %v9718 = vadd.f32 %v9686, %v9626
  %v9719 = vadd.f32 %v9687, %v9629
  %v9720 = vadd.f32 %v9688, %v9634
  %v9721 = vadd.f32 %v9689, %v9637
  %v9722 = vadd.f32 %v9690, %v9642
  %v9723 = vadd.f32 %v9691, %v9645
  %v9724 = vadd.f32 %v9692, %v9650
  %v9725 = vadd.f32 %v9693, %v9653
  %v9726 = vadd.f32 %v9694, %v9658
  %v9727 = vadd.f32 %v9695, %v9661
  %9728 = vst [vmem:[#allocation3] sm:$0xff] %v9696
  %9729 = vst [vmem:[#allocation3 + $0x8] sm:$0xff] %v9697
  %9730 = vst [vmem:[#allocation3 + $0x10] sm:$0xff] %v9698
  %9731 = vst [vmem:[#allocation3 + $0x18] sm:$0xff] %v9699
  %9732 = vst [vmem:[#allocation3 + $0x20] sm:$0xff] %v9700
  %9733 = vst [vmem:[#allocation3 + $0x28] sm:$0xff] %v9701
  %9734 = vst [vmem:[#allocation3 + $0x30] sm:$0xff] %v9702
  %9735 = vst [vmem:[#allocation3 + $0x38] sm:$0xff] %v9703
  %9736 = vst [vmem:[#allocation3 + $0x40] sm:$0xff] %v9704
  %9737 = vst [vmem:[#allocation3 + $0x48] sm:$0xff] %v9705
  %9738 = vst [vmem:[#allocation3 + $0x50] sm:$0xff] %v9706
  %9739 = vst [vmem:[#allocation3 + $0x58] sm:$0xff] %v9707
  %9740 = vst [vmem:[#allocation3 + $0x60] sm:$0xff] %v9708
  %9741 = vst [vmem:[#allocation3 + $0x68] sm:$0xff] %v9709
  %9742 = vst [vmem:[#allocation3 + $0x70] sm:$0xff] %v9710
  %9743 = vst [vmem:[#allocation3 + $0x78] sm:$0xff] %v9711
  %9744 = vst [vmem:[#allocation3 + $0x80] sm:$0xff] %v9712
  %9745 = vst [vmem:[#allocation3 + $0x88] sm:$0xff] %v9713
  %9746 = vst [vmem:[#allocation3 + $0x90] sm:$0xff] %v9714
  %9747 = vst [vmem:[#allocation3 + $0x98] sm:$0xff] %v9715
  %9748 = vst [vmem:[#allocation3 + $0xa0] sm:$0xff] %v9716
  %9749 = vst [vmem:[#allocation3 + $0xa8] sm:$0xff] %v9717
  %9750 = vst [vmem:[#allocation3 + $0xb0] sm:$0xff] %v9718
  %9751 = vst [vmem:[#allocation3 + $0xb8] sm:$0xff] %v9719
  %9752 = vst [vmem:[#allocation3 + $0xc0] sm:$0xff] %v9720
  %9753 = vst [vmem:[#allocation3 + $0xc8] sm:$0xff] %v9721
  %9754 = vst [vmem:[#allocation3 + $0xd0] sm:$0xff] %v9722
  %9755 = vst [vmem:[#allocation3 + $0xd8] sm:$0xff] %v9723
  %9756 = vst [vmem:[#allocation3 + $0xe0] sm:$0xff] %v9724
  %9757 = vst [vmem:[#allocation3 + $0xe8] sm:$0xff] %v9725
  %9758 = vst [vmem:[#allocation3 + $0xf0] sm:$0xff] %v9726
  %9759 = vst [vmem:[#allocation3 + $0xf8] sm:$0xff] %v9727
  %v9760 = vld [vmem:[%s430] sm:$0xe]
  %v9761 = vld [vmem:[%s430 + $0x4] sm:$0xf]
  %v9762 = vld [vmem:[%s430 + $0x8] sm:$0x1]
  %v9763 = vld [vmem:[%s430 + $0xc] sm:$0xe]
  %v9764 = vld [vmem:[%s430 + $0x10] sm:$0xf]
  %v9765 = vld [vmem:[%s430 + $0x14] sm:$0x1]
  %v9766 = vld [vmem:[%s430 + $0x18] sm:$0xe]
  %v9767 = vld [vmem:[%s430 + $0x1c] sm:$0xf]
  %v9768 = vld [vmem:[%s430 + $0x20] sm:$0x1]
  %v9769 = vld [vmem:[%s430 + $0x24] sm:$0xe]
  %v9770 = vld [vmem:[%s430 + $0x28] sm:$0xf]
  %v9771 = vld [vmem:[%s430 + $0x2c] sm:$0x1]
  %v9772 = vld [vmem:[%s430 + $0x30] sm:$0xe]
  %v9773 = vld [vmem:[%s430 + $0x34] sm:$0xf]
  %v9774 = vld [vmem:[%s430 + $0x38] sm:$0x1]
  %v9775 = vld [vmem:[%s430 + $0x3c] sm:$0xe]
  %v9776 = vld [vmem:[%s430 + $0x40] sm:$0xf]
  %v9777 = vld [vmem:[%s430 + $0x44] sm:$0x1]
  %v9778 = vld [vmem:[%s430 + $0x48] sm:$0xe]
  %v9779 = vld [vmem:[%s430 + $0x4c] sm:$0xf]
  %v9780 = vld [vmem:[%s430 + $0x50] sm:$0x1]
  %v9781 = vld [vmem:[%s430 + $0x54] sm:$0xe]
  %v9782 = vld [vmem:[%s430 + $0x58] sm:$0xf]
  %v9783 = vld [vmem:[%s430 + $0x5c] sm:$0x1]
  %v9784 = vld [vmem:[%s430 + $0x60] sm:$0xe]
  %v9785 = vld [vmem:[%s430 + $0x64] sm:$0xf]
  %v9786 = vld [vmem:[%s430 + $0x68] sm:$0x1]
  %v9787 = vld [vmem:[%s430 + $0x6c] sm:$0xe]
  %v9788 = vld [vmem:[%s430 + $0x70] sm:$0xf]
  %v9789 = vld [vmem:[%s430 + $0x74] sm:$0x1]
  %v9790 = vld [vmem:[%s430 + $0x78] sm:$0xe]
  %v9791 = vld [vmem:[%s430 + $0x7c] sm:$0xf]
  %v9792 = vld [vmem:[%s430 + $0x80] sm:$0x1]
  %v9793 = vld [vmem:[%s430 + $0x84] sm:$0xe]
  %v9794 = vld [vmem:[%s430 + $0x88] sm:$0xf]
  %v9795 = vld [vmem:[%s430 + $0x8c] sm:$0x1]
  %v9796 = vld [vmem:[%s430 + $0x90] sm:$0xe]
  %v9797 = vld [vmem:[%s430 + $0x94] sm:$0xf]
  %v9798 = vld [vmem:[%s430 + $0x98] sm:$0x1]
  %v9799 = vld [vmem:[%s430 + $0x9c] sm:$0xe]
  %v9800 = vld [vmem:[%s430 + $0xa0] sm:$0xf]
  %v9801 = vld [vmem:[%s430 + $0xa4] sm:$0x1]
  %v9802 = vld [vmem:[%s430 + $0xa8] sm:$0xe]
  %v9803 = vld [vmem:[%s430 + $0xac] sm:$0xf]
  %v9804 = vld [vmem:[%s430 + $0xb0] sm:$0x1]
  %v9805 = vld [vmem:[%s430 + $0xb4] sm:$0xe]
  %v9806 = vld [vmem:[%s430 + $0xb8] sm:$0xf]
  %v9807 = vld [vmem:[%s430 + $0xbc] sm:$0x1]
  %v9856 = vrot.slane %v9760, 5
  %v9857 = vrot.slane %v9856, 4
  %v9858 = vrot.slane %v9761, 5
  %v9859 = vsel %vm1851, %v9857, %v9858
  %v9860 = vrot.slane %v9858, 4
  %v9861 = vrot.slane %v9762, 5
  %v9862 = vsel %vm1851, %v9860, %v9861
  %v9863 = vrot.slane %v9763, 5
  %v9864 = vrot.slane %v9863, 4
  %v9865 = vrot.slane %v9764, 5
  %v9866 = vsel %vm1851, %v9864, %v9865
  %v9867 = vrot.slane %v9865, 4
  %v9868 = vrot.slane %v9765, 5
  %v9869 = vsel %vm1851, %v9867, %v9868
  %v9870 = vrot.slane %v9766, 5
  %v9871 = vrot.slane %v9870, 4
  %v9872 = vrot.slane %v9767, 5
  %v9873 = vsel %vm1851, %v9871, %v9872
  %v9874 = vrot.slane %v9872, 4
  %v9875 = vrot.slane %v9768, 5
  %v9876 = vsel %vm1851, %v9874, %v9875
  %v9877 = vrot.slane %v9769, 5
  %v9878 = vrot.slane %v9877, 4
  %v9879 = vrot.slane %v9770, 5
  %v9880 = vsel %vm1851, %v9878, %v9879
  %v9881 = vrot.slane %v9879, 4
  %v9882 = vrot.slane %v9771, 5
  %v9883 = vsel %vm1851, %v9881, %v9882
  %v9884 = vrot.slane %v9772, 5
  %v9885 = vrot.slane %v9884, 4
  %v9886 = vrot.slane %v9773, 5
  %v9887 = vsel %vm1851, %v9885, %v9886
  %v9888 = vrot.slane %v9886, 4
  %v9889 = vrot.slane %v9774, 5
  %v9890 = vsel %vm1851, %v9888, %v9889
  %v9891 = vrot.slane %v9775, 5
  %v9892 = vrot.slane %v9891, 4
  %v9893 = vrot.slane %v9776, 5
  %v9894 = vsel %vm1851, %v9892, %v9893
  %v9895 = vrot.slane %v9893, 4
  %v9896 = vrot.slane %v9777, 5
  %v9897 = vsel %vm1851, %v9895, %v9896
  %v9898 = vrot.slane %v9778, 5
  %v9899 = vrot.slane %v9898, 4
  %v9900 = vrot.slane %v9779, 5
  %v9901 = vsel %vm1851, %v9899, %v9900
  %v9902 = vrot.slane %v9900, 4
  %v9903 = vrot.slane %v9780, 5
  %v9904 = vsel %vm1851, %v9902, %v9903
  %v9905 = vrot.slane %v9781, 5
  %v9906 = vrot.slane %v9905, 4
  %v9907 = vrot.slane %v9782, 5
  %v9908 = vsel %vm1851, %v9906, %v9907
  %v9909 = vrot.slane %v9907, 4
  %v9910 = vrot.slane %v9783, 5
  %v9911 = vsel %vm1851, %v9909, %v9910
  %v9912 = vrot.slane %v9784, 5
  %v9913 = vrot.slane %v9912, 4
  %v9914 = vrot.slane %v9785, 5
  %v9915 = vsel %vm1851, %v9913, %v9914
  %v9916 = vrot.slane %v9914, 4
  %v9917 = vrot.slane %v9786, 5
  %v9918 = vsel %vm1851, %v9916, %v9917
  %v9919 = vrot.slane %v9787, 5
  %v9920 = vrot.slane %v9919, 4
  %v9921 = vrot.slane %v9788, 5
  %v9922 = vsel %vm1851, %v9920, %v9921
  %v9923 = vrot.slane %v9921, 4
  %v9924 = vrot.slane %v9789, 5
  %v9925 = vsel %vm1851, %v9923, %v9924
  %v9926 = vrot.slane %v9790, 5
  %v9927 = vrot.slane %v9926, 4
  %v9928 = vrot.slane %v9791, 5
  %v9929 = vsel %vm1851, %v9927, %v9928
  %v9930 = vrot.slane %v9928, 4
  %v9931 = vrot.slane %v9792, 5
  %v9932 = vsel %vm1851, %v9930, %v9931
  %v9933 = vrot.slane %v9793, 5
  %v9934 = vrot.slane %v9933, 4
  %v9935 = vrot.slane %v9794, 5
  %v9936 = vsel %vm1851, %v9934, %v9935
  %v9937 = vrot.slane %v9935, 4
  %v9938 = vrot.slane %v9795, 5
  %v9939 = vsel %vm1851, %v9937, %v9938
  %v9940 = vrot.slane %v9796, 5
  %v9941 = vrot.slane %v9940, 4
  %v9942 = vrot.slane %v9797, 5
  %v9943 = vsel %vm1851, %v9941, %v9942
  %v9944 = vrot.slane %v9942, 4
  %v9945 = vrot.slane %v9798, 5
  %v9946 = vsel %vm1851, %v9944, %v9945
  %v9947 = vrot.slane %v9799, 5
  %v9948 = vrot.slane %v9947, 4
  %v9949 = vrot.slane %v9800, 5
  %v9950 = vsel %vm1851, %v9948, %v9949
  %v9951 = vrot.slane %v9949, 4
  %v9952 = vrot.slane %v9801, 5
  %v9953 = vsel %vm1851, %v9951, %v9952
  %v9954 = vrot.slane %v9802, 5
  %v9955 = vrot.slane %v9954, 4
  %v9956 = vrot.slane %v9803, 5
  %v9957 = vsel %vm1851, %v9955, %v9956
  %v9958 = vrot.slane %v9956, 4
  %v9959 = vrot.slane %v9804, 5
  %v9960 = vsel %vm1851, %v9958, %v9959
  %v9961 = vrot.slane %v9805, 5
  %v9962 = vrot.slane %v9961, 4
  %v9963 = vrot.slane %v9806, 5
  %v9964 = vsel %vm1851, %v9962, %v9963
  %v9965 = vrot.slane %v9963, 4
  %v9966 = vrot.slane %v9807, 5
  %v9967 = vsel %vm1851, %v9965, %v9966
  %v9968 = vld [vmem:[%s3 + $0x140] sm:$0xf]
  %v9969 = vld [vmem:[%s3 + $0x144] sm:$0xf]
  %v9970 = vld [vmem:[%s3 + $0x148] sm:$0xf]
  %v9971 = vld [vmem:[%s3 + $0x14c] sm:$0xf]
  %v9972 = vld [vmem:[%s3 + $0x150] sm:$0xf]
  %v9973 = vld [vmem:[%s3 + $0x154] sm:$0xf]
  %v9974 = vld [vmem:[%s3 + $0x158] sm:$0xf]
  %v9975 = vld [vmem:[%s3 + $0x15c] sm:$0xf]
  %v9976 = vld [vmem:[%s3 + $0x160] sm:$0xf]
  %v9977 = vld [vmem:[%s3 + $0x164] sm:$0xf]
  %v9978 = vld [vmem:[%s3 + $0x168] sm:$0xf]
  %v9979 = vld [vmem:[%s3 + $0x16c] sm:$0xf]
  %v9980 = vld [vmem:[%s3 + $0x170] sm:$0xf]
  %v9981 = vld [vmem:[%s3 + $0x174] sm:$0xf]
  %v9982 = vld [vmem:[%s3 + $0x178] sm:$0xf]
  %v9983 = vld [vmem:[%s3 + $0x17c] sm:$0xf]
  %v9984 = vunpack.c.l.b16 %v9859
  %v9985 = vunpack.c.l.b16 %v9862
  %v9986 = vunpack.c.l.b16 %v9866
  %v9987 = vunpack.c.l.b16 %v9869
  %v9988 = vunpack.c.l.b16 %v9873
  %v9989 = vunpack.c.l.b16 %v9876
  %v9990 = vunpack.c.l.b16 %v9880
  %v9991 = vunpack.c.l.b16 %v9883
  %v9992 = vunpack.c.l.b16 %v9887
  %v9993 = vunpack.c.l.b16 %v9890
  %v9994 = vunpack.c.l.b16 %v9894
  %v9995 = vunpack.c.l.b16 %v9897
  %v9996 = vunpack.c.l.b16 %v9901
  %v9997 = vunpack.c.l.b16 %v9904
  %v9998 = vunpack.c.l.b16 %v9908
  %v9999 = vunpack.c.l.b16 %v9911
  %v10000 = vunpack.c.l.b16 %v9915
  %v10001 = vunpack.c.l.b16 %v9918
  %v10002 = vunpack.c.l.b16 %v9922
  %v10003 = vunpack.c.l.b16 %v9925
  %v10004 = vunpack.c.l.b16 %v9929
  %v10005 = vunpack.c.l.b16 %v9932
  %v10006 = vunpack.c.l.b16 %v9936
  %v10007 = vunpack.c.l.b16 %v9939
  %v10008 = vunpack.c.l.b16 %v9943
  %v10009 = vunpack.c.l.b16 %v9946
  %v10010 = vunpack.c.l.b16 %v9950
  %v10011 = vunpack.c.l.b16 %v9953
  %v10012 = vunpack.c.l.b16 %v9957
  %v10013 = vunpack.c.l.b16 %v9960
  %v10014 = vunpack.c.l.b16 %v9964
  %v10015 = vunpack.c.l.b16 %v9967
  %v10016 = vpack.c.b16 %v9985, %v9984
  %v10017 = vpack.c.b16 %v9987, %v9986
  %v10018 = vpack.c.b16 %v9989, %v9988
  %v10019 = vpack.c.b16 %v9991, %v9990
  %v10020 = vpack.c.b16 %v9993, %v9992
  %v10021 = vpack.c.b16 %v9995, %v9994
  %v10022 = vpack.c.b16 %v9997, %v9996
  %v10023 = vpack.c.b16 %v9999, %v9998
  %v10024 = vpack.c.b16 %v10001, %v10000
  %v10025 = vpack.c.b16 %v10003, %v10002
  %v10026 = vpack.c.b16 %v10005, %v10004
  %v10027 = vpack.c.b16 %v10007, %v10006
  %v10028 = vpack.c.b16 %v10009, %v10008
  %v10029 = vpack.c.b16 %v10011, %v10010
  %v10030 = vpack.c.b16 %v10013, %v10012
  %v10031 = vpack.c.b16 %v10015, %v10014
  %v10064 = vunpack.c.l.b16 %v9968
  %v10065 = vunpack.c.l.b16 %v9969
  %v10066 = vunpack.c.l.b16 %v9970
  %v10067 = vunpack.c.l.b16 %v9971
  %v10068 = vunpack.c.l.b16 %v9972
  %v10069 = vunpack.c.l.b16 %v9973
  %v10070 = vunpack.c.l.b16 %v9974
  %v10071 = vunpack.c.l.b16 %v9975
  %v10072 = vunpack.c.l.b16 %v9976
  %v10073 = vunpack.c.l.b16 %v9977
  %v10074 = vunpack.c.l.b16 %v9978
  %v10075 = vunpack.c.l.b16 %v9979
  %v10076 = vunpack.c.l.b16 %v9980
  %v10077 = vunpack.c.l.b16 %v9981
  %v10078 = vunpack.c.l.b16 %v9982
  %v10079 = vunpack.c.l.b16 %v9983
  %v10080 = vpack.c.b16 %v10065, %v10064
  %v10081 = vpack.c.b16 %v10067, %v10066
  %v10082 = vpack.c.b16 %v10069, %v10068
  %v10083 = vpack.c.b16 %v10071, %v10070
  %v10084 = vpack.c.b16 %v10073, %v10072
  %v10085 = vpack.c.b16 %v10075, %v10074
  %v10086 = vpack.c.b16 %v10077, %v10076
  %v10087 = vpack.c.b16 %v10079, %v10078
  %10096 = vmatprep.subr.bf16.mxu0 0
  %10097 = vmatpush1.bf16.msra.mxu0 %v10087
  %10098 = vmatprep.subr.bf16.mxu0 0
  %10099 = vmatpush1.bf16.msra.mxu0 %v10086
  %10100 = vmatprep.subr.bf16.mxu0 0
  %10101 = vmatpush1.bf16.msra.mxu0 %v10085
  %10102 = vmatprep.subr.bf16.mxu0 0
  %10103 = vmatpush1.bf16.msra.mxu0 %v10084
  %10104 = vmatprep.subr.bf16.mxu0 0
  %10105 = vmatpush1.bf16.msra.mxu0 %v10083
  %10106 = vmatprep.subr.bf16.mxu0 0
  %10107 = vmatpush1.bf16.msra.mxu0 %v10082
  %10108 = vmatprep.subr.bf16.mxu0 0
  %10109 = vmatpush1.bf16.msra.mxu0 %v10081
  %10110 = vmatprep.subr.bf16.mxu0 0
  %10111 = vmatpush1.bf16.msra.mxu0 %v10080
  %10112 = vmatprep.subr.bf16.mxu0 0
  %10113 = vmatpush2.bf16.msra.mxu0 0
  %10114 = vmatprep.subr.bf16.mxu0 0
  %10115 = vmatpush2.bf16.msra.mxu0 0
  %10116 = vmatprep.subr.bf16.mxu0 0
  %10117 = vmatpush2.bf16.msra.mxu0 0
  %10118 = vmatprep.subr.bf16.mxu0 0
  %10119 = vmatpush2.bf16.msra.mxu0 0
  %10120 = vmatprep.subr.bf16.mxu0 0
  %10121 = vmatpush2.bf16.msra.mxu0 0
  %10122 = vmatprep.subr.bf16.mxu0 0
  %10123 = vmatpush2.bf16.msra.mxu0 0
  %10124 = vmatprep.subr.bf16.mxu0 0
  %10125 = vmatpush2.bf16.msra.mxu0 0
  %10126 = vmatprep.subr.bf16.mxu0 0
  %10127 = vmatpush2.bf16.msra.mxu0 0
  %10128 = vmatprep.mubr.bf16.mxu0 0
  %10129 = vmatmul.mubr.bf16.gmra.mxu0 %v10016
  %v10130 = vpop.f32.mrf.mxu0
  %v10131 = vadd.f32 0.0, %v10130
  %v10132 = vpop.f32.mrf.mxu0
  %v10133 = vpop.f32.mrf.mxu0
  %v10134 = vadd.f32 0.0, %v10133
  %v10135 = vpop.f32.mrf.mxu0
  %10136 = vmatprep.mubr.bf16.mxu0 0
  %10137 = vmatmul.mubr.bf16.gmra.mxu0 %v10017
  %v10138 = vpop.f32.mrf.mxu0
  %v10139 = vadd.f32 0.0, %v10138
  %v10140 = vpop.f32.mrf.mxu0
  %v10141 = vpop.f32.mrf.mxu0
  %v10142 = vadd.f32 0.0, %v10141
  %v10143 = vpop.f32.mrf.mxu0
  %10144 = vmatprep.mubr.bf16.mxu0 0
  %10145 = vmatmul.mubr.bf16.gmra.mxu0 %v10018
  %v10146 = vpop.f32.mrf.mxu0
  %v10147 = vadd.f32 0.0, %v10146
  %v10148 = vpop.f32.mrf.mxu0
  %v10149 = vpop.f32.mrf.mxu0
  %v10150 = vadd.f32 0.0, %v10149
  %v10151 = vpop.f32.mrf.mxu0
  %10152 = vmatprep.mubr.bf16.mxu0 0
  %10153 = vmatmul.mubr.bf16.gmra.mxu0 %v10019
  %v10154 = vpop.f32.mrf.mxu0
  %v10155 = vadd.f32 0.0, %v10154
  %v10156 = vpop.f32.mrf.mxu0
  %v10157 = vpop.f32.mrf.mxu0
  %v10158 = vadd.f32 0.0, %v10157
  %v10159 = vpop.f32.mrf.mxu0
  %10160 = vmatprep.mubr.bf16.mxu0 0
  %10161 = vmatmul.mubr.bf16.gmra.mxu0 %v10020
  %v10162 = vpop.f32.mrf.mxu0
  %v10163 = vadd.f32 0.0, %v10162
  %v10164 = vpop.f32.mrf.mxu0
  %v10165 = vpop.f32.mrf.mxu0
  %v10166 = vadd.f32 0.0, %v10165
  %v10167 = vpop.f32.mrf.mxu0
  %10168 = vmatprep.mubr.bf16.mxu0 0
  %10169 = vmatmul.mubr.bf16.gmra.mxu0 %v10021
  %v10170 = vpop.f32.mrf.mxu0
  %v10171 = vadd.f32 0.0, %v10170
  %v10172 = vpop.f32.mrf.mxu0
  %v10173 = vpop.f32.mrf.mxu0
  %v10174 = vadd.f32 0.0, %v10173
  %v10175 = vpop.f32.mrf.mxu0
  %10176 = vmatprep.mubr.bf16.mxu0 0
  %10177 = vmatmul.mubr.bf16.gmra.mxu0 %v10022
  %v10178 = vpop.f32.mrf.mxu0
  %v10179 = vadd.f32 0.0, %v10178
  %v10180 = vpop.f32.mrf.mxu0
  %v10181 = vpop.f32.mrf.mxu0
  %v10182 = vadd.f32 0.0, %v10181
  %v10183 = vpop.f32.mrf.mxu0
  %10184 = vmatprep.mubr.bf16.mxu0 0
  %10185 = vmatmul.mubr.bf16.gmra.mxu0 %v10023
  %v10186 = vpop.f32.mrf.mxu0
  %v10187 = vadd.f32 0.0, %v10186
  %v10188 = vpop.f32.mrf.mxu0
  %v10189 = vpop.f32.mrf.mxu0
  %v10190 = vadd.f32 0.0, %v10189
  %v10191 = vpop.f32.mrf.mxu0
  %10192 = vmatprep.mubr.bf16.mxu0 0
  %10193 = vmatmul.mubr.bf16.gmra.mxu0 %v10024
  %v10194 = vpop.f32.mrf.mxu0
  %v10195 = vadd.f32 0.0, %v10194
  %v10196 = vpop.f32.mrf.mxu0
  %v10197 = vpop.f32.mrf.mxu0
  %v10198 = vadd.f32 0.0, %v10197
  %v10199 = vpop.f32.mrf.mxu0
  %10200 = vmatprep.mubr.bf16.mxu0 0
  %10201 = vmatmul.mubr.bf16.gmra.mxu0 %v10025
  %v10202 = vpop.f32.mrf.mxu0
  %v10203 = vadd.f32 0.0, %v10202
  %v10204 = vpop.f32.mrf.mxu0
  %v10205 = vpop.f32.mrf.mxu0
  %v10206 = vadd.f32 0.0, %v10205
  %v10207 = vpop.f32.mrf.mxu0
  %10208 = vmatprep.mubr.bf16.mxu0 0
  %10209 = vmatmul.mubr.bf16.gmra.mxu0 %v10026
  %v10210 = vpop.f32.mrf.mxu0
  %v10211 = vadd.f32 0.0, %v10210
  %v10212 = vpop.f32.mrf.mxu0
  %v10213 = vpop.f32.mrf.mxu0
  %v10214 = vadd.f32 0.0, %v10213
  %v10215 = vpop.f32.mrf.mxu0
  %10216 = vmatprep.mubr.bf16.mxu0 0
  %10217 = vmatmul.mubr.bf16.gmra.mxu0 %v10027
  %v10218 = vpop.f32.mrf.mxu0
  %v10219 = vadd.f32 0.0, %v10218
  %v10220 = vpop.f32.mrf.mxu0
  %v10221 = vpop.f32.mrf.mxu0
  %v10222 = vadd.f32 0.0, %v10221
  %v10223 = vpop.f32.mrf.mxu0
  %10224 = vmatprep.mubr.bf16.mxu0 0
  %10225 = vmatmul.mubr.bf16.gmra.mxu0 %v10028
  %v10226 = vpop.f32.mrf.mxu0
  %v10227 = vadd.f32 0.0, %v10226
  %v10228 = vpop.f32.mrf.mxu0
  %v10229 = vpop.f32.mrf.mxu0
  %v10230 = vadd.f32 0.0, %v10229
  %v10231 = vpop.f32.mrf.mxu0
  %10232 = vmatprep.mubr.bf16.mxu0 0
  %10233 = vmatmul.mubr.bf16.gmra.mxu0 %v10029
  %v10234 = vpop.f32.mrf.mxu0
  %v10235 = vadd.f32 0.0, %v10234
  %v10236 = vpop.f32.mrf.mxu0
  %v10237 = vpop.f32.mrf.mxu0
  %v10238 = vadd.f32 0.0, %v10237
  %v10239 = vpop.f32.mrf.mxu0
  %10240 = vmatprep.mubr.bf16.mxu0 0
  %10241 = vmatmul.mubr.bf16.gmra.mxu0 %v10030
  %v10242 = vpop.f32.mrf.mxu0
  %v10243 = vadd.f32 0.0, %v10242
  %v10244 = vpop.f32.mrf.mxu0
  %v10245 = vpop.f32.mrf.mxu0
  %v10246 = vadd.f32 0.0, %v10245
  %v10247 = vpop.f32.mrf.mxu0
  %10248 = vmatprep.mubr.bf16.mxu0 0
  %10249 = vmatmul.mubr.bf16.gmra.mxu0 %v10031
  %v10250 = vpop.f32.mrf.mxu0
  %v10251 = vadd.f32 0.0, %v10250
  %v10252 = vpop.f32.mrf.mxu0
  %v10253 = vpop.f32.mrf.mxu0
  %v10254 = vadd.f32 0.0, %v10253
  %v10255 = vpop.f32.mrf.mxu0
  %10256 = vdwg.mxu0
  %v10257 = vld [vmem:[#allocation3] sm:$0xff]
  %v10258 = vld [vmem:[#allocation3 + $0x8] sm:$0xff]
  %v10259 = vld [vmem:[#allocation3 + $0x10] sm:$0xff]
  %v10260 = vld [vmem:[#allocation3 + $0x18] sm:$0xff]
  %v10261 = vld [vmem:[#allocation3 + $0x20] sm:$0xff]
  %v10262 = vld [vmem:[#allocation3 + $0x28] sm:$0xff]
  %v10263 = vld [vmem:[#allocation3 + $0x30] sm:$0xff]
  %v10264 = vld [vmem:[#allocation3 + $0x38] sm:$0xff]
  %v10265 = vld [vmem:[#allocation3 + $0x40] sm:$0xff]
  %v10266 = vld [vmem:[#allocation3 + $0x48] sm:$0xff]
  %v10267 = vld [vmem:[#allocation3 + $0x50] sm:$0xff]
  %v10268 = vld [vmem:[#allocation3 + $0x58] sm:$0xff]
  %v10269 = vld [vmem:[#allocation3 + $0x60] sm:$0xff]
  %v10270 = vld [vmem:[#allocation3 + $0x68] sm:$0xff]
  %v10271 = vld [vmem:[#allocation3 + $0x70] sm:$0xff]
  %v10272 = vld [vmem:[#allocation3 + $0x78] sm:$0xff]
  %v10273 = vld [vmem:[#allocation3 + $0x80] sm:$0xff]
  %v10274 = vld [vmem:[#allocation3 + $0x88] sm:$0xff]
  %v10275 = vld [vmem:[#allocation3 + $0x90] sm:$0xff]
  %v10276 = vld [vmem:[#allocation3 + $0x98] sm:$0xff]
  %v10277 = vld [vmem:[#allocation3 + $0xa0] sm:$0xff]
  %v10278 = vld [vmem:[#allocation3 + $0xa8] sm:$0xff]
  %v10279 = vld [vmem:[#allocation3 + $0xb0] sm:$0xff]
  %v10280 = vld [vmem:[#allocation3 + $0xb8] sm:$0xff]
  %v10281 = vld [vmem:[#allocation3 + $0xc0] sm:$0xff]
  %v10282 = vld [vmem:[#allocation3 + $0xc8] sm:$0xff]
  %v10283 = vld [vmem:[#allocation3 + $0xd0] sm:$0xff]
  %v10284 = vld [vmem:[#allocation3 + $0xd8] sm:$0xff]
  %v10285 = vld [vmem:[#allocation3 + $0xe0] sm:$0xff]
  %v10286 = vld [vmem:[#allocation3 + $0xe8] sm:$0xff]
  %v10287 = vld [vmem:[#allocation3 + $0xf0] sm:$0xff]
  %v10288 = vld [vmem:[#allocation3 + $0xf8] sm:$0xff]
  %v10289 = vadd.f32 %v10257, %v10131
  %v10290 = vadd.f32 %v10258, %v10134
  %v10291 = vadd.f32 %v10259, %v10139
  %v10292 = vadd.f32 %v10260, %v10142
  %v10293 = vadd.f32 %v10261, %v10147
  %v10294 = vadd.f32 %v10262, %v10150
  %v10295 = vadd.f32 %v10263, %v10155
  %v10296 = vadd.f32 %v10264, %v10158
  %v10297 = vadd.f32 %v10265, %v10163
  %v10298 = vadd.f32 %v10266, %v10166
  %v10299 = vadd.f32 %v10267, %v10171
  %v10300 = vadd.f32 %v10268, %v10174
  %v10301 = vadd.f32 %v10269, %v10179
  %v10302 = vadd.f32 %v10270, %v10182
  %v10303 = vadd.f32 %v10271, %v10187
  %v10304 = vadd.f32 %v10272, %v10190
  %v10305 = vadd.f32 %v10273, %v10195
  %v10306 = vadd.f32 %v10274, %v10198
  %v10307 = vadd.f32 %v10275, %v10203
  %v10308 = vadd.f32 %v10276, %v10206
  %v10309 = vadd.f32 %v10277, %v10211
  %v10310 = vadd.f32 %v10278, %v10214
  %v10311 = vadd.f32 %v10279, %v10219
  %v10312 = vadd.f32 %v10280, %v10222
  %v10313 = vadd.f32 %v10281, %v10227
  %v10314 = vadd.f32 %v10282, %v10230
  %v10315 = vadd.f32 %v10283, %v10235
  %v10316 = vadd.f32 %v10284, %v10238
  %v10317 = vadd.f32 %v10285, %v10243
  %v10318 = vadd.f32 %v10286, %v10246
  %v10319 = vadd.f32 %v10287, %v10251
  %v10320 = vadd.f32 %v10288, %v10254
  %10321 = vst [vmem:[#allocation3] sm:$0xff] %v10289
  %10322 = vst [vmem:[#allocation3 + $0x8] sm:$0xff] %v10290
  %10323 = vst [vmem:[#allocation3 + $0x10] sm:$0xff] %v10291
  %10324 = vst [vmem:[#allocation3 + $0x18] sm:$0xff] %v10292
  %10325 = vst [vmem:[#allocation3 + $0x20] sm:$0xff] %v10293
  %10326 = vst [vmem:[#allocation3 + $0x28] sm:$0xff] %v10294
  %10327 = vst [vmem:[#allocation3 + $0x30] sm:$0xff] %v10295
  %10328 = vst [vmem:[#allocation3 + $0x38] sm:$0xff] %v10296
  %10329 = vst [vmem:[#allocation3 + $0x40] sm:$0xff] %v10297
  %10330 = vst [vmem:[#allocation3 + $0x48] sm:$0xff] %v10298
  %10331 = vst [vmem:[#allocation3 + $0x50] sm:$0xff] %v10299
  %10332 = vst [vmem:[#allocation3 + $0x58] sm:$0xff] %v10300
  %10333 = vst [vmem:[#allocation3 + $0x60] sm:$0xff] %v10301
  %10334 = vst [vmem:[#allocation3 + $0x68] sm:$0xff] %v10302
  %10335 = vst [vmem:[#allocation3 + $0x70] sm:$0xff] %v10303
  %10336 = vst [vmem:[#allocation3 + $0x78] sm:$0xff] %v10304
  %10337 = vst [vmem:[#allocation3 + $0x80] sm:$0xff] %v10305
  %10338 = vst [vmem:[#allocation3 + $0x88] sm:$0xff] %v10306
  %10339 = vst [vmem:[#allocation3 + $0x90] sm:$0xff] %v10307
  %10340 = vst [vmem:[#allocation3 + $0x98] sm:$0xff] %v10308
  %10341 = vst [vmem:[#allocation3 + $0xa0] sm:$0xff] %v10309
  %10342 = vst [vmem:[#allocation3 + $0xa8] sm:$0xff] %v10310
  %10343 = vst [vmem:[#allocation3 + $0xb0] sm:$0xff] %v10311
  %10344 = vst [vmem:[#allocation3 + $0xb8] sm:$0xff] %v10312
  %10345 = vst [vmem:[#allocation3 + $0xc0] sm:$0xff] %v10313
  %10346 = vst [vmem:[#allocation3 + $0xc8] sm:$0xff] %v10314
  %10347 = vst [vmem:[#allocation3 + $0xd0] sm:$0xff] %v10315
  %10348 = vst [vmem:[#allocation3 + $0xd8] sm:$0xff] %v10316
  %10349 = vst [vmem:[#allocation3 + $0xe0] sm:$0xff] %v10317
  %10350 = vst [vmem:[#allocation3 + $0xe8] sm:$0xff] %v10318
  %10351 = vst [vmem:[#allocation3 + $0xf0] sm:$0xff] %v10319
  %10352 = vst [vmem:[#allocation3 + $0xf8] sm:$0xff] %v10320
  %v10353 = vld [vmem:[%s4208] sm:$0xf]
  %v10354 = vld [vmem:[%s4208 + $0x4] sm:$0xf]
  %v10355 = vld [vmem:[%s4208 + $0xc] sm:$0xf]
  %v10356 = vld [vmem:[%s4208 + $0x10] sm:$0xf]
  %v10357 = vld [vmem:[%s4208 + $0x18] sm:$0xf]
  %v10358 = vld [vmem:[%s4208 + $0x1c] sm:$0xf]
  %v10359 = vld [vmem:[%s4208 + $0x24] sm:$0xf]
  %v10360 = vld [vmem:[%s4208 + $0x28] sm:$0xf]
  %v10361 = vld [vmem:[%s4208 + $0x30] sm:$0xf]
  %v10362 = vld [vmem:[%s4208 + $0x34] sm:$0xf]
  %v10363 = vld [vmem:[%s4208 + $0x3c] sm:$0xf]
  %v10364 = vld [vmem:[%s4208 + $0x40] sm:$0xf]
  %v10365 = vld [vmem:[%s4208 + $0x48] sm:$0xf]
  %v10366 = vld [vmem:[%s4208 + $0x4c] sm:$0xf]
  %v10367 = vld [vmem:[%s4208 + $0x54] sm:$0xf]
  %v10368 = vld [vmem:[%s4208 + $0x58] sm:$0xf]
  %v10369 = vld [vmem:[%s4208 + $0x60] sm:$0xf]
  %v10370 = vld [vmem:[%s4208 + $0x64] sm:$0xf]
  %v10371 = vld [vmem:[%s4208 + $0x6c] sm:$0xf]
  %v10372 = vld [vmem:[%s4208 + $0x70] sm:$0xf]
  %v10373 = vld [vmem:[%s4208 + $0x78] sm:$0xf]
  %v10374 = vld [vmem:[%s4208 + $0x7c] sm:$0xf]
  %v10375 = vld [vmem:[%s4208 + $0x84] sm:$0xf]
  %v10376 = vld [vmem:[%s4208 + $0x88] sm:$0xf]
  %v10377 = vld [vmem:[%s4208 + $0x90] sm:$0xf]
  %v10378 = vld [vmem:[%s4208 + $0x94] sm:$0xf]
  %v10379 = vld [vmem:[%s4208 + $0x9c] sm:$0xf]
  %v10380 = vld [vmem:[%s4208 + $0xa0] sm:$0xf]
  %v10381 = vld [vmem:[%s4208 + $0xa8] sm:$0xf]
  %v10382 = vld [vmem:[%s4208 + $0xac] sm:$0xf]
  %v10383 = vld [vmem:[%s4208 + $0xb4] sm:$0xf]
  %v10384 = vld [vmem:[%s4208 + $0xb8] sm:$0xf]
  %v10385 = vld [vmem:[%s3 + $0x180] sm:$0xf]
  %v10386 = vld [vmem:[%s3 + $0x184] sm:$0xf]
  %v10387 = vld [vmem:[%s3 + $0x188] sm:$0xf]
  %v10388 = vld [vmem:[%s3 + $0x18c] sm:$0xf]
  %v10389 = vld [vmem:[%s3 + $0x190] sm:$0xf]
  %v10390 = vld [vmem:[%s3 + $0x194] sm:$0xf]
  %v10391 = vld [vmem:[%s3 + $0x198] sm:$0xf]
  %v10392 = vld [vmem:[%s3 + $0x19c] sm:$0xf]
  %v10393 = vld [vmem:[%s3 + $0x1a0] sm:$0xf]
  %v10394 = vld [vmem:[%s3 + $0x1a4] sm:$0xf]
  %v10395 = vld [vmem:[%s3 + $0x1a8] sm:$0xf]
  %v10396 = vld [vmem:[%s3 + $0x1ac] sm:$0xf]
  %v10397 = vld [vmem:[%s3 + $0x1b0] sm:$0xf]
  %v10398 = vld [vmem:[%s3 + $0x1b4] sm:$0xf]
  %v10399 = vld [vmem:[%s3 + $0x1b8] sm:$0xf]
  %v10400 = vld [vmem:[%s3 + $0x1bc] sm:$0xf]
  %v10433 = vunpack.c.l.b16 %v10353
  %v10434 = vunpack.c.l.b16 %v10354
  %v10435 = vunpack.c.l.b16 %v10355
  %v10436 = vunpack.c.l.b16 %v10356
  %v10437 = vunpack.c.l.b16 %v10357
  %v10438 = vunpack.c.l.b16 %v10358
  %v10439 = vunpack.c.l.b16 %v10359
  %v10440 = vunpack.c.l.b16 %v10360
  %v10441 = vunpack.c.l.b16 %v10361
  %v10442 = vunpack.c.l.b16 %v10362
  %v10443 = vunpack.c.l.b16 %v10363
  %v10444 = vunpack.c.l.b16 %v10364
  %v10445 = vunpack.c.l.b16 %v10365
  %v10446 = vunpack.c.l.b16 %v10366
  %v10447 = vunpack.c.l.b16 %v10367
  %v10448 = vunpack.c.l.b16 %v10368
  %v10449 = vunpack.c.l.b16 %v10369
  %v10450 = vunpack.c.l.b16 %v10370
  %v10451 = vunpack.c.l.b16 %v10371
  %v10452 = vunpack.c.l.b16 %v10372
  %v10453 = vunpack.c.l.b16 %v10373
  %v10454 = vunpack.c.l.b16 %v10374
  %v10455 = vunpack.c.l.b16 %v10375
  %v10456 = vunpack.c.l.b16 %v10376
  %v10457 = vunpack.c.l.b16 %v10377
  %v10458 = vunpack.c.l.b16 %v10378
  %v10459 = vunpack.c.l.b16 %v10379
  %v10460 = vunpack.c.l.b16 %v10380
  %v10461 = vunpack.c.l.b16 %v10381
  %v10462 = vunpack.c.l.b16 %v10382
  %v10463 = vunpack.c.l.b16 %v10383
  %v10464 = vunpack.c.l.b16 %v10384
  %v10465 = vpack.c.b16 %v10434, %v10433
  %v10466 = vpack.c.b16 %v10436, %v10435
  %v10467 = vpack.c.b16 %v10438, %v10437
  %v10468 = vpack.c.b16 %v10440, %v10439
  %v10469 = vpack.c.b16 %v10442, %v10441
  %v10470 = vpack.c.b16 %v10444, %v10443
  %v10471 = vpack.c.b16 %v10446, %v10445
  %v10472 = vpack.c.b16 %v10448, %v10447
  %v10473 = vpack.c.b16 %v10450, %v10449
  %v10474 = vpack.c.b16 %v10452, %v10451
  %v10475 = vpack.c.b16 %v10454, %v10453
  %v10476 = vpack.c.b16 %v10456, %v10455
  %v10477 = vpack.c.b16 %v10458, %v10457
  %v10478 = vpack.c.b16 %v10460, %v10459
  %v10479 = vpack.c.b16 %v10462, %v10461
  %v10480 = vpack.c.b16 %v10464, %v10463
  %v10513 = vunpack.c.l.b16 %v10385
  %v10514 = vunpack.c.l.b16 %v10386
  %v10515 = vunpack.c.l.b16 %v10387
  %v10516 = vunpack.c.l.b16 %v10388
  %v10517 = vunpack.c.l.b16 %v10389
  %v10518 = vunpack.c.l.b16 %v10390
  %v10519 = vunpack.c.l.b16 %v10391
  %v10520 = vunpack.c.l.b16 %v10392
  %v10521 = vunpack.c.l.b16 %v10393
  %v10522 = vunpack.c.l.b16 %v10394
  %v10523 = vunpack.c.l.b16 %v10395
  %v10524 = vunpack.c.l.b16 %v10396
  %v10525 = vunpack.c.l.b16 %v10397
  %v10526 = vunpack.c.l.b16 %v10398
  %v10527 = vunpack.c.l.b16 %v10399
  %v10528 = vunpack.c.l.b16 %v10400
  %v10529 = vpack.c.b16 %v10514, %v10513
  %v10530 = vpack.c.b16 %v10516, %v10515
  %v10531 = vpack.c.b16 %v10518, %v10517
  %v10532 = vpack.c.b16 %v10520, %v10519
  %v10533 = vpack.c.b16 %v10522, %v10521
  %v10534 = vpack.c.b16 %v10524, %v10523
  %v10535 = vpack.c.b16 %v10526, %v10525
  %v10536 = vpack.c.b16 %v10528, %v10527
  %10545 = vmatprep.subr.bf16.mxu0 0
  %10546 = vmatpush1.bf16.msra.mxu0 %v10536
  %10547 = vmatprep.subr.bf16.mxu0 0
  %10548 = vmatpush1.bf16.msra.mxu0 %v10535
  %10549 = vmatprep.subr.bf16.mxu0 0
  %10550 = vmatpush1.bf16.msra.mxu0 %v10534
  %10551 = vmatprep.subr.bf16.mxu0 0
  %10552 = vmatpush1.bf16.msra.mxu0 %v10533
  %10553 = vmatprep.subr.bf16.mxu0 0
  %10554 = vmatpush1.bf16.msra.mxu0 %v10532
  %10555 = vmatprep.subr.bf16.mxu0 0
  %10556 = vmatpush1.bf16.msra.mxu0 %v10531
  %10557 = vmatprep.subr.bf16.mxu0 0
  %10558 = vmatpush1.bf16.msra.mxu0 %v10530
  %10559 = vmatprep.subr.bf16.mxu0 0
  %10560 = vmatpush1.bf16.msra.mxu0 %v10529
  %10561 = vmatprep.subr.bf16.mxu0 0
  %10562 = vmatpush2.bf16.msra.mxu0 0
  %10563 = vmatprep.subr.bf16.mxu0 0
  %10564 = vmatpush2.bf16.msra.mxu0 0
  %10565 = vmatprep.subr.bf16.mxu0 0
  %10566 = vmatpush2.bf16.msra.mxu0 0
  %10567 = vmatprep.subr.bf16.mxu0 0
  %10568 = vmatpush2.bf16.msra.mxu0 0
  %10569 = vmatprep.subr.bf16.mxu0 0
  %10570 = vmatpush2.bf16.msra.mxu0 0
  %10571 = vmatprep.subr.bf16.mxu0 0
  %10572 = vmatpush2.bf16.msra.mxu0 0
  %10573 = vmatprep.subr.bf16.mxu0 0
  %10574 = vmatpush2.bf16.msra.mxu0 0
  %10575 = vmatprep.subr.bf16.mxu0 0
  %10576 = vmatpush2.bf16.msra.mxu0 0
  %10577 = vmatprep.mubr.bf16.mxu0 0
  %10578 = vmatmul.mubr.bf16.gmra.mxu0 %v10465
  %v10579 = vpop.f32.mrf.mxu0
  %v10580 = vadd.f32 0.0, %v10579
  %v10581 = vpop.f32.mrf.mxu0
  %v10582 = vpop.f32.mrf.mxu0
  %v10583 = vadd.f32 0.0, %v10582
  %v10584 = vpop.f32.mrf.mxu0
  %10585 = vmatprep.mubr.bf16.mxu0 0
  %10586 = vmatmul.mubr.bf16.gmra.mxu0 %v10466
  %v10587 = vpop.f32.mrf.mxu0
  %v10588 = vadd.f32 0.0, %v10587
  %v10589 = vpop.f32.mrf.mxu0
  %v10590 = vpop.f32.mrf.mxu0
  %v10591 = vadd.f32 0.0, %v10590
  %v10592 = vpop.f32.mrf.mxu0
  %10593 = vmatprep.mubr.bf16.mxu0 0
  %10594 = vmatmul.mubr.bf16.gmra.mxu0 %v10467
  %v10595 = vpop.f32.mrf.mxu0
  %v10596 = vadd.f32 0.0, %v10595
  %v10597 = vpop.f32.mrf.mxu0
  %v10598 = vpop.f32.mrf.mxu0
  %v10599 = vadd.f32 0.0, %v10598
  %v10600 = vpop.f32.mrf.mxu0
  %10601 = vmatprep.mubr.bf16.mxu0 0
  %10602 = vmatmul.mubr.bf16.gmra.mxu0 %v10468
  %v10603 = vpop.f32.mrf.mxu0
  %v10604 = vadd.f32 0.0, %v10603
  %v10605 = vpop.f32.mrf.mxu0
  %v10606 = vpop.f32.mrf.mxu0
  %v10607 = vadd.f32 0.0, %v10606
  %v10608 = vpop.f32.mrf.mxu0
  %10609 = vmatprep.mubr.bf16.mxu0 0
  %10610 = vmatmul.mubr.bf16.gmra.mxu0 %v10469
  %v10611 = vpop.f32.mrf.mxu0
  %v10612 = vadd.f32 0.0, %v10611
  %v10613 = vpop.f32.mrf.mxu0
  %v10614 = vpop.f32.mrf.mxu0
  %v10615 = vadd.f32 0.0, %v10614
  %v10616 = vpop.f32.mrf.mxu0
  %10617 = vmatprep.mubr.bf16.mxu0 0
  %10618 = vmatmul.mubr.bf16.gmra.mxu0 %v10470
  %v10619 = vpop.f32.mrf.mxu0
  %v10620 = vadd.f32 0.0, %v10619
  %v10621 = vpop.f32.mrf.mxu0
  %v10622 = vpop.f32.mrf.mxu0
  %v10623 = vadd.f32 0.0, %v10622
  %v10624 = vpop.f32.mrf.mxu0
  %10625 = vmatprep.mubr.bf16.mxu0 0
  %10626 = vmatmul.mubr.bf16.gmra.mxu0 %v10471
  %v10627 = vpop.f32.mrf.mxu0
  %v10628 = vadd.f32 0.0, %v10627
  %v10629 = vpop.f32.mrf.mxu0
  %v10630 = vpop.f32.mrf.mxu0
  %v10631 = vadd.f32 0.0, %v10630
  %v10632 = vpop.f32.mrf.mxu0
  %10633 = vmatprep.mubr.bf16.mxu0 0
  %10634 = vmatmul.mubr.bf16.gmra.mxu0 %v10472
  %v10635 = vpop.f32.mrf.mxu0
  %v10636 = vadd.f32 0.0, %v10635
  %v10637 = vpop.f32.mrf.mxu0
  %v10638 = vpop.f32.mrf.mxu0
  %v10639 = vadd.f32 0.0, %v10638
  %v10640 = vpop.f32.mrf.mxu0
  %10641 = vmatprep.mubr.bf16.mxu0 0
  %10642 = vmatmul.mubr.bf16.gmra.mxu0 %v10473
  %v10643 = vpop.f32.mrf.mxu0
  %v10644 = vadd.f32 0.0, %v10643
  %v10645 = vpop.f32.mrf.mxu0
  %v10646 = vpop.f32.mrf.mxu0
  %v10647 = vadd.f32 0.0, %v10646
  %v10648 = vpop.f32.mrf.mxu0
  %10649 = vmatprep.mubr.bf16.mxu0 0
  %10650 = vmatmul.mubr.bf16.gmra.mxu0 %v10474
  %v10651 = vpop.f32.mrf.mxu0
  %v10652 = vadd.f32 0.0, %v10651
  %v10653 = vpop.f32.mrf.mxu0
  %v10654 = vpop.f32.mrf.mxu0
  %v10655 = vadd.f32 0.0, %v10654
  %v10656 = vpop.f32.mrf.mxu0
  %10657 = vmatprep.mubr.bf16.mxu0 0
  %10658 = vmatmul.mubr.bf16.gmra.mxu0 %v10475
  %v10659 = vpop.f32.mrf.mxu0
  %v10660 = vadd.f32 0.0, %v10659
  %v10661 = vpop.f32.mrf.mxu0
  %v10662 = vpop.f32.mrf.mxu0
  %v10663 = vadd.f32 0.0, %v10662
  %v10664 = vpop.f32.mrf.mxu0
  %10665 = vmatprep.mubr.bf16.mxu0 0
  %10666 = vmatmul.mubr.bf16.gmra.mxu0 %v10476
  %v10667 = vpop.f32.mrf.mxu0
  %v10668 = vadd.f32 0.0, %v10667
  %v10669 = vpop.f32.mrf.mxu0
  %v10670 = vpop.f32.mrf.mxu0
  %v10671 = vadd.f32 0.0, %v10670
  %v10672 = vpop.f32.mrf.mxu0
  %10673 = vmatprep.mubr.bf16.mxu0 0
  %10674 = vmatmul.mubr.bf16.gmra.mxu0 %v10477
  %v10675 = vpop.f32.mrf.mxu0
  %v10676 = vadd.f32 0.0, %v10675
  %v10677 = vpop.f32.mrf.mxu0
  %v10678 = vpop.f32.mrf.mxu0
  %v10679 = vadd.f32 0.0, %v10678
  %v10680 = vpop.f32.mrf.mxu0
  %10681 = vmatprep.mubr.bf16.mxu0 0
  %10682 = vmatmul.mubr.bf16.gmra.mxu0 %v10478
  %v10683 = vpop.f32.mrf.mxu0
  %v10684 = vadd.f32 0.0, %v10683
  %v10685 = vpop.f32.mrf.mxu0
  %v10686 = vpop.f32.mrf.mxu0
  %v10687 = vadd.f32 0.0, %v10686
  %v10688 = vpop.f32.mrf.mxu0
  %10689 = vmatprep.mubr.bf16.mxu0 0
  %10690 = vmatmul.mubr.bf16.gmra.mxu0 %v10479
  %v10691 = vpop.f32.mrf.mxu0
  %v10692 = vadd.f32 0.0, %v10691
  %v10693 = vpop.f32.mrf.mxu0
  %v10694 = vpop.f32.mrf.mxu0
  %v10695 = vadd.f32 0.0, %v10694
  %v10696 = vpop.f32.mrf.mxu0
  %10697 = vmatprep.mubr.bf16.mxu0 0
  %10698 = vmatmul.mubr.bf16.gmra.mxu0 %v10480
  %v10699 = vpop.f32.mrf.mxu0
  %v10700 = vadd.f32 0.0, %v10699
  %v10701 = vpop.f32.mrf.mxu0
  %v10702 = vpop.f32.mrf.mxu0
  %v10703 = vadd.f32 0.0, %v10702
  %v10704 = vpop.f32.mrf.mxu0
  %10705 = vdwg.mxu0
  %v10706 = vld [vmem:[#allocation3] sm:$0xff]
  %v10707 = vld [vmem:[#allocation3 + $0x8] sm:$0xff]
  %v10708 = vld [vmem:[#allocation3 + $0x10] sm:$0xff]
  %v10709 = vld [vmem:[#allocation3 + $0x18] sm:$0xff]
  %v10710 = vld [vmem:[#allocation3 + $0x20] sm:$0xff]
  %v10711 = vld [vmem:[#allocation3 + $0x28] sm:$0xff]
  %v10712 = vld [vmem:[#allocation3 + $0x30] sm:$0xff]
  %v10713 = vld [vmem:[#allocation3 + $0x38] sm:$0xff]
  %v10714 = vld [vmem:[#allocation3 + $0x40] sm:$0xff]
  %v10715 = vld [vmem:[#allocation3 + $0x48] sm:$0xff]
  %v10716 = vld [vmem:[#allocation3 + $0x50] sm:$0xff]
  %v10717 = vld [vmem:[#allocation3 + $0x58] sm:$0xff]
  %v10718 = vld [vmem:[#allocation3 + $0x60] sm:$0xff]
  %v10719 = vld [vmem:[#allocation3 + $0x68] sm:$0xff]
  %v10720 = vld [vmem:[#allocation3 + $0x70] sm:$0xff]
  %v10721 = vld [vmem:[#allocation3 + $0x78] sm:$0xff]
  %v10722 = vld [vmem:[#allocation3 + $0x80] sm:$0xff]
  %v10723 = vld [vmem:[#allocation3 + $0x88] sm:$0xff]
  %v10724 = vld [vmem:[#allocation3 + $0x90] sm:$0xff]
  %v10725 = vld [vmem:[#allocation3 + $0x98] sm:$0xff]
  %v10726 = vld [vmem:[#allocation3 + $0xa0] sm:$0xff]
  %v10727 = vld [vmem:[#allocation3 + $0xa8] sm:$0xff]
  %v10728 = vld [vmem:[#allocation3 + $0xb0] sm:$0xff]
  %v10729 = vld [vmem:[#allocation3 + $0xb8] sm:$0xff]
  %v10730 = vld [vmem:[#allocation3 + $0xc0] sm:$0xff]
  %v10731 = vld [vmem:[#allocation3 + $0xc8] sm:$0xff]
  %v10732 = vld [vmem:[#allocation3 + $0xd0] sm:$0xff]
  %v10733 = vld [vmem:[#allocation3 + $0xd8] sm:$0xff]
  %v10734 = vld [vmem:[#allocation3 + $0xe0] sm:$0xff]
  %v10735 = vld [vmem:[#allocation3 + $0xe8] sm:$0xff]
  %v10736 = vld [vmem:[#allocation3 + $0xf0] sm:$0xff]
  %v10737 = vld [vmem:[#allocation3 + $0xf8] sm:$0xff]
  %v10738 = vadd.f32 %v10706, %v10580
  %v10739 = vadd.f32 %v10707, %v10583
  %v10740 = vadd.f32 %v10708, %v10588
  %v10741 = vadd.f32 %v10709, %v10591
  %v10742 = vadd.f32 %v10710, %v10596
  %v10743 = vadd.f32 %v10711, %v10599
  %v10744 = vadd.f32 %v10712, %v10604
  %v10745 = vadd.f32 %v10713, %v10607
  %v10746 = vadd.f32 %v10714, %v10612
  %v10747 = vadd.f32 %v10715, %v10615
  %v10748 = vadd.f32 %v10716, %v10620
  %v10749 = vadd.f32 %v10717, %v10623
  %v10750 = vadd.f32 %v10718, %v10628
  %v10751 = vadd.f32 %v10719, %v10631
  %v10752 = vadd.f32 %v10720, %v10636
  %v10753 = vadd.f32 %v10721, %v10639
  %v10754 = vadd.f32 %v10722, %v10644
  %v10755 = vadd.f32 %v10723, %v10647
  %v10756 = vadd.f32 %v10724, %v10652
  %v10757 = vadd.f32 %v10725, %v10655
  %v10758 = vadd.f32 %v10726, %v10660
  %v10759 = vadd.f32 %v10727, %v10663
  %v10760 = vadd.f32 %v10728, %v10668
  %v10761 = vadd.f32 %v10729, %v10671
  %v10762 = vadd.f32 %v10730, %v10676
  %v10763 = vadd.f32 %v10731, %v10679
  %v10764 = vadd.f32 %v10732, %v10684
  %v10765 = vadd.f32 %v10733, %v10687
  %v10766 = vadd.f32 %v10734, %v10692
  %v10767 = vadd.f32 %v10735, %v10695
  %v10768 = vadd.f32 %v10736, %v10700
  %v10769 = vadd.f32 %v10737, %v10703
  %10770 = vst [vmem:[#allocation3] sm:$0xff] %v10738
  %10771 = vst [vmem:[#allocation3 + $0x8] sm:$0xff] %v10739
  %10772 = vst [vmem:[#allocation3 + $0x10] sm:$0xff] %v10740
  %10773 = vst [vmem:[#allocation3 + $0x18] sm:$0xff] %v10741
  %10774 = vst [vmem:[#allocation3 + $0x20] sm:$0xff] %v10742
  %10775 = vst [vmem:[#allocation3 + $0x28] sm:$0xff] %v10743
  %10776 = vst [vmem:[#allocation3 + $0x30] sm:$0xff] %v10744
  %10777 = vst [vmem:[#allocation3 + $0x38] sm:$0xff] %v10745
  %10778 = vst [vmem:[#allocation3 + $0x40] sm:$0xff] %v10746
  %10779 = vst [vmem:[#allocation3 + $0x48] sm:$0xff] %v10747
  %10780 = vst [vmem:[#allocation3 + $0x50] sm:$0xff] %v10748
  %10781 = vst [vmem:[#allocation3 + $0x58] sm:$0xff] %v10749
  %10782 = vst [vmem:[#allocation3 + $0x60] sm:$0xff] %v10750
  %10783 = vst [vmem:[#allocation3 + $0x68] sm:$0xff] %v10751
  %10784 = vst [vmem:[#allocation3 + $0x70] sm:$0xff] %v10752
  %10785 = vst [vmem:[#allocation3 + $0x78] sm:$0xff] %v10753
  %10786 = vst [vmem:[#allocation3 + $0x80] sm:$0xff] %v10754
  %10787 = vst [vmem:[#allocation3 + $0x88] sm:$0xff] %v10755
  %10788 = vst [vmem:[#allocation3 + $0x90] sm:$0xff] %v10756
  %10789 = vst [vmem:[#allocation3 + $0x98] sm:$0xff] %v10757
  %10790 = vst [vmem:[#allocation3 + $0xa0] sm:$0xff] %v10758
  %10791 = vst [vmem:[#allocation3 + $0xa8] sm:$0xff] %v10759
  %10792 = vst [vmem:[#allocation3 + $0xb0] sm:$0xff] %v10760
  %10793 = vst [vmem:[#allocation3 + $0xb8] sm:$0xff] %v10761
  %10794 = vst [vmem:[#allocation3 + $0xc0] sm:$0xff] %v10762
  %10795 = vst [vmem:[#allocation3 + $0xc8] sm:$0xff] %v10763
  %10796 = vst [vmem:[#allocation3 + $0xd0] sm:$0xff] %v10764
  %10797 = vst [vmem:[#allocation3 + $0xd8] sm:$0xff] %v10765
  %10798 = vst [vmem:[#allocation3 + $0xe0] sm:$0xff] %v10766
  %10799 = vst [vmem:[#allocation3 + $0xe8] sm:$0xff] %v10767
  %10800 = vst [vmem:[#allocation3 + $0xf0] sm:$0xff] %v10768
  %10801 = vst [vmem:[#allocation3 + $0xf8] sm:$0xff] %v10769
  %v10802 = vld [vmem:[%s4208] sm:$0xf]
  %v10803 = vld [vmem:[%s4208 + $0x4] sm:$0xf]
  %v10804 = vld [vmem:[%s4208 + $0x8] sm:$0x1]
  %v10805 = vld [vmem:[%s4208 + $0xc] sm:$0xf]
  %v10806 = vld [vmem:[%s4208 + $0x10] sm:$0xf]
  %v10807 = vld [vmem:[%s4208 + $0x14] sm:$0x1]
  %v10808 = vld [vmem:[%s4208 + $0x18] sm:$0xf]
  %v10809 = vld [vmem:[%s4208 + $0x1c] sm:$0xf]
  %v10810 = vld [vmem:[%s4208 + $0x20] sm:$0x1]
  %v10811 = vld [vmem:[%s4208 + $0x24] sm:$0xf]
  %v10812 = vld [vmem:[%s4208 + $0x28] sm:$0xf]
  %v10813 = vld [vmem:[%s4208 + $0x2c] sm:$0x1]
  %v10814 = vld [vmem:[%s4208 + $0x30] sm:$0xf]
  %v10815 = vld [vmem:[%s4208 + $0x34] sm:$0xf]
  %v10816 = vld [vmem:[%s4208 + $0x38] sm:$0x1]
  %v10817 = vld [vmem:[%s4208 + $0x3c] sm:$0xf]
  %v10818 = vld [vmem:[%s4208 + $0x40] sm:$0xf]
  %v10819 = vld [vmem:[%s4208 + $0x44] sm:$0x1]
  %v10820 = vld [vmem:[%s4208 + $0x48] sm:$0xf]
  %v10821 = vld [vmem:[%s4208 + $0x4c] sm:$0xf]
  %v10822 = vld [vmem:[%s4208 + $0x50] sm:$0x1]
  %v10823 = vld [vmem:[%s4208 + $0x54] sm:$0xf]
  %v10824 = vld [vmem:[%s4208 + $0x58] sm:$0xf]
  %v10825 = vld [vmem:[%s4208 + $0x5c] sm:$0x1]
  %v10826 = vld [vmem:[%s4208 + $0x60] sm:$0xf]
  %v10827 = vld [vmem:[%s4208 + $0x64] sm:$0xf]
  %v10828 = vld [vmem:[%s4208 + $0x68] sm:$0x1]
  %v10829 = vld [vmem:[%s4208 + $0x6c] sm:$0xf]
  %v10830 = vld [vmem:[%s4208 + $0x70] sm:$0xf]
  %v10831 = vld [vmem:[%s4208 + $0x74] sm:$0x1]
  %v10832 = vld [vmem:[%s4208 + $0x78] sm:$0xf]
  %v10833 = vld [vmem:[%s4208 + $0x7c] sm:$0xf]
  %v10834 = vld [vmem:[%s4208 + $0x80] sm:$0x1]
  %v10835 = vld [vmem:[%s4208 + $0x84] sm:$0xf]
  %v10836 = vld [vmem:[%s4208 + $0x88] sm:$0xf]
  %v10837 = vld [vmem:[%s4208 + $0x8c] sm:$0x1]
  %v10838 = vld [vmem:[%s4208 + $0x90] sm:$0xf]
  %v10839 = vld [vmem:[%s4208 + $0x94] sm:$0xf]
  %v10840 = vld [vmem:[%s4208 + $0x98] sm:$0x1]
  %v10841 = vld [vmem:[%s4208 + $0x9c] sm:$0xf]
  %v10842 = vld [vmem:[%s4208 + $0xa0] sm:$0xf]
  %v10843 = vld [vmem:[%s4208 + $0xa4] sm:$0x1]
  %v10844 = vld [vmem:[%s4208 + $0xa8] sm:$0xf]
  %v10845 = vld [vmem:[%s4208 + $0xac] sm:$0xf]
  %v10846 = vld [vmem:[%s4208 + $0xb0] sm:$0x1]
  %v10847 = vld [vmem:[%s4208 + $0xb4] sm:$0xf]
  %v10848 = vld [vmem:[%s4208 + $0xb8] sm:$0xf]
  %v10849 = vld [vmem:[%s4208 + $0xbc] sm:$0x1]
  %v10851 = vshrl.u32 %v10802, 16
  %v10853 = vrot.slane %v10851, 4
  %v10854 = vshll.u32 %v10802, 16
  %v10856 = vrot.slane %v10854, 5
  %v10857 = vor.u32 %v10853, %v10856
  %v10858 = vrot.slane %v10857, 4
  %v10860 = vshll.u32 %v10803, 16
  %v10862 = vrot.slane %v10860, 5
  %v10863 = vsel %vm983, %v10858, %v10862
  %v10864 = vshrl.u32 %v10803, 16
  %v10866 = vrot.slane %v10864, 4
  %v10867 = vor.u32 %v10866, %v10862
  %v10868 = vrot.slane %v10867, 4
  %v10870 = vshll.u32 %v10804, 16
  %v10872 = vrot.slane %v10870, 5
  %v10873 = vsel %vm983, %v10868, %v10872
  %v10875 = vshrl.u32 %v10805, 16
  %v10877 = vrot.slane %v10875, 4
  %v10878 = vshll.u32 %v10805, 16
  %v10880 = vrot.slane %v10878, 5
  %v10881 = vor.u32 %v10877, %v10880
  %v10882 = vrot.slane %v10881, 4
  %v10884 = vshll.u32 %v10806, 16
  %v10886 = vrot.slane %v10884, 5
  %v10887 = vsel %vm983, %v10882, %v10886
  %v10888 = vshrl.u32 %v10806, 16
  %v10890 = vrot.slane %v10888, 4
  %v10891 = vor.u32 %v10890, %v10886
  %v10892 = vrot.slane %v10891, 4
  %v10894 = vshll.u32 %v10807, 16
  %v10896 = vrot.slane %v10894, 5
  %v10897 = vsel %vm983, %v10892, %v10896
  %v10899 = vshrl.u32 %v10808, 16
  %v10901 = vrot.slane %v10899, 4
  %v10902 = vshll.u32 %v10808, 16
  %v10904 = vrot.slane %v10902, 5
  %v10905 = vor.u32 %v10901, %v10904
  %v10906 = vrot.slane %v10905, 4
  %v10908 = vshll.u32 %v10809, 16
  %v10910 = vrot.slane %v10908, 5
  %v10911 = vsel %vm983, %v10906, %v10910
  %v10912 = vshrl.u32 %v10809, 16
  %v10914 = vrot.slane %v10912, 4
  %v10915 = vor.u32 %v10914, %v10910
  %v10916 = vrot.slane %v10915, 4
  %v10918 = vshll.u32 %v10810, 16
  %v10920 = vrot.slane %v10918, 5
  %v10921 = vsel %vm983, %v10916, %v10920
  %v10923 = vshrl.u32 %v10811, 16
  %v10925 = vrot.slane %v10923, 4
  %v10926 = vshll.u32 %v10811, 16
  %v10928 = vrot.slane %v10926, 5
  %v10929 = vor.u32 %v10925, %v10928
  %v10930 = vrot.slane %v10929, 4
  %v10932 = vshll.u32 %v10812, 16
  %v10934 = vrot.slane %v10932, 5
  %v10935 = vsel %vm983, %v10930, %v10934
  %v10936 = vshrl.u32 %v10812, 16
  %v10938 = vrot.slane %v10936, 4
  %v10939 = vor.u32 %v10938, %v10934
  %v10940 = vrot.slane %v10939, 4
  %v10942 = vshll.u32 %v10813, 16
  %v10944 = vrot.slane %v10942, 5
  %v10945 = vsel %vm983, %v10940, %v10944
  %v10947 = vshrl.u32 %v10814, 16
  %v10949 = vrot.slane %v10947, 4
  %v10950 = vshll.u32 %v10814, 16
  %v10952 = vrot.slane %v10950, 5
  %v10953 = vor.u32 %v10949, %v10952
  %v10954 = vrot.slane %v10953, 4
  %v10956 = vshll.u32 %v10815, 16
  %v10958 = vrot.slane %v10956, 5
  %v10959 = vsel %vm983, %v10954, %v10958
  %v10960 = vshrl.u32 %v10815, 16
  %v10962 = vrot.slane %v10960, 4
  %v10963 = vor.u32 %v10962, %v10958
  %v10964 = vrot.slane %v10963, 4
  %v10966 = vshll.u32 %v10816, 16
  %v10968 = vrot.slane %v10966, 5
  %v10969 = vsel %vm983, %v10964, %v10968
  %v10971 = vshrl.u32 %v10817, 16
  %v10973 = vrot.slane %v10971, 4
  %v10974 = vshll.u32 %v10817, 16
  %v10976 = vrot.slane %v10974, 5
  %v10977 = vor.u32 %v10973, %v10976
  %v10978 = vrot.slane %v10977, 4
  %v10980 = vshll.u32 %v10818, 16
  %v10982 = vrot.slane %v10980, 5
  %v10983 = vsel %vm983, %v10978, %v10982
  %v10984 = vshrl.u32 %v10818, 16
  %v10986 = vrot.slane %v10984, 4
  %v10987 = vor.u32 %v10986, %v10982
  %v10988 = vrot.slane %v10987, 4
  %v10990 = vshll.u32 %v10819, 16
  %v10992 = vrot.slane %v10990, 5
  %v10993 = vsel %vm983, %v10988, %v10992
  %v10995 = vshrl.u32 %v10820, 16
  %v10997 = vrot.slane %v10995, 4
  %v10998 = vshll.u32 %v10820, 16
  %v11000 = vrot.slane %v10998, 5
  %v11001 = vor.u32 %v10997, %v11000
  %v11002 = vrot.slane %v11001, 4
  %v11004 = vshll.u32 %v10821, 16
  %v11006 = vrot.slane %v11004, 5
  %v11007 = vsel %vm983, %v11002, %v11006
  %v11008 = vshrl.u32 %v10821, 16
  %v11010 = vrot.slane %v11008, 4
  %v11011 = vor.u32 %v11010, %v11006
  %v11012 = vrot.slane %v11011, 4
  %v11014 = vshll.u32 %v10822, 16
  %v11016 = vrot.slane %v11014, 5
  %v11017 = vsel %vm983, %v11012, %v11016
  %v11019 = vshrl.u32 %v10823, 16
  %v11021 = vrot.slane %v11019, 4
  %v11022 = vshll.u32 %v10823, 16
  %v11024 = vrot.slane %v11022, 5
  %v11025 = vor.u32 %v11021, %v11024
  %v11026 = vrot.slane %v11025, 4
  %v11028 = vshll.u32 %v10824, 16
  %v11030 = vrot.slane %v11028, 5
  %v11031 = vsel %vm983, %v11026, %v11030
  %v11032 = vshrl.u32 %v10824, 16
  %v11034 = vrot.slane %v11032, 4
  %v11035 = vor.u32 %v11034, %v11030
  %v11036 = vrot.slane %v11035, 4
  %v11038 = vshll.u32 %v10825, 16
  %v11040 = vrot.slane %v11038, 5
  %v11041 = vsel %vm983, %v11036, %v11040
  %v11043 = vshrl.u32 %v10826, 16
  %v11045 = vrot.slane %v11043, 4
  %v11046 = vshll.u32 %v10826, 16
  %v11048 = vrot.slane %v11046, 5
  %v11049 = vor.u32 %v11045, %v11048
  %v11050 = vrot.slane %v11049, 4
  %v11052 = vshll.u32 %v10827, 16
  %v11054 = vrot.slane %v11052, 5
  %v11055 = vsel %vm983, %v11050, %v11054
  %v11056 = vshrl.u32 %v10827, 16
  %v11058 = vrot.slane %v11056, 4
  %v11059 = vor.u32 %v11058, %v11054
  %v11060 = vrot.slane %v11059, 4
  %v11062 = vshll.u32 %v10828, 16
  %v11064 = vrot.slane %v11062, 5
  %v11065 = vsel %vm983, %v11060, %v11064
  %v11067 = vshrl.u32 %v10829, 16
  %v11069 = vrot.slane %v11067, 4
  %v11070 = vshll.u32 %v10829, 16
  %v11072 = vrot.slane %v11070, 5
  %v11073 = vor.u32 %v11069, %v11072
  %v11074 = vrot.slane %v11073, 4
  %v11076 = vshll.u32 %v10830, 16
  %v11078 = vrot.slane %v11076, 5
  %v11079 = vsel %vm983, %v11074, %v11078
  %v11080 = vshrl.u32 %v10830, 16
  %v11082 = vrot.slane %v11080, 4
  %v11083 = vor.u32 %v11082, %v11078
  %v11084 = vrot.slane %v11083, 4
  %v11086 = vshll.u32 %v10831, 16
  %v11088 = vrot.slane %v11086, 5
  %v11089 = vsel %vm983, %v11084, %v11088
  %v11091 = vshrl.u32 %v10832, 16
  %v11093 = vrot.slane %v11091, 4
  %v11094 = vshll.u32 %v10832, 16
  %v11096 = vrot.slane %v11094, 5
  %v11097 = vor.u32 %v11093, %v11096
  %v11098 = vrot.slane %v11097, 4
  %v11100 = vshll.u32 %v10833, 16
  %v11102 = vrot.slane %v11100, 5
  %v11103 = vsel %vm983, %v11098, %v11102
  %v11104 = vshrl.u32 %v10833, 16
  %v11106 = vrot.slane %v11104, 4
  %v11107 = vor.u32 %v11106, %v11102
  %v11108 = vrot.slane %v11107, 4
  %v11110 = vshll.u32 %v10834, 16
  %v11112 = vrot.slane %v11110, 5
  %v11113 = vsel %vm983, %v11108, %v11112
  %v11115 = vshrl.u32 %v10835, 16
  %v11117 = vrot.slane %v11115, 4
  %v11118 = vshll.u32 %v10835, 16
  %v11120 = vrot.slane %v11118, 5
  %v11121 = vor.u32 %v11117, %v11120
  %v11122 = vrot.slane %v11121, 4
  %v11124 = vshll.u32 %v10836, 16
  %v11126 = vrot.slane %v11124, 5
  %v11127 = vsel %vm983, %v11122, %v11126
  %v11128 = vshrl.u32 %v10836, 16
  %v11130 = vrot.slane %v11128, 4
  %v11131 = vor.u32 %v11130, %v11126
  %v11132 = vrot.slane %v11131, 4
  %v11134 = vshll.u32 %v10837, 16
  %v11136 = vrot.slane %v11134, 5
  %v11137 = vsel %vm983, %v11132, %v11136
  %v11139 = vshrl.u32 %v10838, 16
  %v11141 = vrot.slane %v11139, 4
  %v11142 = vshll.u32 %v10838, 16
  %v11144 = vrot.slane %v11142, 5
  %v11145 = vor.u32 %v11141, %v11144
  %v11146 = vrot.slane %v11145, 4
  %v11148 = vshll.u32 %v10839, 16
  %v11150 = vrot.slane %v11148, 5
  %v11151 = vsel %vm983, %v11146, %v11150
  %v11152 = vshrl.u32 %v10839, 16
  %v11154 = vrot.slane %v11152, 4
  %v11155 = vor.u32 %v11154, %v11150
  %v11156 = vrot.slane %v11155, 4
  %v11158 = vshll.u32 %v10840, 16
  %v11160 = vrot.slane %v11158, 5
  %v11161 = vsel %vm983, %v11156, %v11160
  %v11163 = vshrl.u32 %v10841, 16
  %v11165 = vrot.slane %v11163, 4
  %v11166 = vshll.u32 %v10841, 16
  %v11168 = vrot.slane %v11166, 5
  %v11169 = vor.u32 %v11165, %v11168
  %v11170 = vrot.slane %v11169, 4
  %v11172 = vshll.u32 %v10842, 16
  %v11174 = vrot.slane %v11172, 5
  %v11175 = vsel %vm983, %v11170, %v11174
  %v11176 = vshrl.u32 %v10842, 16
  %v11178 = vrot.slane %v11176, 4
  %v11179 = vor.u32 %v11178, %v11174
  %v11180 = vrot.slane %v11179, 4
  %v11182 = vshll.u32 %v10843, 16
  %v11184 = vrot.slane %v11182, 5
  %v11185 = vsel %vm983, %v11180, %v11184
  %v11187 = vshrl.u32 %v10844, 16
  %v11189 = vrot.slane %v11187, 4
  %v11190 = vshll.u32 %v10844, 16
  %v11192 = vrot.slane %v11190, 5
  %v11193 = vor.u32 %v11189, %v11192
  %v11194 = vrot.slane %v11193, 4
  %v11196 = vshll.u32 %v10845, 16
  %v11198 = vrot.slane %v11196, 5
  %v11199 = vsel %vm983, %v11194, %v11198
  %v11200 = vshrl.u32 %v10845, 16
  %v11202 = vrot.slane %v11200, 4
  %v11203 = vor.u32 %v11202, %v11198
  %v11204 = vrot.slane %v11203, 4
  %v11206 = vshll.u32 %v10846, 16
  %v11208 = vrot.slane %v11206, 5
  %v11209 = vsel %vm983, %v11204, %v11208
  %v11211 = vshrl.u32 %v10847, 16
  %v11213 = vrot.slane %v11211, 4
  %v11214 = vshll.u32 %v10847, 16
  %v11216 = vrot.slane %v11214, 5
  %v11217 = vor.u32 %v11213, %v11216
  %v11218 = vrot.slane %v11217, 4
  %v11220 = vshll.u32 %v10848, 16
  %v11222 = vrot.slane %v11220, 5
  %v11223 = vsel %vm983, %v11218, %v11222
  %v11224 = vshrl.u32 %v10848, 16
  %v11226 = vrot.slane %v11224, 4
  %v11227 = vor.u32 %v11226, %v11222
  %v11228 = vrot.slane %v11227, 4
  %v11230 = vshll.u32 %v10849, 16
  %v11232 = vrot.slane %v11230, 5
  %v11233 = vsel %vm983, %v11228, %v11232
  %v11234 = vld [vmem:[%s3 + $0x1c0] sm:$0xf]
  %v11235 = vld [vmem:[%s3 + $0x1c4] sm:$0xf]
  %v11236 = vld [vmem:[%s3 + $0x1c8] sm:$0xf]
  %v11237 = vld [vmem:[%s3 + $0x1cc] sm:$0xf]
  %v11238 = vld [vmem:[%s3 + $0x1d0] sm:$0xf]
  %v11239 = vld [vmem:[%s3 + $0x1d4] sm:$0xf]
  %v11240 = vld [vmem:[%s3 + $0x1d8] sm:$0xf]
  %v11241 = vld [vmem:[%s3 + $0x1dc] sm:$0xf]
  %v11242 = vld [vmem:[%s3 + $0x1e0] sm:$0xf]
  %v11243 = vld [vmem:[%s3 + $0x1e4] sm:$0xf]
  %v11244 = vld [vmem:[%s3 + $0x1e8] sm:$0xf]
  %v11245 = vld [vmem:[%s3 + $0x1ec] sm:$0xf]
  %v11246 = vld [vmem:[%s3 + $0x1f0] sm:$0xf]
  %v11247 = vld [vmem:[%s3 + $0x1f4] sm:$0xf]
  %v11248 = vld [vmem:[%s3 + $0x1f8] sm:$0xf]
  %v11249 = vld [vmem:[%s3 + $0x1fc] sm:$0xf]
  %v11250 = vunpack.c.l.b16 %v10863
  %v11251 = vunpack.c.l.b16 %v10873
  %v11252 = vunpack.c.l.b16 %v10887
  %v11253 = vunpack.c.l.b16 %v10897
  %v11254 = vunpack.c.l.b16 %v10911
  %v11255 = vunpack.c.l.b16 %v10921
  %v11256 = vunpack.c.l.b16 %v10935
  %v11257 = vunpack.c.l.b16 %v10945
  %v11258 = vunpack.c.l.b16 %v10959
  %v11259 = vunpack.c.l.b16 %v10969
  %v11260 = vunpack.c.l.b16 %v10983
  %v11261 = vunpack.c.l.b16 %v10993
  %v11262 = vunpack.c.l.b16 %v11007
  %v11263 = vunpack.c.l.b16 %v11017
  %v11264 = vunpack.c.l.b16 %v11031
  %v11265 = vunpack.c.l.b16 %v11041
  %v11266 = vunpack.c.l.b16 %v11055
  %v11267 = vunpack.c.l.b16 %v11065
  %v11268 = vunpack.c.l.b16 %v11079
  %v11269 = vunpack.c.l.b16 %v11089
  %v11270 = vunpack.c.l.b16 %v11103
  %v11271 = vunpack.c.l.b16 %v11113
  %v11272 = vunpack.c.l.b16 %v11127
  %v11273 = vunpack.c.l.b16 %v11137
  %v11274 = vunpack.c.l.b16 %v11151
  %v11275 = vunpack.c.l.b16 %v11161
  %v11276 = vunpack.c.l.b16 %v11175
  %v11277 = vunpack.c.l.b16 %v11185
  %v11278 = vunpack.c.l.b16 %v11199
  %v11279 = vunpack.c.l.b16 %v11209
  %v11280 = vunpack.c.l.b16 %v11223
  %v11281 = vunpack.c.l.b16 %v11233
  %v11282 = vpack.c.b16 %v11251, %v11250
  %v11283 = vpack.c.b16 %v11253, %v11252
  %v11284 = vpack.c.b16 %v11255, %v11254
  %v11285 = vpack.c.b16 %v11257, %v11256
  %v11286 = vpack.c.b16 %v11259, %v11258
  %v11287 = vpack.c.b16 %v11261, %v11260
  %v11288 = vpack.c.b16 %v11263, %v11262
  %v11289 = vpack.c.b16 %v11265, %v11264
  %v11290 = vpack.c.b16 %v11267, %v11266
  %v11291 = vpack.c.b16 %v11269, %v11268
  %v11292 = vpack.c.b16 %v11271, %v11270
  %v11293 = vpack.c.b16 %v11273, %v11272
  %v11294 = vpack.c.b16 %v11275, %v11274
  %v11295 = vpack.c.b16 %v11277, %v11276
  %v11296 = vpack.c.b16 %v11279, %v11278
  %v11297 = vpack.c.b16 %v11281, %v11280
  %v11330 = vunpack.c.l.b16 %v11234
  %v11331 = vunpack.c.l.b16 %v11235
  %v11332 = vunpack.c.l.b16 %v11236
  %v11333 = vunpack.c.l.b16 %v11237
  %v11334 = vunpack.c.l.b16 %v11238
  %v11335 = vunpack.c.l.b16 %v11239
  %v11336 = vunpack.c.l.b16 %v11240
  %v11337 = vunpack.c.l.b16 %v11241
  %v11338 = vunpack.c.l.b16 %v11242
  %v11339 = vunpack.c.l.b16 %v11243
  %v11340 = vunpack.c.l.b16 %v11244
  %v11341 = vunpack.c.l.b16 %v11245
  %v11342 = vunpack.c.l.b16 %v11246
  %v11343 = vunpack.c.l.b16 %v11247
  %v11344 = vunpack.c.l.b16 %v11248
  %v11345 = vunpack.c.l.b16 %v11249
  %v11346 = vpack.c.b16 %v11331, %v11330
  %v11347 = vpack.c.b16 %v11333, %v11332
  %v11348 = vpack.c.b16 %v11335, %v11334
  %v11349 = vpack.c.b16 %v11337, %v11336
  %v11350 = vpack.c.b16 %v11339, %v11338
  %v11351 = vpack.c.b16 %v11341, %v11340
  %v11352 = vpack.c.b16 %v11343, %v11342
  %v11353 = vpack.c.b16 %v11345, %v11344
  %11362 = vmatprep.subr.bf16.mxu0 0
  %11363 = vmatpush1.bf16.msra.mxu0 %v11353
  %11364 = vmatprep.subr.bf16.mxu0 0
  %11365 = vmatpush1.bf16.msra.mxu0 %v11352
  %11366 = vmatprep.subr.bf16.mxu0 0
  %11367 = vmatpush1.bf16.msra.mxu0 %v11351
  %11368 = vmatprep.subr.bf16.mxu0 0
  %11369 = vmatpush1.bf16.msra.mxu0 %v11350
  %11370 = vmatprep.subr.bf16.mxu0 0
  %11371 = vmatpush1.bf16.msra.mxu0 %v11349
  %11372 = vmatprep.subr.bf16.mxu0 0
  %11373 = vmatpush1.bf16.msra.mxu0 %v11348
  %11374 = vmatprep.subr.bf16.mxu0 0
  %11375 = vmatpush1.bf16.msra.mxu0 %v11347
  %11376 = vmatprep.subr.bf16.mxu0 0
  %11377 = vmatpush1.bf16.msra.mxu0 %v11346
  %11378 = vmatprep.subr.bf16.mxu0 0
  %11379 = vmatpush2.bf16.msra.mxu0 0
  %11380 = vmatprep.subr.bf16.mxu0 0
  %11381 = vmatpush2.bf16.msra.mxu0 0
  %11382 = vmatprep.subr.bf16.mxu0 0
  %11383 = vmatpush2.bf16.msra.mxu0 0
  %11384 = vmatprep.subr.bf16.mxu0 0
  %11385 = vmatpush2.bf16.msra.mxu0 0
  %11386 = vmatprep.subr.bf16.mxu0 0
  %11387 = vmatpush2.bf16.msra.mxu0 0
  %11388 = vmatprep.subr.bf16.mxu0 0
  %11389 = vmatpush2.bf16.msra.mxu0 0
  %11390 = vmatprep.subr.bf16.mxu0 0
  %11391 = vmatpush2.bf16.msra.mxu0 0
  %11392 = vmatprep.subr.bf16.mxu0 0
  %11393 = vmatpush2.bf16.msra.mxu0 0
  %11394 = vmatprep.mubr.bf16.mxu0 0
  %11395 = vmatmul.mubr.bf16.gmra.mxu0 %v11282
  %v11396 = vpop.f32.mrf.mxu0
  %v11397 = vadd.f32 0.0, %v11396
  %v11398 = vpop.f32.mrf.mxu0
  %v11399 = vpop.f32.mrf.mxu0
  %v11400 = vadd.f32 0.0, %v11399
  %v11401 = vpop.f32.mrf.mxu0
  %11402 = vmatprep.mubr.bf16.mxu0 0
  %11403 = vmatmul.mubr.bf16.gmra.mxu0 %v11283
  %v11404 = vpop.f32.mrf.mxu0
  %v11405 = vadd.f32 0.0, %v11404
  %v11406 = vpop.f32.mrf.mxu0
  %v11407 = vpop.f32.mrf.mxu0
  %v11408 = vadd.f32 0.0, %v11407
  %v11409 = vpop.f32.mrf.mxu0
  %11410 = vmatprep.mubr.bf16.mxu0 0
  %11411 = vmatmul.mubr.bf16.gmra.mxu0 %v11284
  %v11412 = vpop.f32.mrf.mxu0
  %v11413 = vadd.f32 0.0, %v11412
  %v11414 = vpop.f32.mrf.mxu0
  %v11415 = vpop.f32.mrf.mxu0
  %v11416 = vadd.f32 0.0, %v11415
  %v11417 = vpop.f32.mrf.mxu0
  %11418 = vmatprep.mubr.bf16.mxu0 0
  %11419 = vmatmul.mubr.bf16.gmra.mxu0 %v11285
  %v11420 = vpop.f32.mrf.mxu0
  %v11421 = vadd.f32 0.0, %v11420
  %v11422 = vpop.f32.mrf.mxu0
  %v11423 = vpop.f32.mrf.mxu0
  %v11424 = vadd.f32 0.0, %v11423
  %v11425 = vpop.f32.mrf.mxu0
  %11426 = vmatprep.mubr.bf16.mxu0 0
  %11427 = vmatmul.mubr.bf16.gmra.mxu0 %v11286
  %v11428 = vpop.f32.mrf.mxu0
  %v11429 = vadd.f32 0.0, %v11428
  %v11430 = vpop.f32.mrf.mxu0
  %v11431 = vpop.f32.mrf.mxu0
  %v11432 = vadd.f32 0.0, %v11431
  %v11433 = vpop.f32.mrf.mxu0
  %11434 = vmatprep.mubr.bf16.mxu0 0
  %11435 = vmatmul.mubr.bf16.gmra.mxu0 %v11287
  %v11436 = vpop.f32.mrf.mxu0
  %v11437 = vadd.f32 0.0, %v11436
  %v11438 = vpop.f32.mrf.mxu0
  %v11439 = vpop.f32.mrf.mxu0
  %v11440 = vadd.f32 0.0, %v11439
  %v11441 = vpop.f32.mrf.mxu0
  %11442 = vmatprep.mubr.bf16.mxu0 0
  %11443 = vmatmul.mubr.bf16.gmra.mxu0 %v11288
  %v11444 = vpop.f32.mrf.mxu0
  %v11445 = vadd.f32 0.0, %v11444
  %v11446 = vpop.f32.mrf.mxu0
  %v11447 = vpop.f32.mrf.mxu0
  %v11448 = vadd.f32 0.0, %v11447
  %v11449 = vpop.f32.mrf.mxu0
  %11450 = vmatprep.mubr.bf16.mxu0 0
  %11451 = vmatmul.mubr.bf16.gmra.mxu0 %v11289
  %v11452 = vpop.f32.mrf.mxu0
  %v11453 = vadd.f32 0.0, %v11452
  %v11454 = vpop.f32.mrf.mxu0
  %v11455 = vpop.f32.mrf.mxu0
  %v11456 = vadd.f32 0.0, %v11455
  %v11457 = vpop.f32.mrf.mxu0
  %11458 = vmatprep.mubr.bf16.mxu0 0
  %11459 = vmatmul.mubr.bf16.gmra.mxu0 %v11290
  %v11460 = vpop.f32.mrf.mxu0
  %v11461 = vadd.f32 0.0, %v11460
  %v11462 = vpop.f32.mrf.mxu0
  %v11463 = vpop.f32.mrf.mxu0
  %v11464 = vadd.f32 0.0, %v11463
  %v11465 = vpop.f32.mrf.mxu0
  %11466 = vmatprep.mubr.bf16.mxu0 0
  %11467 = vmatmul.mubr.bf16.gmra.mxu0 %v11291
  %v11468 = vpop.f32.mrf.mxu0
  %v11469 = vadd.f32 0.0, %v11468
  %v11470 = vpop.f32.mrf.mxu0
  %v11471 = vpop.f32.mrf.mxu0
  %v11472 = vadd.f32 0.0, %v11471
  %v11473 = vpop.f32.mrf.mxu0
  %11474 = vmatprep.mubr.bf16.mxu0 0
  %11475 = vmatmul.mubr.bf16.gmra.mxu0 %v11292
  %v11476 = vpop.f32.mrf.mxu0
  %v11477 = vadd.f32 0.0, %v11476
  %v11478 = vpop.f32.mrf.mxu0
  %v11479 = vpop.f32.mrf.mxu0
  %v11480 = vadd.f32 0.0, %v11479
  %v11481 = vpop.f32.mrf.mxu0
  %11482 = vmatprep.mubr.bf16.mxu0 0
  %11483 = vmatmul.mubr.bf16.gmra.mxu0 %v11293
  %v11484 = vpop.f32.mrf.mxu0
  %v11485 = vadd.f32 0.0, %v11484
  %v11486 = vpop.f32.mrf.mxu0
  %v11487 = vpop.f32.mrf.mxu0
  %v11488 = vadd.f32 0.0, %v11487
  %v11489 = vpop.f32.mrf.mxu0
  %11490 = vmatprep.mubr.bf16.mxu0 0
  %11491 = vmatmul.mubr.bf16.gmra.mxu0 %v11294
  %v11492 = vpop.f32.mrf.mxu0
  %v11493 = vadd.f32 0.0, %v11492
  %v11494 = vpop.f32.mrf.mxu0
  %v11495 = vpop.f32.mrf.mxu0
  %v11496 = vadd.f32 0.0, %v11495
  %v11497 = vpop.f32.mrf.mxu0
  %11498 = vmatprep.mubr.bf16.mxu0 0
  %11499 = vmatmul.mubr.bf16.gmra.mxu0 %v11295
  %v11500 = vpop.f32.mrf.mxu0
  %v11501 = vadd.f32 0.0, %v11500
  %v11502 = vpop.f32.mrf.mxu0
  %v11503 = vpop.f32.mrf.mxu0
  %v11504 = vadd.f32 0.0, %v11503
  %v11505 = vpop.f32.mrf.mxu0
  %11506 = vmatprep.mubr.bf16.mxu0 0
  %11507 = vmatmul.mubr.bf16.gmra.mxu0 %v11296
  %v11508 = vpop.f32.mrf.mxu0
  %v11509 = vadd.f32 0.0, %v11508
  %v11510 = vpop.f32.mrf.mxu0
  %v11511 = vpop.f32.mrf.mxu0
  %v11512 = vadd.f32 0.0, %v11511
  %v11513 = vpop.f32.mrf.mxu0
  %11514 = vmatprep.mubr.bf16.mxu0 0
  %11515 = vmatmul.mubr.bf16.gmra.mxu0 %v11297
  %v11516 = vpop.f32.mrf.mxu0
  %v11517 = vadd.f32 0.0, %v11516
  %v11518 = vpop.f32.mrf.mxu0
  %v11519 = vpop.f32.mrf.mxu0
  %v11520 = vadd.f32 0.0, %v11519
  %v11521 = vpop.f32.mrf.mxu0
  %11522 = vdwg.mxu0
  %v11523 = vld [vmem:[#allocation3] sm:$0xff]
  %v11524 = vld [vmem:[#allocation3 + $0x8] sm:$0xff]
  %v11525 = vld [vmem:[#allocation3 + $0x10] sm:$0xff]
  %v11526 = vld [vmem:[#allocation3 + $0x18] sm:$0xff]
  %v11527 = vld [vmem:[#allocation3 + $0x20] sm:$0xff]
  %v11528 = vld [vmem:[#allocation3 + $0x28] sm:$0xff]
  %v11529 = vld [vmem:[#allocation3 + $0x30] sm:$0xff]
  %v11530 = vld [vmem:[#allocation3 + $0x38] sm:$0xff]
  %v11531 = vld [vmem:[#allocation3 + $0x40] sm:$0xff]
  %v11532 = vld [vmem:[#allocation3 + $0x48] sm:$0xff]
  %v11533 = vld [vmem:[#allocation3 + $0x50] sm:$0xff]
  %v11534 = vld [vmem:[#allocation3 + $0x58] sm:$0xff]
  %v11535 = vld [vmem:[#allocation3 + $0x60] sm:$0xff]
  %v11536 = vld [vmem:[#allocation3 + $0x68] sm:$0xff]
  %v11537 = vld [vmem:[#allocation3 + $0x70] sm:$0xff]
  %v11538 = vld [vmem:[#allocation3 + $0x78] sm:$0xff]
  %v11539 = vld [vmem:[#allocation3 + $0x80] sm:$0xff]
  %v11540 = vld [vmem:[#allocation3 + $0x88] sm:$0xff]
  %v11541 = vld [vmem:[#allocation3 + $0x90] sm:$0xff]
  %v11542 = vld [vmem:[#allocation3 + $0x98] sm:$0xff]
  %v11543 = vld [vmem:[#allocation3 + $0xa0] sm:$0xff]
  %v11544 = vld [vmem:[#allocation3 + $0xa8] sm:$0xff]
  %v11545 = vld [vmem:[#allocation3 + $0xb0] sm:$0xff]
  %v11546 = vld [vmem:[#allocation3 + $0xb8] sm:$0xff]
  %v11547 = vld [vmem:[#allocation3 + $0xc0] sm:$0xff]
  %v11548 = vld [vmem:[#allocation3 + $0xc8] sm:$0xff]
  %v11549 = vld [vmem:[#allocation3 + $0xd0] sm:$0xff]
  %v11550 = vld [vmem:[#allocation3 + $0xd8] sm:$0xff]
  %v11551 = vld [vmem:[#allocation3 + $0xe0] sm:$0xff]
  %v11552 = vld [vmem:[#allocation3 + $0xe8] sm:$0xff]
  %v11553 = vld [vmem:[#allocation3 + $0xf0] sm:$0xff]
  %v11554 = vld [vmem:[#allocation3 + $0xf8] sm:$0xff]
  %v11555 = vadd.f32 %v11523, %v11397
  %v11556 = vadd.f32 %v11524, %v11400
  %v11557 = vadd.f32 %v11525, %v11405
  %v11558 = vadd.f32 %v11526, %v11408
  %v11559 = vadd.f32 %v11527, %v11413
  %v11560 = vadd.f32 %v11528, %v11416
  %v11561 = vadd.f32 %v11529, %v11421
  %v11562 = vadd.f32 %v11530, %v11424
  %v11563 = vadd.f32 %v11531, %v11429
  %v11564 = vadd.f32 %v11532, %v11432
  %v11565 = vadd.f32 %v11533, %v11437
  %v11566 = vadd.f32 %v11534, %v11440
  %v11567 = vadd.f32 %v11535, %v11445
  %v11568 = vadd.f32 %v11536, %v11448
  %v11569 = vadd.f32 %v11537, %v11453
  %v11570 = vadd.f32 %v11538, %v11456
  %v11571 = vadd.f32 %v11539, %v11461
  %v11572 = vadd.f32 %v11540, %v11464
  %v11573 = vadd.f32 %v11541, %v11469
  %v11574 = vadd.f32 %v11542, %v11472
  %v11575 = vadd.f32 %v11543, %v11477
  %v11576 = vadd.f32 %v11544, %v11480
  %v11577 = vadd.f32 %v11545, %v11485
  %v11578 = vadd.f32 %v11546, %v11488
  %v11579 = vadd.f32 %v11547, %v11493
  %v11580 = vadd.f32 %v11548, %v11496
  %v11581 = vadd.f32 %v11549, %v11501
  %v11582 = vadd.f32 %v11550, %v11504
  %v11583 = vadd.f32 %v11551, %v11509
  %v11584 = vadd.f32 %v11552, %v11512
  %v11585 = vadd.f32 %v11553, %v11517
  %v11586 = vadd.f32 %v11554, %v11520
  %11587 = vst [vmem:[#allocation3] sm:$0xff] %v11555
  %11588 = vst [vmem:[#allocation3 + $0x8] sm:$0xff] %v11556
  %11589 = vst [vmem:[#allocation3 + $0x10] sm:$0xff] %v11557
  %11590 = vst [vmem:[#allocation3 + $0x18] sm:$0xff] %v11558
  %11591 = vst [vmem:[#allocation3 + $0x20] sm:$0xff] %v11559
  %11592 = vst [vmem:[#allocation3 + $0x28] sm:$0xff] %v11560
  %11593 = vst [vmem:[#allocation3 + $0x30] sm:$0xff] %v11561
  %11594 = vst [vmem:[#allocation3 + $0x38] sm:$0xff] %v11562
  %11595 = vst [vmem:[#allocation3 + $0x40] sm:$0xff] %v11563
  %11596 = vst [vmem:[#allocation3 + $0x48] sm:$0xff] %v11564
  %11597 = vst [vmem:[#allocation3 + $0x50] sm:$0xff] %v11565
  %11598 = vst [vmem:[#allocation3 + $0x58] sm:$0xff] %v11566
  %11599 = vst [vmem:[#allocation3 + $0x60] sm:$0xff] %v11567
  %11600 = vst [vmem:[#allocation3 + $0x68] sm:$0xff] %v11568
  %11601 = vst [vmem:[#allocation3 + $0x70] sm:$0xff] %v11569
  %11602 = vst [vmem:[#allocation3 + $0x78] sm:$0xff] %v11570
  %11603 = vst [vmem:[#allocation3 + $0x80] sm:$0xff] %v11571
  %11604 = vst [vmem:[#allocation3 + $0x88] sm:$0xff] %v11572
  %11605 = vst [vmem:[#allocation3 + $0x90] sm:$0xff] %v11573
  %11606 = vst [vmem:[#allocation3 + $0x98] sm:$0xff] %v11574
  %11607 = vst [vmem:[#allocation3 + $0xa0] sm:$0xff] %v11575
  %11608 = vst [vmem:[#allocation3 + $0xa8] sm:$0xff] %v11576
  %11609 = vst [vmem:[#allocation3 + $0xb0] sm:$0xff] %v11577
  %11610 = vst [vmem:[#allocation3 + $0xb8] sm:$0xff] %v11578
  %11611 = vst [vmem:[#allocation3 + $0xc0] sm:$0xff] %v11579
  %11612 = vst [vmem:[#allocation3 + $0xc8] sm:$0xff] %v11580
  %11613 = vst [vmem:[#allocation3 + $0xd0] sm:$0xff] %v11581
  %11614 = vst [vmem:[#allocation3 + $0xd8] sm:$0xff] %v11582
  %11615 = vst [vmem:[#allocation3 + $0xe0] sm:$0xff] %v11583
  %11616 = vst [vmem:[#allocation3 + $0xe8] sm:$0xff] %v11584
  %11617 = vst [vmem:[#allocation3 + $0xf0] sm:$0xff] %v11585
  %11618 = vst [vmem:[#allocation3 + $0xf8] sm:$0xff] %v11586
  %v11619 = vld [vmem:[%s4208] sm:$0xe]
  %v11620 = vld [vmem:[%s4208 + $0x4] sm:$0xf]
  %v11621 = vld [vmem:[%s4208 + $0x8] sm:$0x1]
  %v11622 = vld [vmem:[%s4208 + $0xc] sm:$0xe]
  %v11623 = vld [vmem:[%s4208 + $0x10] sm:$0xf]
  %v11624 = vld [vmem:[%s4208 + $0x14] sm:$0x1]
  %v11625 = vld [vmem:[%s4208 + $0x18] sm:$0xe]
  %v11626 = vld [vmem:[%s4208 + $0x1c] sm:$0xf]
  %v11627 = vld [vmem:[%s4208 + $0x20] sm:$0x1]
  %v11628 = vld [vmem:[%s4208 + $0x24] sm:$0xe]
  %v11629 = vld [vmem:[%s4208 + $0x28] sm:$0xf]
  %v11630 = vld [vmem:[%s4208 + $0x2c] sm:$0x1]
  %v11631 = vld [vmem:[%s4208 + $0x30] sm:$0xe]
  %v11632 = vld [vmem:[%s4208 + $0x34] sm:$0xf]
  %v11633 = vld [vmem:[%s4208 + $0x38] sm:$0x1]
  %v11634 = vld [vmem:[%s4208 + $0x3c] sm:$0xe]
  %v11635 = vld [vmem:[%s4208 + $0x40] sm:$0xf]
  %v11636 = vld [vmem:[%s4208 + $0x44] sm:$0x1]
  %v11637 = vld [vmem:[%s4208 + $0x48] sm:$0xe]
  %v11638 = vld [vmem:[%s4208 + $0x4c] sm:$0xf]
  %v11639 = vld [vmem:[%s4208 + $0x50] sm:$0x1]
  %v11640 = vld [vmem:[%s4208 + $0x54] sm:$0xe]
  %v11641 = vld [vmem:[%s4208 + $0x58] sm:$0xf]
  %v11642 = vld [vmem:[%s4208 + $0x5c] sm:$0x1]
  %v11643 = vld [vmem:[%s4208 + $0x60] sm:$0xe]
  %v11644 = vld [vmem:[%s4208 + $0x64] sm:$0xf]
  %v11645 = vld [vmem:[%s4208 + $0x68] sm:$0x1]
  %v11646 = vld [vmem:[%s4208 + $0x6c] sm:$0xe]
  %v11647 = vld [vmem:[%s4208 + $0x70] sm:$0xf]
  %v11648 = vld [vmem:[%s4208 + $0x74] sm:$0x1]
  %v11649 = vld [vmem:[%s4208 + $0x78] sm:$0xe]
  %v11650 = vld [vmem:[%s4208 + $0x7c] sm:$0xf]
  %v11651 = vld [vmem:[%s4208 + $0x80] sm:$0x1]
  %v11652 = vld [vmem:[%s4208 + $0x84] sm:$0xe]
  %v11653 = vld [vmem:[%s4208 + $0x88] sm:$0xf]
  %v11654 = vld [vmem:[%s4208 + $0x8c] sm:$0x1]
  %v11655 = vld [vmem:[%s4208 + $0x90] sm:$0xe]
  %v11656 = vld [vmem:[%s4208 + $0x94] sm:$0xf]
  %v11657 = vld [vmem:[%s4208 + $0x98] sm:$0x1]
  %v11658 = vld [vmem:[%s4208 + $0x9c] sm:$0xe]
  %v11659 = vld [vmem:[%s4208 + $0xa0] sm:$0xf]
  %v11660 = vld [vmem:[%s4208 + $0xa4] sm:$0x1]
  %v11661 = vld [vmem:[%s4208 + $0xa8] sm:$0xe]
  %v11662 = vld [vmem:[%s4208 + $0xac] sm:$0xf]
  %v11663 = vld [vmem:[%s4208 + $0xb0] sm:$0x1]
  %v11664 = vld [vmem:[%s4208 + $0xb4] sm:$0xe]
  %v11665 = vld [vmem:[%s4208 + $0xb8] sm:$0xf]
  %v11666 = vld [vmem:[%s4208 + $0xbc] sm:$0x1]
  %v11715 = vrot.slane %v11619, 5
  %v11716 = vrot.slane %v11715, 4
  %v11717 = vrot.slane %v11620, 5
  %v11718 = vsel %vm1851, %v11716, %v11717
  %v11719 = vrot.slane %v11717, 4
  %v11720 = vrot.slane %v11621, 5
  %v11721 = vsel %vm1851, %v11719, %v11720
  %v11722 = vrot.slane %v11622, 5
  %v11723 = vrot.slane %v11722, 4
  %v11724 = vrot.slane %v11623, 5
  %v11725 = vsel %vm1851, %v11723, %v11724
  %v11726 = vrot.slane %v11724, 4
  %v11727 = vrot.slane %v11624, 5
  %v11728 = vsel %vm1851, %v11726, %v11727
  %v11729 = vrot.slane %v11625, 5
  %v11730 = vrot.slane %v11729, 4
  %v11731 = vrot.slane %v11626, 5
  %v11732 = vsel %vm1851, %v11730, %v11731
  %v11733 = vrot.slane %v11731, 4
  %v11734 = vrot.slane %v11627, 5
  %v11735 = vsel %vm1851, %v11733, %v11734
  %v11736 = vrot.slane %v11628, 5
  %v11737 = vrot.slane %v11736, 4
  %v11738 = vrot.slane %v11629, 5
  %v11739 = vsel %vm1851, %v11737, %v11738
  %v11740 = vrot.slane %v11738, 4
  %v11741 = vrot.slane %v11630, 5
  %v11742 = vsel %vm1851, %v11740, %v11741
  %v11743 = vrot.slane %v11631, 5
  %v11744 = vrot.slane %v11743, 4
  %v11745 = vrot.slane %v11632, 5
  %v11746 = vsel %vm1851, %v11744, %v11745
  %v11747 = vrot.slane %v11745, 4
  %v11748 = vrot.slane %v11633, 5
  %v11749 = vsel %vm1851, %v11747, %v11748
  %v11750 = vrot.slane %v11634, 5
  %v11751 = vrot.slane %v11750, 4
  %v11752 = vrot.slane %v11635, 5
  %v11753 = vsel %vm1851, %v11751, %v11752
  %v11754 = vrot.slane %v11752, 4
  %v11755 = vrot.slane %v11636, 5
  %v11756 = vsel %vm1851, %v11754, %v11755
  %v11757 = vrot.slane %v11637, 5
  %v11758 = vrot.slane %v11757, 4
  %v11759 = vrot.slane %v11638, 5
  %v11760 = vsel %vm1851, %v11758, %v11759
  %v11761 = vrot.slane %v11759, 4
  %v11762 = vrot.slane %v11639, 5
  %v11763 = vsel %vm1851, %v11761, %v11762
  %v11764 = vrot.slane %v11640, 5
  %v11765 = vrot.slane %v11764, 4
  %v11766 = vrot.slane %v11641, 5
  %v11767 = vsel %vm1851, %v11765, %v11766
  %v11768 = vrot.slane %v11766, 4
  %v11769 = vrot.slane %v11642, 5
  %v11770 = vsel %vm1851, %v11768, %v11769
  %v11771 = vrot.slane %v11643, 5
  %v11772 = vrot.slane %v11771, 4
  %v11773 = vrot.slane %v11644, 5
  %v11774 = vsel %vm1851, %v11772, %v11773
  %v11775 = vrot.slane %v11773, 4
  %v11776 = vrot.slane %v11645, 5
  %v11777 = vsel %vm1851, %v11775, %v11776
  %v11778 = vrot.slane %v11646, 5
  %v11779 = vrot.slane %v11778, 4
  %v11780 = vrot.slane %v11647, 5
  %v11781 = vsel %vm1851, %v11779, %v11780
  %v11782 = vrot.slane %v11780, 4
  %v11783 = vrot.slane %v11648, 5
  %v11784 = vsel %vm1851, %v11782, %v11783
  %v11785 = vrot.slane %v11649, 5
  %v11786 = vrot.slane %v11785, 4
  %v11787 = vrot.slane %v11650, 5
  %v11788 = vsel %vm1851, %v11786, %v11787
  %v11789 = vrot.slane %v11787, 4
  %v11790 = vrot.slane %v11651, 5
  %v11791 = vsel %vm1851, %v11789, %v11790
  %v11792 = vrot.slane %v11652, 5
  %v11793 = vrot.slane %v11792, 4
  %v11794 = vrot.slane %v11653, 5
  %v11795 = vsel %vm1851, %v11793, %v11794
  %v11796 = vrot.slane %v11794, 4
  %v11797 = vrot.slane %v11654, 5
  %v11798 = vsel %vm1851, %v11796, %v11797
  %v11799 = vrot.slane %v11655, 5
  %v11800 = vrot.slane %v11799, 4
  %v11801 = vrot.slane %v11656, 5
  %v11802 = vsel %vm1851, %v11800, %v11801
  %v11803 = vrot.slane %v11801, 4
  %v11804 = vrot.slane %v11657, 5
  %v11805 = vsel %vm1851, %v11803, %v11804
  %v11806 = vrot.slane %v11658, 5
  %v11807 = vrot.slane %v11806, 4
  %v11808 = vrot.slane %v11659, 5
  %v11809 = vsel %vm1851, %v11807, %v11808
  %v11810 = vrot.slane %v11808, 4
  %v11811 = vrot.slane %v11660, 5
  %v11812 = vsel %vm1851, %v11810, %v11811
  %v11813 = vrot.slane %v11661, 5
  %v11814 = vrot.slane %v11813, 4
  %v11815 = vrot.slane %v11662, 5
  %v11816 = vsel %vm1851, %v11814, %v11815
  %v11817 = vrot.slane %v11815, 4
  %v11818 = vrot.slane %v11663, 5
  %v11819 = vsel %vm1851, %v11817, %v11818
  %v11820 = vrot.slane %v11664, 5
  %v11821 = vrot.slane %v11820, 4
  %v11822 = vrot.slane %v11665, 5
  %v11823 = vsel %vm1851, %v11821, %v11822
  %v11824 = vrot.slane %v11822, 4
  %v11825 = vrot.slane %v11666, 5
  %v11826 = vsel %vm1851, %v11824, %v11825
  %v11827 = vld [vmem:[%s3 + $0x200] sm:$0xf]
  %v11828 = vld [vmem:[%s3 + $0x204] sm:$0xf]
  %v11829 = vld [vmem:[%s3 + $0x208] sm:$0xf]
  %v11830 = vld [vmem:[%s3 + $0x20c] sm:$0xf]
  %v11831 = vld [vmem:[%s3 + $0x210] sm:$0xf]
  %v11832 = vld [vmem:[%s3 + $0x214] sm:$0xf]
  %v11833 = vld [vmem:[%s3 + $0x218] sm:$0xf]
  %v11834 = vld [vmem:[%s3 + $0x21c] sm:$0xf]
  %v11835 = vld [vmem:[%s3 + $0x220] sm:$0xf]
  %v11836 = vld [vmem:[%s3 + $0x224] sm:$0xf]
  %v11837 = vld [vmem:[%s3 + $0x228] sm:$0xf]
  %v11838 = vld [vmem:[%s3 + $0x22c] sm:$0xf]
  %v11839 = vld [vmem:[%s3 + $0x230] sm:$0xf]
  %v11840 = vld [vmem:[%s3 + $0x234] sm:$0xf]
  %v11841 = vld [vmem:[%s3 + $0x238] sm:$0xf]
  %v11842 = vld [vmem:[%s3 + $0x23c] sm:$0xf]
  %v11843 = vunpack.c.l.b16 %v11718
  %v11844 = vunpack.c.l.b16 %v11721
  %v11845 = vunpack.c.l.b16 %v11725
  %v11846 = vunpack.c.l.b16 %v11728
  %v11847 = vunpack.c.l.b16 %v11732
  %v11848 = vunpack.c.l.b16 %v11735
  %v11849 = vunpack.c.l.b16 %v11739
  %v11850 = vunpack.c.l.b16 %v11742
  %v11851 = vunpack.c.l.b16 %v11746
  %v11852 = vunpack.c.l.b16 %v11749
  %v11853 = vunpack.c.l.b16 %v11753
  %v11854 = vunpack.c.l.b16 %v11756
  %v11855 = vunpack.c.l.b16 %v11760
  %v11856 = vunpack.c.l.b16 %v11763
  %v11857 = vunpack.c.l.b16 %v11767
  %v11858 = vunpack.c.l.b16 %v11770
  %v11859 = vunpack.c.l.b16 %v11774
  %v11860 = vunpack.c.l.b16 %v11777
  %v11861 = vunpack.c.l.b16 %v11781
  %v11862 = vunpack.c.l.b16 %v11784
  %v11863 = vunpack.c.l.b16 %v11788
  %v11864 = vunpack.c.l.b16 %v11791
  %v11865 = vunpack.c.l.b16 %v11795
  %v11866 = vunpack.c.l.b16 %v11798
  %v11867 = vunpack.c.l.b16 %v11802
  %v11868 = vunpack.c.l.b16 %v11805
  %v11869 = vunpack.c.l.b16 %v11809
  %v11870 = vunpack.c.l.b16 %v11812
  %v11871 = vunpack.c.l.b16 %v11816
  %v11872 = vunpack.c.l.b16 %v11819
  %v11873 = vunpack.c.l.b16 %v11823
  %v11874 = vunpack.c.l.b16 %v11826
  %v11875 = vpack.c.b16 %v11844, %v11843
  %v11876 = vpack.c.b16 %v11846, %v11845
  %v11877 = vpack.c.b16 %v11848, %v11847
  %v11878 = vpack.c.b16 %v11850, %v11849
  %v11879 = vpack.c.b16 %v11852, %v11851
  %v11880 = vpack.c.b16 %v11854, %v11853
  %v11881 = vpack.c.b16 %v11856, %v11855
  %v11882 = vpack.c.b16 %v11858, %v11857
  %v11883 = vpack.c.b16 %v11860, %v11859
  %v11884 = vpack.c.b16 %v11862, %v11861
  %v11885 = vpack.c.b16 %v11864, %v11863
  %v11886 = vpack.c.b16 %v11866, %v11865
  %v11887 = vpack.c.b16 %v11868, %v11867
  %v11888 = vpack.c.b16 %v11870, %v11869
  %v11889 = vpack.c.b16 %v11872, %v11871
  %v11890 = vpack.c.b16 %v11874, %v11873
  %v11923 = vunpack.c.l.b16 %v11827
  %v11924 = vunpack.c.l.b16 %v11828
  %v11925 = vunpack.c.l.b16 %v11829
  %v11926 = vunpack.c.l.b16 %v11830
  %v11927 = vunpack.c.l.b16 %v11831
  %v11928 = vunpack.c.l.b16 %v11832
  %v11929 = vunpack.c.l.b16 %v11833
  %v11930 = vunpack.c.l.b16 %v11834
  %v11931 = vunpack.c.l.b16 %v11835
  %v11932 = vunpack.c.l.b16 %v11836
  %v11933 = vunpack.c.l.b16 %v11837
  %v11934 = vunpack.c.l.b16 %v11838
  %v11935 = vunpack.c.l.b16 %v11839
  %v11936 = vunpack.c.l.b16 %v11840
  %v11937 = vunpack.c.l.b16 %v11841
  %v11938 = vunpack.c.l.b16 %v11842
  %v11939 = vpack.c.b16 %v11924, %v11923
  %v11940 = vpack.c.b16 %v11926, %v11925
  %v11941 = vpack.c.b16 %v11928, %v11927
  %v11942 = vpack.c.b16 %v11930, %v11929
  %v11943 = vpack.c.b16 %v11932, %v11931
  %v11944 = vpack.c.b16 %v11934, %v11933
  %v11945 = vpack.c.b16 %v11936, %v11935
  %v11946 = vpack.c.b16 %v11938, %v11937
  %11955 = vmatprep.subr.bf16.mxu0 0
  %11956 = vmatpush1.bf16.msra.mxu0 %v11946
  %11957 = vmatprep.subr.bf16.mxu0 0
  %11958 = vmatpush1.bf16.msra.mxu0 %v11945
  %11959 = vmatprep.subr.bf16.mxu0 0
  %11960 = vmatpush1.bf16.msra.mxu0 %v11944
  %11961 = vmatprep.subr.bf16.mxu0 0
  %11962 = vmatpush1.bf16.msra.mxu0 %v11943
  %11963 = vmatprep.subr.bf16.mxu0 0
  %11964 = vmatpush1.bf16.msra.mxu0 %v11942
  %11965 = vmatprep.subr.bf16.mxu0 0
  %11966 = vmatpush1.bf16.msra.mxu0 %v11941
  %11967 = vmatprep.subr.bf16.mxu0 0
  %11968 = vmatpush1.bf16.msra.mxu0 %v11940
  %11969 = vmatprep.subr.bf16.mxu0 0
  %11970 = vmatpush1.bf16.msra.mxu0 %v11939
  %11971 = vmatprep.subr.bf16.mxu0 0
  %11972 = vmatpush2.bf16.msra.mxu0 0
  %11973 = vmatprep.subr.bf16.mxu0 0
  %11974 = vmatpush2.bf16.msra.mxu0 0
  %11975 = vmatprep.subr.bf16.mxu0 0
  %11976 = vmatpush2.bf16.msra.mxu0 0
  %11977 = vmatprep.subr.bf16.mxu0 0
  %11978 = vmatpush2.bf16.msra.mxu0 0
  %11979 = vmatprep.subr.bf16.mxu0 0
  %11980 = vmatpush2.bf16.msra.mxu0 0
  %11981 = vmatprep.subr.bf16.mxu0 0
  %11982 = vmatpush2.bf16.msra.mxu0 0
  %11983 = vmatprep.subr.bf16.mxu0 0
  %11984 = vmatpush2.bf16.msra.mxu0 0
  %11985 = vmatprep.subr.bf16.mxu0 0
  %11986 = vmatpush2.bf16.msra.mxu0 0
  %11987 = vmatprep.mubr.bf16.mxu0 0
  %11988 = vmatmul.mubr.bf16.gmra.mxu0 %v11875
  %v11989 = vpop.f32.mrf.mxu0
  %v11990 = vadd.f32 0.0, %v11989
  %v11991 = vpop.f32.mrf.mxu0
  %v11992 = vpop.f32.mrf.mxu0
  %v11993 = vadd.f32 0.0, %v11992
  %v11994 = vpop.f32.mrf.mxu0
  %11995 = vmatprep.mubr.bf16.mxu0 0
  %11996 = vmatmul.mubr.bf16.gmra.mxu0 %v11876
  %v11997 = vpop.f32.mrf.mxu0
  %v11998 = vadd.f32 0.0, %v11997
  %v11999 = vpop.f32.mrf.mxu0
  %v12000 = vpop.f32.mrf.mxu0
  %v12001 = vadd.f32 0.0, %v12000
  %v12002 = vpop.f32.mrf.mxu0
  %12003 = vmatprep.mubr.bf16.mxu0 0
  %12004 = vmatmul.mubr.bf16.gmra.mxu0 %v11877
  %v12005 = vpop.f32.mrf.mxu0
  %v12006 = vadd.f32 0.0, %v12005
  %v12007 = vpop.f32.mrf.mxu0
  %v12008 = vpop.f32.mrf.mxu0
  %v12009 = vadd.f32 0.0, %v12008
  %v12010 = vpop.f32.mrf.mxu0
  %12011 = vmatprep.mubr.bf16.mxu0 0
  %12012 = vmatmul.mubr.bf16.gmra.mxu0 %v11878
  %v12013 = vpop.f32.mrf.mxu0
  %v12014 = vadd.f32 0.0, %v12013
  %v12015 = vpop.f32.mrf.mxu0
  %v12016 = vpop.f32.mrf.mxu0
  %v12017 = vadd.f32 0.0, %v12016
  %v12018 = vpop.f32.mrf.mxu0
  %12019 = vmatprep.mubr.bf16.mxu0 0
  %12020 = vmatmul.mubr.bf16.gmra.mxu0 %v11879
  %v12021 = vpop.f32.mrf.mxu0
  %v12022 = vadd.f32 0.0, %v12021
  %v12023 = vpop.f32.mrf.mxu0
  %v12024 = vpop.f32.mrf.mxu0
  %v12025 = vadd.f32 0.0, %v12024
  %v12026 = vpop.f32.mrf.mxu0
  %12027 = vmatprep.mubr.bf16.mxu0 0
  %12028 = vmatmul.mubr.bf16.gmra.mxu0 %v11880
  %v12029 = vpop.f32.mrf.mxu0
  %v12030 = vadd.f32 0.0, %v12029
  %v12031 = vpop.f32.mrf.mxu0
  %v12032 = vpop.f32.mrf.mxu0
  %v12033 = vadd.f32 0.0, %v12032
  %v12034 = vpop.f32.mrf.mxu0
  %12035 = vmatprep.mubr.bf16.mxu0 0
  %12036 = vmatmul.mubr.bf16.gmra.mxu0 %v11881
  %v12037 = vpop.f32.mrf.mxu0
  %v12038 = vadd.f32 0.0, %v12037
  %v12039 = vpop.f32.mrf.mxu0
  %v12040 = vpop.f32.mrf.mxu0
  %v12041 = vadd.f32 0.0, %v12040
  %v12042 = vpop.f32.mrf.mxu0
  %12043 = vmatprep.mubr.bf16.mxu0 0
  %12044 = vmatmul.mubr.bf16.gmra.mxu0 %v11882
  %v12045 = vpop.f32.mrf.mxu0
  %v12046 = vadd.f32 0.0, %v12045
  %v12047 = vpop.f32.mrf.mxu0
  %v12048 = vpop.f32.mrf.mxu0
  %v12049 = vadd.f32 0.0, %v12048
  %v12050 = vpop.f32.mrf.mxu0
  %12051 = vmatprep.mubr.bf16.mxu0 0
  %12052 = vmatmul.mubr.bf16.gmra.mxu0 %v11883
  %v12053 = vpop.f32.mrf.mxu0
  %v12054 = vadd.f32 0.0, %v12053
  %v12055 = vpop.f32.mrf.mxu0
  %v12056 = vpop.f32.mrf.mxu0
  %v12057 = vadd.f32 0.0, %v12056
  %v12058 = vpop.f32.mrf.mxu0
  %12059 = vmatprep.mubr.bf16.mxu0 0
  %12060 = vmatmul.mubr.bf16.gmra.mxu0 %v11884
  %v12061 = vpop.f32.mrf.mxu0
  %v12062 = vadd.f32 0.0, %v12061
  %v12063 = vpop.f32.mrf.mxu0
  %v12064 = vpop.f32.mrf.mxu0
  %v12065 = vadd.f32 0.0, %v12064
  %v12066 = vpop.f32.mrf.mxu0
  %12067 = vmatprep.mubr.bf16.mxu0 0
  %12068 = vmatmul.mubr.bf16.gmra.mxu0 %v11885
  %v12069 = vpop.f32.mrf.mxu0
  %v12070 = vadd.f32 0.0, %v12069
  %v12071 = vpop.f32.mrf.mxu0
  %v12072 = vpop.f32.mrf.mxu0
  %v12073 = vadd.f32 0.0, %v12072
  %v12074 = vpop.f32.mrf.mxu0
  %12075 = vmatprep.mubr.bf16.mxu0 0
  %12076 = vmatmul.mubr.bf16.gmra.mxu0 %v11886
  %v12077 = vpop.f32.mrf.mxu0
  %v12078 = vadd.f32 0.0, %v12077
  %v12079 = vpop.f32.mrf.mxu0
  %v12080 = vpop.f32.mrf.mxu0
  %v12081 = vadd.f32 0.0, %v12080
  %v12082 = vpop.f32.mrf.mxu0
  %12083 = vmatprep.mubr.bf16.mxu0 0
  %12084 = vmatmul.mubr.bf16.gmra.mxu0 %v11887
  %v12085 = vpop.f32.mrf.mxu0
  %v12086 = vadd.f32 0.0, %v12085
  %v12087 = vpop.f32.mrf.mxu0
  %v12088 = vpop.f32.mrf.mxu0
  %v12089 = vadd.f32 0.0, %v12088
  %v12090 = vpop.f32.mrf.mxu0
  %12091 = vmatprep.mubr.bf16.mxu0 0
  %12092 = vmatmul.mubr.bf16.gmra.mxu0 %v11888
  %v12093 = vpop.f32.mrf.mxu0
  %v12094 = vadd.f32 0.0, %v12093
  %v12095 = vpop.f32.mrf.mxu0
  %v12096 = vpop.f32.mrf.mxu0
  %v12097 = vadd.f32 0.0, %v12096
  %v12098 = vpop.f32.mrf.mxu0
  %12099 = vmatprep.mubr.bf16.mxu0 0
  %12100 = vmatmul.mubr.bf16.gmra.mxu0 %v11889
  %v12101 = vpop.f32.mrf.mxu0
  %v12102 = vadd.f32 0.0, %v12101
  %v12103 = vpop.f32.mrf.mxu0
  %v12104 = vpop.f32.mrf.mxu0
  %v12105 = vadd.f32 0.0, %v12104
  %v12106 = vpop.f32.mrf.mxu0
  %12107 = vmatprep.mubr.bf16.mxu0 0
  %12108 = vmatmul.mubr.bf16.gmra.mxu0 %v11890
  %v12109 = vpop.f32.mrf.mxu0
  %v12110 = vadd.f32 0.0, %v12109
  %v12111 = vpop.f32.mrf.mxu0
  %v12112 = vpop.f32.mrf.mxu0
  %v12113 = vadd.f32 0.0, %v12112
  %v12114 = vpop.f32.mrf.mxu0
  %12115 = vdwg.mxu0
  %v12116 = vld [vmem:[#allocation3] sm:$0xff]
  %v12117 = vld [vmem:[#allocation3 + $0x8] sm:$0xff]
  %v12118 = vld [vmem:[#allocation3 + $0x10] sm:$0xff]
  %v12119 = vld [vmem:[#allocation3 + $0x18] sm:$0xff]
  %v12120 = vld [vmem:[#allocation3 + $0x20] sm:$0xff]
  %v12121 = vld [vmem:[#allocation3 + $0x28] sm:$0xff]
  %v12122 = vld [vmem:[#allocation3 + $0x30] sm:$0xff]
  %v12123 = vld [vmem:[#allocation3 + $0x38] sm:$0xff]
  %v12124 = vld [vmem:[#allocation3 + $0x40] sm:$0xff]
  %v12125 = vld [vmem:[#allocation3 + $0x48] sm:$0xff]
  %v12126 = vld [vmem:[#allocation3 + $0x50] sm:$0xff]
  %v12127 = vld [vmem:[#allocation3 + $0x58] sm:$0xff]
  %v12128 = vld [vmem:[#allocation3 + $0x60] sm:$0xff]
  %v12129 = vld [vmem:[#allocation3 + $0x68] sm:$0xff]
  %v12130 = vld [vmem:[#allocation3 + $0x70] sm:$0xff]
  %v12131 = vld [vmem:[#allocation3 + $0x78] sm:$0xff]
  %v12132 = vld [vmem:[#allocation3 + $0x80] sm:$0xff]
  %v12133 = vld [vmem:[#allocation3 + $0x88] sm:$0xff]
  %v12134 = vld [vmem:[#allocation3 + $0x90] sm:$0xff]
  %v12135 = vld [vmem:[#allocation3 + $0x98] sm:$0xff]
  %v12136 = vld [vmem:[#allocation3 + $0xa0] sm:$0xff]
  %v12137 = vld [vmem:[#allocation3 + $0xa8] sm:$0xff]
  %v12138 = vld [vmem:[#allocation3 + $0xb0] sm:$0xff]
  %v12139 = vld [vmem:[#allocation3 + $0xb8] sm:$0xff]
  %v12140 = vld [vmem:[#allocation3 + $0xc0] sm:$0xff]
  %v12141 = vld [vmem:[#allocation3 + $0xc8] sm:$0xff]
  %v12142 = vld [vmem:[#allocation3 + $0xd0] sm:$0xff]
  %v12143 = vld [vmem:[#allocation3 + $0xd8] sm:$0xff]
  %v12144 = vld [vmem:[#allocation3 + $0xe0] sm:$0xff]
  %v12145 = vld [vmem:[#allocation3 + $0xe8] sm:$0xff]
  %v12146 = vld [vmem:[#allocation3 + $0xf0] sm:$0xff]
  %v12147 = vld [vmem:[#allocation3 + $0xf8] sm:$0xff]
  %v12148 = vadd.f32 %v12116, %v11990
  %v12149 = vadd.f32 %v12117, %v11993
  %v12150 = vadd.f32 %v12118, %v11998
  %v12151 = vadd.f32 %v12119, %v12001
  %v12152 = vadd.f32 %v12120, %v12006
  %v12153 = vadd.f32 %v12121, %v12009
  %v12154 = vadd.f32 %v12122, %v12014
  %v12155 = vadd.f32 %v12123, %v12017
  %v12156 = vadd.f32 %v12124, %v12022
  %v12157 = vadd.f32 %v12125, %v12025
  %v12158 = vadd.f32 %v12126, %v12030
  %v12159 = vadd.f32 %v12127, %v12033
  %v12160 = vadd.f32 %v12128, %v12038
  %v12161 = vadd.f32 %v12129, %v12041
  %v12162 = vadd.f32 %v12130, %v12046
  %v12163 = vadd.f32 %v12131, %v12049
  %v12164 = vadd.f32 %v12132, %v12054
  %v12165 = vadd.f32 %v12133, %v12057
  %v12166 = vadd.f32 %v12134, %v12062
  %v12167 = vadd.f32 %v12135, %v12065
  %v12168 = vadd.f32 %v12136, %v12070
  %v12169 = vadd.f32 %v12137, %v12073
  %v12170 = vadd.f32 %v12138, %v12078
  %v12171 = vadd.f32 %v12139, %v12081
  %v12172 = vadd.f32 %v12140, %v12086
  %v12173 = vadd.f32 %v12141, %v12089
  %v12174 = vadd.f32 %v12142, %v12094
  %v12175 = vadd.f32 %v12143, %v12097
  %v12176 = vadd.f32 %v12144, %v12102
  %v12177 = vadd.f32 %v12145, %v12105
  %v12178 = vadd.f32 %v12146, %v12110
  %v12179 = vadd.f32 %v12147, %v12113
  %12180 = vst [vmem:[#allocation3] sm:$0xff] %v12148
  %12181 = vst [vmem:[#allocation3 + $0x8] sm:$0xff] %v12149
  %12182 = vst [vmem:[#allocation3 + $0x10] sm:$0xff] %v12150
  %12183 = vst [vmem:[#allocation3 + $0x18] sm:$0xff] %v12151
  %12184 = vst [vmem:[#allocation3 + $0x20] sm:$0xff] %v12152
  %12185 = vst [vmem:[#allocation3 + $0x28] sm:$0xff] %v12153
  %12186 = vst [vmem:[#allocation3 + $0x30] sm:$0xff] %v12154
  %12187 = vst [vmem:[#allocation3 + $0x38] sm:$0xff] %v12155
  %12188 = vst [vmem:[#allocation3 + $0x40] sm:$0xff] %v12156
  %12189 = vst [vmem:[#allocation3 + $0x48] sm:$0xff] %v12157
  %12190 = vst [vmem:[#allocation3 + $0x50] sm:$0xff] %v12158
  %12191 = vst [vmem:[#allocation3 + $0x58] sm:$0xff] %v12159
  %12192 = vst [vmem:[#allocation3 + $0x60] sm:$0xff] %v12160
  %12193 = vst [vmem:[#allocation3 + $0x68] sm:$0xff] %v12161
  %12194 = vst [vmem:[#allocation3 + $0x70] sm:$0xff] %v12162
  %12195 = vst [vmem:[#allocation3 + $0x78] sm:$0xff] %v12163
  %12196 = vst [vmem:[#allocation3 + $0x80] sm:$0xff] %v12164
  %12197 = vst [vmem:[#allocation3 + $0x88] sm:$0xff] %v12165
  %12198 = vst [vmem:[#allocation3 + $0x90] sm:$0xff] %v12166
  %12199 = vst [vmem:[#allocation3 + $0x98] sm:$0xff] %v12167
  %12200 = vst [vmem:[#allocation3 + $0xa0] sm:$0xff] %v12168
  %12201 = vst [vmem:[#allocation3 + $0xa8] sm:$0xff] %v12169
  %12202 = vst [vmem:[#allocation3 + $0xb0] sm:$0xff] %v12170
  %12203 = vst [vmem:[#allocation3 + $0xb8] sm:$0xff] %v12171
  %12204 = vst [vmem:[#allocation3 + $0xc0] sm:$0xff] %v12172
  %12205 = vst [vmem:[#allocation3 + $0xc8] sm:$0xff] %v12173
  %12206 = vst [vmem:[#allocation3 + $0xd0] sm:$0xff] %v12174
  %12207 = vst [vmem:[#allocation3 + $0xd8] sm:$0xff] %v12175
  %12208 = vst [vmem:[#allocation3 + $0xe0] sm:$0xff] %v12176
  %12209 = vst [vmem:[#allocation3 + $0xe8] sm:$0xff] %v12177
  %12210 = vst [vmem:[#allocation3 + $0xf0] sm:$0xff] %v12178
  %12211 = vst [vmem:[#allocation3 + $0xf8] sm:$0xff] %v12179
  %v12212 = vld [vmem:[#allocation3] sm:$0xff]
  %v12213 = vld [vmem:[#allocation3 + $0x8] sm:$0xff]
  %v12214 = vld [vmem:[#allocation3 + $0x10] sm:$0xff]
  %v12215 = vld [vmem:[#allocation3 + $0x18] sm:$0xff]
  %v12216 = vld [vmem:[#allocation3 + $0x20] sm:$0xff]
  %v12217 = vld [vmem:[#allocation3 + $0x28] sm:$0xff]
  %v12218 = vld [vmem:[#allocation3 + $0x30] sm:$0xff]
  %v12219 = vld [vmem:[#allocation3 + $0x38] sm:$0xff]
  %v12220 = vld [vmem:[#allocation3 + $0x40] sm:$0xff]
  %v12221 = vld [vmem:[#allocation3 + $0x48] sm:$0xff]
  %v12222 = vld [vmem:[#allocation3 + $0x50] sm:$0xff]
  %v12223 = vld [vmem:[#allocation3 + $0x58] sm:$0xff]
  %v12224 = vld [vmem:[#allocation3 + $0x60] sm:$0xff]
  %v12225 = vld [vmem:[#allocation3 + $0x68] sm:$0xff]
  %v12226 = vld [vmem:[#allocation3 + $0x70] sm:$0xff]
  %v12227 = vld [vmem:[#allocation3 + $0x78] sm:$0xff]
  %v12228 = vld [vmem:[#allocation3 + $0x80] sm:$0xff]
  %v12229 = vld [vmem:[#allocation3 + $0x88] sm:$0xff]
  %v12230 = vld [vmem:[#allocation3 + $0x90] sm:$0xff]
  %v12231 = vld [vmem:[#allocation3 + $0x98] sm:$0xff]
  %v12232 = vld [vmem:[#allocation3 + $0xa0] sm:$0xff]
  %v12233 = vld [vmem:[#allocation3 + $0xa8] sm:$0xff]
  %v12234 = vld [vmem:[#allocation3 + $0xb0] sm:$0xff]
  %v12235 = vld [vmem:[#allocation3 + $0xb8] sm:$0xff]
  %v12236 = vld [vmem:[#allocation3 + $0xc0] sm:$0xff]
  %v12237 = vld [vmem:[#allocation3 + $0xc8] sm:$0xff]
  %v12238 = vld [vmem:[#allocation3 + $0xd0] sm:$0xff]
  %v12239 = vld [vmem:[#allocation3 + $0xd8] sm:$0xff]
  %v12240 = vld [vmem:[#allocation3 + $0xe0] sm:$0xff]
  %v12241 = vld [vmem:[#allocation3 + $0xe8] sm:$0xff]
  %v12242 = vld [vmem:[#allocation3 + $0xf0] sm:$0xff]
  %v12243 = vld [vmem:[#allocation3 + $0xf8] sm:$0xff]
  %v12244 = vld [vmem:[%s4] sm:$0x1]
  %v12246 = vlaneseq
  %v12247 = vshrl.u32 %v12246, 7
  %v12248 = vsub.s32 0, %v12247
  %v12249 = vrot.slane %v12244, %v12248
  %v12251 = vadd.f32 %v12212, %v12249
  %v12252 = vadd.f32 %v12213, %v12249
  %v12253 = vadd.f32 %v12214, %v12249
  %v12254 = vadd.f32 %v12215, %v12249
  %v12255 = vadd.f32 %v12216, %v12249
  %v12256 = vadd.f32 %v12217, %v12249
  %v12257 = vadd.f32 %v12218, %v12249
  %v12258 = vadd.f32 %v12219, %v12249
  %v12259 = vadd.f32 %v12220, %v12249
  %v12260 = vadd.f32 %v12221, %v12249
  %v12261 = vadd.f32 %v12222, %v12249
  %v12262 = vadd.f32 %v12223, %v12249
  %v12263 = vadd.f32 %v12224, %v12249
  %v12264 = vadd.f32 %v12225, %v12249
  %v12265 = vadd.f32 %v12226, %v12249
  %v12266 = vadd.f32 %v12227, %v12249
  %v12267 = vadd.f32 %v12228, %v12249
  %v12268 = vadd.f32 %v12229, %v12249
  %v12269 = vadd.f32 %v12230, %v12249
  %v12270 = vadd.f32 %v12231, %v12249
  %v12271 = vadd.f32 %v12232, %v12249
  %v12272 = vadd.f32 %v12233, %v12249
  %v12273 = vadd.f32 %v12234, %v12249
  %v12274 = vadd.f32 %v12235, %v12249
  %v12275 = vadd.f32 %v12236, %v12249
  %v12276 = vadd.f32 %v12237, %v12249
  %v12277 = vadd.f32 %v12238, %v12249
  %v12278 = vadd.f32 %v12239, %v12249
  %v12279 = vadd.f32 %v12240, %v12249
  %v12280 = vadd.f32 %v12241, %v12249
  %v12281 = vadd.f32 %v12242, %v12249
  %v12282 = vadd.f32 %v12243, %v12249
  %v12283 = vmax.f32 %v12251, 0.0
  %v12284 = vmax.f32 %v12252, 0.0
  %v12285 = vmax.f32 %v12253, 0.0
  %v12286 = vmax.f32 %v12254, 0.0
  %v12287 = vmax.f32 %v12255, 0.0
  %v12288 = vmax.f32 %v12256, 0.0
  %v12289 = vmax.f32 %v12257, 0.0
  %v12290 = vmax.f32 %v12258, 0.0
  %v12291 = vmax.f32 %v12259, 0.0
  %v12292 = vmax.f32 %v12260, 0.0
  %v12293 = vmax.f32 %v12261, 0.0
  %v12294 = vmax.f32 %v12262, 0.0
  %v12295 = vmax.f32 %v12263, 0.0
  %v12296 = vmax.f32 %v12264, 0.0
  %v12297 = vmax.f32 %v12265, 0.0
  %v12298 = vmax.f32 %v12266, 0.0
  %v12299 = vmax.f32 %v12267, 0.0
  %v12300 = vmax.f32 %v12268, 0.0
  %v12301 = vmax.f32 %v12269, 0.0
  %v12302 = vmax.f32 %v12270, 0.0
  %v12303 = vmax.f32 %v12271, 0.0
  %v12304 = vmax.f32 %v12272, 0.0
  %v12305 = vmax.f32 %v12273, 0.0
  %v12306 = vmax.f32 %v12274, 0.0
  %v12307 = vmax.f32 %v12275, 0.0
  %v12308 = vmax.f32 %v12276, 0.0
  %v12309 = vmax.f32 %v12277, 0.0
  %v12310 = vmax.f32 %v12278, 0.0
  %v12311 = vmax.f32 %v12279, 0.0
  %v12312 = vmax.f32 %v12280, 0.0
  %v12313 = vmax.f32 %v12281, 0.0
  %v12314 = vmax.f32 %v12282, 0.0
  %v12315 = vpack.c.bf16 %v12284, %v12283
  %v12316 = vpack.c.bf16 %v12286, %v12285
  %v12317 = vpack.c.bf16 %v12288, %v12287
  %v12318 = vpack.c.bf16 %v12290, %v12289
  %v12319 = vpack.c.bf16 %v12292, %v12291
  %v12320 = vpack.c.bf16 %v12294, %v12293
  %v12321 = vpack.c.bf16 %v12296, %v12295
  %v12322 = vpack.c.bf16 %v12298, %v12297
  %v12323 = vpack.c.bf16 %v12300, %v12299
  %v12324 = vpack.c.bf16 %v12302, %v12301
  %v12325 = vpack.c.bf16 %v12304, %v12303
  %v12326 = vpack.c.bf16 %v12306, %v12305
  %v12327 = vpack.c.bf16 %v12308, %v12307
  %v12328 = vpack.c.bf16 %v12310, %v12309
  %v12329 = vpack.c.bf16 %v12312, %v12311
  %v12330 = vpack.c.bf16 %v12314, %v12313
  %v12347 = vunpack.c.l.b16 %v12315
  %v12348 = vunpack.c.h.b16 %v12315
  %v12349 = vunpack.c.l.b16 %v12316
  %v12350 = vunpack.c.h.b16 %v12316
  %v12351 = vunpack.c.l.b16 %v12317
  %v12352 = vunpack.c.h.b16 %v12317
  %v12353 = vunpack.c.l.b16 %v12318
  %v12354 = vunpack.c.h.b16 %v12318
  %v12355 = vunpack.c.l.b16 %v12319
  %v12356 = vunpack.c.h.b16 %v12319
  %v12357 = vunpack.c.l.b16 %v12320
  %v12358 = vunpack.c.h.b16 %v12320
  %v12359 = vunpack.c.l.b16 %v12321
  %v12360 = vunpack.c.h.b16 %v12321
  %v12361 = vunpack.c.l.b16 %v12322
  %v12362 = vunpack.c.h.b16 %v12322
  %v12363 = vunpack.c.l.b16 %v12323
  %v12364 = vunpack.c.h.b16 %v12323
  %v12365 = vunpack.c.l.b16 %v12324
  %v12366 = vunpack.c.h.b16 %v12324
  %v12367 = vunpack.c.l.b16 %v12325
  %v12368 = vunpack.c.h.b16 %v12325
  %v12369 = vunpack.c.l.b16 %v12326
  %v12370 = vunpack.c.h.b16 %v12326
  %v12371 = vunpack.c.l.b16 %v12327
  %v12372 = vunpack.c.h.b16 %v12327
  %v12373 = vunpack.c.l.b16 %v12328
  %v12374 = vunpack.c.h.b16 %v12328
  %v12375 = vunpack.c.l.b16 %v12329
  %v12376 = vunpack.c.h.b16 %v12329
  %v12377 = vunpack.c.l.b16 %v12330
  %v12378 = vunpack.c.h.b16 %v12330
  %v12379 = vpack.c.b16 %v12347, %v12347
  %v12380 = vpack.c.b16 %v12348, %v12348
  %v12381 = vpack.c.b16 %v12349, %v12349
  %v12382 = vpack.c.b16 %v12350, %v12350
  %v12383 = vpack.c.b16 %v12351, %v12351
  %v12384 = vpack.c.b16 %v12352, %v12352
  %v12385 = vpack.c.b16 %v12353, %v12353
  %v12386 = vpack.c.b16 %v12354, %v12354
  %v12387 = vpack.c.b16 %v12355, %v12355
  %v12388 = vpack.c.b16 %v12356, %v12356
  %v12389 = vpack.c.b16 %v12357, %v12357
  %v12390 = vpack.c.b16 %v12358, %v12358
  %v12391 = vpack.c.b16 %v12359, %v12359
  %v12392 = vpack.c.b16 %v12360, %v12360
  %v12393 = vpack.c.b16 %v12361, %v12361
  %v12394 = vpack.c.b16 %v12362, %v12362
  %v12395 = vpack.c.b16 %v12363, %v12363
  %v12396 = vpack.c.b16 %v12364, %v12364
  %v12397 = vpack.c.b16 %v12365, %v12365
  %v12398 = vpack.c.b16 %v12366, %v12366
  %v12399 = vpack.c.b16 %v12367, %v12367
  %v12400 = vpack.c.b16 %v12368, %v12368
  %v12401 = vpack.c.b16 %v12369, %v12369
  %v12402 = vpack.c.b16 %v12370, %v12370
  %v12403 = vpack.c.b16 %v12371, %v12371
  %v12404 = vpack.c.b16 %v12372, %v12372
  %v12405 = vpack.c.b16 %v12373, %v12373
  %v12406 = vpack.c.b16 %v12374, %v12374
  %v12407 = vpack.c.b16 %v12375, %v12375
  %v12408 = vpack.c.b16 %v12376, %v12376
  %v12409 = vpack.c.b16 %v12377, %v12377
  %v12410 = vpack.c.b16 %v12378, %v12378
  %12443 = vst [vmem:[%s5] sm:$0xf] %v12379
  %12444 = vst [vmem:[%s5 + $0x4] sm:$0xf] %v12380
  %12445 = vst [vmem:[%s5 + $0x8] sm:$0xf] %v12381
  %12446 = vst [vmem:[%s5 + $0xc] sm:$0xf] %v12382
  %12447 = vst [vmem:[%s5 + $0x10] sm:$0xf] %v12383
  %12448 = vst [vmem:[%s5 + $0x14] sm:$0xf] %v12384
  %12449 = vst [vmem:[%s5 + $0x18] sm:$0xf] %v12385
  %12450 = vst [vmem:[%s5 + $0x1c] sm:$0xf] %v12386
  %12451 = vst [vmem:[%s5 + $0x20] sm:$0xf] %v12387
  %12452 = vst [vmem:[%s5 + $0x24] sm:$0xf] %v12388
  %12453 = vst [vmem:[%s5 + $0x28] sm:$0xf] %v12389
  %12454 = vst [vmem:[%s5 + $0x2c] sm:$0xf] %v12390
  %12455 = vst [vmem:[%s5 + $0x30] sm:$0xf] %v12391
  %12456 = vst [vmem:[%s5 + $0x34] sm:$0xf] %v12392
  %12457 = vst [vmem:[%s5 + $0x38] sm:$0xf] %v12393
  %12458 = vst [vmem:[%s5 + $0x3c] sm:$0xf] %v12394
  %12459 = vst [vmem:[%s5 + $0x40] sm:$0xf] %v12395
  %12460 = vst [vmem:[%s5 + $0x44] sm:$0xf] %v12396
  %12461 = vst [vmem:[%s5 + $0x48] sm:$0xf] %v12397
  %12462 = vst [vmem:[%s5 + $0x4c] sm:$0xf] %v12398
  %12463 = vst [vmem:[%s5 + $0x50] sm:$0xf] %v12399
  %12464 = vst [vmem:[%s5 + $0x54] sm:$0xf] %v12400
  %12465 = vst [vmem:[%s5 + $0x58] sm:$0xf] %v12401
  %12466 = vst [vmem:[%s5 + $0x5c] sm:$0xf] %v12402
  %12467 = vst [vmem:[%s5 + $0x60] sm:$0xf] %v12403
  %12468 = vst [vmem:[%s5 + $0x64] sm:$0xf] %v12404
  %12469 = vst [vmem:[%s5 + $0x68] sm:$0xf] %v12405
  %12470 = vst [vmem:[%s5 + $0x6c] sm:$0xf] %v12406
  %12471 = vst [vmem:[%s5 + $0x70] sm:$0xf] %v12407
  %12472 = vst [vmem:[%s5 + $0x74] sm:$0xf] %v12408
  %12473 = vst [vmem:[%s5 + $0x78] sm:$0xf] %v12409
  %12474 = vst [vmem:[%s5 + $0x7c] sm:$0xf] %v12410
  // Predicated region
  $region22: #{_fudet_forward_core.1} parent=0 // pred_check
    _
  $region23: #{_fudet_forward_core.1} parent=0 // pred_check_branch
    %12476 = sbr.rel (0) target = $region25
  $region24: #{_fudet_forward_core.1} parent=0 // pred_region
    _
  $region25: #{_fudet_forward_core.1} parent=0 // pred_fallthru
    _
  // Predicated region
  $region26: #{_fudet_forward_core.1} parent=0 // pred_check
    _
  $region27: #{_fudet_forward_core.1} parent=0 // pred_check_branch
    %12478 = sbr.rel (0) target = $region29
  $region28: #{_fudet_forward_core.1} parent=0 // pred_region
    _
  $region29: #{_fudet_forward_core.1} parent=0 // pred_fallthru
    _

</llo_original>
